<compile_context>
chip_gen: v6e
topology: v6e:2x2x1
jax: 0.10.0
libtpu: 0.0.40
codegen_flags: <defaults>
</compile_context>

<pallas_src>
import jax
import jax.numpy as jnp
import numpy as np
from jax import lax
from jax.experimental import pallas as pl
from jax.experimental.pallas import tpu as pltpu

T = 100
STATE_DIM = 4
ACTION_DIM = 2
ACT_LO = STATE_DIM                 # action lanes [4, 6)
ACT_HI = STATE_DIM + ACTION_DIM
HOM_LANE = 6                       # homogeneous "1" lane (carries the bias)
ROW_PAD = 8                        # sublane tile
LANE = 128                         # lane tile


def rollout_kernel(state_ref, wc_ref, wdyn_ref, s_out_ref, err_ref):
    # Weights stay resident in VMEM for the whole rollout (bf16 tiles).
    wc = wc_ref[...]
    wdyn = wdyn_ref[...]

    lane = lax.broadcasted_iota(jnp.int32, (ROW_PAD, LANE), 1)
    row = lax.broadcasted_iota(jnp.int32, (ROW_PAD, LANE), 0)
    in_row0 = row == 0

    # Build the padded (8,128) state tile in-kernel from the 4 SMEM scalars:
    # row 0 = [s0 s1 s2 s3 | 0 0 | 1 | 0...], rows 1..7 = 0.
    s = jnp.zeros((ROW_PAD, LANE), jnp.float32)
    for j in range(STATE_DIM):
        s = jnp.where(in_row0 & (lane == j), state_ref[j], s)
    s = jnp.where(in_row0 & (lane == HOM_LANE), 1.0, s)

    # Fully-unrolled serial recurrence: 100 steps x 2 single-pass bf16 MXU
    # matmuls with f32 accumulation.  State / tanh / add stay in f32.
    for _ in range(T):
        # controller: action = tanh(state @ Wc + bc)   (bias via homogeneous lane)
        act = jnp.tanh(
            jnp.dot(s.astype(jnp.bfloat16), wc,
                    preferred_element_type=jnp.float32))
        # dynamics: next = state @ A + action @ B, fused into one matmul on
        # the combined row [state | action | 0 | 1 | 0...].
        s = jnp.dot((s + act).astype(jnp.bfloat16), wdyn,
                    preferred_element_type=jnp.float32)

    s_out_ref[...] = s

    # error(state) = sum of squares of the 4 state entries, reduced in-kernel.
    mask = in_row0 & (lane < STATE_DIM)
    sq = jnp.where(mask, s, 0.0)
    err_ref[0, 0] = jnp.sum(sq * sq)

    # TODO(synk): the module's action_trajectory / state_trajectory Python
    # side-lists (not part of the returned value) are not materialized; they
    # would need a (T, ...) per-step output and change the I/O profile.


def prepare_weights(Wc, bc, A, B):
    """Pad/fuse the weights ONCE into two 128x128 bf16 tiles; reuse across calls."""
    wc_p = (jnp.zeros((LANE, LANE), jnp.float32)
            .at[:STATE_DIM, ACT_LO:ACT_HI].set(Wc)
            .at[HOM_LANE, ACT_LO:ACT_HI].set(bc))
    wdyn_p = (jnp.zeros((LANE, LANE), jnp.float32)
              .at[:STATE_DIM, :STATE_DIM].set(A)
              .at[ACT_LO:ACT_HI, :STATE_DIM].set(B)
              .at[HOM_LANE, HOM_LANE].set(1.0))
    return wc_p.astype(jnp.bfloat16), wdyn_p.astype(jnp.bfloat16)


@jax.jit
def simulate_pallas(state, wc_p, wdyn_p):
    """Single pallas_call: 4-scalar state in SMEM, weights in VMEM,
    final-state tile (VMEM) and error scalar ((1,1) SMEM) out."""
    vmem = pl.BlockSpec(memory_space=pltpu.MemorySpace.VMEM)
    smem = pl.BlockSpec(memory_space=pltpu.MemorySpace.SMEM)
    s_out, err = pl.pallas_call(
        rollout_kernel,
        out_shape=(jax.ShapeDtypeStruct((ROW_PAD, LANE), jnp.float32),
                   jax.ShapeDtypeStruct((1, 1), jnp.float32)),
        in_specs=[smem, vmem, vmem],
        out_specs=(vmem, smem),
    )(state, wc_p, wdyn_p)
    return err, s_out


@jax.jit
def simulate_reference_f32(state, Wc, bc, A, B):
    """Plain-JAX f32 reference mirroring the PyTorch forward loop."""
    s = state
    for _ in range(T):
        a = jnp.tanh(jnp.dot(s, Wc, precision=lax.Precision.HIGHEST) + bc)
        s = (jnp.dot(s, A, precision=lax.Precision.HIGHEST)
             + jnp.dot(a, B, precision=lax.Precision.HIGHEST))
    return jnp.sum(s ** 2), s


@jax.jit
def simulate_reference_bf16(state, wc_p, wdyn_p):
    """Plain-JAX mirror of the exact kernel math (bf16 operands, f32 accumulate)."""
    s = (jnp.zeros((ROW_PAD, LANE), jnp.float32)
         .at[0, :STATE_DIM].set(state)
         .at[0, HOM_LANE].set(1.0))
    for _ in range(T):
        act = jnp.tanh(jnp.dot(s.astype(jnp.bfloat16), wc_p,
                               preferred_element_type=jnp.float32))
        s = jnp.dot((s + act).astype(jnp.bfloat16), wdyn_p,
                    preferred_element_type=jnp.float32)
    sf = s[0, :STATE_DIM]
    return jnp.sum(sf ** 2), sf


if __name__ == "__main__":
    # Deterministic parameters / inputs.
    key = jax.random.PRNGKey(0)
    k_wc, k_bc, k_a, k_b = jax.random.split(key, 4)
    Wc = 0.1 * jax.random.normal(k_wc, (STATE_DIM, ACTION_DIM), jnp.float32)
    bc = 0.1 * jax.random.normal(k_bc, (ACTION_DIM,), jnp.float32)
    A = 0.1 * jax.random.normal(k_a, (STATE_DIM, STATE_DIM), jnp.float32)
    B = 0.1 * jax.random.normal(k_b, (ACTION_DIM, STATE_DIM), jnp.float32)

    # Pad / fuse weights once (hoisted out of the per-call path).
    wc_p, wdyn_p = prepare_weights(Wc, bc, A, B)
    wc_p = jax.block_until_ready(wc_p)
    wdyn_p = jax.block_until_ready(wdyn_p)

    # Simulation.initialize_state()
    state0 = jnp.array([0.1, 1.0, 0.0, 0.0], dtype=jnp.float32)

    err2d, s_tile = simulate_pallas(state0, wc_p, wdyn_p)
    err2d = jax.block_until_ready(err2d)
    s_tile = jax.block_until_ready(s_tile)
    err = float(np.asarray(err2d)[0, 0])
    s_final = np.asarray(s_tile)[0, :STATE_DIM]

    # 1) Tight check against a plain-JAX mirror of the exact kernel math.
    err_bf, s_bf = simulate_reference_bf16(state0, wc_p, wdyn_p)
    assert np.allclose(s_final, np.asarray(s_bf), rtol=1e-3, atol=1e-5), (s_final, s_bf)
    assert np.allclose(err, float(err_bf), rtol=1e-3, atol=1e-6), (err, err_bf)

    # 2) Loose check against the f32 reference (bf16 MXU operands drift ~1e-2
    #    relative over the 100-step contracting chain).
    err_ref, s_ref = simulate_reference_f32(state0, Wc, bc, A, B)
    assert np.allclose(s_final, np.asarray(s_ref), rtol=5e-2, atol=1e-4), (s_final, s_ref)
    assert np.allclose(err, float(err_ref), rtol=1e-1, atol=1e-5), (err, err_ref)

    print("KERNEL_OK")
</pallas_src>

<mosaic_0001>
module attributes {stable_mosaic.version = 11 : i64} {
  func.func @rollout_kernel(%arg0: memref<4xf32, #tpu.memory_space<smem>>, %arg1: memref<128x128xbf16, #tpu.memory_space<vmem>>, %arg2: memref<128x128xbf16, #tpu.memory_space<vmem>>, %arg3: memref<8x128xf32, #tpu.memory_space<vmem>>, %arg4: memref<1x1xf32, #tpu.memory_space<smem>>) attributes {dimension_semantics = [], scalar_prefetch = 0 : i64, scratch_operands = 0 : i64, tpu.core_type = #tpu.core_type<tc>} {
    %c0 = arith.constant 0 : index
    %c0_0 = arith.constant 0 : index
    %0 = vector.load %arg1[%c0, %c0_0] : memref<128x128xbf16, #tpu.memory_space<vmem>>, vector<128x128xbf16>
    %c0_1 = arith.constant 0 : index
    %c0_2 = arith.constant 0 : index
    %1 = vector.load %arg2[%c0_1, %c0_2] : memref<128x128xbf16, #tpu.memory_space<vmem>>, vector<128x128xbf16>
    %2 = tpu.iota {dimensions = array<i32: 1>} : vector<8x128xi32>
    %3 = tpu.iota {dimensions = array<i32: 0>} : vector<8x128xi32>
    %c0_i32 = arith.constant 0 : i32
    %4 = vector.broadcast %c0_i32 : i32 to vector<8x128xi32>
    %5 = arith.cmpi eq, %3, %4 : vector<8x128xi32>
    %cst = arith.constant 0.000000e+00 : f32
    %6 = vector.broadcast %cst : f32 to vector<8x128xf32>
    %c0_i32_3 = arith.constant 0 : i32
    %7 = vector.broadcast %c0_i32_3 : i32 to vector<8x128xi32>
    %8 = arith.cmpi eq, %2, %7 : vector<8x128xi32>
    %9 = arith.andi %5, %8 : vector<8x128xi1>
    %c0_4 = arith.constant 0 : index
    %10 = memref.load %arg0[%c0_4] : memref<4xf32, #tpu.memory_space<smem>>
    %11 = vector.broadcast %10 : f32 to vector<8x128xf32>
    %12 = arith.select %9, %11, %6 : vector<8x128xi1>, vector<8x128xf32>
    %c1_i32 = arith.constant 1 : i32
    %13 = vector.broadcast %c1_i32 : i32 to vector<8x128xi32>
    %14 = arith.cmpi eq, %2, %13 : vector<8x128xi32>
    %15 = arith.andi %5, %14 : vector<8x128xi1>
    %c1 = arith.constant 1 : index
    %16 = memref.load %arg0[%c1] : memref<4xf32, #tpu.memory_space<smem>>
    %17 = vector.broadcast %16 : f32 to vector<8x128xf32>
    %18 = arith.select %15, %17, %12 : vector<8x128xi1>, vector<8x128xf32>
    %c2_i32 = arith.constant 2 : i32
    %19 = vector.broadcast %c2_i32 : i32 to vector<8x128xi32>
    %20 = arith.cmpi eq, %2, %19 : vector<8x128xi32>
    %21 = arith.andi %5, %20 : vector<8x128xi1>
    %c2 = arith.constant 2 : index
    %22 = memref.load %arg0[%c2] : memref<4xf32, #tpu.memory_space<smem>>
    %23 = vector.broadcast %22 : f32 to vector<8x128xf32>
    %24 = arith.select %21, %23, %18 : vector<8x128xi1>, vector<8x128xf32>
    %c3_i32 = arith.constant 3 : i32
    %25 = vector.broadcast %c3_i32 : i32 to vector<8x128xi32>
    %26 = arith.cmpi eq, %2, %25 : vector<8x128xi32>
    %27 = arith.andi %5, %26 : vector<8x128xi1>
    %c3 = arith.constant 3 : index
    %28 = memref.load %arg0[%c3] : memref<4xf32, #tpu.memory_space<smem>>
    %29 = vector.broadcast %28 : f32 to vector<8x128xf32>
    %30 = arith.select %27, %29, %24 : vector<8x128xi1>, vector<8x128xf32>
    %c6_i32 = arith.constant 6 : i32
    %31 = vector.broadcast %c6_i32 : i32 to vector<8x128xi32>
    %32 = arith.cmpi eq, %2, %31 : vector<8x128xi32>
    %33 = arith.andi %5, %32 : vector<8x128xi1>
    %cst_5 = arith.constant 1.000000e+00 : f32
    %34 = vector.broadcast %cst_5 : f32 to vector<8x128xf32>
    %35 = arith.select %33, %34, %30 : vector<8x128xi1>, vector<8x128xf32>
    %36 = arith.truncf %35 : vector<8x128xf32> to vector<8x128xbf16>
    %cst_6 = arith.constant dense<0.000000e+00> : vector<8x128xf32>
    %37 = tpu.matmul %36, %0, %cst_6 {dimension_numbers = #tpu.dot_dimension_numbers<[1], [0], [0], [1], [0, 0, 1, 1], [], []>} : vector<8x128xbf16>, vector<128x128xbf16>, vector<8x128xf32> -> vector<8x128xf32>
    %38 = math.tanh %37 : vector<8x128xf32>
    %39 = arith.addf %35, %38 : vector<8x128xf32>
    %40 = arith.truncf %39 : vector<8x128xf32> to vector<8x128xbf16>
    %cst_7 = arith.constant dense<0.000000e+00> : vector<8x128xf32>
    %41 = tpu.matmul %40, %1, %cst_7 {dimension_numbers = #tpu.dot_dimension_numbers<[1], [0], [0], [1], [0, 0, 1, 1], [], []>} : vector<8x128xbf16>, vector<128x128xbf16>, vector<8x128xf32> -> vector<8x128xf32>
    %42 = arith.truncf %41 : vector<8x128xf32> to vector<8x128xbf16>
    %cst_8 = arith.constant dense<0.000000e+00> : vector<8x128xf32>
    %43 = tpu.matmul %42, %0, %cst_8 {dimension_numbers = #tpu.dot_dimension_numbers<[1], [0], [0], [1], [0, 0, 1, 1], [], []>} : vector<8x128xbf16>, vector<128x128xbf16>, vector<8x128xf32> -> vector<8x128xf32>
    %44 = math.tanh %43 : vector<8x128xf32>
    %45 = arith.addf %41, %44 : vector<8x128xf32>
    %46 = arith.truncf %45 : vector<8x128xf32> to vector<8x128xbf16>
    %cst_9 = arith.constant dense<0.000000e+00> : vector<8x128xf32>
    %47 = tpu.matmul %46, %1, %cst_9 {dimension_numbers = #tpu.dot_dimension_numbers<[1], [0], [0], [1], [0, 0, 1, 1], [], []>} : vector<8x128xbf16>, vector<128x128xbf16>, vector<8x128xf32> -> vector<8x128xf32>
    %48 = arith.truncf %47 : vector<8x128xf32> to vector<8x128xbf16>
    %cst_10 = arith.constant dense<0.000000e+00> : vector<8x128xf32>
    %49 = tpu.matmul %48, %0, %cst_10 {dimension_numbers = #tpu.dot_dimension_numbers<[1], [0], [0], [1], [0, 0, 1, 1], [], []>} : vector<8x128xbf16>, vector<128x128xbf16>, vector<8x128xf32> -> vector<8x128xf32>
    %50 = math.tanh %49 : vector<8x128xf32>
    %51 = arith.addf %47, %50 : vector<8x128xf32>
    %52 = arith.truncf %51 : vector<8x128xf32> to vector<8x128xbf16>
    %cst_11 = arith.constant dense<0.000000e+00> : vector<8x128xf32>
    %53 = tpu.matmul %52, %1, %cst_11 {dimension_numbers = #tpu.dot_dimension_numbers<[1], [0], [0], [1], [0, 0, 1, 1], [], []>} : vector<8x128xbf16>, vector<128x128xbf16>, vector<8x128xf32> -> vector<8x128xf32>
    %54 = arith.truncf %53 : vector<8x128xf32> to vector<8x128xbf16>
    %cst_12 = arith.constant dense<0.000000e+00> : vector<8x128xf32>
    %55 = tpu.matmul %54, %0, %cst_12 {dimension_numbers = #tpu.dot_dimension_numbers<[1], [0], [0], [1], [0, 0, 1, 1], [], []>} : vector<8x128xbf16>, vector<128x128xbf16>, vector<8x128xf32> -> vector<8x128xf32>
    %56 = math.tanh %55 : vector<8x128xf32>
    %57 = arith.addf %53, %56 : vector<8x128xf32>
    %58 = arith.truncf %57 : vector<8x128xf32> to vector<8x128xbf16>
    %cst_13 = arith.constant dense<0.000000e+00> : vector<8x128xf32>
    %59 = tpu.matmul %58, %1, %cst_13 {dimension_numbers = #tpu.dot_dimension_numbers<[1], [0], [0], [1], [0, 0, 1, 1], [], []>} : vector<8x128xbf16>, vector<128x128xbf16>, vector<8x128xf32> -> vector<8x128xf32>
    %60 = arith.truncf %59 : vector<8x128xf32> to vector<8x128xbf16>
    %cst_14 = arith.constant dense<0.000000e+00> : vector<8x128xf32>
    %61 = tpu.matmul %60, %0, %cst_14 {dimension_numbers = #tpu.dot_dimension_numbers<[1], [0], [0], [1], [0, 0, 1, 1], [], []>} : vector<8x128xbf16>, vector<128x128xbf16>, vector<8x128xf32> -> vector<8x128xf32>
    %62 = math.tanh %61 : vector<8x128xf32>
    %63 = arith.addf %59, %62 : vector<8x128xf32>
    %64 = arith.truncf %63 : vector<8x128xf32> to vector<8x128xbf16>
    %cst_15 = arith.constant dense<0.000000e+00> : vector<8x128xf32>
    %65 = tpu.matmul %64, %1, %cst_15 {dimension_numbers = #tpu.dot_dimension_numbers<[1], [0], [0], [1], [0, 0, 1, 1], [], []>} : vector<8x128xbf16>, vector<128x128xbf16>, vector<8x128xf32> -> vector<8x128xf32>
    %66 = arith.truncf %65 : vector<8x128xf32> to vector<8x128xbf16>
    %cst_16 = arith.constant dense<0.000000e+00> : vector<8x128xf32>
    %67 = tpu.matmul %66, %0, %cst_16 {dimension_numbers = #tpu.dot_dimension_numbers<[1], [0], [0], [1], [0, 0, 1, 1], [], []>} : vector<8x128xbf16>, vector<128x128xbf16>, vector<8x128xf32> -> vector<8x128xf32>
    %68 = math.tanh %67 : vector<8x128xf32>
    %69 = arith.addf %65, %68 : vector<8x128xf32>
    %70 = arith.truncf %69 : vector<8x128xf32> to vector<8x128xbf16>
    %cst_17 = arith.constant dense<0.000000e+00> : vector<8x128xf32>
    %71 = tpu.matmul %70, %1, %cst_17 {dimension_numbers = #tpu.dot_dimension_numbers<[1], [0], [0], [1], [0, 0, 1, 1], [], []>} : vector<8x128xbf16>, vector<128x128xbf16>, vector<8x128xf32> -> vector<8x128xf32>
    %72 = arith.truncf %71 : vector<8x128xf32> to vector<8x128xbf16>
    %cst_18 = arith.constant dense<0.000000e+00> : vector<8x128xf32>
    %73 = tpu.matmul %72, %0, %cst_18 {dimension_numbers = #tpu.dot_dimension_numbers<[1], [0], [0], [1], [0, 0, 1, 1], [], []>} : vector<8x128xbf16>, vector<128x128xbf16>, vector<8x128xf32> -> vector<8x128xf32>
    %74 = math.tanh %73 : vector<8x128xf32>
    %75 = arith.addf %71, %74 : vector<8x128xf32>
    %76 = arith.truncf %75 : vector<8x128xf32> to vector<8x128xbf16>
    %cst_19 = arith.constant dense<0.000000e+00> : vector<8x128xf32>
    %77 = tpu.matmul %76, %1, %cst_19 {dimension_numbers = #tpu.dot_dimension_numbers<[1], [0], [0], [1], [0, 0, 1, 1], [], []>} : vector<8x128xbf16>, vector<128x128xbf16>, vector<8x128xf32> -> vector<8x128xf32>
    %78 = arith.truncf %77 : vector<8x128xf32> to vector<8x128xbf16>
    %cst_20 = arith.constant dense<0.000000e+00> : vector<8x128xf32>
    %79 = tpu.matmul %78, %0, %cst_20 {dimension_numbers = #tpu.dot_dimension_numbers<[1], [0], [0], [1], [0, 0, 1, 1], [], []>} : vector<8x128xbf16>, vector<128x128xbf16>, vector<8x128xf32> -> vector<8x128xf32>
    %80 = math.tanh %79 : vector<8x128xf32>
    %81 = arith.addf %77, %80 : vector<8x128xf32>
    %82 = arith.truncf %81 : vector<8x128xf32> to vector<8x128xbf16>
    %cst_21 = arith.constant dense<0.000000e+00> : vector<8x128xf32>
    %83 = tpu.matmul %82, %1, %cst_21 {dimension_numbers = #tpu.dot_dimension_numbers<[1], [0], [0], [1], [0, 0, 1, 1], [], []>} : vector<8x128xbf16>, vector<128x128xbf16>, vector<8x128xf32> -> vector<8x128xf32>
    %84 = arith.truncf %83 : vector<8x128xf32> to vector<8x128xbf16>
    %cst_22 = arith.constant dense<0.000000e+00> : vector<8x128xf32>
    %85 = tpu.matmul %84, %0, %cst_22 {dimension_numbers = #tpu.dot_dimension_numbers<[1], [0], [0], [1], [0, 0, 1, 1], [], []>} : vector<8x128xbf16>, vector<128x128xbf16>, vector<8x128xf32> -> vector<8x128xf32>
    %86 = math.tanh %85 : vector<8x128xf32>
    %87 = arith.addf %83, %86 : vector<8x128xf32>
    %88 = arith.truncf %87 : vector<8x128xf32> to vector<8x128xbf16>
    %cst_23 = arith.constant dense<0.000000e+00> : vector<8x128xf32>
    %89 = tpu.matmul %88, %1, %cst_23 {dimension_numbers = #tpu.dot_dimension_numbers<[1], [0], [0], [1], [0, 0, 1, 1], [], []>} : vector<8x128xbf16>, vector<128x128xbf16>, vector<8x128xf32> -> vector<8x128xf32>
    %90 = arith.truncf %89 : vector<8x128xf32> to vector<8x128xbf16>
    %cst_24 = arith.constant dense<0.000000e+00> : vector<8x128xf32>
    %91 = tpu.matmul %90, %0, %cst_24 {dimension_numbers = #tpu.dot_dimension_numbers<[1], [0], [0], [1], [0, 0, 1, 1], [], []>} : vector<8x128xbf16>, vector<128x128xbf16>, vector<8x128xf32> -> vector<8x128xf32>
    %92 = math.tanh %91 : vector<8x128xf32>
    %93 = arith.addf %89, %92 : vector<8x128xf32>
    %94 = arith.truncf %93 : vector<8x128xf32> to vector<8x128xbf16>
    %cst_25 = arith.constant dense<0.000000e+00> : vector<8x128xf32>
    %95 = tpu.matmul %94, %1, %cst_25 {dimension_numbers = #tpu.dot_dimension_numbers<[1], [0], [0], [1], [0, 0, 1, 1], [], []>} : vector<8x128xbf16>, vector<128x128xbf16>, vector<8x128xf32> -> vector<8x128xf32>
    %96 = arith.truncf %95 : vector<8x128xf32> to vector<8x128xbf16>
    %cst_26 = arith.constant dense<0.000000e+00> : vector<8x128xf32>
    %97 = tpu.matmul %96, %0, %cst_26 {dimension_numbers = #tpu.dot_dimension_numbers<[1], [0], [0], [1], [0, 0, 1, 1], [], []>} : vector<8x128xbf16>, vector<128x128xbf16>, vector<8x128xf32> -> vector<8x128xf32>
    %98 = math.tanh %97 : vector<8x128xf32>
    %99 = arith.addf %95, %98 : vector<8x128xf32>
    %100 = arith.truncf %99 : vector<8x128xf32> to vector<8x128xbf16>
    %cst_27 = arith.constant dense<0.000000e+00> : vector<8x128xf32>
    %101 = tpu.matmul %100, %1, %cst_27 {dimension_numbers = #tpu.dot_dimension_numbers<[1], [0], [0], [1], [0, 0, 1, 1], [], []>} : vector<8x128xbf16>, vector<128x128xbf16>, vector<8x128xf32> -> vector<8x128xf32>
    %102 = arith.truncf %101 : vector<8x128xf32> to vector<8x128xbf16>
    %cst_28 = arith.constant dense<0.000000e+00> : vector<8x128xf32>
    %103 = tpu.matmul %102, %0, %cst_28 {dimension_numbers = #tpu.dot_dimension_numbers<[1], [0], [0], [1], [0, 0, 1, 1], [], []>} : vector<8x128xbf16>, vector<128x128xbf16>, vector<8x128xf32> -> vector<8x128xf32>
    %104 = math.tanh %103 : vector<8x128xf32>
    %105 = arith.addf %101, %104 : vector<8x128xf32>
    %106 = arith.truncf %105 : vector<8x128xf32> to vector<8x128xbf16>
    %cst_29 = arith.constant dense<0.000000e+00> : vector<8x128xf32>
    %107 = tpu.matmul %106, %1, %cst_29 {dimension_numbers = #tpu.dot_dimension_numbers<[1], [0], [0], [1], [0, 0, 1, 1], [], []>} : vector<8x128xbf16>, vector<128x128xbf16>, vector<8x128xf32> -> vector<8x128xf32>
    %108 = arith.truncf %107 : vector<8x128xf32> to vector<8x128xbf16>
    %cst_30 = arith.constant dense<0.000000e+00> : vector<8x128xf32>
    %109 = tpu.matmul %108, %0, %cst_30 {dimension_numbers = #tpu.dot_dimension_numbers<[1], [0], [0], [1], [0, 0, 1, 1], [], []>} : vector<8x128xbf16>, vector<128x128xbf16>, vector<8x128xf32> -> vector<8x128xf32>
    %110 = math.tanh %109 : vector<8x128xf32>
    %111 = arith.addf %107, %110 : vector<8x128xf32>
    %112 = arith.truncf %111 : vector<8x128xf32> to vector<8x128xbf16>
    %cst_31 = arith.constant dense<0.000000e+00> : vector<8x128xf32>
    %113 = tpu.matmul %112, %1, %cst_31 {dimension_numbers = #tpu.dot_dimension_numbers<[1], [0], [0], [1], [0, 0, 1, 1], [], []>} : vector<8x128xbf16>, vector<128x128xbf16>, vector<8x128xf32> -> vector<8x128xf32>
    %114 = arith.truncf %113 : vector<8x128xf32> to vector<8x128xbf16>
    %cst_32 = arith.constant dense<0.000000e+00> : vector<8x128xf32>
    %115 = tpu.matmul %114, %0, %cst_32 {dimension_numbers = #tpu.dot_dimension_numbers<[1], [0], [0], [1], [0, 0, 1, 1], [], []>} : vector<8x128xbf16>, vector<128x128xbf16>, vector<8x128xf32> -> vector<8x128xf32>
    %116 = math.tanh %115 : vector<8x128xf32>
    %117 = arith.addf %113, %116 : vector<8x128xf32>
    %118 = arith.truncf %117 : vector<8x128xf32> to vector<8x128xbf16>
    %cst_33 = arith.constant dense<0.000000e+00> : vector<8x128xf32>
    %119 = tpu.matmul %118, %1, %cst_33 {dimension_numbers = #tpu.dot_dimension_numbers<[1], [0], [0], [1], [0, 0, 1, 1], [], []>} : vector<8x128xbf16>, vector<128x128xbf16>, vector<8x128xf32> -> vector<8x128xf32>
    %120 = arith.truncf %119 : vector<8x128xf32> to vector<8x128xbf16>
    %cst_34 = arith.constant dense<0.000000e+00> : vector<8x128xf32>
    %121 = tpu.matmul %120, %0, %cst_34 {dimension_numbers = #tpu.dot_dimension_numbers<[1], [0], [0], [1], [0, 0, 1, 1], [], []>} : vector<8x128xbf16>, vector<128x128xbf16>, vector<8x128xf32> -> vector<8x128xf32>
    %122 = math.tanh %121 : vector<8x128xf32>
    %123 = arith.addf %119, %122 : vector<8x128xf32>
    %124 = arith.truncf %123 : vector<8x128xf32> to vector<8x128xbf16>
    %cst_35 = arith.constant dense<0.000000e+00> : vector<8x128xf32>
    %125 = tpu.matmul %124, %1, %cst_35 {dimension_numbers = #tpu.dot_dimension_numbers<[1], [0], [0], [1], [0, 0, 1, 1], [], []>} : vector<8x128xbf16>, vector<128x128xbf16>, vector<8x128xf32> -> vector<8x128xf32>
    %126 = arith.truncf %125 : vector<8x128xf32> to vector<8x128xbf16>
    %cst_36 = arith.constant dense<0.000000e+00> : vector<8x128xf32>
    %127 = tpu.matmul %126, %0, %cst_36 {dimension_numbers = #tpu.dot_dimension_numbers<[1], [0], [0], [1], [0, 0, 1, 1], [], []>} : vector<8x128xbf16>, vector<128x128xbf16>, vector<8x128xf32> -> vector<8x128xf32>
    %128 = math.tanh %127 : vector<8x128xf32>
    %129 = arith.addf %125, %128 : vector<8x128xf32>
    %130 = arith.truncf %129 : vector<8x128xf32> to vector<8x128xbf16>
    %cst_37 = arith.constant dense<0.000000e+00> : vector<8x128xf32>
    %131 = tpu.matmul %130, %1, %cst_37 {dimension_numbers = #tpu.dot_dimension_numbers<[1], [0], [0], [1], [0, 0, 1, 1], [], []>} : vector<8x128xbf16>, vector<128x128xbf16>, vector<8x128xf32> -> vector<8x128xf32>
    %132 = arith.truncf %131 : vector<8x128xf32> to vector<8x128xbf16>
    %cst_38 = arith.constant dense<0.000000e+00> : vector<8x128xf32>
    %133 = tpu.matmul %132, %0, %cst_38 {dimension_numbers = #tpu.dot_dimension_numbers<[1], [0], [0], [1], [0, 0, 1, 1], [], []>} : vector<8x128xbf16>, vector<128x128xbf16>, vector<8x128xf32> -> vector<8x128xf32>
    %134 = math.tanh %133 : vector<8x128xf32>
    %135 = arith.addf %131, %134 : vector<8x128xf32>
    %136 = arith.truncf %135 : vector<8x128xf32> to vector<8x128xbf16>
    %cst_39 = arith.constant dense<0.000000e+00> : vector<8x128xf32>
    %137 = tpu.matmul %136, %1, %cst_39 {dimension_numbers = #tpu.dot_dimension_numbers<[1], [0], [0], [1], [0, 0, 1, 1], [], []>} : vector<8x128xbf16>, vector<128x128xbf16>, vector<8x128xf32> -> vector<8x128xf32>
    %138 = arith.truncf %137 : vector<8x128xf32> to vector<8x128xbf16>
    %cst_40 = arith.constant dense<0.000000e+00> : vector<8x128xf32>
    %139 = tpu.matmul %138, %0, %cst_40 {dimension_numbers = #tpu.dot_dimension_numbers<[1], [0], [0], [1], [0, 0, 1, 1], [], []>} : vector<8x128xbf16>, vector<128x128xbf16>, vector<8x128xf32> -> vector<8x128xf32>
    %140 = math.tanh %139 : vector<8x128xf32>
    %141 = arith.addf %137, %140 : vector<8x128xf32>
    %142 = arith.truncf %141 : vector<8x128xf32> to vector<8x128xbf16>
    %cst_41 = arith.constant dense<0.000000e+00> : vector<8x128xf32>
    %143 = tpu.matmul %142, %1, %cst_41 {dimension_numbers = #tpu.dot_dimension_numbers<[1], [0], [0], [1], [0, 0, 1, 1], [], []>} : vector<8x128xbf16>, vector<128x128xbf16>, vector<8x128xf32> -> vector<8x128xf32>
    %144 = arith.truncf %143 : vector<8x128xf32> to vector<8x128xbf16>
    %cst_42 = arith.constant dense<0.000000e+00> : vector<8x128xf32>
    %145 = tpu.matmul %144, %0, %cst_42 {dimension_numbers = #tpu.dot_dimension_numbers<[1], [0], [0], [1], [0, 0, 1, 1], [], []>} : vector<8x128xbf16>, vector<128x128xbf16>, vector<8x128xf32> -> vector<8x128xf32>
    %146 = math.tanh %145 : vector<8x128xf32>
    %147 = arith.addf %143, %146 : vector<8x128xf32>
    %148 = arith.truncf %147 : vector<8x128xf32> to vector<8x128xbf16>
    %cst_43 = arith.constant dense<0.000000e+00> : vector<8x128xf32>
    %149 = tpu.matmul %148, %1, %cst_43 {dimension_numbers = #tpu.dot_dimension_numbers<[1], [0], [0], [1], [0, 0, 1, 1], [], []>} : vector<8x128xbf16>, vector<128x128xbf16>, vector<8x128xf32> -> vector<8x128xf32>
    %150 = arith.truncf %149 : vector<8x128xf32> to vector<8x128xbf16>
    %cst_44 = arith.constant dense<0.000000e+00> : vector<8x128xf32>
    %151 = tpu.matmul %150, %0, %cst_44 {dimension_numbers = #tpu.dot_dimension_numbers<[1], [0], [0], [1], [0, 0, 1, 1], [], []>} : vector<8x128xbf16>, vector<128x128xbf16>, vector<8x128xf32> -> vector<8x128xf32>
    %152 = math.tanh %151 : vector<8x128xf32>
    %153 = arith.addf %149, %152 : vector<8x128xf32>
    %154 = arith.truncf %153 : vector<8x128xf32> to vector<8x128xbf16>
    %cst_45 = arith.constant dense<0.000000e+00> : vector<8x128xf32>
    %155 = tpu.matmul %154, %1, %cst_45 {dimension_numbers = #tpu.dot_dimension_numbers<[1], [0], [0], [1], [0, 0, 1, 1], [], []>} : vector<8x128xbf16>, vector<128x128xbf16>, vector<8x128xf32> -> vector<8x128xf32>
    %156 = arith.truncf %155 : vector<8x128xf32> to vector<8x128xbf16>
    %cst_46 = arith.constant dense<0.000000e+00> : vector<8x128xf32>
    %157 = tpu.matmul %156, %0, %cst_46 {dimension_numbers = #tpu.dot_dimension_numbers<[1], [0], [0], [1], [0, 0, 1, 1], [], []>} : vector<8x128xbf16>, vector<128x128xbf16>, vector<8x128xf32> -> vector<8x128xf32>
    %158 = math.tanh %157 : vector<8x128xf32>
    %159 = arith.addf %155, %158 : vector<8x128xf32>
    %160 = arith.truncf %159 : vector<8x128xf32> to vector<8x128xbf16>
    %cst_47 = arith.constant dense<0.000000e+00> : vector<8x128xf32>
    %161 = tpu.matmul %160, %1, %cst_47 {dimension_numbers = #tpu.dot_dimension_numbers<[1], [0], [0], [1], [0, 0, 1, 1], [], []>} : vector<8x128xbf16>, vector<128x128xbf16>, vector<8x128xf32> -> vector<8x128xf32>
    %162 = arith.truncf %161 : vector<8x128xf32> to vector<8x128xbf16>
    %cst_48 = arith.constant dense<0.000000e+00> : vector<8x128xf32>
    %163 = tpu.matmul %162, %0, %cst_48 {dimension_numbers = #tpu.dot_dimension_numbers<[1], [0], [0], [1], [0, 0, 1, 1], [], []>} : vector<8x128xbf16>, vector<128x128xbf16>, vector<8x128xf32> -> vector<8x128xf32>
    %164 = math.tanh %163 : vector<8x128xf32>
    %165 = arith.addf %161, %164 : vector<8x128xf32>
    %166 = arith.truncf %165 : vector<8x128xf32> to vector<8x128xbf16>
    %cst_49 = arith.constant dense<0.000000e+00> : vector<8x128xf32>
    %167 = tpu.matmul %166, %1, %cst_49 {dimension_numbers = #tpu.dot_dimension_numbers<[1], [0], [0], [1], [0, 0, 1, 1], [], []>} : vector<8x128xbf16>, vector<128x128xbf16>, vector<8x128xf32> -> vector<8x128xf32>
    %168 = arith.truncf %167 : vector<8x128xf32> to vector<8x128xbf16>
    %cst_50 = arith.constant dense<0.000000e+00> : vector<8x128xf32>
    %169 = tpu.matmul %168, %0, %cst_50 {dimension_numbers = #tpu.dot_dimension_numbers<[1], [0], [0], [1], [0, 0, 1, 1], [], []>} : vector<8x128xbf16>, vector<128x128xbf16>, vector<8x128xf32> -> vector<8x128xf32>
    %170 = math.tanh %169 : vector<8x128xf32>
    %171 = arith.addf %167, %170 : vector<8x128xf32>
    %172 = arith.truncf %171 : vector<8x128xf32> to vector<8x128xbf16>
    %cst_51 = arith.constant dense<0.000000e+00> : vector<8x128xf32>
    %173 = tpu.matmul %172, %1, %cst_51 {dimension_numbers = #tpu.dot_dimension_numbers<[1], [0], [0], [1], [0, 0, 1, 1], [], []>} : vector<8x128xbf16>, vector<128x128xbf16>, vector<8x128xf32> -> vector<8x128xf32>
    %174 = arith.truncf %173 : vector<8x128xf32> to vector<8x128xbf16>
    %cst_52 = arith.constant dense<0.000000e+00> : vector<8x128xf32>
    %175 = tpu.matmul %174, %0, %cst_52 {dimension_numbers = #tpu.dot_dimension_numbers<[1], [0], [0], [1], [0, 0, 1, 1], [], []>} : vector<8x128xbf16>, vector<128x128xbf16>, vector<8x128xf32> -> vector<8x128xf32>
    %176 = math.tanh %175 : vector<8x128xf32>
    %177 = arith.addf %173, %176 : vector<8x128xf32>
    %178 = arith.truncf %177 : vector<8x128xf32> to vector<8x128xbf16>
    %cst_53 = arith.constant dense<0.000000e+00> : vector<8x128xf32>
    %179 = tpu.matmul %178, %1, %cst_53 {dimension_numbers = #tpu.dot_dimension_numbers<[1], [0], [0], [1], [0, 0, 1, 1], [], []>} : vector<8x128xbf16>, vector<128x128xbf16>, vector<8x128xf32> -> vector<8x128xf32>
    %180 = arith.truncf %179 : vector<8x128xf32> to vector<8x128xbf16>
    %cst_54 = arith.constant dense<0.000000e+00> : vector<8x128xf32>
    %181 = tpu.matmul %180, %0, %cst_54 {dimension_numbers = #tpu.dot_dimension_numbers<[1], [0], [0], [1], [0, 0, 1, 1], [], []>} : vector<8x128xbf16>, vector<128x128xbf16>, vector<8x128xf32> -> vector<8x128xf32>
    %182 = math.tanh %181 : vector<8x128xf32>
    %183 = arith.addf %179, %182 : vector<8x128xf32>
    %184 = arith.truncf %183 : vector<8x128xf32> to vector<8x128xbf16>
    %cst_55 = arith.constant dense<0.000000e+00> : vector<8x128xf32>
    %185 = tpu.matmul %184, %1, %cst_55 {dimension_numbers = #tpu.dot_dimension_numbers<[1], [0], [0], [1], [0, 0, 1, 1], [], []>} : vector<8x128xbf16>, vector<128x128xbf16>, vector<8x128xf32> -> vector<8x128xf32>
    %186 = arith.truncf %185 : vector<8x128xf32> to vector<8x128xbf16>
    %cst_56 = arith.constant dense<0.000000e+00> : vector<8x128xf32>
    %187 = tpu.matmul %186, %0, %cst_56 {dimension_numbers = #tpu.dot_dimension_numbers<[1], [0], [0], [1], [0, 0, 1, 1], [], []>} : vector<8x128xbf16>, vector<128x128xbf16>, vector<8x128xf32> -> vector<8x128xf32>
    %188 = math.tanh %187 : vector<8x128xf32>
    %189 = arith.addf %185, %188 : vector<8x128xf32>
    %190 = arith.truncf %189 : vector<8x128xf32> to vector<8x128xbf16>
    %cst_57 = arith.constant dense<0.000000e+00> : vector<8x128xf32>
    %191 = tpu.matmul %190, %1, %cst_57 {dimension_numbers = #tpu.dot_dimension_numbers<[1], [0], [0], [1], [0, 0, 1, 1], [], []>} : vector<8x128xbf16>, vector<128x128xbf16>, vector<8x128xf32> -> vector<8x128xf32>
    %192 = arith.truncf %191 : vector<8x128xf32> to vector<8x128xbf16>
    %cst_58 = arith.constant dense<0.000000e+00> : vector<8x128xf32>
    %193 = tpu.matmul %192, %0, %cst_58 {dimension_numbers = #tpu.dot_dimension_numbers<[1], [0], [0], [1], [0, 0, 1, 1], [], []>} : vector<8x128xbf16>, vector<128x128xbf16>, vector<8x128xf32> -> vector<8x128xf32>
    %194 = math.tanh %193 : vector<8x128xf32>
    %195 = arith.addf %191, %194 : vector<8x128xf32>
    %196 = arith.truncf %195 : vector<8x128xf32> to vector<8x128xbf16>
    %cst_59 = arith.constant dense<0.000000e+00> : vector<8x128xf32>
    %197 = tpu.matmul %196, %1, %cst_59 {dimension_numbers = #tpu.dot_dimension_numbers<[1], [0], [0], [1], [0, 0, 1, 1], [], []>} : vector<8x128xbf16>, vector<128x128xbf16>, vector<8x128xf32> -> vector<8x128xf32>
    %198 = arith.truncf %197 : vector<8x128xf32> to vector<8x128xbf16>
    %cst_60 = arith.constant dense<0.000000e+00> : vector<8x128xf32>
    %199 = tpu.matmul %198, %0, %cst_60 {dimension_numbers = #tpu.dot_dimension_numbers<[1], [0], [0], [1], [0, 0, 1, 1], [], []>} : vector<8x128xbf16>, vector<128x128xbf16>, vector<8x128xf32> -> vector<8x128xf32>
    %200 = math.tanh %199 : vector<8x128xf32>
    %201 = arith.addf %197, %200 : vector<8x128xf32>
    %202 = arith.truncf %201 : vector<8x128xf32> to vector<8x128xbf16>
    %cst_61 = arith.constant dense<0.000000e+00> : vector<8x128xf32>
    %203 = tpu.matmul %202, %1, %cst_61 {dimension_numbers = #tpu.dot_dimension_numbers<[1], [0], [0], [1], [0, 0, 1, 1], [], []>} : vector<8x128xbf16>, vector<128x128xbf16>, vector<8x128xf32> -> vector<8x128xf32>
    %204 = arith.truncf %203 : vector<8x128xf32> to vector<8x128xbf16>
    %cst_62 = arith.constant dense<0.000000e+00> : vector<8x128xf32>
    %205 = tpu.matmul %204, %0, %cst_62 {dimension_numbers = #tpu.dot_dimension_numbers<[1], [0], [0], [1], [0, 0, 1, 1], [], []>} : vector<8x128xbf16>, vector<128x128xbf16>, vector<8x128xf32> -> vector<8x128xf32>
    %206 = math.tanh %205 : vector<8x128xf32>
    %207 = arith.addf %203, %206 : vector<8x128xf32>
    %208 = arith.truncf %207 : vector<8x128xf32> to vector<8x128xbf16>
    %cst_63 = arith.constant dense<0.000000e+00> : vector<8x128xf32>
    %209 = tpu.matmul %208, %1, %cst_63 {dimension_numbers = #tpu.dot_dimension_numbers<[1], [0], [0], [1], [0, 0, 1, 1], [], []>} : vector<8x128xbf16>, vector<128x128xbf16>, vector<8x128xf32> -> vector<8x128xf32>
    %210 = arith.truncf %209 : vector<8x128xf32> to vector<8x128xbf16>
    %cst_64 = arith.constant dense<0.000000e+00> : vector<8x128xf32>
    %211 = tpu.matmul %210, %0, %cst_64 {dimension_numbers = #tpu.dot_dimension_numbers<[1], [0], [0], [1], [0, 0, 1, 1], [], []>} : vector<8x128xbf16>, vector<128x128xbf16>, vector<8x128xf32> -> vector<8x128xf32>
    %212 = math.tanh %211 : vector<8x128xf32>
    %213 = arith.addf %209, %212 : vector<8x128xf32>
    %214 = arith.truncf %213 : vector<8x128xf32> to vector<8x128xbf16>
    %cst_65 = arith.constant dense<0.000000e+00> : vector<8x128xf32>
    %215 = tpu.matmul %214, %1, %cst_65 {dimension_numbers = #tpu.dot_dimension_numbers<[1], [0], [0], [1], [0, 0, 1, 1], [], []>} : vector<8x128xbf16>, vector<128x128xbf16>, vector<8x128xf32> -> vector<8x128xf32>
    %216 = arith.truncf %215 : vector<8x128xf32> to vector<8x128xbf16>
    %cst_66 = arith.constant dense<0.000000e+00> : vector<8x128xf32>
    %217 = tpu.matmul %216, %0, %cst_66 {dimension_numbers = #tpu.dot_dimension_numbers<[1], [0], [0], [1], [0, 0, 1, 1], [], []>} : vector<8x128xbf16>, vector<128x128xbf16>, vector<8x128xf32> -> vector<8x128xf32>
    %218 = math.tanh %217 : vector<8x128xf32>
    %219 = arith.addf %215, %218 : vector<8x128xf32>
    %220 = arith.truncf %219 : vector<8x128xf32> to vector<8x128xbf16>
    %cst_67 = arith.constant dense<0.000000e+00> : vector<8x128xf32>
    %221 = tpu.matmul %220, %1, %cst_67 {dimension_numbers = #tpu.dot_dimension_numbers<[1], [0], [0], [1], [0, 0, 1, 1], [], []>} : vector<8x128xbf16>, vector<128x128xbf16>, vector<8x128xf32> -> vector<8x128xf32>
    %222 = arith.truncf %221 : vector<8x128xf32> to vector<8x128xbf16>
    %cst_68 = arith.constant dense<0.000000e+00> : vector<8x128xf32>
    %223 = tpu.matmul %222, %0, %cst_68 {dimension_numbers = #tpu.dot_dimension_numbers<[1], [0], [0], [1], [0, 0, 1, 1], [], []>} : vector<8x128xbf16>, vector<128x128xbf16>, vector<8x128xf32> -> vector<8x128xf32>
    %224 = math.tanh %223 : vector<8x128xf32>
    %225 = arith.addf %221, %224 : vector<8x128xf32>
    %226 = arith.truncf %225 : vector<8x128xf32> to vector<8x128xbf16>
    %cst_69 = arith.constant dense<0.000000e+00> : vector<8x128xf32>
    %227 = tpu.matmul %226, %1, %cst_69 {dimension_numbers = #tpu.dot_dimension_numbers<[1], [0], [0], [1], [0, 0, 1, 1], [], []>} : vector<8x128xbf16>, vector<128x128xbf16>, vector<8x128xf32> -> vector<8x128xf32>
    %228 = arith.truncf %227 : vector<8x128xf32> to vector<8x128xbf16>
    %cst_70 = arith.constant dense<0.000000e+00> : vector<8x128xf32>
    %229 = tpu.matmul %228, %0, %cst_70 {dimension_numbers = #tpu.dot_dimension_numbers<[1], [0], [0], [1], [0, 0, 1, 1], [], []>} : vector<8x128xbf16>, vector<128x128xbf16>, vector<8x128xf32> -> vector<8x128xf32>
    %230 = math.tanh %229 : vector<8x128xf32>
    %231 = arith.addf %227, %230 : vector<8x128xf32>
    %232 = arith.truncf %231 : vector<8x128xf32> to vector<8x128xbf16>
    %cst_71 = arith.constant dense<0.000000e+00> : vector<8x128xf32>
    %233 = tpu.matmul %232, %1, %cst_71 {dimension_numbers = #tpu.dot_dimension_numbers<[1], [0], [0], [1], [0, 0, 1, 1], [], []>} : vector<8x128xbf16>, vector<128x128xbf16>, vector<8x128xf32> -> vector<8x128xf32>
    %234 = arith.truncf %233 : vector<8x128xf32> to vector<8x128xbf16>
    %cst_72 = arith.constant dense<0.000000e+00> : vector<8x128xf32>
    %235 = tpu.matmul %234, %0, %cst_72 {dimension_numbers = #tpu.dot_dimension_numbers<[1], [0], [0], [1], [0, 0, 1, 1], [], []>} : vector<8x128xbf16>, vector<128x128xbf16>, vector<8x128xf32> -> vector<8x128xf32>
    %236 = math.tanh %235 : vector<8x128xf32>
    %237 = arith.addf %233, %236 : vector<8x128xf32>
    %238 = arith.truncf %237 : vector<8x128xf32> to vector<8x128xbf16>
    %cst_73 = arith.constant dense<0.000000e+00> : vector<8x128xf32>
    %239 = tpu.matmul %238, %1, %cst_73 {dimension_numbers = #tpu.dot_dimension_numbers<[1], [0], [0], [1], [0, 0, 1, 1], [], []>} : vector<8x128xbf16>, vector<128x128xbf16>, vector<8x128xf32> -> vector<8x128xf32>
    %240 = arith.truncf %239 : vector<8x128xf32> to vector<8x128xbf16>
    %cst_74 = arith.constant dense<0.000000e+00> : vector<8x128xf32>
    %241 = tpu.matmul %240, %0, %cst_74 {dimension_numbers = #tpu.dot_dimension_numbers<[1], [0], [0], [1], [0, 0, 1, 1], [], []>} : vector<8x128xbf16>, vector<128x128xbf16>, vector<8x128xf32> -> vector<8x128xf32>
    %242 = math.tanh %241 : vector<8x128xf32>
    %243 = arith.addf %239, %242 : vector<8x128xf32>
    %244 = arith.truncf %243 : vector<8x128xf32> to vector<8x128xbf16>
    %cst_75 = arith.constant dense<0.000000e+00> : vector<8x128xf32>
    %245 = tpu.matmul %244, %1, %cst_75 {dimension_numbers = #tpu.dot_dimension_numbers<[1], [0], [0], [1], [0, 0, 1, 1], [], []>} : vector<8x128xbf16>, vector<128x128xbf16>, vector<8x128xf32> -> vector<8x128xf32>
    %246 = arith.truncf %245 : vector<8x128xf32> to vector<8x128xbf16>
    %cst_76 = arith.constant dense<0.000000e+00> : vector<8x128xf32>
    %247 = tpu.matmul %246, %0, %cst_76 {dimension_numbers = #tpu.dot_dimension_numbers<[1], [0], [0], [1], [0, 0, 1, 1], [], []>} : vector<8x128xbf16>, vector<128x128xbf16>, vector<8x128xf32> -> vector<8x128xf32>
    %248 = math.tanh %247 : vector<8x128xf32>
    %249 = arith.addf %245, %248 : vector<8x128xf32>
    %250 = arith.truncf %249 : vector<8x128xf32> to vector<8x128xbf16>
    %cst_77 = arith.constant dense<0.000000e+00> : vector<8x128xf32>
    %251 = tpu.matmul %250, %1, %cst_77 {dimension_numbers = #tpu.dot_dimension_numbers<[1], [0], [0], [1], [0, 0, 1, 1], [], []>} : vector<8x128xbf16>, vector<128x128xbf16>, vector<8x128xf32> -> vector<8x128xf32>
    %252 = arith.truncf %251 : vector<8x128xf32> to vector<8x128xbf16>
    %cst_78 = arith.constant dense<0.000000e+00> : vector<8x128xf32>
    %253 = tpu.matmul %252, %0, %cst_78 {dimension_numbers = #tpu.dot_dimension_numbers<[1], [0], [0], [1], [0, 0, 1, 1], [], []>} : vector<8x128xbf16>, vector<128x128xbf16>, vector<8x128xf32> -> vector<8x128xf32>
    %254 = math.tanh %253 : vector<8x128xf32>
    %255 = arith.addf %251, %254 : vector<8x128xf32>
    %256 = arith.truncf %255 : vector<8x128xf32> to vector<8x128xbf16>
    %cst_79 = arith.constant dense<0.000000e+00> : vector<8x128xf32>
    %257 = tpu.matmul %256, %1, %cst_79 {dimension_numbers = #tpu.dot_dimension_numbers<[1], [0], [0], [1], [0, 0, 1, 1], [], []>} : vector<8x128xbf16>, vector<128x128xbf16>, vector<8x128xf32> -> vector<8x128xf32>
    %258 = arith.truncf %257 : vector<8x128xf32> to vector<8x128xbf16>
    %cst_80 = arith.constant dense<0.000000e+00> : vector<8x128xf32>
    %259 = tpu.matmul %258, %0, %cst_80 {dimension_numbers = #tpu.dot_dimension_numbers<[1], [0], [0], [1], [0, 0, 1, 1], [], []>} : vector<8x128xbf16>, vector<128x128xbf16>, vector<8x128xf32> -> vector<8x128xf32>
    %260 = math.tanh %259 : vector<8x128xf32>
    %261 = arith.addf %257, %260 : vector<8x128xf32>
    %262 = arith.truncf %261 : vector<8x128xf32> to vector<8x128xbf16>
    %cst_81 = arith.constant dense<0.000000e+00> : vector<8x128xf32>
    %263 = tpu.matmul %262, %1, %cst_81 {dimension_numbers = #tpu.dot_dimension_numbers<[1], [0], [0], [1], [0, 0, 1, 1], [], []>} : vector<8x128xbf16>, vector<128x128xbf16>, vector<8x128xf32> -> vector<8x128xf32>
    %264 = arith.truncf %263 : vector<8x128xf32> to vector<8x128xbf16>
    %cst_82 = arith.constant dense<0.000000e+00> : vector<8x128xf32>
    %265 = tpu.matmul %264, %0, %cst_82 {dimension_numbers = #tpu.dot_dimension_numbers<[1], [0], [0], [1], [0, 0, 1, 1], [], []>} : vector<8x128xbf16>, vector<128x128xbf16>, vector<8x128xf32> -> vector<8x128xf32>
    %266 = math.tanh %265 : vector<8x128xf32>
    %267 = arith.addf %263, %266 : vector<8x128xf32>
    %268 = arith.truncf %267 : vector<8x128xf32> to vector<8x128xbf16>
    %cst_83 = arith.constant dense<0.000000e+00> : vector<8x128xf32>
    %269 = tpu.matmul %268, %1, %cst_83 {dimension_numbers = #tpu.dot_dimension_numbers<[1], [0], [0], [1], [0, 0, 1, 1], [], []>} : vector<8x128xbf16>, vector<128x128xbf16>, vector<8x128xf32> -> vector<8x128xf32>
    %270 = arith.truncf %269 : vector<8x128xf32> to vector<8x128xbf16>
    %cst_84 = arith.constant dense<0.000000e+00> : vector<8x128xf32>
    %271 = tpu.matmul %270, %0, %cst_84 {dimension_numbers = #tpu.dot_dimension_numbers<[1], [0], [0], [1], [0, 0, 1, 1], [], []>} : vector<8x128xbf16>, vector<128x128xbf16>, vector<8x128xf32> -> vector<8x128xf32>
    %272 = math.tanh %271 : vector<8x128xf32>
    %273 = arith.addf %269, %272 : vector<8x128xf32>
    %274 = arith.truncf %273 : vector<8x128xf32> to vector<8x128xbf16>
    %cst_85 = arith.constant dense<0.000000e+00> : vector<8x128xf32>
    %275 = tpu.matmul %274, %1, %cst_85 {dimension_numbers = #tpu.dot_dimension_numbers<[1], [0], [0], [1], [0, 0, 1, 1], [], []>} : vector<8x128xbf16>, vector<128x128xbf16>, vector<8x128xf32> -> vector<8x128xf32>
    %276 = arith.truncf %275 : vector<8x128xf32> to vector<8x128xbf16>
    %cst_86 = arith.constant dense<0.000000e+00> : vector<8x128xf32>
    %277 = tpu.matmul %276, %0, %cst_86 {dimension_numbers = #tpu.dot_dimension_numbers<[1], [0], [0], [1], [0, 0, 1, 1], [], []>} : vector<8x128xbf16>, vector<128x128xbf16>, vector<8x128xf32> -> vector<8x128xf32>
    %278 = math.tanh %277 : vector<8x128xf32>
    %279 = arith.addf %275, %278 : vector<8x128xf32>
    %280 = arith.truncf %279 : vector<8x128xf32> to vector<8x128xbf16>
    %cst_87 = arith.constant dense<0.000000e+00> : vector<8x128xf32>
    %281 = tpu.matmul %280, %1, %cst_87 {dimension_numbers = #tpu.dot_dimension_numbers<[1], [0], [0], [1], [0, 0, 1, 1], [], []>} : vector<8x128xbf16>, vector<128x128xbf16>, vector<8x128xf32> -> vector<8x128xf32>
    %282 = arith.truncf %281 : vector<8x128xf32> to vector<8x128xbf16>
    %cst_88 = arith.constant dense<0.000000e+00> : vector<8x128xf32>
    %283 = tpu.matmul %282, %0, %cst_88 {dimension_numbers = #tpu.dot_dimension_numbers<[1], [0], [0], [1], [0, 0, 1, 1], [], []>} : vector<8x128xbf16>, vector<128x128xbf16>, vector<8x128xf32> -> vector<8x128xf32>
    %284 = math.tanh %283 : vector<8x128xf32>
    %285 = arith.addf %281, %284 : vector<8x128xf32>
    %286 = arith.truncf %285 : vector<8x128xf32> to vector<8x128xbf16>
    %cst_89 = arith.constant dense<0.000000e+00> : vector<8x128xf32>
    %287 = tpu.matmul %286, %1, %cst_89 {dimension_numbers = #tpu.dot_dimension_numbers<[1], [0], [0], [1], [0, 0, 1, 1], [], []>} : vector<8x128xbf16>, vector<128x128xbf16>, vector<8x128xf32> -> vector<8x128xf32>
    %288 = arith.truncf %287 : vector<8x128xf32> to vector<8x128xbf16>
    %cst_90 = arith.constant dense<0.000000e+00> : vector<8x128xf32>
    %289 = tpu.matmul %288, %0, %cst_90 {dimension_numbers = #tpu.dot_dimension_numbers<[1], [0], [0], [1], [0, 0, 1, 1], [], []>} : vector<8x128xbf16>, vector<128x128xbf16>, vector<8x128xf32> -> vector<8x128xf32>
    %290 = math.tanh %289 : vector<8x128xf32>
    %291 = arith.addf %287, %290 : vector<8x128xf32>
    %292 = arith.truncf %291 : vector<8x128xf32> to vector<8x128xbf16>
    %cst_91 = arith.constant dense<0.000000e+00> : vector<8x128xf32>
    %293 = tpu.matmul %292, %1, %cst_91 {dimension_numbers = #tpu.dot_dimension_numbers<[1], [0], [0], [1], [0, 0, 1, 1], [], []>} : vector<8x128xbf16>, vector<128x128xbf16>, vector<8x128xf32> -> vector<8x128xf32>
    %294 = arith.truncf %293 : vector<8x128xf32> to vector<8x128xbf16>
    %cst_92 = arith.constant dense<0.000000e+00> : vector<8x128xf32>
    %295 = tpu.matmul %294, %0, %cst_92 {dimension_numbers = #tpu.dot_dimension_numbers<[1], [0], [0], [1], [0, 0, 1, 1], [], []>} : vector<8x128xbf16>, vector<128x128xbf16>, vector<8x128xf32> -> vector<8x128xf32>
    %296 = math.tanh %295 : vector<8x128xf32>
    %297 = arith.addf %293, %296 : vector<8x128xf32>
    %298 = arith.truncf %297 : vector<8x128xf32> to vector<8x128xbf16>
    %cst_93 = arith.constant dense<0.000000e+00> : vector<8x128xf32>
    %299 = tpu.matmul %298, %1, %cst_93 {dimension_numbers = #tpu.dot_dimension_numbers<[1], [0], [0], [1], [0, 0, 1, 1], [], []>} : vector<8x128xbf16>, vector<128x128xbf16>, vector<8x128xf32> -> vector<8x128xf32>
    %300 = arith.truncf %299 : vector<8x128xf32> to vector<8x128xbf16>
    %cst_94 = arith.constant dense<0.000000e+00> : vector<8x128xf32>
    %301 = tpu.matmul %300, %0, %cst_94 {dimension_numbers = #tpu.dot_dimension_numbers<[1], [0], [0], [1], [0, 0, 1, 1], [], []>} : vector<8x128xbf16>, vector<128x128xbf16>, vector<8x128xf32> -> vector<8x128xf32>
    %302 = math.tanh %301 : vector<8x128xf32>
    %303 = arith.addf %299, %302 : vector<8x128xf32>
    %304 = arith.truncf %303 : vector<8x128xf32> to vector<8x128xbf16>
    %cst_95 = arith.constant dense<0.000000e+00> : vector<8x128xf32>
    %305 = tpu.matmul %304, %1, %cst_95 {dimension_numbers = #tpu.dot_dimension_numbers<[1], [0], [0], [1], [0, 0, 1, 1], [], []>} : vector<8x128xbf16>, vector<128x128xbf16>, vector<8x128xf32> -> vector<8x128xf32>
    %306 = arith.truncf %305 : vector<8x128xf32> to vector<8x128xbf16>
    %cst_96 = arith.constant dense<0.000000e+00> : vector<8x128xf32>
    %307 = tpu.matmul %306, %0, %cst_96 {dimension_numbers = #tpu.dot_dimension_numbers<[1], [0], [0], [1], [0, 0, 1, 1], [], []>} : vector<8x128xbf16>, vector<128x128xbf16>, vector<8x128xf32> -> vector<8x128xf32>
    %308 = math.tanh %307 : vector<8x128xf32>
    %309 = arith.addf %305, %308 : vector<8x128xf32>
    %310 = arith.truncf %309 : vector<8x128xf32> to vector<8x128xbf16>
    %cst_97 = arith.constant dense<0.000000e+00> : vector<8x128xf32>
    %311 = tpu.matmul %310, %1, %cst_97 {dimension_numbers = #tpu.dot_dimension_numbers<[1], [0], [0], [1], [0, 0, 1, 1], [], []>} : vector<8x128xbf16>, vector<128x128xbf16>, vector<8x128xf32> -> vector<8x128xf32>
    %312 = arith.truncf %311 : vector<8x128xf32> to vector<8x128xbf16>
    %cst_98 = arith.constant dense<0.000000e+00> : vector<8x128xf32>
    %313 = tpu.matmul %312, %0, %cst_98 {dimension_numbers = #tpu.dot_dimension_numbers<[1], [0], [0], [1], [0, 0, 1, 1], [], []>} : vector<8x128xbf16>, vector<128x128xbf16>, vector<8x128xf32> -> vector<8x128xf32>
    %314 = math.tanh %313 : vector<8x128xf32>
    %315 = arith.addf %311, %314 : vector<8x128xf32>
    %316 = arith.truncf %315 : vector<8x128xf32> to vector<8x128xbf16>
    %cst_99 = arith.constant dense<0.000000e+00> : vector<8x128xf32>
    %317 = tpu.matmul %316, %1, %cst_99 {dimension_numbers = #tpu.dot_dimension_numbers<[1], [0], [0], [1], [0, 0, 1, 1], [], []>} : vector<8x128xbf16>, vector<128x128xbf16>, vector<8x128xf32> -> vector<8x128xf32>
    %318 = arith.truncf %317 : vector<8x128xf32> to vector<8x128xbf16>
    %cst_100 = arith.constant dense<0.000000e+00> : vector<8x128xf32>
    %319 = tpu.matmul %318, %0, %cst_100 {dimension_numbers = #tpu.dot_dimension_numbers<[1], [0], [0], [1], [0, 0, 1, 1], [], []>} : vector<8x128xbf16>, vector<128x128xbf16>, vector<8x128xf32> -> vector<8x128xf32>
    %320 = math.tanh %319 : vector<8x128xf32>
    %321 = arith.addf %317, %320 : vector<8x128xf32>
    %322 = arith.truncf %321 : vector<8x128xf32> to vector<8x128xbf16>
    %cst_101 = arith.constant dense<0.000000e+00> : vector<8x128xf32>
    %323 = tpu.matmul %322, %1, %cst_101 {dimension_numbers = #tpu.dot_dimension_numbers<[1], [0], [0], [1], [0, 0, 1, 1], [], []>} : vector<8x128xbf16>, vector<128x128xbf16>, vector<8x128xf32> -> vector<8x128xf32>
    %324 = arith.truncf %323 : vector<8x128xf32> to vector<8x128xbf16>
    %cst_102 = arith.constant dense<0.000000e+00> : vector<8x128xf32>
    %325 = tpu.matmul %324, %0, %cst_102 {dimension_numbers = #tpu.dot_dimension_numbers<[1], [0], [0], [1], [0, 0, 1, 1], [], []>} : vector<8x128xbf16>, vector<128x128xbf16>, vector<8x128xf32> -> vector<8x128xf32>
    %326 = math.tanh %325 : vector<8x128xf32>
    %327 = arith.addf %323, %326 : vector<8x128xf32>
    %328 = arith.truncf %327 : vector<8x128xf32> to vector<8x128xbf16>
    %cst_103 = arith.constant dense<0.000000e+00> : vector<8x128xf32>
    %329 = tpu.matmul %328, %1, %cst_103 {dimension_numbers = #tpu.dot_dimension_numbers<[1], [0], [0], [1], [0, 0, 1, 1], [], []>} : vector<8x128xbf16>, vector<128x128xbf16>, vector<8x128xf32> -> vector<8x128xf32>
    %330 = arith.truncf %329 : vector<8x128xf32> to vector<8x128xbf16>
    %cst_104 = arith.constant dense<0.000000e+00> : vector<8x128xf32>
    %331 = tpu.matmul %330, %0, %cst_104 {dimension_numbers = #tpu.dot_dimension_numbers<[1], [0], [0], [1], [0, 0, 1, 1], [], []>} : vector<8x128xbf16>, vector<128x128xbf16>, vector<8x128xf32> -> vector<8x128xf32>
    %332 = math.tanh %331 : vector<8x128xf32>
    %333 = arith.addf %329, %332 : vector<8x128xf32>
    %334 = arith.truncf %333 : vector<8x128xf32> to vector<8x128xbf16>
    %cst_105 = arith.constant dense<0.000000e+00> : vector<8x128xf32>
    %335 = tpu.matmul %334, %1, %cst_105 {dimension_numbers = #tpu.dot_dimension_numbers<[1], [0], [0], [1], [0, 0, 1, 1], [], []>} : vector<8x128xbf16>, vector<128x128xbf16>, vector<8x128xf32> -> vector<8x128xf32>
    %336 = arith.truncf %335 : vector<8x128xf32> to vector<8x128xbf16>
    %cst_106 = arith.constant dense<0.000000e+00> : vector<8x128xf32>
    %337 = tpu.matmul %336, %0, %cst_106 {dimension_numbers = #tpu.dot_dimension_numbers<[1], [0], [0], [1], [0, 0, 1, 1], [], []>} : vector<8x128xbf16>, vector<128x128xbf16>, vector<8x128xf32> -> vector<8x128xf32>
    %338 = math.tanh %337 : vector<8x128xf32>
    %339 = arith.addf %335, %338 : vector<8x128xf32>
    %340 = arith.truncf %339 : vector<8x128xf32> to vector<8x128xbf16>
    %cst_107 = arith.constant dense<0.000000e+00> : vector<8x128xf32>
    %341 = tpu.matmul %340, %1, %cst_107 {dimension_numbers = #tpu.dot_dimension_numbers<[1], [0], [0], [1], [0, 0, 1, 1], [], []>} : vector<8x128xbf16>, vector<128x128xbf16>, vector<8x128xf32> -> vector<8x128xf32>
    %342 = arith.truncf %341 : vector<8x128xf32> to vector<8x128xbf16>
    %cst_108 = arith.constant dense<0.000000e+00> : vector<8x128xf32>
    %343 = tpu.matmul %342, %0, %cst_108 {dimension_numbers = #tpu.dot_dimension_numbers<[1], [0], [0], [1], [0, 0, 1, 1], [], []>} : vector<8x128xbf16>, vector<128x128xbf16>, vector<8x128xf32> -> vector<8x128xf32>
    %344 = math.tanh %343 : vector<8x128xf32>
    %345 = arith.addf %341, %344 : vector<8x128xf32>
    %346 = arith.truncf %345 : vector<8x128xf32> to vector<8x128xbf16>
    %cst_109 = arith.constant dense<0.000000e+00> : vector<8x128xf32>
    %347 = tpu.matmul %346, %1, %cst_109 {dimension_numbers = #tpu.dot_dimension_numbers<[1], [0], [0], [1], [0, 0, 1, 1], [], []>} : vector<8x128xbf16>, vector<128x128xbf16>, vector<8x128xf32> -> vector<8x128xf32>
    %348 = arith.truncf %347 : vector<8x128xf32> to vector<8x128xbf16>
    %cst_110 = arith.constant dense<0.000000e+00> : vector<8x128xf32>
    %349 = tpu.matmul %348, %0, %cst_110 {dimension_numbers = #tpu.dot_dimension_numbers<[1], [0], [0], [1], [0, 0, 1, 1], [], []>} : vector<8x128xbf16>, vector<128x128xbf16>, vector<8x128xf32> -> vector<8x128xf32>
    %350 = math.tanh %349 : vector<8x128xf32>
    %351 = arith.addf %347, %350 : vector<8x128xf32>
    %352 = arith.truncf %351 : vector<8x128xf32> to vector<8x128xbf16>
    %cst_111 = arith.constant dense<0.000000e+00> : vector<8x128xf32>
    %353 = tpu.matmul %352, %1, %cst_111 {dimension_numbers = #tpu.dot_dimension_numbers<[1], [0], [0], [1], [0, 0, 1, 1], [], []>} : vector<8x128xbf16>, vector<128x128xbf16>, vector<8x128xf32> -> vector<8x128xf32>
    %354 = arith.truncf %353 : vector<8x128xf32> to vector<8x128xbf16>
    %cst_112 = arith.constant dense<0.000000e+00> : vector<8x128xf32>
    %355 = tpu.matmul %354, %0, %cst_112 {dimension_numbers = #tpu.dot_dimension_numbers<[1], [0], [0], [1], [0, 0, 1, 1], [], []>} : vector<8x128xbf16>, vector<128x128xbf16>, vector<8x128xf32> -> vector<8x128xf32>
    %356 = math.tanh %355 : vector<8x128xf32>
    %357 = arith.addf %353, %356 : vector<8x128xf32>
    %358 = arith.truncf %357 : vector<8x128xf32> to vector<8x128xbf16>
    %cst_113 = arith.constant dense<0.000000e+00> : vector<8x128xf32>
    %359 = tpu.matmul %358, %1, %cst_113 {dimension_numbers = #tpu.dot_dimension_numbers<[1], [0], [0], [1], [0, 0, 1, 1], [], []>} : vector<8x128xbf16>, vector<128x128xbf16>, vector<8x128xf32> -> vector<8x128xf32>
    %360 = arith.truncf %359 : vector<8x128xf32> to vector<8x128xbf16>
    %cst_114 = arith.constant dense<0.000000e+00> : vector<8x128xf32>
    %361 = tpu.matmul %360, %0, %cst_114 {dimension_numbers = #tpu.dot_dimension_numbers<[1], [0], [0], [1], [0, 0, 1, 1], [], []>} : vector<8x128xbf16>, vector<128x128xbf16>, vector<8x128xf32> -> vector<8x128xf32>
    %362 = math.tanh %361 : vector<8x128xf32>
    %363 = arith.addf %359, %362 : vector<8x128xf32>
    %364 = arith.truncf %363 : vector<8x128xf32> to vector<8x128xbf16>
    %cst_115 = arith.constant dense<0.000000e+00> : vector<8x128xf32>
    %365 = tpu.matmul %364, %1, %cst_115 {dimension_numbers = #tpu.dot_dimension_numbers<[1], [0], [0], [1], [0, 0, 1, 1], [], []>} : vector<8x128xbf16>, vector<128x128xbf16>, vector<8x128xf32> -> vector<8x128xf32>
    %366 = arith.truncf %365 : vector<8x128xf32> to vector<8x128xbf16>
    %cst_116 = arith.constant dense<0.000000e+00> : vector<8x128xf32>
    %367 = tpu.matmul %366, %0, %cst_116 {dimension_numbers = #tpu.dot_dimension_numbers<[1], [0], [0], [1], [0, 0, 1, 1], [], []>} : vector<8x128xbf16>, vector<128x128xbf16>, vector<8x128xf32> -> vector<8x128xf32>
    %368 = math.tanh %367 : vector<8x128xf32>
    %369 = arith.addf %365, %368 : vector<8x128xf32>
    %370 = arith.truncf %369 : vector<8x128xf32> to vector<8x128xbf16>
    %cst_117 = arith.constant dense<0.000000e+00> : vector<8x128xf32>
    %371 = tpu.matmul %370, %1, %cst_117 {dimension_numbers = #tpu.dot_dimension_numbers<[1], [0], [0], [1], [0, 0, 1, 1], [], []>} : vector<8x128xbf16>, vector<128x128xbf16>, vector<8x128xf32> -> vector<8x128xf32>
    %372 = arith.truncf %371 : vector<8x128xf32> to vector<8x128xbf16>
    %cst_118 = arith.constant dense<0.000000e+00> : vector<8x128xf32>
    %373 = tpu.matmul %372, %0, %cst_118 {dimension_numbers = #tpu.dot_dimension_numbers<[1], [0], [0], [1], [0, 0, 1, 1], [], []>} : vector<8x128xbf16>, vector<128x128xbf16>, vector<8x128xf32> -> vector<8x128xf32>
    %374 = math.tanh %373 : vector<8x128xf32>
    %375 = arith.addf %371, %374 : vector<8x128xf32>
    %376 = arith.truncf %375 : vector<8x128xf32> to vector<8x128xbf16>
    %cst_119 = arith.constant dense<0.000000e+00> : vector<8x128xf32>
    %377 = tpu.matmul %376, %1, %cst_119 {dimension_numbers = #tpu.dot_dimension_numbers<[1], [0], [0], [1], [0, 0, 1, 1], [], []>} : vector<8x128xbf16>, vector<128x128xbf16>, vector<8x128xf32> -> vector<8x128xf32>
    %378 = arith.truncf %377 : vector<8x128xf32> to vector<8x128xbf16>
    %cst_120 = arith.constant dense<0.000000e+00> : vector<8x128xf32>
    %379 = tpu.matmul %378, %0, %cst_120 {dimension_numbers = #tpu.dot_dimension_numbers<[1], [0], [0], [1], [0, 0, 1, 1], [], []>} : vector<8x128xbf16>, vector<128x128xbf16>, vector<8x128xf32> -> vector<8x128xf32>
    %380 = math.tanh %379 : vector<8x128xf32>
    %381 = arith.addf %377, %380 : vector<8x128xf32>
    %382 = arith.truncf %381 : vector<8x128xf32> to vector<8x128xbf16>
    %cst_121 = arith.constant dense<0.000000e+00> : vector<8x128xf32>
    %383 = tpu.matmul %382, %1, %cst_121 {dimension_numbers = #tpu.dot_dimension_numbers<[1], [0], [0], [1], [0, 0, 1, 1], [], []>} : vector<8x128xbf16>, vector<128x128xbf16>, vector<8x128xf32> -> vector<8x128xf32>
    %384 = arith.truncf %383 : vector<8x128xf32> to vector<8x128xbf16>
    %cst_122 = arith.constant dense<0.000000e+00> : vector<8x128xf32>
    %385 = tpu.matmul %384, %0, %cst_122 {dimension_numbers = #tpu.dot_dimension_numbers<[1], [0], [0], [1], [0, 0, 1, 1], [], []>} : vector<8x128xbf16>, vector<128x128xbf16>, vector<8x128xf32> -> vector<8x128xf32>
    %386 = math.tanh %385 : vector<8x128xf32>
    %387 = arith.addf %383, %386 : vector<8x128xf32>
    %388 = arith.truncf %387 : vector<8x128xf32> to vector<8x128xbf16>
    %cst_123 = arith.constant dense<0.000000e+00> : vector<8x128xf32>
    %389 = tpu.matmul %388, %1, %cst_123 {dimension_numbers = #tpu.dot_dimension_numbers<[1], [0], [0], [1], [0, 0, 1, 1], [], []>} : vector<8x128xbf16>, vector<128x128xbf16>, vector<8x128xf32> -> vector<8x128xf32>
    %390 = arith.truncf %389 : vector<8x128xf32> to vector<8x128xbf16>
    %cst_124 = arith.constant dense<0.000000e+00> : vector<8x128xf32>
    %391 = tpu.matmul %390, %0, %cst_124 {dimension_numbers = #tpu.dot_dimension_numbers<[1], [0], [0], [1], [0, 0, 1, 1], [], []>} : vector<8x128xbf16>, vector<128x128xbf16>, vector<8x128xf32> -> vector<8x128xf32>
    %392 = math.tanh %391 : vector<8x128xf32>
    %393 = arith.addf %389, %392 : vector<8x128xf32>
    %394 = arith.truncf %393 : vector<8x128xf32> to vector<8x128xbf16>
    %cst_125 = arith.constant dense<0.000000e+00> : vector<8x128xf32>
    %395 = tpu.matmul %394, %1, %cst_125 {dimension_numbers = #tpu.dot_dimension_numbers<[1], [0], [0], [1], [0, 0, 1, 1], [], []>} : vector<8x128xbf16>, vector<128x128xbf16>, vector<8x128xf32> -> vector<8x128xf32>
    %396 = arith.truncf %395 : vector<8x128xf32> to vector<8x128xbf16>
    %cst_126 = arith.constant dense<0.000000e+00> : vector<8x128xf32>
    %397 = tpu.matmul %396, %0, %cst_126 {dimension_numbers = #tpu.dot_dimension_numbers<[1], [0], [0], [1], [0, 0, 1, 1], [], []>} : vector<8x128xbf16>, vector<128x128xbf16>, vector<8x128xf32> -> vector<8x128xf32>
    %398 = math.tanh %397 : vector<8x128xf32>
    %399 = arith.addf %395, %398 : vector<8x128xf32>
    %400 = arith.truncf %399 : vector<8x128xf32> to vector<8x128xbf16>
    %cst_127 = arith.constant dense<0.000000e+00> : vector<8x128xf32>
    %401 = tpu.matmul %400, %1, %cst_127 {dimension_numbers = #tpu.dot_dimension_numbers<[1], [0], [0], [1], [0, 0, 1, 1], [], []>} : vector<8x128xbf16>, vector<128x128xbf16>, vector<8x128xf32> -> vector<8x128xf32>
    %402 = arith.truncf %401 : vector<8x128xf32> to vector<8x128xbf16>
    %cst_128 = arith.constant dense<0.000000e+00> : vector<8x128xf32>
    %403 = tpu.matmul %402, %0, %cst_128 {dimension_numbers = #tpu.dot_dimension_numbers<[1], [0], [0], [1], [0, 0, 1, 1], [], []>} : vector<8x128xbf16>, vector<128x128xbf16>, vector<8x128xf32> -> vector<8x128xf32>
    %404 = math.tanh %403 : vector<8x128xf32>
    %405 = arith.addf %401, %404 : vector<8x128xf32>
    %406 = arith.truncf %405 : vector<8x128xf32> to vector<8x128xbf16>
    %cst_129 = arith.constant dense<0.000000e+00> : vector<8x128xf32>
    %407 = tpu.matmul %406, %1, %cst_129 {dimension_numbers = #tpu.dot_dimension_numbers<[1], [0], [0], [1], [0, 0, 1, 1], [], []>} : vector<8x128xbf16>, vector<128x128xbf16>, vector<8x128xf32> -> vector<8x128xf32>
    %408 = arith.truncf %407 : vector<8x128xf32> to vector<8x128xbf16>
    %cst_130 = arith.constant dense<0.000000e+00> : vector<8x128xf32>
    %409 = tpu.matmul %408, %0, %cst_130 {dimension_numbers = #tpu.dot_dimension_numbers<[1], [0], [0], [1], [0, 0, 1, 1], [], []>} : vector<8x128xbf16>, vector<128x128xbf16>, vector<8x128xf32> -> vector<8x128xf32>
    %410 = math.tanh %409 : vector<8x128xf32>
    %411 = arith.addf %407, %410 : vector<8x128xf32>
    %412 = arith.truncf %411 : vector<8x128xf32> to vector<8x128xbf16>
    %cst_131 = arith.constant dense<0.000000e+00> : vector<8x128xf32>
    %413 = tpu.matmul %412, %1, %cst_131 {dimension_numbers = #tpu.dot_dimension_numbers<[1], [0], [0], [1], [0, 0, 1, 1], [], []>} : vector<8x128xbf16>, vector<128x128xbf16>, vector<8x128xf32> -> vector<8x128xf32>
    %414 = arith.truncf %413 : vector<8x128xf32> to vector<8x128xbf16>
    %cst_132 = arith.constant dense<0.000000e+00> : vector<8x128xf32>
    %415 = tpu.matmul %414, %0, %cst_132 {dimension_numbers = #tpu.dot_dimension_numbers<[1], [0], [0], [1], [0, 0, 1, 1], [], []>} : vector<8x128xbf16>, vector<128x128xbf16>, vector<8x128xf32> -> vector<8x128xf32>
    %416 = math.tanh %415 : vector<8x128xf32>
    %417 = arith.addf %413, %416 : vector<8x128xf32>
    %418 = arith.truncf %417 : vector<8x128xf32> to vector<8x128xbf16>
    %cst_133 = arith.constant dense<0.000000e+00> : vector<8x128xf32>
    %419 = tpu.matmul %418, %1, %cst_133 {dimension_numbers = #tpu.dot_dimension_numbers<[1], [0], [0], [1], [0, 0, 1, 1], [], []>} : vector<8x128xbf16>, vector<128x128xbf16>, vector<8x128xf32> -> vector<8x128xf32>
    %420 = arith.truncf %419 : vector<8x128xf32> to vector<8x128xbf16>
    %cst_134 = arith.constant dense<0.000000e+00> : vector<8x128xf32>
    %421 = tpu.matmul %420, %0, %cst_134 {dimension_numbers = #tpu.dot_dimension_numbers<[1], [0], [0], [1], [0, 0, 1, 1], [], []>} : vector<8x128xbf16>, vector<128x128xbf16>, vector<8x128xf32> -> vector<8x128xf32>
    %422 = math.tanh %421 : vector<8x128xf32>
    %423 = arith.addf %419, %422 : vector<8x128xf32>
    %424 = arith.truncf %423 : vector<8x128xf32> to vector<8x128xbf16>
    %cst_135 = arith.constant dense<0.000000e+00> : vector<8x128xf32>
    %425 = tpu.matmul %424, %1, %cst_135 {dimension_numbers = #tpu.dot_dimension_numbers<[1], [0], [0], [1], [0, 0, 1, 1], [], []>} : vector<8x128xbf16>, vector<128x128xbf16>, vector<8x128xf32> -> vector<8x128xf32>
    %426 = arith.truncf %425 : vector<8x128xf32> to vector<8x128xbf16>
    %cst_136 = arith.constant dense<0.000000e+00> : vector<8x128xf32>
    %427 = tpu.matmul %426, %0, %cst_136 {dimension_numbers = #tpu.dot_dimension_numbers<[1], [0], [0], [1], [0, 0, 1, 1], [], []>} : vector<8x128xbf16>, vector<128x128xbf16>, vector<8x128xf32> -> vector<8x128xf32>
    %428 = math.tanh %427 : vector<8x128xf32>
    %429 = arith.addf %425, %428 : vector<8x128xf32>
    %430 = arith.truncf %429 : vector<8x128xf32> to vector<8x128xbf16>
    %cst_137 = arith.constant dense<0.000000e+00> : vector<8x128xf32>
    %431 = tpu.matmul %430, %1, %cst_137 {dimension_numbers = #tpu.dot_dimension_numbers<[1], [0], [0], [1], [0, 0, 1, 1], [], []>} : vector<8x128xbf16>, vector<128x128xbf16>, vector<8x128xf32> -> vector<8x128xf32>
    %432 = arith.truncf %431 : vector<8x128xf32> to vector<8x128xbf16>
    %cst_138 = arith.constant dense<0.000000e+00> : vector<8x128xf32>
    %433 = tpu.matmul %432, %0, %cst_138 {dimension_numbers = #tpu.dot_dimension_numbers<[1], [0], [0], [1], [0, 0, 1, 1], [], []>} : vector<8x128xbf16>, vector<128x128xbf16>, vector<8x128xf32> -> vector<8x128xf32>
    %434 = math.tanh %433 : vector<8x128xf32>
    %435 = arith.addf %431, %434 : vector<8x128xf32>
    %436 = arith.truncf %435 : vector<8x128xf32> to vector<8x128xbf16>
    %cst_139 = arith.constant dense<0.000000e+00> : vector<8x128xf32>
    %437 = tpu.matmul %436, %1, %cst_139 {dimension_numbers = #tpu.dot_dimension_numbers<[1], [0], [0], [1], [0, 0, 1, 1], [], []>} : vector<8x128xbf16>, vector<128x128xbf16>, vector<8x128xf32> -> vector<8x128xf32>
    %438 = arith.truncf %437 : vector<8x128xf32> to vector<8x128xbf16>
    %cst_140 = arith.constant dense<0.000000e+00> : vector<8x128xf32>
    %439 = tpu.matmul %438, %0, %cst_140 {dimension_numbers = #tpu.dot_dimension_numbers<[1], [0], [0], [1], [0, 0, 1, 1], [], []>} : vector<8x128xbf16>, vector<128x128xbf16>, vector<8x128xf32> -> vector<8x128xf32>
    %440 = math.tanh %439 : vector<8x128xf32>
    %441 = arith.addf %437, %440 : vector<8x128xf32>
    %442 = arith.truncf %441 : vector<8x128xf32> to vector<8x128xbf16>
    %cst_141 = arith.constant dense<0.000000e+00> : vector<8x128xf32>
    %443 = tpu.matmul %442, %1, %cst_141 {dimension_numbers = #tpu.dot_dimension_numbers<[1], [0], [0], [1], [0, 0, 1, 1], [], []>} : vector<8x128xbf16>, vector<128x128xbf16>, vector<8x128xf32> -> vector<8x128xf32>
    %444 = arith.truncf %443 : vector<8x128xf32> to vector<8x128xbf16>
    %cst_142 = arith.constant dense<0.000000e+00> : vector<8x128xf32>
    %445 = tpu.matmul %444, %0, %cst_142 {dimension_numbers = #tpu.dot_dimension_numbers<[1], [0], [0], [1], [0, 0, 1, 1], [], []>} : vector<8x128xbf16>, vector<128x128xbf16>, vector<8x128xf32> -> vector<8x128xf32>
    %446 = math.tanh %445 : vector<8x128xf32>
    %447 = arith.addf %443, %446 : vector<8x128xf32>
    %448 = arith.truncf %447 : vector<8x128xf32> to vector<8x128xbf16>
    %cst_143 = arith.constant dense<0.000000e+00> : vector<8x128xf32>
    %449 = tpu.matmul %448, %1, %cst_143 {dimension_numbers = #tpu.dot_dimension_numbers<[1], [0], [0], [1], [0, 0, 1, 1], [], []>} : vector<8x128xbf16>, vector<128x128xbf16>, vector<8x128xf32> -> vector<8x128xf32>
    %450 = arith.truncf %449 : vector<8x128xf32> to vector<8x128xbf16>
    %cst_144 = arith.constant dense<0.000000e+00> : vector<8x128xf32>
    %451 = tpu.matmul %450, %0, %cst_144 {dimension_numbers = #tpu.dot_dimension_numbers<[1], [0], [0], [1], [0, 0, 1, 1], [], []>} : vector<8x128xbf16>, vector<128x128xbf16>, vector<8x128xf32> -> vector<8x128xf32>
    %452 = math.tanh %451 : vector<8x128xf32>
    %453 = arith.addf %449, %452 : vector<8x128xf32>
    %454 = arith.truncf %453 : vector<8x128xf32> to vector<8x128xbf16>
    %cst_145 = arith.constant dense<0.000000e+00> : vector<8x128xf32>
    %455 = tpu.matmul %454, %1, %cst_145 {dimension_numbers = #tpu.dot_dimension_numbers<[1], [0], [0], [1], [0, 0, 1, 1], [], []>} : vector<8x128xbf16>, vector<128x128xbf16>, vector<8x128xf32> -> vector<8x128xf32>
    %456 = arith.truncf %455 : vector<8x128xf32> to vector<8x128xbf16>
    %cst_146 = arith.constant dense<0.000000e+00> : vector<8x128xf32>
    %457 = tpu.matmul %456, %0, %cst_146 {dimension_numbers = #tpu.dot_dimension_numbers<[1], [0], [0], [1], [0, 0, 1, 1], [], []>} : vector<8x128xbf16>, vector<128x128xbf16>, vector<8x128xf32> -> vector<8x128xf32>
    %458 = math.tanh %457 : vector<8x128xf32>
    %459 = arith.addf %455, %458 : vector<8x128xf32>
    %460 = arith.truncf %459 : vector<8x128xf32> to vector<8x128xbf16>
    %cst_147 = arith.constant dense<0.000000e+00> : vector<8x128xf32>
    %461 = tpu.matmul %460, %1, %cst_147 {dimension_numbers = #tpu.dot_dimension_numbers<[1], [0], [0], [1], [0, 0, 1, 1], [], []>} : vector<8x128xbf16>, vector<128x128xbf16>, vector<8x128xf32> -> vector<8x128xf32>
    %462 = arith.truncf %461 : vector<8x128xf32> to vector<8x128xbf16>
    %cst_148 = arith.constant dense<0.000000e+00> : vector<8x128xf32>
    %463 = tpu.matmul %462, %0, %cst_148 {dimension_numbers = #tpu.dot_dimension_numbers<[1], [0], [0], [1], [0, 0, 1, 1], [], []>} : vector<8x128xbf16>, vector<128x128xbf16>, vector<8x128xf32> -> vector<8x128xf32>
    %464 = math.tanh %463 : vector<8x128xf32>
    %465 = arith.addf %461, %464 : vector<8x128xf32>
    %466 = arith.truncf %465 : vector<8x128xf32> to vector<8x128xbf16>
    %cst_149 = arith.constant dense<0.000000e+00> : vector<8x128xf32>
    %467 = tpu.matmul %466, %1, %cst_149 {dimension_numbers = #tpu.dot_dimension_numbers<[1], [0], [0], [1], [0, 0, 1, 1], [], []>} : vector<8x128xbf16>, vector<128x128xbf16>, vector<8x128xf32> -> vector<8x128xf32>
    %468 = arith.truncf %467 : vector<8x128xf32> to vector<8x128xbf16>
    %cst_150 = arith.constant dense<0.000000e+00> : vector<8x128xf32>
    %469 = tpu.matmul %468, %0, %cst_150 {dimension_numbers = #tpu.dot_dimension_numbers<[1], [0], [0], [1], [0, 0, 1, 1], [], []>} : vector<8x128xbf16>, vector<128x128xbf16>, vector<8x128xf32> -> vector<8x128xf32>
    %470 = math.tanh %469 : vector<8x128xf32>
    %471 = arith.addf %467, %470 : vector<8x128xf32>
    %472 = arith.truncf %471 : vector<8x128xf32> to vector<8x128xbf16>
    %cst_151 = arith.constant dense<0.000000e+00> : vector<8x128xf32>
    %473 = tpu.matmul %472, %1, %cst_151 {dimension_numbers = #tpu.dot_dimension_numbers<[1], [0], [0], [1], [0, 0, 1, 1], [], []>} : vector<8x128xbf16>, vector<128x128xbf16>, vector<8x128xf32> -> vector<8x128xf32>
    %474 = arith.truncf %473 : vector<8x128xf32> to vector<8x128xbf16>
    %cst_152 = arith.constant dense<0.000000e+00> : vector<8x128xf32>
    %475 = tpu.matmul %474, %0, %cst_152 {dimension_numbers = #tpu.dot_dimension_numbers<[1], [0], [0], [1], [0, 0, 1, 1], [], []>} : vector<8x128xbf16>, vector<128x128xbf16>, vector<8x128xf32> -> vector<8x128xf32>
    %476 = math.tanh %475 : vector<8x128xf32>
    %477 = arith.addf %473, %476 : vector<8x128xf32>
    %478 = arith.truncf %477 : vector<8x128xf32> to vector<8x128xbf16>
    %cst_153 = arith.constant dense<0.000000e+00> : vector<8x128xf32>
    %479 = tpu.matmul %478, %1, %cst_153 {dimension_numbers = #tpu.dot_dimension_numbers<[1], [0], [0], [1], [0, 0, 1, 1], [], []>} : vector<8x128xbf16>, vector<128x128xbf16>, vector<8x128xf32> -> vector<8x128xf32>
    %480 = arith.truncf %479 : vector<8x128xf32> to vector<8x128xbf16>
    %cst_154 = arith.constant dense<0.000000e+00> : vector<8x128xf32>
    %481 = tpu.matmul %480, %0, %cst_154 {dimension_numbers = #tpu.dot_dimension_numbers<[1], [0], [0], [1], [0, 0, 1, 1], [], []>} : vector<8x128xbf16>, vector<128x128xbf16>, vector<8x128xf32> -> vector<8x128xf32>
    %482 = math.tanh %481 : vector<8x128xf32>
    %483 = arith.addf %479, %482 : vector<8x128xf32>
    %484 = arith.truncf %483 : vector<8x128xf32> to vector<8x128xbf16>
    %cst_155 = arith.constant dense<0.000000e+00> : vector<8x128xf32>
    %485 = tpu.matmul %484, %1, %cst_155 {dimension_numbers = #tpu.dot_dimension_numbers<[1], [0], [0], [1], [0, 0, 1, 1], [], []>} : vector<8x128xbf16>, vector<128x128xbf16>, vector<8x128xf32> -> vector<8x128xf32>
    %486 = arith.truncf %485 : vector<8x128xf32> to vector<8x128xbf16>
    %cst_156 = arith.constant dense<0.000000e+00> : vector<8x128xf32>
    %487 = tpu.matmul %486, %0, %cst_156 {dimension_numbers = #tpu.dot_dimension_numbers<[1], [0], [0], [1], [0, 0, 1, 1], [], []>} : vector<8x128xbf16>, vector<128x128xbf16>, vector<8x128xf32> -> vector<8x128xf32>
    %488 = math.tanh %487 : vector<8x128xf32>
    %489 = arith.addf %485, %488 : vector<8x128xf32>
    %490 = arith.truncf %489 : vector<8x128xf32> to vector<8x128xbf16>
    %cst_157 = arith.constant dense<0.000000e+00> : vector<8x128xf32>
    %491 = tpu.matmul %490, %1, %cst_157 {dimension_numbers = #tpu.dot_dimension_numbers<[1], [0], [0], [1], [0, 0, 1, 1], [], []>} : vector<8x128xbf16>, vector<128x128xbf16>, vector<8x128xf32> -> vector<8x128xf32>
    %492 = arith.truncf %491 : vector<8x128xf32> to vector<8x128xbf16>
    %cst_158 = arith.constant dense<0.000000e+00> : vector<8x128xf32>
    %493 = tpu.matmul %492, %0, %cst_158 {dimension_numbers = #tpu.dot_dimension_numbers<[1], [0], [0], [1], [0, 0, 1, 1], [], []>} : vector<8x128xbf16>, vector<128x128xbf16>, vector<8x128xf32> -> vector<8x128xf32>
    %494 = math.tanh %493 : vector<8x128xf32>
    %495 = arith.addf %491, %494 : vector<8x128xf32>
    %496 = arith.truncf %495 : vector<8x128xf32> to vector<8x128xbf16>
    %cst_159 = arith.constant dense<0.000000e+00> : vector<8x128xf32>
    %497 = tpu.matmul %496, %1, %cst_159 {dimension_numbers = #tpu.dot_dimension_numbers<[1], [0], [0], [1], [0, 0, 1, 1], [], []>} : vector<8x128xbf16>, vector<128x128xbf16>, vector<8x128xf32> -> vector<8x128xf32>
    %498 = arith.truncf %497 : vector<8x128xf32> to vector<8x128xbf16>
    %cst_160 = arith.constant dense<0.000000e+00> : vector<8x128xf32>
    %499 = tpu.matmul %498, %0, %cst_160 {dimension_numbers = #tpu.dot_dimension_numbers<[1], [0], [0], [1], [0, 0, 1, 1], [], []>} : vector<8x128xbf16>, vector<128x128xbf16>, vector<8x128xf32> -> vector<8x128xf32>
    %500 = math.tanh %499 : vector<8x128xf32>
    %501 = arith.addf %497, %500 : vector<8x128xf32>
    %502 = arith.truncf %501 : vector<8x128xf32> to vector<8x128xbf16>
    %cst_161 = arith.constant dense<0.000000e+00> : vector<8x128xf32>
    %503 = tpu.matmul %502, %1, %cst_161 {dimension_numbers = #tpu.dot_dimension_numbers<[1], [0], [0], [1], [0, 0, 1, 1], [], []>} : vector<8x128xbf16>, vector<128x128xbf16>, vector<8x128xf32> -> vector<8x128xf32>
    %504 = arith.truncf %503 : vector<8x128xf32> to vector<8x128xbf16>
    %cst_162 = arith.constant dense<0.000000e+00> : vector<8x128xf32>
    %505 = tpu.matmul %504, %0, %cst_162 {dimension_numbers = #tpu.dot_dimension_numbers<[1], [0], [0], [1], [0, 0, 1, 1], [], []>} : vector<8x128xbf16>, vector<128x128xbf16>, vector<8x128xf32> -> vector<8x128xf32>
    %506 = math.tanh %505 : vector<8x128xf32>
    %507 = arith.addf %503, %506 : vector<8x128xf32>
    %508 = arith.truncf %507 : vector<8x128xf32> to vector<8x128xbf16>
    %cst_163 = arith.constant dense<0.000000e+00> : vector<8x128xf32>
    %509 = tpu.matmul %508, %1, %cst_163 {dimension_numbers = #tpu.dot_dimension_numbers<[1], [0], [0], [1], [0, 0, 1, 1], [], []>} : vector<8x128xbf16>, vector<128x128xbf16>, vector<8x128xf32> -> vector<8x128xf32>
    %510 = arith.truncf %509 : vector<8x128xf32> to vector<8x128xbf16>
    %cst_164 = arith.constant dense<0.000000e+00> : vector<8x128xf32>
    %511 = tpu.matmul %510, %0, %cst_164 {dimension_numbers = #tpu.dot_dimension_numbers<[1], [0], [0], [1], [0, 0, 1, 1], [], []>} : vector<8x128xbf16>, vector<128x128xbf16>, vector<8x128xf32> -> vector<8x128xf32>
    %512 = math.tanh %511 : vector<8x128xf32>
    %513 = arith.addf %509, %512 : vector<8x128xf32>
    %514 = arith.truncf %513 : vector<8x128xf32> to vector<8x128xbf16>
    %cst_165 = arith.constant dense<0.000000e+00> : vector<8x128xf32>
    %515 = tpu.matmul %514, %1, %cst_165 {dimension_numbers = #tpu.dot_dimension_numbers<[1], [0], [0], [1], [0, 0, 1, 1], [], []>} : vector<8x128xbf16>, vector<128x128xbf16>, vector<8x128xf32> -> vector<8x128xf32>
    %516 = arith.truncf %515 : vector<8x128xf32> to vector<8x128xbf16>
    %cst_166 = arith.constant dense<0.000000e+00> : vector<8x128xf32>
    %517 = tpu.matmul %516, %0, %cst_166 {dimension_numbers = #tpu.dot_dimension_numbers<[1], [0], [0], [1], [0, 0, 1, 1], [], []>} : vector<8x128xbf16>, vector<128x128xbf16>, vector<8x128xf32> -> vector<8x128xf32>
    %518 = math.tanh %517 : vector<8x128xf32>
    %519 = arith.addf %515, %518 : vector<8x128xf32>
    %520 = arith.truncf %519 : vector<8x128xf32> to vector<8x128xbf16>
    %cst_167 = arith.constant dense<0.000000e+00> : vector<8x128xf32>
    %521 = tpu.matmul %520, %1, %cst_167 {dimension_numbers = #tpu.dot_dimension_numbers<[1], [0], [0], [1], [0, 0, 1, 1], [], []>} : vector<8x128xbf16>, vector<128x128xbf16>, vector<8x128xf32> -> vector<8x128xf32>
    %522 = arith.truncf %521 : vector<8x128xf32> to vector<8x128xbf16>
    %cst_168 = arith.constant dense<0.000000e+00> : vector<8x128xf32>
    %523 = tpu.matmul %522, %0, %cst_168 {dimension_numbers = #tpu.dot_dimension_numbers<[1], [0], [0], [1], [0, 0, 1, 1], [], []>} : vector<8x128xbf16>, vector<128x128xbf16>, vector<8x128xf32> -> vector<8x128xf32>
    %524 = math.tanh %523 : vector<8x128xf32>
    %525 = arith.addf %521, %524 : vector<8x128xf32>
    %526 = arith.truncf %525 : vector<8x128xf32> to vector<8x128xbf16>
    %cst_169 = arith.constant dense<0.000000e+00> : vector<8x128xf32>
    %527 = tpu.matmul %526, %1, %cst_169 {dimension_numbers = #tpu.dot_dimension_numbers<[1], [0], [0], [1], [0, 0, 1, 1], [], []>} : vector<8x128xbf16>, vector<128x128xbf16>, vector<8x128xf32> -> vector<8x128xf32>
    %528 = arith.truncf %527 : vector<8x128xf32> to vector<8x128xbf16>
    %cst_170 = arith.constant dense<0.000000e+00> : vector<8x128xf32>
    %529 = tpu.matmul %528, %0, %cst_170 {dimension_numbers = #tpu.dot_dimension_numbers<[1], [0], [0], [1], [0, 0, 1, 1], [], []>} : vector<8x128xbf16>, vector<128x128xbf16>, vector<8x128xf32> -> vector<8x128xf32>
    %530 = math.tanh %529 : vector<8x128xf32>
    %531 = arith.addf %527, %530 : vector<8x128xf32>
    %532 = arith.truncf %531 : vector<8x128xf32> to vector<8x128xbf16>
    %cst_171 = arith.constant dense<0.000000e+00> : vector<8x128xf32>
    %533 = tpu.matmul %532, %1, %cst_171 {dimension_numbers = #tpu.dot_dimension_numbers<[1], [0], [0], [1], [0, 0, 1, 1], [], []>} : vector<8x128xbf16>, vector<128x128xbf16>, vector<8x128xf32> -> vector<8x128xf32>
    %534 = arith.truncf %533 : vector<8x128xf32> to vector<8x128xbf16>
    %cst_172 = arith.constant dense<0.000000e+00> : vector<8x128xf32>
    %535 = tpu.matmul %534, %0, %cst_172 {dimension_numbers = #tpu.dot_dimension_numbers<[1], [0], [0], [1], [0, 0, 1, 1], [], []>} : vector<8x128xbf16>, vector<128x128xbf16>, vector<8x128xf32> -> vector<8x128xf32>
    %536 = math.tanh %535 : vector<8x128xf32>
    %537 = arith.addf %533, %536 : vector<8x128xf32>
    %538 = arith.truncf %537 : vector<8x128xf32> to vector<8x128xbf16>
    %cst_173 = arith.constant dense<0.000000e+00> : vector<8x128xf32>
    %539 = tpu.matmul %538, %1, %cst_173 {dimension_numbers = #tpu.dot_dimension_numbers<[1], [0], [0], [1], [0, 0, 1, 1], [], []>} : vector<8x128xbf16>, vector<128x128xbf16>, vector<8x128xf32> -> vector<8x128xf32>
    %540 = arith.truncf %539 : vector<8x128xf32> to vector<8x128xbf16>
    %cst_174 = arith.constant dense<0.000000e+00> : vector<8x128xf32>
    %541 = tpu.matmul %540, %0, %cst_174 {dimension_numbers = #tpu.dot_dimension_numbers<[1], [0], [0], [1], [0, 0, 1, 1], [], []>} : vector<8x128xbf16>, vector<128x128xbf16>, vector<8x128xf32> -> vector<8x128xf32>
    %542 = math.tanh %541 : vector<8x128xf32>
    %543 = arith.addf %539, %542 : vector<8x128xf32>
    %544 = arith.truncf %543 : vector<8x128xf32> to vector<8x128xbf16>
    %cst_175 = arith.constant dense<0.000000e+00> : vector<8x128xf32>
    %545 = tpu.matmul %544, %1, %cst_175 {dimension_numbers = #tpu.dot_dimension_numbers<[1], [0], [0], [1], [0, 0, 1, 1], [], []>} : vector<8x128xbf16>, vector<128x128xbf16>, vector<8x128xf32> -> vector<8x128xf32>
    %546 = arith.truncf %545 : vector<8x128xf32> to vector<8x128xbf16>
    %cst_176 = arith.constant dense<0.000000e+00> : vector<8x128xf32>
    %547 = tpu.matmul %546, %0, %cst_176 {dimension_numbers = #tpu.dot_dimension_numbers<[1], [0], [0], [1], [0, 0, 1, 1], [], []>} : vector<8x128xbf16>, vector<128x128xbf16>, vector<8x128xf32> -> vector<8x128xf32>
    %548 = math.tanh %547 : vector<8x128xf32>
    %549 = arith.addf %545, %548 : vector<8x128xf32>
    %550 = arith.truncf %549 : vector<8x128xf32> to vector<8x128xbf16>
    %cst_177 = arith.constant dense<0.000000e+00> : vector<8x128xf32>
    %551 = tpu.matmul %550, %1, %cst_177 {dimension_numbers = #tpu.dot_dimension_numbers<[1], [0], [0], [1], [0, 0, 1, 1], [], []>} : vector<8x128xbf16>, vector<128x128xbf16>, vector<8x128xf32> -> vector<8x128xf32>
    %552 = arith.truncf %551 : vector<8x128xf32> to vector<8x128xbf16>
    %cst_178 = arith.constant dense<0.000000e+00> : vector<8x128xf32>
    %553 = tpu.matmul %552, %0, %cst_178 {dimension_numbers = #tpu.dot_dimension_numbers<[1], [0], [0], [1], [0, 0, 1, 1], [], []>} : vector<8x128xbf16>, vector<128x128xbf16>, vector<8x128xf32> -> vector<8x128xf32>
    %554 = math.tanh %553 : vector<8x128xf32>
    %555 = arith.addf %551, %554 : vector<8x128xf32>
    %556 = arith.truncf %555 : vector<8x128xf32> to vector<8x128xbf16>
    %cst_179 = arith.constant dense<0.000000e+00> : vector<8x128xf32>
    %557 = tpu.matmul %556, %1, %cst_179 {dimension_numbers = #tpu.dot_dimension_numbers<[1], [0], [0], [1], [0, 0, 1, 1], [], []>} : vector<8x128xbf16>, vector<128x128xbf16>, vector<8x128xf32> -> vector<8x128xf32>
    %558 = arith.truncf %557 : vector<8x128xf32> to vector<8x128xbf16>
    %cst_180 = arith.constant dense<0.000000e+00> : vector<8x128xf32>
    %559 = tpu.matmul %558, %0, %cst_180 {dimension_numbers = #tpu.dot_dimension_numbers<[1], [0], [0], [1], [0, 0, 1, 1], [], []>} : vector<8x128xbf16>, vector<128x128xbf16>, vector<8x128xf32> -> vector<8x128xf32>
    %560 = math.tanh %559 : vector<8x128xf32>
    %561 = arith.addf %557, %560 : vector<8x128xf32>
    %562 = arith.truncf %561 : vector<8x128xf32> to vector<8x128xbf16>
    %cst_181 = arith.constant dense<0.000000e+00> : vector<8x128xf32>
    %563 = tpu.matmul %562, %1, %cst_181 {dimension_numbers = #tpu.dot_dimension_numbers<[1], [0], [0], [1], [0, 0, 1, 1], [], []>} : vector<8x128xbf16>, vector<128x128xbf16>, vector<8x128xf32> -> vector<8x128xf32>
    %564 = arith.truncf %563 : vector<8x128xf32> to vector<8x128xbf16>
    %cst_182 = arith.constant dense<0.000000e+00> : vector<8x128xf32>
    %565 = tpu.matmul %564, %0, %cst_182 {dimension_numbers = #tpu.dot_dimension_numbers<[1], [0], [0], [1], [0, 0, 1, 1], [], []>} : vector<8x128xbf16>, vector<128x128xbf16>, vector<8x128xf32> -> vector<8x128xf32>
    %566 = math.tanh %565 : vector<8x128xf32>
    %567 = arith.addf %563, %566 : vector<8x128xf32>
    %568 = arith.truncf %567 : vector<8x128xf32> to vector<8x128xbf16>
    %cst_183 = arith.constant dense<0.000000e+00> : vector<8x128xf32>
    %569 = tpu.matmul %568, %1, %cst_183 {dimension_numbers = #tpu.dot_dimension_numbers<[1], [0], [0], [1], [0, 0, 1, 1], [], []>} : vector<8x128xbf16>, vector<128x128xbf16>, vector<8x128xf32> -> vector<8x128xf32>
    %570 = arith.truncf %569 : vector<8x128xf32> to vector<8x128xbf16>
    %cst_184 = arith.constant dense<0.000000e+00> : vector<8x128xf32>
    %571 = tpu.matmul %570, %0, %cst_184 {dimension_numbers = #tpu.dot_dimension_numbers<[1], [0], [0], [1], [0, 0, 1, 1], [], []>} : vector<8x128xbf16>, vector<128x128xbf16>, vector<8x128xf32> -> vector<8x128xf32>
    %572 = math.tanh %571 : vector<8x128xf32>
    %573 = arith.addf %569, %572 : vector<8x128xf32>
    %574 = arith.truncf %573 : vector<8x128xf32> to vector<8x128xbf16>
    %cst_185 = arith.constant dense<0.000000e+00> : vector<8x128xf32>
    %575 = tpu.matmul %574, %1, %cst_185 {dimension_numbers = #tpu.dot_dimension_numbers<[1], [0], [0], [1], [0, 0, 1, 1], [], []>} : vector<8x128xbf16>, vector<128x128xbf16>, vector<8x128xf32> -> vector<8x128xf32>
    %576 = arith.truncf %575 : vector<8x128xf32> to vector<8x128xbf16>
    %cst_186 = arith.constant dense<0.000000e+00> : vector<8x128xf32>
    %577 = tpu.matmul %576, %0, %cst_186 {dimension_numbers = #tpu.dot_dimension_numbers<[1], [0], [0], [1], [0, 0, 1, 1], [], []>} : vector<8x128xbf16>, vector<128x128xbf16>, vector<8x128xf32> -> vector<8x128xf32>
    %578 = math.tanh %577 : vector<8x128xf32>
    %579 = arith.addf %575, %578 : vector<8x128xf32>
    %580 = arith.truncf %579 : vector<8x128xf32> to vector<8x128xbf16>
    %cst_187 = arith.constant dense<0.000000e+00> : vector<8x128xf32>
    %581 = tpu.matmul %580, %1, %cst_187 {dimension_numbers = #tpu.dot_dimension_numbers<[1], [0], [0], [1], [0, 0, 1, 1], [], []>} : vector<8x128xbf16>, vector<128x128xbf16>, vector<8x128xf32> -> vector<8x128xf32>
    %582 = arith.truncf %581 : vector<8x128xf32> to vector<8x128xbf16>
    %cst_188 = arith.constant dense<0.000000e+00> : vector<8x128xf32>
    %583 = tpu.matmul %582, %0, %cst_188 {dimension_numbers = #tpu.dot_dimension_numbers<[1], [0], [0], [1], [0, 0, 1, 1], [], []>} : vector<8x128xbf16>, vector<128x128xbf16>, vector<8x128xf32> -> vector<8x128xf32>
    %584 = math.tanh %583 : vector<8x128xf32>
    %585 = arith.addf %581, %584 : vector<8x128xf32>
    %586 = arith.truncf %585 : vector<8x128xf32> to vector<8x128xbf16>
    %cst_189 = arith.constant dense<0.000000e+00> : vector<8x128xf32>
    %587 = tpu.matmul %586, %1, %cst_189 {dimension_numbers = #tpu.dot_dimension_numbers<[1], [0], [0], [1], [0, 0, 1, 1], [], []>} : vector<8x128xbf16>, vector<128x128xbf16>, vector<8x128xf32> -> vector<8x128xf32>
    %588 = arith.truncf %587 : vector<8x128xf32> to vector<8x128xbf16>
    %cst_190 = arith.constant dense<0.000000e+00> : vector<8x128xf32>
    %589 = tpu.matmul %588, %0, %cst_190 {dimension_numbers = #tpu.dot_dimension_numbers<[1], [0], [0], [1], [0, 0, 1, 1], [], []>} : vector<8x128xbf16>, vector<128x128xbf16>, vector<8x128xf32> -> vector<8x128xf32>
    %590 = math.tanh %589 : vector<8x128xf32>
    %591 = arith.addf %587, %590 : vector<8x128xf32>
    %592 = arith.truncf %591 : vector<8x128xf32> to vector<8x128xbf16>
    %cst_191 = arith.constant dense<0.000000e+00> : vector<8x128xf32>
    %593 = tpu.matmul %592, %1, %cst_191 {dimension_numbers = #tpu.dot_dimension_numbers<[1], [0], [0], [1], [0, 0, 1, 1], [], []>} : vector<8x128xbf16>, vector<128x128xbf16>, vector<8x128xf32> -> vector<8x128xf32>
    %594 = arith.truncf %593 : vector<8x128xf32> to vector<8x128xbf16>
    %cst_192 = arith.constant dense<0.000000e+00> : vector<8x128xf32>
    %595 = tpu.matmul %594, %0, %cst_192 {dimension_numbers = #tpu.dot_dimension_numbers<[1], [0], [0], [1], [0, 0, 1, 1], [], []>} : vector<8x128xbf16>, vector<128x128xbf16>, vector<8x128xf32> -> vector<8x128xf32>
    %596 = math.tanh %595 : vector<8x128xf32>
    %597 = arith.addf %593, %596 : vector<8x128xf32>
    %598 = arith.truncf %597 : vector<8x128xf32> to vector<8x128xbf16>
    %cst_193 = arith.constant dense<0.000000e+00> : vector<8x128xf32>
    %599 = tpu.matmul %598, %1, %cst_193 {dimension_numbers = #tpu.dot_dimension_numbers<[1], [0], [0], [1], [0, 0, 1, 1], [], []>} : vector<8x128xbf16>, vector<128x128xbf16>, vector<8x128xf32> -> vector<8x128xf32>
    %600 = arith.truncf %599 : vector<8x128xf32> to vector<8x128xbf16>
    %cst_194 = arith.constant dense<0.000000e+00> : vector<8x128xf32>
    %601 = tpu.matmul %600, %0, %cst_194 {dimension_numbers = #tpu.dot_dimension_numbers<[1], [0], [0], [1], [0, 0, 1, 1], [], []>} : vector<8x128xbf16>, vector<128x128xbf16>, vector<8x128xf32> -> vector<8x128xf32>
    %602 = math.tanh %601 : vector<8x128xf32>
    %603 = arith.addf %599, %602 : vector<8x128xf32>
    %604 = arith.truncf %603 : vector<8x128xf32> to vector<8x128xbf16>
    %cst_195 = arith.constant dense<0.000000e+00> : vector<8x128xf32>
    %605 = tpu.matmul %604, %1, %cst_195 {dimension_numbers = #tpu.dot_dimension_numbers<[1], [0], [0], [1], [0, 0, 1, 1], [], []>} : vector<8x128xbf16>, vector<128x128xbf16>, vector<8x128xf32> -> vector<8x128xf32>
    %606 = arith.truncf %605 : vector<8x128xf32> to vector<8x128xbf16>
    %cst_196 = arith.constant dense<0.000000e+00> : vector<8x128xf32>
    %607 = tpu.matmul %606, %0, %cst_196 {dimension_numbers = #tpu.dot_dimension_numbers<[1], [0], [0], [1], [0, 0, 1, 1], [], []>} : vector<8x128xbf16>, vector<128x128xbf16>, vector<8x128xf32> -> vector<8x128xf32>
    %608 = math.tanh %607 : vector<8x128xf32>
    %609 = arith.addf %605, %608 : vector<8x128xf32>
    %610 = arith.truncf %609 : vector<8x128xf32> to vector<8x128xbf16>
    %cst_197 = arith.constant dense<0.000000e+00> : vector<8x128xf32>
    %611 = tpu.matmul %610, %1, %cst_197 {dimension_numbers = #tpu.dot_dimension_numbers<[1], [0], [0], [1], [0, 0, 1, 1], [], []>} : vector<8x128xbf16>, vector<128x128xbf16>, vector<8x128xf32> -> vector<8x128xf32>
    %612 = arith.truncf %611 : vector<8x128xf32> to vector<8x128xbf16>
    %cst_198 = arith.constant dense<0.000000e+00> : vector<8x128xf32>
    %613 = tpu.matmul %612, %0, %cst_198 {dimension_numbers = #tpu.dot_dimension_numbers<[1], [0], [0], [1], [0, 0, 1, 1], [], []>} : vector<8x128xbf16>, vector<128x128xbf16>, vector<8x128xf32> -> vector<8x128xf32>
    %614 = math.tanh %613 : vector<8x128xf32>
    %615 = arith.addf %611, %614 : vector<8x128xf32>
    %616 = arith.truncf %615 : vector<8x128xf32> to vector<8x128xbf16>
    %cst_199 = arith.constant dense<0.000000e+00> : vector<8x128xf32>
    %617 = tpu.matmul %616, %1, %cst_199 {dimension_numbers = #tpu.dot_dimension_numbers<[1], [0], [0], [1], [0, 0, 1, 1], [], []>} : vector<8x128xbf16>, vector<128x128xbf16>, vector<8x128xf32> -> vector<8x128xf32>
    %618 = arith.truncf %617 : vector<8x128xf32> to vector<8x128xbf16>
    %cst_200 = arith.constant dense<0.000000e+00> : vector<8x128xf32>
    %619 = tpu.matmul %618, %0, %cst_200 {dimension_numbers = #tpu.dot_dimension_numbers<[1], [0], [0], [1], [0, 0, 1, 1], [], []>} : vector<8x128xbf16>, vector<128x128xbf16>, vector<8x128xf32> -> vector<8x128xf32>
    %620 = math.tanh %619 : vector<8x128xf32>
    %621 = arith.addf %617, %620 : vector<8x128xf32>
    %622 = arith.truncf %621 : vector<8x128xf32> to vector<8x128xbf16>
    %cst_201 = arith.constant dense<0.000000e+00> : vector<8x128xf32>
    %623 = tpu.matmul %622, %1, %cst_201 {dimension_numbers = #tpu.dot_dimension_numbers<[1], [0], [0], [1], [0, 0, 1, 1], [], []>} : vector<8x128xbf16>, vector<128x128xbf16>, vector<8x128xf32> -> vector<8x128xf32>
    %624 = arith.truncf %623 : vector<8x128xf32> to vector<8x128xbf16>
    %cst_202 = arith.constant dense<0.000000e+00> : vector<8x128xf32>
    %625 = tpu.matmul %624, %0, %cst_202 {dimension_numbers = #tpu.dot_dimension_numbers<[1], [0], [0], [1], [0, 0, 1, 1], [], []>} : vector<8x128xbf16>, vector<128x128xbf16>, vector<8x128xf32> -> vector<8x128xf32>
    %626 = math.tanh %625 : vector<8x128xf32>
    %627 = arith.addf %623, %626 : vector<8x128xf32>
    %628 = arith.truncf %627 : vector<8x128xf32> to vector<8x128xbf16>
    %cst_203 = arith.constant dense<0.000000e+00> : vector<8x128xf32>
    %629 = tpu.matmul %628, %1, %cst_203 {dimension_numbers = #tpu.dot_dimension_numbers<[1], [0], [0], [1], [0, 0, 1, 1], [], []>} : vector<8x128xbf16>, vector<128x128xbf16>, vector<8x128xf32> -> vector<8x128xf32>
    %630 = arith.truncf %629 : vector<8x128xf32> to vector<8x128xbf16>
    %cst_204 = arith.constant dense<0.000000e+00> : vector<8x128xf32>
    %631 = tpu.matmul %630, %0, %cst_204 {dimension_numbers = #tpu.dot_dimension_numbers<[1], [0], [0], [1], [0, 0, 1, 1], [], []>} : vector<8x128xbf16>, vector<128x128xbf16>, vector<8x128xf32> -> vector<8x128xf32>
    %632 = math.tanh %631 : vector<8x128xf32>
    %633 = arith.addf %629, %632 : vector<8x128xf32>
    %634 = arith.truncf %633 : vector<8x128xf32> to vector<8x128xbf16>
    %cst_205 = arith.constant dense<0.000000e+00> : vector<8x128xf32>
    %635 = tpu.matmul %634, %1, %cst_205 {dimension_numbers = #tpu.dot_dimension_numbers<[1], [0], [0], [1], [0, 0, 1, 1], [], []>} : vector<8x128xbf16>, vector<128x128xbf16>, vector<8x128xf32> -> vector<8x128xf32>
    %c0_206 = arith.constant 0 : index
    %c0_207 = arith.constant 0 : index
    %636 = vector.load %arg3[%c0_206, %c0_207] : memref<8x128xf32, #tpu.memory_space<vmem>>, vector<8x128xf32>
    tpu.vector_store %arg3[%c0_206, %c0_207], %635 {strides = array<i32>} : memref<8x128xf32, #tpu.memory_space<vmem>>, vector<8x128xf32>,
    %c4_i32 = arith.constant 4 : i32
    %637 = vector.broadcast %c4_i32 : i32 to vector<8x128xi32>
    %638 = arith.cmpi slt, %2, %637 : vector<8x128xi32>
    %639 = arith.andi %5, %638 : vector<8x128xi1>
    %cst_208 = arith.constant 0.000000e+00 : f32
    %640 = vector.broadcast %cst_208 : f32 to vector<8x128xf32>
    %641 = arith.select %639, %635, %640 : vector<8x128xi1>, vector<8x128xf32>
    %642 = arith.mulf %641, %641 : vector<8x128xf32>
    %643 = vector.shape_cast %642 : vector<8x128xf32> to vector<1x8x128xf32>
    %cst_209 = arith.constant dense<0.000000e+00> : vector<1xf32>
    %644 = vector.multi_reduction <add>, %643, %cst_209 [1, 2] : vector<1x8x128xf32> to vector<1xf32>
    %645 = vector.shape_cast %644 : vector<1xf32> to vector<1x1x1xf32>
    %646 = vector.extract %645[0, 0, 0] : f32 from vector<1x1x1xf32>
    %c0_210 = arith.constant 0 : index
    %c0_211 = arith.constant 0 : index
    %647 = memref.load %arg4[%c0_210, %c0_211] : memref<1x1xf32, #tpu.memory_space<smem>>
    memref.store %646, %arg4[%c0_210, %c0_211] : memref<1x1xf32, #tpu.memory_space<smem>>
    return
  }
}

</mosaic_0001>

<llo_original>
// kernel: simulate_pallas.1
$region0: #{simulate_pallas.1}
  #allocation0 [shape = 'u32[]', space=smem, size = 0x4, offset = 0x4, fixed_abs, tag = 'smem constant byte address 0x4 - core index']
  #allocation1 [shape = 'u32[144,128]{1,0:T(1,128)}', space=vmem, size = 0x12000, scoped, tag = 'internal scratch']
  %s0 = inlined_call_operand.hbm [shape: f32[4], index: 0, kind: input, shape index: {}]
  %s1 = inlined_call_operand.hbm [shape: bf16[128,128], index: 1, kind: input, shape index: {}]
  %s2 = inlined_call_operand.hbm [shape: bf16[128,128], index: 2, kind: input, shape index: {}]
  %s3 = inlined_call_operand.hbm [shape: f32[8,128], index: 3, kind: output, shape index: {0}]
  %s4 = inlined_call_operand.hbm [shape: f32[1,1], index: 4, kind: output, shape index: {1}]
  %5 = xla_tuple %s3, %s4
  %s6 = sld [smem:[#allocation0]]
  $region42: #{simulate_pallas.1} parent=0
    _
  %s8 = ssub.s32 1, %s6
  %s9 = scalar_select 0, %s8, %s6
  $region1: #{simulate_pallas.1} parent=0
    #allocation2 [shape = 'u8[512]{0}', space=smem, size = 0x200, scoped, tag = 'input window, operand 0, single buffered']
    #allocation3 [shape = 's32[1]{0}', space=sflag, size = 0x4, scoped, tag = 'scoped memory for simulate_pallas.1']
    #allocation4 [shape = 's32[1]{0}', space=sflag, size = 0x4, scoped, tag = 'scoped memory for simulate_pallas.1']
    #allocation5 [shape = 's32[1]{0}', space=sflag, size = 0x4, scoped, tag = 'scoped memory for simulate_pallas.1']
    #allocation6 [shape = 's32[1]{0}', space=sflag, size = 0x4, scoped, tag = 'scoped memory for simulate_pallas.1']
    #allocation7 [shape = 'u8[32768]{0}', space=vmem, size = 0x8000, scoped, tag = 'input window, operand 1, single buffered']
    #allocation8 [shape = 'u8[32768]{0}', space=vmem, size = 0x8000, scoped, tag = 'input window, operand 2, single buffered']
    #allocation9 [shape = 's32[1]{0}', space=sflag, size = 0x4, scoped, tag = 'scoped memory for simulate_pallas.1']
    #allocation10 [shape = 'u8[4096]{0}', space=vmem, size = 0x1000, scoped, tag = 'output window, operand 0, single buffered']
    #allocation11 [shape = 'u8[512]{0}', space=smem, size = 0x200, scoped, tag = 'output window, operand 1, single buffered']
    %10 = vsyncpa [#allocation5], 0
    %11 = vsyncpa [#allocation3], 0
    %12 = vsyncpa [#allocation9], 0
    %13 = vsyncpa [#allocation4], 0
    %14 = vsyncpa [#allocation6], 0
    // Predicated region
    $region2: #{simulate_pallas.1} parent=1 // pred_check
      _
    $region3: #{simulate_pallas.1} parent=1 // pred_check_branch
      %16 = sbr.rel (0) target = $region5
    $region4: #{simulate_pallas.1} parent=1 // pred_region
      %s18 = ssub.s32 16, 16
      %19 = vsyncadd [#allocation5], %s18
      %22 = dma.hbm_to_smem %s0, 16, [#allocation2], [#allocation5]
    $region5: #{simulate_pallas.1} parent=1 // pred_fallthru
      _
    // Predicated region
    $region6: #{simulate_pallas.1} parent=1 // pred_check
      _
    $region7: #{simulate_pallas.1} parent=1 // pred_check_branch
      %24 = sbr.rel (0) target = $region9
    $region8: #{simulate_pallas.1} parent=1 // pred_region
      %s26 = ssub.s32 1024, 1024
      %27 = vsyncadd [#allocation3], %s26
      %s28 = sshll.u32 [#allocation7], 4
      %s29 = int_to_ptr.vmem [resolvable:$true] %s28
      %34 = dma.hbm_to_vmem [thread:$0]  %s1, 1024, %s29, [#allocation3], 64, 64, 4
    $region9: #{simulate_pallas.1} parent=1 // pred_fallthru
      _
    // Predicated region
    $region10: #{simulate_pallas.1} parent=1 // pred_check
      _
    $region11: #{simulate_pallas.1} parent=1 // pred_check_branch
      %36 = sbr.rel (0) target = $region13
    $region12: #{simulate_pallas.1} parent=1 // pred_region
      %s38 = ssub.s32 1024, 1024
      %39 = vsyncadd [#allocation9], %s38
      %s40 = sshll.u32 [#allocation8], 4
      %s41 = int_to_ptr.vmem [resolvable:$true] %s40
      %46 = dma.hbm_to_vmem [thread:$0]  %s2, 1024, %s41, [#allocation9], 64, 64, 4
    $region13: #{simulate_pallas.1} parent=1 // pred_fallthru
      _
    // Predicated region
    $region14: #{simulate_pallas.1} parent=1 // pred_check
      _
    $region15: #{simulate_pallas.1} parent=1 // pred_check_branch
      %48 = sbr.rel (0) target = $region17
    $region16: #{simulate_pallas.1} parent=1 // pred_region
      %49 = dma.done [#allocation5], 16
    $region17: #{simulate_pallas.1} parent=1 // pred_fallthru
      _
    // Predicated region
    $region18: #{simulate_pallas.1} parent=1 // pred_check
      _
    $region19: #{simulate_pallas.1} parent=1 // pred_check_branch
      %51 = sbr.rel (0) target = $region21
    $region20: #{simulate_pallas.1} parent=1 // pred_region
      %52 = dma.done [#allocation3], 1024
    $region21: #{simulate_pallas.1} parent=1 // pred_fallthru
      _
    // Predicated region
    $region22: #{simulate_pallas.1} parent=1 // pred_check
      _
    $region23: #{simulate_pallas.1} parent=1 // pred_check_branch
      %54 = sbr.rel (0) target = $region25
    $region24: #{simulate_pallas.1} parent=1 // pred_region
      %55 = dma.done [#allocation9], 1024
    $region25: #{simulate_pallas.1} parent=1 // pred_fallthru
      _
    %56 = sfence
    %v58 = vld [vmem:[#allocation7] sm:$0xf]
    %v59 = vld [vmem:[#allocation7 + $0x4] sm:$0xf]
    %v60 = vld [vmem:[#allocation7 + $0x8] sm:$0xf]
    %v61 = vld [vmem:[#allocation7 + $0xc] sm:$0xf]
    %v62 = vld [vmem:[#allocation7 + $0x10] sm:$0xf]
    %v63 = vld [vmem:[#allocation7 + $0x14] sm:$0xf]
    %v64 = vld [vmem:[#allocation7 + $0x18] sm:$0xf]
    %v65 = vld [vmem:[#allocation7 + $0x1c] sm:$0xf]
    %v66 = vld [vmem:[#allocation7 + $0x20] sm:$0xf]
    %v67 = vld [vmem:[#allocation7 + $0x24] sm:$0xf]
    %v68 = vld [vmem:[#allocation7 + $0x28] sm:$0xf]
    %v69 = vld [vmem:[#allocation7 + $0x2c] sm:$0xf]
    %v70 = vld [vmem:[#allocation7 + $0x30] sm:$0xf]
    %v71 = vld [vmem:[#allocation7 + $0x34] sm:$0xf]
    %v72 = vld [vmem:[#allocation7 + $0x38] sm:$0xf]
    %v73 = vld [vmem:[#allocation7 + $0x3c] sm:$0xf]
    %v74 = vld [vmem:[#allocation8] sm:$0xf]
    %v75 = vld [vmem:[#allocation8 + $0x4] sm:$0xf]
    %v76 = vld [vmem:[#allocation8 + $0x8] sm:$0xf]
    %v77 = vld [vmem:[#allocation8 + $0xc] sm:$0xf]
    %v78 = vld [vmem:[#allocation8 + $0x10] sm:$0xf]
    %v79 = vld [vmem:[#allocation8 + $0x14] sm:$0xf]
    %v80 = vld [vmem:[#allocation8 + $0x18] sm:$0xf]
    %v81 = vld [vmem:[#allocation8 + $0x1c] sm:$0xf]
    %v82 = vld [vmem:[#allocation8 + $0x20] sm:$0xf]
    %v83 = vld [vmem:[#allocation8 + $0x24] sm:$0xf]
    %v84 = vld [vmem:[#allocation8 + $0x28] sm:$0xf]
    %v85 = vld [vmem:[#allocation8 + $0x2c] sm:$0xf]
    %v86 = vld [vmem:[#allocation8 + $0x30] sm:$0xf]
    %v87 = vld [vmem:[#allocation8 + $0x34] sm:$0xf]
    %v88 = vld [vmem:[#allocation8 + $0x38] sm:$0xf]
    %v89 = vld [vmem:[#allocation8 + $0x3c] sm:$0xf]
    %v90 = vlaneseq
    %v91 = vand.u32 %v90, 127
    %v92 = vlaneseq
    %v93 = vshrl.u32 %v92, 7
    %vm94 = vcmp.eq.s32.totalorder %v93, 0
    %vm95 = vcmp.eq.s32.totalorder %v91, 0
    %vm96 = vmand %vm94, %vm95
    %s97 = sld [smem:[#allocation2]]
    %v98 = vstv %s97
    %v99 = vsel %vm96, %v98, 0.0
    %vm100 = vcmp.eq.s32.totalorder %v91, 1
    %vm101 = vmand %vm94, %vm100
    %s102 = sld [smem:[#allocation2 + $0x1]]
    %v103 = vstv %s102
    %v104 = vsel %vm101, %v103, %v99
    %vm105 = vcmp.eq.s32.totalorder %v91, 2
    %vm106 = vmand %vm94, %vm105
    %s107 = sld [smem:[#allocation2 + $0x2]]
    %v108 = vstv %s107
    %v109 = vsel %vm106, %v108, %v104
    %vm110 = vcmp.eq.s32.totalorder %v91, 3
    %vm111 = vmand %vm94, %vm110
    %s112 = sld [smem:[#allocation2 + $0x3]]
    %v113 = vstv %s112
    %v114 = vsel %vm111, %v113, %v109
    %vm115 = vcmp.eq.s32.totalorder %v91, 6
    %vm116 = vmand %vm94, %vm115
    %v117 = vsel %vm116, 1.0, %v114
    %v118 = vpack.c.bf16 %v117, %v117
    %v135 = vunpack.c.l.b16 %v58
    %v136 = vunpack.c.l.b16 %v59
    %v137 = vunpack.c.l.b16 %v60
    %v138 = vunpack.c.l.b16 %v61
    %v139 = vunpack.c.l.b16 %v62
    %v140 = vunpack.c.l.b16 %v63
    %v141 = vunpack.c.l.b16 %v64
    %v142 = vunpack.c.l.b16 %v65
    %v143 = vunpack.c.l.b16 %v66
    %v144 = vunpack.c.l.b16 %v67
    %v145 = vunpack.c.l.b16 %v68
    %v146 = vunpack.c.l.b16 %v69
    %v147 = vunpack.c.l.b16 %v70
    %v148 = vunpack.c.l.b16 %v71
    %v149 = vunpack.c.l.b16 %v72
    %v150 = vunpack.c.l.b16 %v73
    %v151 = vpack.c.b16 %v136, %v135
    %v152 = vpack.c.b16 %v138, %v137
    %v153 = vpack.c.b16 %v140, %v139
    %v154 = vpack.c.b16 %v142, %v141
    %v155 = vpack.c.b16 %v144, %v143
    %v156 = vpack.c.b16 %v146, %v145
    %v157 = vpack.c.b16 %v148, %v147
    %v158 = vpack.c.b16 %v150, %v149
    %167 = vmatprep.subr.bf16.mxu0 0
    %168 = vmatpush1.bf16.msra.mxu0 %v158
    %169 = vmatprep.subr.bf16.mxu0 0
    %170 = vmatpush1.bf16.msra.mxu0 %v157
    %171 = vmatprep.subr.bf16.mxu0 0
    %172 = vmatpush1.bf16.msra.mxu0 %v156
    %173 = vmatprep.subr.bf16.mxu0 0
    %174 = vmatpush1.bf16.msra.mxu0 %v155
    %175 = vmatprep.subr.bf16.mxu0 0
    %176 = vmatpush1.bf16.msra.mxu0 %v154
    %177 = vmatprep.subr.bf16.mxu0 0
    %178 = vmatpush1.bf16.msra.mxu0 %v153
    %179 = vmatprep.subr.bf16.mxu0 0
    %180 = vmatpush1.bf16.msra.mxu0 %v152
    %181 = vmatprep.subr.bf16.mxu0 0
    %182 = vmatpush1.bf16.msra.mxu0 %v151
    %183 = vmatprep.subr.bf16.mxu0 0
    %184 = vmatpush2.bf16.msra.mxu0 0
    %185 = vmatprep.subr.bf16.mxu0 0
    %186 = vmatpush2.bf16.msra.mxu0 0
    %187 = vmatprep.subr.bf16.mxu0 0
    %188 = vmatpush2.bf16.msra.mxu0 0
    %189 = vmatprep.subr.bf16.mxu0 0
    %190 = vmatpush2.bf16.msra.mxu0 0
    %191 = vmatprep.subr.bf16.mxu0 0
    %192 = vmatpush2.bf16.msra.mxu0 0
    %193 = vmatprep.subr.bf16.mxu0 0
    %194 = vmatpush2.bf16.msra.mxu0 0
    %195 = vmatprep.subr.bf16.mxu0 0
    %196 = vmatpush2.bf16.msra.mxu0 0
    %197 = vmatprep.subr.bf16.mxu0 0
    %198 = vmatpush2.bf16.msra.mxu0 0
    %199 = vmatprep.mubr.bf16.mxu0 0
    %200 = vmatmul.mubr.bf16.gmra.mxu0 %v118
    %v201 = vpop.f32.mrf.mxu0
    %v202 = vadd.f32 0.0, %v201
    %v203 = vpop.f32.mrf.mxu0
    %v204 = vpop.f32.mrf.mxu0
    %v205 = vpop.f32.mrf.mxu0
    %206 = vdwg.mxu0
    %v207 = vtanh.pop %v202
    %v208 = vadd.f32 %v117, %v207
    %v209 = vpack.c.bf16 %v208, %v208
    %v226 = vunpack.c.l.b16 %v74
    %v227 = vunpack.c.l.b16 %v75
    %v228 = vunpack.c.l.b16 %v76
    %v229 = vunpack.c.l.b16 %v77
    %v230 = vunpack.c.l.b16 %v78
    %v231 = vunpack.c.l.b16 %v79
    %v232 = vunpack.c.l.b16 %v80
    %v233 = vunpack.c.l.b16 %v81
    %v234 = vunpack.c.l.b16 %v82
    %v235 = vunpack.c.l.b16 %v83
    %v236 = vunpack.c.l.b16 %v84
    %v237 = vunpack.c.l.b16 %v85
    %v238 = vunpack.c.l.b16 %v86
    %v239 = vunpack.c.l.b16 %v87
    %v240 = vunpack.c.l.b16 %v88
    %v241 = vunpack.c.l.b16 %v89
    %v242 = vpack.c.b16 %v227, %v226
    %v243 = vpack.c.b16 %v229, %v228
    %v244 = vpack.c.b16 %v231, %v230
    %v245 = vpack.c.b16 %v233, %v232
    %v246 = vpack.c.b16 %v235, %v234
    %v247 = vpack.c.b16 %v237, %v236
    %v248 = vpack.c.b16 %v239, %v238
    %v249 = vpack.c.b16 %v241, %v240
    %258 = vmatprep.subr.bf16.mxu0 0
    %259 = vmatpush1.bf16.msra.mxu0 %v249
    %260 = vmatprep.subr.bf16.mxu0 0
    %261 = vmatpush1.bf16.msra.mxu0 %v248
    %262 = vmatprep.subr.bf16.mxu0 0
    %263 = vmatpush1.bf16.msra.mxu0 %v247
    %264 = vmatprep.subr.bf16.mxu0 0
    %265 = vmatpush1.bf16.msra.mxu0 %v246
    %266 = vmatprep.subr.bf16.mxu0 0
    %267 = vmatpush1.bf16.msra.mxu0 %v245
    %268 = vmatprep.subr.bf16.mxu0 0
    %269 = vmatpush1.bf16.msra.mxu0 %v244
    %270 = vmatprep.subr.bf16.mxu0 0
    %271 = vmatpush1.bf16.msra.mxu0 %v243
    %272 = vmatprep.subr.bf16.mxu0 0
    %273 = vmatpush1.bf16.msra.mxu0 %v242
    %274 = vmatprep.subr.bf16.mxu0 0
    %275 = vmatpush2.bf16.msra.mxu0 0
    %276 = vmatprep.subr.bf16.mxu0 0
    %277 = vmatpush2.bf16.msra.mxu0 0
    %278 = vmatprep.subr.bf16.mxu0 0
    %279 = vmatpush2.bf16.msra.mxu0 0
    %280 = vmatprep.subr.bf16.mxu0 0
    %281 = vmatpush2.bf16.msra.mxu0 0
    %282 = vmatprep.subr.bf16.mxu0 0
    %283 = vmatpush2.bf16.msra.mxu0 0
    %284 = vmatprep.subr.bf16.mxu0 0
    %285 = vmatpush2.bf16.msra.mxu0 0
    %286 = vmatprep.subr.bf16.mxu0 0
    %287 = vmatpush2.bf16.msra.mxu0 0
    %288 = vmatprep.subr.bf16.mxu0 0
    %289 = vmatpush2.bf16.msra.mxu0 0
    %290 = vmatprep.mubr.bf16.mxu0 0
    %291 = vmatmul.mubr.bf16.gmra.mxu0 %v209
    %v292 = vpop.f32.mrf.mxu0
    %v293 = vadd.f32 0.0, %v292
    %v294 = vpop.f32.mrf.mxu0
    %v295 = vpop.f32.mrf.mxu0
    %v296 = vpop.f32.mrf.mxu0
    %297 = vdwg.mxu0
    %v298 = vpack.c.bf16 %v293, %v293
    %299 = vmatprep.subr.bf16.mxu0 0
    %300 = vmatpush1.bf16.msra.mxu0 %v158
    %301 = vmatprep.subr.bf16.mxu0 0
    %302 = vmatpush1.bf16.msra.mxu0 %v157
    %303 = vmatprep.subr.bf16.mxu0 0
    %304 = vmatpush1.bf16.msra.mxu0 %v156
    %305 = vmatprep.subr.bf16.mxu0 0
    %306 = vmatpush1.bf16.msra.mxu0 %v155
    %307 = vmatprep.subr.bf16.mxu0 0
    %308 = vmatpush1.bf16.msra.mxu0 %v154
    %309 = vmatprep.subr.bf16.mxu0 0
    %310 = vmatpush1.bf16.msra.mxu0 %v153
    %311 = vmatprep.subr.bf16.mxu0 0
    %312 = vmatpush1.bf16.msra.mxu0 %v152
    %313 = vmatprep.subr.bf16.mxu0 0
    %314 = vmatpush1.bf16.msra.mxu0 %v151
    %315 = vmatprep.subr.bf16.mxu0 0
    %316 = vmatpush2.bf16.msra.mxu0 0
    %317 = vmatprep.subr.bf16.mxu0 0
    %318 = vmatpush2.bf16.msra.mxu0 0
    %319 = vmatprep.subr.bf16.mxu0 0
    %320 = vmatpush2.bf16.msra.mxu0 0
    %321 = vmatprep.subr.bf16.mxu0 0
    %322 = vmatpush2.bf16.msra.mxu0 0
    %323 = vmatprep.subr.bf16.mxu0 0
    %324 = vmatpush2.bf16.msra.mxu0 0
    %325 = vmatprep.subr.bf16.mxu0 0
    %326 = vmatpush2.bf16.msra.mxu0 0
    %327 = vmatprep.subr.bf16.mxu0 0
    %328 = vmatpush2.bf16.msra.mxu0 0
    %329 = vmatprep.subr.bf16.mxu0 0
    %330 = vmatpush2.bf16.msra.mxu0 0
    %331 = vmatprep.mubr.bf16.mxu0 0
    %332 = vmatmul.mubr.bf16.gmra.mxu0 %v298
    %v333 = vpop.f32.mrf.mxu0
    %v334 = vadd.f32 0.0, %v333
    %v335 = vpop.f32.mrf.mxu0
    %v336 = vpop.f32.mrf.mxu0
    %v337 = vpop.f32.mrf.mxu0
    %338 = vdwg.mxu0
    %v339 = vtanh.pop %v334
    %v340 = vadd.f32 %v293, %v339
    %v341 = vpack.c.bf16 %v340, %v340
    %342 = vmatprep.subr.bf16.mxu0 0
    %343 = vmatpush1.bf16.msra.mxu0 %v249
    %344 = vmatprep.subr.bf16.mxu0 0
    %345 = vmatpush1.bf16.msra.mxu0 %v248
    %346 = vmatprep.subr.bf16.mxu0 0
    %347 = vmatpush1.bf16.msra.mxu0 %v247
    %348 = vmatprep.subr.bf16.mxu0 0
    %349 = vmatpush1.bf16.msra.mxu0 %v246
    %350 = vmatprep.subr.bf16.mxu0 0
    %351 = vmatpush1.bf16.msra.mxu0 %v245
    %352 = vmatprep.subr.bf16.mxu0 0
    %353 = vmatpush1.bf16.msra.mxu0 %v244
    %354 = vmatprep.subr.bf16.mxu0 0
    %355 = vmatpush1.bf16.msra.mxu0 %v243
    %356 = vmatprep.subr.bf16.mxu0 0
    %357 = vmatpush1.bf16.msra.mxu0 %v242
    %358 = vmatprep.subr.bf16.mxu0 0
    %359 = vmatpush2.bf16.msra.mxu0 0
    %360 = vmatprep.subr.bf16.mxu0 0
    %361 = vmatpush2.bf16.msra.mxu0 0
    %362 = vmatprep.subr.bf16.mxu0 0
    %363 = vmatpush2.bf16.msra.mxu0 0
    %364 = vmatprep.subr.bf16.mxu0 0
    %365 = vmatpush2.bf16.msra.mxu0 0
    %366 = vmatprep.subr.bf16.mxu0 0
    %367 = vmatpush2.bf16.msra.mxu0 0
    %368 = vmatprep.subr.bf16.mxu0 0
    %369 = vmatpush2.bf16.msra.mxu0 0
    %370 = vmatprep.subr.bf16.mxu0 0
    %371 = vmatpush2.bf16.msra.mxu0 0
    %372 = vmatprep.subr.bf16.mxu0 0
    %373 = vmatpush2.bf16.msra.mxu0 0
    %374 = vmatprep.mubr.bf16.mxu0 0
    %375 = vmatmul.mubr.bf16.gmra.mxu0 %v341
    %v376 = vpop.f32.mrf.mxu0
    %v377 = vadd.f32 0.0, %v376
    %v378 = vpop.f32.mrf.mxu0
    %v379 = vpop.f32.mrf.mxu0
    %v380 = vpop.f32.mrf.mxu0
    %381 = vdwg.mxu0
    %v382 = vpack.c.bf16 %v377, %v377
    %383 = vmatprep.subr.bf16.mxu0 0
    %384 = vmatpush1.bf16.msra.mxu0 %v158
    %385 = vmatprep.subr.bf16.mxu0 0
    %386 = vmatpush1.bf16.msra.mxu0 %v157
    %387 = vmatprep.subr.bf16.mxu0 0
    %388 = vmatpush1.bf16.msra.mxu0 %v156
    %389 = vmatprep.subr.bf16.mxu0 0
    %390 = vmatpush1.bf16.msra.mxu0 %v155
    %391 = vmatprep.subr.bf16.mxu0 0
    %392 = vmatpush1.bf16.msra.mxu0 %v154
    %393 = vmatprep.subr.bf16.mxu0 0
    %394 = vmatpush1.bf16.msra.mxu0 %v153
    %395 = vmatprep.subr.bf16.mxu0 0
    %396 = vmatpush1.bf16.msra.mxu0 %v152
    %397 = vmatprep.subr.bf16.mxu0 0
    %398 = vmatpush1.bf16.msra.mxu0 %v151
    %399 = vmatprep.subr.bf16.mxu0 0
    %400 = vmatpush2.bf16.msra.mxu0 0
    %401 = vmatprep.subr.bf16.mxu0 0
    %402 = vmatpush2.bf16.msra.mxu0 0
    %403 = vmatprep.subr.bf16.mxu0 0
    %404 = vmatpush2.bf16.msra.mxu0 0
    %405 = vmatprep.subr.bf16.mxu0 0
    %406 = vmatpush2.bf16.msra.mxu0 0
    %407 = vmatprep.subr.bf16.mxu0 0
    %408 = vmatpush2.bf16.msra.mxu0 0
    %409 = vmatprep.subr.bf16.mxu0 0
    %410 = vmatpush2.bf16.msra.mxu0 0
    %411 = vmatprep.subr.bf16.mxu0 0
    %412 = vmatpush2.bf16.msra.mxu0 0
    %413 = vmatprep.subr.bf16.mxu0 0
    %414 = vmatpush2.bf16.msra.mxu0 0
    %415 = vmatprep.mubr.bf16.mxu0 0
    %416 = vmatmul.mubr.bf16.gmra.mxu0 %v382
    %v417 = vpop.f32.mrf.mxu0
    %v418 = vadd.f32 0.0, %v417
    %v419 = vpop.f32.mrf.mxu0
    %v420 = vpop.f32.mrf.mxu0
    %v421 = vpop.f32.mrf.mxu0
    %422 = vdwg.mxu0
    %v423 = vtanh.pop %v418
    %v424 = vadd.f32 %v377, %v423
    %v425 = vpack.c.bf16 %v424, %v424
    %426 = vmatprep.subr.bf16.mxu0 0
    %427 = vmatpush1.bf16.msra.mxu0 %v249
    %428 = vmatprep.subr.bf16.mxu0 0
    %429 = vmatpush1.bf16.msra.mxu0 %v248
    %430 = vmatprep.subr.bf16.mxu0 0
    %431 = vmatpush1.bf16.msra.mxu0 %v247
    %432 = vmatprep.subr.bf16.mxu0 0
    %433 = vmatpush1.bf16.msra.mxu0 %v246
    %434 = vmatprep.subr.bf16.mxu0 0
    %435 = vmatpush1.bf16.msra.mxu0 %v245
    %436 = vmatprep.subr.bf16.mxu0 0
    %437 = vmatpush1.bf16.msra.mxu0 %v244
    %438 = vmatprep.subr.bf16.mxu0 0
    %439 = vmatpush1.bf16.msra.mxu0 %v243
    %440 = vmatprep.subr.bf16.mxu0 0
    %441 = vmatpush1.bf16.msra.mxu0 %v242
    %442 = vmatprep.subr.bf16.mxu0 0
    %443 = vmatpush2.bf16.msra.mxu0 0
    %444 = vmatprep.subr.bf16.mxu0 0
    %445 = vmatpush2.bf16.msra.mxu0 0
    %446 = vmatprep.subr.bf16.mxu0 0
    %447 = vmatpush2.bf16.msra.mxu0 0
    %448 = vmatprep.subr.bf16.mxu0 0
    %449 = vmatpush2.bf16.msra.mxu0 0
    %450 = vmatprep.subr.bf16.mxu0 0
    %451 = vmatpush2.bf16.msra.mxu0 0
    %452 = vmatprep.subr.bf16.mxu0 0
    %453 = vmatpush2.bf16.msra.mxu0 0
    %454 = vmatprep.subr.bf16.mxu0 0
    %455 = vmatpush2.bf16.msra.mxu0 0
    %456 = vmatprep.subr.bf16.mxu0 0
    %457 = vmatpush2.bf16.msra.mxu0 0
    %458 = vmatprep.mubr.bf16.mxu0 0
    %459 = vmatmul.mubr.bf16.gmra.mxu0 %v425
    %v460 = vpop.f32.mrf.mxu0
    %v461 = vadd.f32 0.0, %v460
    %v462 = vpop.f32.mrf.mxu0
    %v463 = vpop.f32.mrf.mxu0
    %v464 = vpop.f32.mrf.mxu0
    %465 = vdwg.mxu0
    %v466 = vpack.c.bf16 %v461, %v461
    %467 = vmatprep.subr.bf16.mxu0 0
    %468 = vmatpush1.bf16.msra.mxu0 %v158
    %469 = vmatprep.subr.bf16.mxu0 0
    %470 = vmatpush1.bf16.msra.mxu0 %v157
    %471 = vmatprep.subr.bf16.mxu0 0
    %472 = vmatpush1.bf16.msra.mxu0 %v156
    %473 = vmatprep.subr.bf16.mxu0 0
    %474 = vmatpush1.bf16.msra.mxu0 %v155
    %475 = vmatprep.subr.bf16.mxu0 0
    %476 = vmatpush1.bf16.msra.mxu0 %v154
    %477 = vmatprep.subr.bf16.mxu0 0
    %478 = vmatpush1.bf16.msra.mxu0 %v153
    %479 = vmatprep.subr.bf16.mxu0 0
    %480 = vmatpush1.bf16.msra.mxu0 %v152
    %481 = vmatprep.subr.bf16.mxu0 0
    %482 = vmatpush1.bf16.msra.mxu0 %v151
    %483 = vmatprep.subr.bf16.mxu0 0
    %484 = vmatpush2.bf16.msra.mxu0 0
    %485 = vmatprep.subr.bf16.mxu0 0
    %486 = vmatpush2.bf16.msra.mxu0 0
    %487 = vmatprep.subr.bf16.mxu0 0
    %488 = vmatpush2.bf16.msra.mxu0 0
    %489 = vmatprep.subr.bf16.mxu0 0
    %490 = vmatpush2.bf16.msra.mxu0 0
    %491 = vmatprep.subr.bf16.mxu0 0
    %492 = vmatpush2.bf16.msra.mxu0 0
    %493 = vmatprep.subr.bf16.mxu0 0
    %494 = vmatpush2.bf16.msra.mxu0 0
    %495 = vmatprep.subr.bf16.mxu0 0
    %496 = vmatpush2.bf16.msra.mxu0 0
    %497 = vmatprep.subr.bf16.mxu0 0
    %498 = vmatpush2.bf16.msra.mxu0 0
    %499 = vmatprep.mubr.bf16.mxu0 0
    %500 = vmatmul.mubr.bf16.gmra.mxu0 %v466
    %v501 = vpop.f32.mrf.mxu0
    %v502 = vadd.f32 0.0, %v501
    %v503 = vpop.f32.mrf.mxu0
    %v504 = vpop.f32.mrf.mxu0
    %v505 = vpop.f32.mrf.mxu0
    %506 = vdwg.mxu0
    %v507 = vtanh.pop %v502
    %v508 = vadd.f32 %v461, %v507
    %v509 = vpack.c.bf16 %v508, %v508
    %510 = vmatprep.subr.bf16.mxu0 0
    %511 = vmatpush1.bf16.msra.mxu0 %v249
    %512 = vmatprep.subr.bf16.mxu0 0
    %513 = vmatpush1.bf16.msra.mxu0 %v248
    %514 = vmatprep.subr.bf16.mxu0 0
    %515 = vmatpush1.bf16.msra.mxu0 %v247
    %516 = vmatprep.subr.bf16.mxu0 0
    %517 = vmatpush1.bf16.msra.mxu0 %v246
    %518 = vmatprep.subr.bf16.mxu0 0
    %519 = vmatpush1.bf16.msra.mxu0 %v245
    %520 = vmatprep.subr.bf16.mxu0 0
    %521 = vmatpush1.bf16.msra.mxu0 %v244
    %522 = vmatprep.subr.bf16.mxu0 0
    %523 = vmatpush1.bf16.msra.mxu0 %v243
    %524 = vmatprep.subr.bf16.mxu0 0
    %525 = vmatpush1.bf16.msra.mxu0 %v242
    %526 = vmatprep.subr.bf16.mxu0 0
    %527 = vmatpush2.bf16.msra.mxu0 0
    %528 = vmatprep.subr.bf16.mxu0 0
    %529 = vmatpush2.bf16.msra.mxu0 0
    %530 = vmatprep.subr.bf16.mxu0 0
    %531 = vmatpush2.bf16.msra.mxu0 0
    %532 = vmatprep.subr.bf16.mxu0 0
    %533 = vmatpush2.bf16.msra.mxu0 0
    %534 = vmatprep.subr.bf16.mxu0 0
    %535 = vmatpush2.bf16.msra.mxu0 0
    %536 = vmatprep.subr.bf16.mxu0 0
    %537 = vmatpush2.bf16.msra.mxu0 0
    %538 = vmatprep.subr.bf16.mxu0 0
    %539 = vmatpush2.bf16.msra.mxu0 0
    %540 = vmatprep.subr.bf16.mxu0 0
    %541 = vmatpush2.bf16.msra.mxu0 0
    %542 = vmatprep.mubr.bf16.mxu0 0
    %543 = vmatmul.mubr.bf16.gmra.mxu0 %v509
    %v544 = vpop.f32.mrf.mxu0
    %v545 = vadd.f32 0.0, %v544
    %v546 = vpop.f32.mrf.mxu0
    %v547 = vpop.f32.mrf.mxu0
    %v548 = vpop.f32.mrf.mxu0
    %549 = vdwg.mxu0
    %v550 = vpack.c.bf16 %v545, %v545
    %551 = vmatprep.subr.bf16.mxu0 0
    %552 = vmatpush1.bf16.msra.mxu0 %v158
    %553 = vmatprep.subr.bf16.mxu0 0
    %554 = vmatpush1.bf16.msra.mxu0 %v157
    %555 = vmatprep.subr.bf16.mxu0 0
    %556 = vmatpush1.bf16.msra.mxu0 %v156
    %557 = vmatprep.subr.bf16.mxu0 0
    %558 = vmatpush1.bf16.msra.mxu0 %v155
    %559 = vmatprep.subr.bf16.mxu0 0
    %560 = vmatpush1.bf16.msra.mxu0 %v154
    %561 = vmatprep.subr.bf16.mxu0 0
    %562 = vmatpush1.bf16.msra.mxu0 %v153
    %563 = vmatprep.subr.bf16.mxu0 0
    %564 = vmatpush1.bf16.msra.mxu0 %v152
    %565 = vmatprep.subr.bf16.mxu0 0
    %566 = vmatpush1.bf16.msra.mxu0 %v151
    %567 = vmatprep.subr.bf16.mxu0 0
    %568 = vmatpush2.bf16.msra.mxu0 0
    %569 = vmatprep.subr.bf16.mxu0 0
    %570 = vmatpush2.bf16.msra.mxu0 0
    %571 = vmatprep.subr.bf16.mxu0 0
    %572 = vmatpush2.bf16.msra.mxu0 0
    %573 = vmatprep.subr.bf16.mxu0 0
    %574 = vmatpush2.bf16.msra.mxu0 0
    %575 = vmatprep.subr.bf16.mxu0 0
    %576 = vmatpush2.bf16.msra.mxu0 0
    %577 = vmatprep.subr.bf16.mxu0 0
    %578 = vmatpush2.bf16.msra.mxu0 0
    %579 = vmatprep.subr.bf16.mxu0 0
    %580 = vmatpush2.bf16.msra.mxu0 0
    %581 = vmatprep.subr.bf16.mxu0 0
    %582 = vmatpush2.bf16.msra.mxu0 0
    %583 = vmatprep.mubr.bf16.mxu0 0
    %584 = vmatmul.mubr.bf16.gmra.mxu0 %v550
    %v585 = vpop.f32.mrf.mxu0
    %v586 = vadd.f32 0.0, %v585
    %v587 = vpop.f32.mrf.mxu0
    %v588 = vpop.f32.mrf.mxu0
    %v589 = vpop.f32.mrf.mxu0
    %590 = vdwg.mxu0
    %v591 = vtanh.pop %v586
    %v592 = vadd.f32 %v545, %v591
    %v593 = vpack.c.bf16 %v592, %v592
    %594 = vmatprep.subr.bf16.mxu0 0
    %595 = vmatpush1.bf16.msra.mxu0 %v249
    %596 = vmatprep.subr.bf16.mxu0 0
    %597 = vmatpush1.bf16.msra.mxu0 %v248
    %598 = vmatprep.subr.bf16.mxu0 0
    %599 = vmatpush1.bf16.msra.mxu0 %v247
    %600 = vmatprep.subr.bf16.mxu0 0
    %601 = vmatpush1.bf16.msra.mxu0 %v246
    %602 = vmatprep.subr.bf16.mxu0 0
    %603 = vmatpush1.bf16.msra.mxu0 %v245
    %604 = vmatprep.subr.bf16.mxu0 0
    %605 = vmatpush1.bf16.msra.mxu0 %v244
    %606 = vmatprep.subr.bf16.mxu0 0
    %607 = vmatpush1.bf16.msra.mxu0 %v243
    %608 = vmatprep.subr.bf16.mxu0 0
    %609 = vmatpush1.bf16.msra.mxu0 %v242
    %610 = vmatprep.subr.bf16.mxu0 0
    %611 = vmatpush2.bf16.msra.mxu0 0
    %612 = vmatprep.subr.bf16.mxu0 0
    %613 = vmatpush2.bf16.msra.mxu0 0
    %614 = vmatprep.subr.bf16.mxu0 0
    %615 = vmatpush2.bf16.msra.mxu0 0
    %616 = vmatprep.subr.bf16.mxu0 0
    %617 = vmatpush2.bf16.msra.mxu0 0
    %618 = vmatprep.subr.bf16.mxu0 0
    %619 = vmatpush2.bf16.msra.mxu0 0
    %620 = vmatprep.subr.bf16.mxu0 0
    %621 = vmatpush2.bf16.msra.mxu0 0
    %622 = vmatprep.subr.bf16.mxu0 0
    %623 = vmatpush2.bf16.msra.mxu0 0
    %624 = vmatprep.subr.bf16.mxu0 0
    %625 = vmatpush2.bf16.msra.mxu0 0
    %626 = vmatprep.mubr.bf16.mxu0 0
    %627 = vmatmul.mubr.bf16.gmra.mxu0 %v593
    %v628 = vpop.f32.mrf.mxu0
    %v629 = vadd.f32 0.0, %v628
    %v630 = vpop.f32.mrf.mxu0
    %v631 = vpop.f32.mrf.mxu0
    %v632 = vpop.f32.mrf.mxu0
    %633 = vdwg.mxu0
    %v634 = vpack.c.bf16 %v629, %v629
    %635 = vmatprep.subr.bf16.mxu0 0
    %636 = vmatpush1.bf16.msra.mxu0 %v158
    %637 = vmatprep.subr.bf16.mxu0 0
    %638 = vmatpush1.bf16.msra.mxu0 %v157
    %639 = vmatprep.subr.bf16.mxu0 0
    %640 = vmatpush1.bf16.msra.mxu0 %v156
    %641 = vmatprep.subr.bf16.mxu0 0
    %642 = vmatpush1.bf16.msra.mxu0 %v155
    %643 = vmatprep.subr.bf16.mxu0 0
    %644 = vmatpush1.bf16.msra.mxu0 %v154
    %645 = vmatprep.subr.bf16.mxu0 0
    %646 = vmatpush1.bf16.msra.mxu0 %v153
    %647 = vmatprep.subr.bf16.mxu0 0
    %648 = vmatpush1.bf16.msra.mxu0 %v152
    %649 = vmatprep.subr.bf16.mxu0 0
    %650 = vmatpush1.bf16.msra.mxu0 %v151
    %651 = vmatprep.subr.bf16.mxu0 0
    %652 = vmatpush2.bf16.msra.mxu0 0
    %653 = vmatprep.subr.bf16.mxu0 0
    %654 = vmatpush2.bf16.msra.mxu0 0
    %655 = vmatprep.subr.bf16.mxu0 0
    %656 = vmatpush2.bf16.msra.mxu0 0
    %657 = vmatprep.subr.bf16.mxu0 0
    %658 = vmatpush2.bf16.msra.mxu0 0
    %659 = vmatprep.subr.bf16.mxu0 0
    %660 = vmatpush2.bf16.msra.mxu0 0
    %661 = vmatprep.subr.bf16.mxu0 0
    %662 = vmatpush2.bf16.msra.mxu0 0
    %663 = vmatprep.subr.bf16.mxu0 0
    %664 = vmatpush2.bf16.msra.mxu0 0
    %665 = vmatprep.subr.bf16.mxu0 0
    %666 = vmatpush2.bf16.msra.mxu0 0
    %667 = vmatprep.mubr.bf16.mxu0 0
    %668 = vmatmul.mubr.bf16.gmra.mxu0 %v634
    %v669 = vpop.f32.mrf.mxu0
    %v670 = vadd.f32 0.0, %v669
    %v671 = vpop.f32.mrf.mxu0
    %v672 = vpop.f32.mrf.mxu0
    %v673 = vpop.f32.mrf.mxu0
    %674 = vdwg.mxu0
    %v675 = vtanh.pop %v670
    %v676 = vadd.f32 %v629, %v675
    %v677 = vpack.c.bf16 %v676, %v676
    %678 = vmatprep.subr.bf16.mxu0 0
    %679 = vmatpush1.bf16.msra.mxu0 %v249
    %680 = vmatprep.subr.bf16.mxu0 0
    %681 = vmatpush1.bf16.msra.mxu0 %v248
    %682 = vmatprep.subr.bf16.mxu0 0
    %683 = vmatpush1.bf16.msra.mxu0 %v247
    %684 = vmatprep.subr.bf16.mxu0 0
    %685 = vmatpush1.bf16.msra.mxu0 %v246
    %686 = vmatprep.subr.bf16.mxu0 0
    %687 = vmatpush1.bf16.msra.mxu0 %v245
    %688 = vmatprep.subr.bf16.mxu0 0
    %689 = vmatpush1.bf16.msra.mxu0 %v244
    %690 = vmatprep.subr.bf16.mxu0 0
    %691 = vmatpush1.bf16.msra.mxu0 %v243
    %692 = vmatprep.subr.bf16.mxu0 0
    %693 = vmatpush1.bf16.msra.mxu0 %v242
    %694 = vmatprep.subr.bf16.mxu0 0
    %695 = vmatpush2.bf16.msra.mxu0 0
    %696 = vmatprep.subr.bf16.mxu0 0
    %697 = vmatpush2.bf16.msra.mxu0 0
    %698 = vmatprep.subr.bf16.mxu0 0
    %699 = vmatpush2.bf16.msra.mxu0 0
    %700 = vmatprep.subr.bf16.mxu0 0
    %701 = vmatpush2.bf16.msra.mxu0 0
    %702 = vmatprep.subr.bf16.mxu0 0
    %703 = vmatpush2.bf16.msra.mxu0 0
    %704 = vmatprep.subr.bf16.mxu0 0
    %705 = vmatpush2.bf16.msra.mxu0 0
    %706 = vmatprep.subr.bf16.mxu0 0
    %707 = vmatpush2.bf16.msra.mxu0 0
    %708 = vmatprep.subr.bf16.mxu0 0
    %709 = vmatpush2.bf16.msra.mxu0 0
    %710 = vmatprep.mubr.bf16.mxu0 0
    %711 = vmatmul.mubr.bf16.gmra.mxu0 %v677
    %v712 = vpop.f32.mrf.mxu0
    %v713 = vadd.f32 0.0, %v712
    %v714 = vpop.f32.mrf.mxu0
    %v715 = vpop.f32.mrf.mxu0
    %v716 = vpop.f32.mrf.mxu0
    %717 = vdwg.mxu0
    %v718 = vpack.c.bf16 %v713, %v713
    %719 = vmatprep.subr.bf16.mxu0 0
    %720 = vmatpush1.bf16.msra.mxu0 %v158
    %721 = vmatprep.subr.bf16.mxu0 0
    %722 = vmatpush1.bf16.msra.mxu0 %v157
    %723 = vmatprep.subr.bf16.mxu0 0
    %724 = vmatpush1.bf16.msra.mxu0 %v156
    %725 = vmatprep.subr.bf16.mxu0 0
    %726 = vmatpush1.bf16.msra.mxu0 %v155
    %727 = vmatprep.subr.bf16.mxu0 0
    %728 = vmatpush1.bf16.msra.mxu0 %v154
    %729 = vmatprep.subr.bf16.mxu0 0
    %730 = vmatpush1.bf16.msra.mxu0 %v153
    %731 = vmatprep.subr.bf16.mxu0 0
    %732 = vmatpush1.bf16.msra.mxu0 %v152
    %733 = vmatprep.subr.bf16.mxu0 0
    %734 = vmatpush1.bf16.msra.mxu0 %v151
    %735 = vmatprep.subr.bf16.mxu0 0
    %736 = vmatpush2.bf16.msra.mxu0 0
    %737 = vmatprep.subr.bf16.mxu0 0
    %738 = vmatpush2.bf16.msra.mxu0 0
    %739 = vmatprep.subr.bf16.mxu0 0
    %740 = vmatpush2.bf16.msra.mxu0 0
    %741 = vmatprep.subr.bf16.mxu0 0
    %742 = vmatpush2.bf16.msra.mxu0 0
    %743 = vmatprep.subr.bf16.mxu0 0
    %744 = vmatpush2.bf16.msra.mxu0 0
    %745 = vmatprep.subr.bf16.mxu0 0
    %746 = vmatpush2.bf16.msra.mxu0 0
    %747 = vmatprep.subr.bf16.mxu0 0
    %748 = vmatpush2.bf16.msra.mxu0 0
    %749 = vmatprep.subr.bf16.mxu0 0
    %750 = vmatpush2.bf16.msra.mxu0 0
    %751 = vmatprep.mubr.bf16.mxu0 0
    %752 = vmatmul.mubr.bf16.gmra.mxu0 %v718
    %v753 = vpop.f32.mrf.mxu0
    %v754 = vadd.f32 0.0, %v753
    %v755 = vpop.f32.mrf.mxu0
    %v756 = vpop.f32.mrf.mxu0
    %v757 = vpop.f32.mrf.mxu0
    %758 = vdwg.mxu0
    %v759 = vtanh.pop %v754
    %v760 = vadd.f32 %v713, %v759
    %v761 = vpack.c.bf16 %v760, %v760
    %762 = vmatprep.subr.bf16.mxu0 0
    %763 = vmatpush1.bf16.msra.mxu0 %v249
    %764 = vmatprep.subr.bf16.mxu0 0
    %765 = vmatpush1.bf16.msra.mxu0 %v248
    %766 = vmatprep.subr.bf16.mxu0 0
    %767 = vmatpush1.bf16.msra.mxu0 %v247
    %768 = vmatprep.subr.bf16.mxu0 0
    %769 = vmatpush1.bf16.msra.mxu0 %v246
    %770 = vmatprep.subr.bf16.mxu0 0
    %771 = vmatpush1.bf16.msra.mxu0 %v245
    %772 = vmatprep.subr.bf16.mxu0 0
    %773 = vmatpush1.bf16.msra.mxu0 %v244
    %774 = vmatprep.subr.bf16.mxu0 0
    %775 = vmatpush1.bf16.msra.mxu0 %v243
    %776 = vmatprep.subr.bf16.mxu0 0
    %777 = vmatpush1.bf16.msra.mxu0 %v242
    %778 = vmatprep.subr.bf16.mxu0 0
    %779 = vmatpush2.bf16.msra.mxu0 0
    %780 = vmatprep.subr.bf16.mxu0 0
    %781 = vmatpush2.bf16.msra.mxu0 0
    %782 = vmatprep.subr.bf16.mxu0 0
    %783 = vmatpush2.bf16.msra.mxu0 0
    %784 = vmatprep.subr.bf16.mxu0 0
    %785 = vmatpush2.bf16.msra.mxu0 0
    %786 = vmatprep.subr.bf16.mxu0 0
    %787 = vmatpush2.bf16.msra.mxu0 0
    %788 = vmatprep.subr.bf16.mxu0 0
    %789 = vmatpush2.bf16.msra.mxu0 0
    %790 = vmatprep.subr.bf16.mxu0 0
    %791 = vmatpush2.bf16.msra.mxu0 0
    %792 = vmatprep.subr.bf16.mxu0 0
    %793 = vmatpush2.bf16.msra.mxu0 0
    %794 = vmatprep.mubr.bf16.mxu0 0
    %795 = vmatmul.mubr.bf16.gmra.mxu0 %v761
    %v796 = vpop.f32.mrf.mxu0
    %v797 = vadd.f32 0.0, %v796
    %v798 = vpop.f32.mrf.mxu0
    %v799 = vpop.f32.mrf.mxu0
    %v800 = vpop.f32.mrf.mxu0
    %801 = vdwg.mxu0
    %v802 = vpack.c.bf16 %v797, %v797
    %803 = vmatprep.subr.bf16.mxu0 0
    %804 = vmatpush1.bf16.msra.mxu0 %v158
    %805 = vmatprep.subr.bf16.mxu0 0
    %806 = vmatpush1.bf16.msra.mxu0 %v157
    %807 = vmatprep.subr.bf16.mxu0 0
    %808 = vmatpush1.bf16.msra.mxu0 %v156
    %809 = vmatprep.subr.bf16.mxu0 0
    %810 = vmatpush1.bf16.msra.mxu0 %v155
    %811 = vmatprep.subr.bf16.mxu0 0
    %812 = vmatpush1.bf16.msra.mxu0 %v154
    %813 = vmatprep.subr.bf16.mxu0 0
    %814 = vmatpush1.bf16.msra.mxu0 %v153
    %815 = vmatprep.subr.bf16.mxu0 0
    %816 = vmatpush1.bf16.msra.mxu0 %v152
    %817 = vmatprep.subr.bf16.mxu0 0
    %818 = vmatpush1.bf16.msra.mxu0 %v151
    %819 = vmatprep.subr.bf16.mxu0 0
    %820 = vmatpush2.bf16.msra.mxu0 0
    %821 = vmatprep.subr.bf16.mxu0 0
    %822 = vmatpush2.bf16.msra.mxu0 0
    %823 = vmatprep.subr.bf16.mxu0 0
    %824 = vmatpush2.bf16.msra.mxu0 0
    %825 = vmatprep.subr.bf16.mxu0 0
    %826 = vmatpush2.bf16.msra.mxu0 0
    %827 = vmatprep.subr.bf16.mxu0 0
    %828 = vmatpush2.bf16.msra.mxu0 0
    %829 = vmatprep.subr.bf16.mxu0 0
    %830 = vmatpush2.bf16.msra.mxu0 0
    %831 = vmatprep.subr.bf16.mxu0 0
    %832 = vmatpush2.bf16.msra.mxu0 0
    %833 = vmatprep.subr.bf16.mxu0 0
    %834 = vmatpush2.bf16.msra.mxu0 0
    %835 = vmatprep.mubr.bf16.mxu0 0
    %836 = vmatmul.mubr.bf16.gmra.mxu0 %v802
    %v837 = vpop.f32.mrf.mxu0
    %v838 = vadd.f32 0.0, %v837
    %v839 = vpop.f32.mrf.mxu0
    %v840 = vpop.f32.mrf.mxu0
    %v841 = vpop.f32.mrf.mxu0
    %842 = vdwg.mxu0
    %v843 = vtanh.pop %v838
    %v844 = vadd.f32 %v797, %v843
    %v845 = vpack.c.bf16 %v844, %v844
    %846 = vmatprep.subr.bf16.mxu0 0
    %847 = vmatpush1.bf16.msra.mxu0 %v249
    %848 = vmatprep.subr.bf16.mxu0 0
    %849 = vmatpush1.bf16.msra.mxu0 %v248
    %850 = vmatprep.subr.bf16.mxu0 0
    %851 = vmatpush1.bf16.msra.mxu0 %v247
    %852 = vmatprep.subr.bf16.mxu0 0
    %853 = vmatpush1.bf16.msra.mxu0 %v246
    %854 = vmatprep.subr.bf16.mxu0 0
    %855 = vmatpush1.bf16.msra.mxu0 %v245
    %856 = vmatprep.subr.bf16.mxu0 0
    %857 = vmatpush1.bf16.msra.mxu0 %v244
    %858 = vmatprep.subr.bf16.mxu0 0
    %859 = vmatpush1.bf16.msra.mxu0 %v243
    %860 = vmatprep.subr.bf16.mxu0 0
    %861 = vmatpush1.bf16.msra.mxu0 %v242
    %862 = vmatprep.subr.bf16.mxu0 0
    %863 = vmatpush2.bf16.msra.mxu0 0
    %864 = vmatprep.subr.bf16.mxu0 0
    %865 = vmatpush2.bf16.msra.mxu0 0
    %866 = vmatprep.subr.bf16.mxu0 0
    %867 = vmatpush2.bf16.msra.mxu0 0
    %868 = vmatprep.subr.bf16.mxu0 0
    %869 = vmatpush2.bf16.msra.mxu0 0
    %870 = vmatprep.subr.bf16.mxu0 0
    %871 = vmatpush2.bf16.msra.mxu0 0
    %872 = vmatprep.subr.bf16.mxu0 0
    %873 = vmatpush2.bf16.msra.mxu0 0
    %874 = vmatprep.subr.bf16.mxu0 0
    %875 = vmatpush2.bf16.msra.mxu0 0
    %876 = vmatprep.subr.bf16.mxu0 0
    %877 = vmatpush2.bf16.msra.mxu0 0
    %878 = vmatprep.mubr.bf16.mxu0 0
    %879 = vmatmul.mubr.bf16.gmra.mxu0 %v845
    %v880 = vpop.f32.mrf.mxu0
    %v881 = vadd.f32 0.0, %v880
    %v882 = vpop.f32.mrf.mxu0
    %v883 = vpop.f32.mrf.mxu0
    %v884 = vpop.f32.mrf.mxu0
    %885 = vdwg.mxu0
    %v886 = vpack.c.bf16 %v881, %v881
    %887 = vmatprep.subr.bf16.mxu0 0
    %888 = vmatpush1.bf16.msra.mxu0 %v158
    %889 = vmatprep.subr.bf16.mxu0 0
    %890 = vmatpush1.bf16.msra.mxu0 %v157
    %891 = vmatprep.subr.bf16.mxu0 0
    %892 = vmatpush1.bf16.msra.mxu0 %v156
    %893 = vmatprep.subr.bf16.mxu0 0
    %894 = vmatpush1.bf16.msra.mxu0 %v155
    %895 = vmatprep.subr.bf16.mxu0 0
    %896 = vmatpush1.bf16.msra.mxu0 %v154
    %897 = vmatprep.subr.bf16.mxu0 0
    %898 = vmatpush1.bf16.msra.mxu0 %v153
    %899 = vmatprep.subr.bf16.mxu0 0
    %900 = vmatpush1.bf16.msra.mxu0 %v152
    %901 = vmatprep.subr.bf16.mxu0 0
    %902 = vmatpush1.bf16.msra.mxu0 %v151
    %903 = vmatprep.subr.bf16.mxu0 0
    %904 = vmatpush2.bf16.msra.mxu0 0
    %905 = vmatprep.subr.bf16.mxu0 0
    %906 = vmatpush2.bf16.msra.mxu0 0
    %907 = vmatprep.subr.bf16.mxu0 0
    %908 = vmatpush2.bf16.msra.mxu0 0
    %909 = vmatprep.subr.bf16.mxu0 0
    %910 = vmatpush2.bf16.msra.mxu0 0
    %911 = vmatprep.subr.bf16.mxu0 0
    %912 = vmatpush2.bf16.msra.mxu0 0
    %913 = vmatprep.subr.bf16.mxu0 0
    %914 = vmatpush2.bf16.msra.mxu0 0
    %915 = vmatprep.subr.bf16.mxu0 0
    %916 = vmatpush2.bf16.msra.mxu0 0
    %917 = vmatprep.subr.bf16.mxu0 0
    %918 = vmatpush2.bf16.msra.mxu0 0
    %919 = vmatprep.mubr.bf16.mxu0 0
    %920 = vmatmul.mubr.bf16.gmra.mxu0 %v886
    %v921 = vpop.f32.mrf.mxu0
    %v922 = vadd.f32 0.0, %v921
    %v923 = vpop.f32.mrf.mxu0
    %v924 = vpop.f32.mrf.mxu0
    %v925 = vpop.f32.mrf.mxu0
    %926 = vdwg.mxu0
    %v927 = vtanh.pop %v922
    %v928 = vadd.f32 %v881, %v927
    %v929 = vpack.c.bf16 %v928, %v928
    %930 = vmatprep.subr.bf16.mxu0 0
    %931 = vmatpush1.bf16.msra.mxu0 %v249
    %932 = vmatprep.subr.bf16.mxu0 0
    %933 = vmatpush1.bf16.msra.mxu0 %v248
    %934 = vmatprep.subr.bf16.mxu0 0
    %935 = vmatpush1.bf16.msra.mxu0 %v247
    %936 = vmatprep.subr.bf16.mxu0 0
    %937 = vmatpush1.bf16.msra.mxu0 %v246
    %938 = vmatprep.subr.bf16.mxu0 0
    %939 = vmatpush1.bf16.msra.mxu0 %v245
    %940 = vmatprep.subr.bf16.mxu0 0
    %941 = vmatpush1.bf16.msra.mxu0 %v244
    %942 = vmatprep.subr.bf16.mxu0 0
    %943 = vmatpush1.bf16.msra.mxu0 %v243
    %944 = vmatprep.subr.bf16.mxu0 0
    %945 = vmatpush1.bf16.msra.mxu0 %v242
    %946 = vmatprep.subr.bf16.mxu0 0
    %947 = vmatpush2.bf16.msra.mxu0 0
    %948 = vmatprep.subr.bf16.mxu0 0
    %949 = vmatpush2.bf16.msra.mxu0 0
    %950 = vmatprep.subr.bf16.mxu0 0
    %951 = vmatpush2.bf16.msra.mxu0 0
    %952 = vmatprep.subr.bf16.mxu0 0
    %953 = vmatpush2.bf16.msra.mxu0 0
    %954 = vmatprep.subr.bf16.mxu0 0
    %955 = vmatpush2.bf16.msra.mxu0 0
    %956 = vmatprep.subr.bf16.mxu0 0
    %957 = vmatpush2.bf16.msra.mxu0 0
    %958 = vmatprep.subr.bf16.mxu0 0
    %959 = vmatpush2.bf16.msra.mxu0 0
    %960 = vmatprep.subr.bf16.mxu0 0
    %961 = vmatpush2.bf16.msra.mxu0 0
    %962 = vmatprep.mubr.bf16.mxu0 0
    %963 = vmatmul.mubr.bf16.gmra.mxu0 %v929
    %v964 = vpop.f32.mrf.mxu0
    %v965 = vadd.f32 0.0, %v964
    %v966 = vpop.f32.mrf.mxu0
    %v967 = vpop.f32.mrf.mxu0
    %v968 = vpop.f32.mrf.mxu0
    %969 = vdwg.mxu0
    %v970 = vpack.c.bf16 %v965, %v965
    %971 = vmatprep.subr.bf16.mxu0 0
    %972 = vmatpush1.bf16.msra.mxu0 %v158
    %973 = vmatprep.subr.bf16.mxu0 0
    %974 = vmatpush1.bf16.msra.mxu0 %v157
    %975 = vmatprep.subr.bf16.mxu0 0
    %976 = vmatpush1.bf16.msra.mxu0 %v156
    %977 = vmatprep.subr.bf16.mxu0 0
    %978 = vmatpush1.bf16.msra.mxu0 %v155
    %979 = vmatprep.subr.bf16.mxu0 0
    %980 = vmatpush1.bf16.msra.mxu0 %v154
    %981 = vmatprep.subr.bf16.mxu0 0
    %982 = vmatpush1.bf16.msra.mxu0 %v153
    %983 = vmatprep.subr.bf16.mxu0 0
    %984 = vmatpush1.bf16.msra.mxu0 %v152
    %985 = vmatprep.subr.bf16.mxu0 0
    %986 = vmatpush1.bf16.msra.mxu0 %v151
    %987 = vmatprep.subr.bf16.mxu0 0
    %988 = vmatpush2.bf16.msra.mxu0 0
    %989 = vmatprep.subr.bf16.mxu0 0
    %990 = vmatpush2.bf16.msra.mxu0 0
    %991 = vmatprep.subr.bf16.mxu0 0
    %992 = vmatpush2.bf16.msra.mxu0 0
    %993 = vmatprep.subr.bf16.mxu0 0
    %994 = vmatpush2.bf16.msra.mxu0 0
    %995 = vmatprep.subr.bf16.mxu0 0
    %996 = vmatpush2.bf16.msra.mxu0 0
    %997 = vmatprep.subr.bf16.mxu0 0
    %998 = vmatpush2.bf16.msra.mxu0 0
    %999 = vmatprep.subr.bf16.mxu0 0
    %1000 = vmatpush2.bf16.msra.mxu0 0
    %1001 = vmatprep.subr.bf16.mxu0 0
    %1002 = vmatpush2.bf16.msra.mxu0 0
    %1003 = vmatprep.mubr.bf16.mxu0 0
    %1004 = vmatmul.mubr.bf16.gmra.mxu0 %v970
    %v1005 = vpop.f32.mrf.mxu0
    %v1006 = vadd.f32 0.0, %v1005
    %v1007 = vpop.f32.mrf.mxu0
    %v1008 = vpop.f32.mrf.mxu0
    %v1009 = vpop.f32.mrf.mxu0
    %1010 = vdwg.mxu0
    %v1011 = vtanh.pop %v1006
    %v1012 = vadd.f32 %v965, %v1011
    %v1013 = vpack.c.bf16 %v1012, %v1012
    %1014 = vmatprep.subr.bf16.mxu0 0
    %1015 = vmatpush1.bf16.msra.mxu0 %v249
    %1016 = vmatprep.subr.bf16.mxu0 0
    %1017 = vmatpush1.bf16.msra.mxu0 %v248
    %1018 = vmatprep.subr.bf16.mxu0 0
    %1019 = vmatpush1.bf16.msra.mxu0 %v247
    %1020 = vmatprep.subr.bf16.mxu0 0
    %1021 = vmatpush1.bf16.msra.mxu0 %v246
    %1022 = vmatprep.subr.bf16.mxu0 0
    %1023 = vmatpush1.bf16.msra.mxu0 %v245
    %1024 = vmatprep.subr.bf16.mxu0 0
    %1025 = vmatpush1.bf16.msra.mxu0 %v244
    %1026 = vmatprep.subr.bf16.mxu0 0
    %1027 = vmatpush1.bf16.msra.mxu0 %v243
    %1028 = vmatprep.subr.bf16.mxu0 0
    %1029 = vmatpush1.bf16.msra.mxu0 %v242
    %1030 = vmatprep.subr.bf16.mxu0 0
    %1031 = vmatpush2.bf16.msra.mxu0 0
    %1032 = vmatprep.subr.bf16.mxu0 0
    %1033 = vmatpush2.bf16.msra.mxu0 0
    %1034 = vmatprep.subr.bf16.mxu0 0
    %1035 = vmatpush2.bf16.msra.mxu0 0
    %1036 = vmatprep.subr.bf16.mxu0 0
    %1037 = vmatpush2.bf16.msra.mxu0 0
    %1038 = vmatprep.subr.bf16.mxu0 0
    %1039 = vmatpush2.bf16.msra.mxu0 0
    %1040 = vmatprep.subr.bf16.mxu0 0
    %1041 = vmatpush2.bf16.msra.mxu0 0
    %1042 = vmatprep.subr.bf16.mxu0 0
    %1043 = vmatpush2.bf16.msra.mxu0 0
    %1044 = vmatprep.subr.bf16.mxu0 0
    %1045 = vmatpush2.bf16.msra.mxu0 0
    %1046 = vmatprep.mubr.bf16.mxu0 0
    %1047 = vmatmul.mubr.bf16.gmra.mxu0 %v1013
    %v1048 = vpop.f32.mrf.mxu0
    %v1049 = vadd.f32 0.0, %v1048
    %v1050 = vpop.f32.mrf.mxu0
    %v1051 = vpop.f32.mrf.mxu0
    %v1052 = vpop.f32.mrf.mxu0
    %1053 = vdwg.mxu0
    %v1054 = vpack.c.bf16 %v1049, %v1049
    %1055 = vmatprep.subr.bf16.mxu0 0
    %1056 = vmatpush1.bf16.msra.mxu0 %v158
    %1057 = vmatprep.subr.bf16.mxu0 0
    %1058 = vmatpush1.bf16.msra.mxu0 %v157
    %1059 = vmatprep.subr.bf16.mxu0 0
    %1060 = vmatpush1.bf16.msra.mxu0 %v156
    %1061 = vmatprep.subr.bf16.mxu0 0
    %1062 = vmatpush1.bf16.msra.mxu0 %v155
    %1063 = vmatprep.subr.bf16.mxu0 0
    %1064 = vmatpush1.bf16.msra.mxu0 %v154
    %1065 = vmatprep.subr.bf16.mxu0 0
    %1066 = vmatpush1.bf16.msra.mxu0 %v153
    %1067 = vmatprep.subr.bf16.mxu0 0
    %1068 = vmatpush1.bf16.msra.mxu0 %v152
    %1069 = vmatprep.subr.bf16.mxu0 0
    %1070 = vmatpush1.bf16.msra.mxu0 %v151
    %1071 = vmatprep.subr.bf16.mxu0 0
    %1072 = vmatpush2.bf16.msra.mxu0 0
    %1073 = vmatprep.subr.bf16.mxu0 0
    %1074 = vmatpush2.bf16.msra.mxu0 0
    %1075 = vmatprep.subr.bf16.mxu0 0
    %1076 = vmatpush2.bf16.msra.mxu0 0
    %1077 = vmatprep.subr.bf16.mxu0 0
    %1078 = vmatpush2.bf16.msra.mxu0 0
    %1079 = vmatprep.subr.bf16.mxu0 0
    %1080 = vmatpush2.bf16.msra.mxu0 0
    %1081 = vmatprep.subr.bf16.mxu0 0
    %1082 = vmatpush2.bf16.msra.mxu0 0
    %1083 = vmatprep.subr.bf16.mxu0 0
    %1084 = vmatpush2.bf16.msra.mxu0 0
    %1085 = vmatprep.subr.bf16.mxu0 0
    %1086 = vmatpush2.bf16.msra.mxu0 0
    %1087 = vmatprep.mubr.bf16.mxu0 0
    %1088 = vmatmul.mubr.bf16.gmra.mxu0 %v1054
    %v1089 = vpop.f32.mrf.mxu0
    %v1090 = vadd.f32 0.0, %v1089
    %v1091 = vpop.f32.mrf.mxu0
    %v1092 = vpop.f32.mrf.mxu0
    %v1093 = vpop.f32.mrf.mxu0
    %1094 = vdwg.mxu0
    %v1095 = vtanh.pop %v1090
    %v1096 = vadd.f32 %v1049, %v1095
    %v1097 = vpack.c.bf16 %v1096, %v1096
    %1098 = vmatprep.subr.bf16.mxu0 0
    %1099 = vmatpush1.bf16.msra.mxu0 %v249
    %1100 = vmatprep.subr.bf16.mxu0 0
    %1101 = vmatpush1.bf16.msra.mxu0 %v248
    %1102 = vmatprep.subr.bf16.mxu0 0
    %1103 = vmatpush1.bf16.msra.mxu0 %v247
    %1104 = vmatprep.subr.bf16.mxu0 0
    %1105 = vmatpush1.bf16.msra.mxu0 %v246
    %1106 = vmatprep.subr.bf16.mxu0 0
    %1107 = vmatpush1.bf16.msra.mxu0 %v245
    %1108 = vmatprep.subr.bf16.mxu0 0
    %1109 = vmatpush1.bf16.msra.mxu0 %v244
    %1110 = vmatprep.subr.bf16.mxu0 0
    %1111 = vmatpush1.bf16.msra.mxu0 %v243
    %1112 = vmatprep.subr.bf16.mxu0 0
    %1113 = vmatpush1.bf16.msra.mxu0 %v242
    %1114 = vmatprep.subr.bf16.mxu0 0
    %1115 = vmatpush2.bf16.msra.mxu0 0
    %1116 = vmatprep.subr.bf16.mxu0 0
    %1117 = vmatpush2.bf16.msra.mxu0 0
    %1118 = vmatprep.subr.bf16.mxu0 0
    %1119 = vmatpush2.bf16.msra.mxu0 0
    %1120 = vmatprep.subr.bf16.mxu0 0
    %1121 = vmatpush2.bf16.msra.mxu0 0
    %1122 = vmatprep.subr.bf16.mxu0 0
    %1123 = vmatpush2.bf16.msra.mxu0 0
    %1124 = vmatprep.subr.bf16.mxu0 0
    %1125 = vmatpush2.bf16.msra.mxu0 0
    %1126 = vmatprep.subr.bf16.mxu0 0
    %1127 = vmatpush2.bf16.msra.mxu0 0
    %1128 = vmatprep.subr.bf16.mxu0 0
    %1129 = vmatpush2.bf16.msra.mxu0 0
    %1130 = vmatprep.mubr.bf16.mxu0 0
    %1131 = vmatmul.mubr.bf16.gmra.mxu0 %v1097
    %v1132 = vpop.f32.mrf.mxu0
    %v1133 = vadd.f32 0.0, %v1132
    %v1134 = vpop.f32.mrf.mxu0
    %v1135 = vpop.f32.mrf.mxu0
    %v1136 = vpop.f32.mrf.mxu0
    %1137 = vdwg.mxu0
    %v1138 = vpack.c.bf16 %v1133, %v1133
    %1139 = vmatprep.subr.bf16.mxu0 0
    %1140 = vmatpush1.bf16.msra.mxu0 %v158
    %1141 = vmatprep.subr.bf16.mxu0 0
    %1142 = vmatpush1.bf16.msra.mxu0 %v157
    %1143 = vmatprep.subr.bf16.mxu0 0
    %1144 = vmatpush1.bf16.msra.mxu0 %v156
    %1145 = vmatprep.subr.bf16.mxu0 0
    %1146 = vmatpush1.bf16.msra.mxu0 %v155
    %1147 = vmatprep.subr.bf16.mxu0 0
    %1148 = vmatpush1.bf16.msra.mxu0 %v154
    %1149 = vmatprep.subr.bf16.mxu0 0
    %1150 = vmatpush1.bf16.msra.mxu0 %v153
    %1151 = vmatprep.subr.bf16.mxu0 0
    %1152 = vmatpush1.bf16.msra.mxu0 %v152
    %1153 = vmatprep.subr.bf16.mxu0 0
    %1154 = vmatpush1.bf16.msra.mxu0 %v151
    %1155 = vmatprep.subr.bf16.mxu0 0
    %1156 = vmatpush2.bf16.msra.mxu0 0
    %1157 = vmatprep.subr.bf16.mxu0 0
    %1158 = vmatpush2.bf16.msra.mxu0 0
    %1159 = vmatprep.subr.bf16.mxu0 0
    %1160 = vmatpush2.bf16.msra.mxu0 0
    %1161 = vmatprep.subr.bf16.mxu0 0
    %1162 = vmatpush2.bf16.msra.mxu0 0
    %1163 = vmatprep.subr.bf16.mxu0 0
    %1164 = vmatpush2.bf16.msra.mxu0 0
    %1165 = vmatprep.subr.bf16.mxu0 0
    %1166 = vmatpush2.bf16.msra.mxu0 0
    %1167 = vmatprep.subr.bf16.mxu0 0
    %1168 = vmatpush2.bf16.msra.mxu0 0
    %1169 = vmatprep.subr.bf16.mxu0 0
    %1170 = vmatpush2.bf16.msra.mxu0 0
    %1171 = vmatprep.mubr.bf16.mxu0 0
    %1172 = vmatmul.mubr.bf16.gmra.mxu0 %v1138
    %v1173 = vpop.f32.mrf.mxu0
    %v1174 = vadd.f32 0.0, %v1173
    %v1175 = vpop.f32.mrf.mxu0
    %v1176 = vpop.f32.mrf.mxu0
    %v1177 = vpop.f32.mrf.mxu0
    %1178 = vdwg.mxu0
    %v1179 = vtanh.pop %v1174
    %v1180 = vadd.f32 %v1133, %v1179
    %v1181 = vpack.c.bf16 %v1180, %v1180
    %1182 = vmatprep.subr.bf16.mxu0 0
    %1183 = vmatpush1.bf16.msra.mxu0 %v249
    %1184 = vmatprep.subr.bf16.mxu0 0
    %1185 = vmatpush1.bf16.msra.mxu0 %v248
    %1186 = vmatprep.subr.bf16.mxu0 0
    %1187 = vmatpush1.bf16.msra.mxu0 %v247
    %1188 = vmatprep.subr.bf16.mxu0 0
    %1189 = vmatpush1.bf16.msra.mxu0 %v246
    %1190 = vmatprep.subr.bf16.mxu0 0
    %1191 = vmatpush1.bf16.msra.mxu0 %v245
    %1192 = vmatprep.subr.bf16.mxu0 0
    %1193 = vmatpush1.bf16.msra.mxu0 %v244
    %1194 = vmatprep.subr.bf16.mxu0 0
    %1195 = vmatpush1.bf16.msra.mxu0 %v243
    %1196 = vmatprep.subr.bf16.mxu0 0
    %1197 = vmatpush1.bf16.msra.mxu0 %v242
    %1198 = vmatprep.subr.bf16.mxu0 0
    %1199 = vmatpush2.bf16.msra.mxu0 0
    %1200 = vmatprep.subr.bf16.mxu0 0
    %1201 = vmatpush2.bf16.msra.mxu0 0
    %1202 = vmatprep.subr.bf16.mxu0 0
    %1203 = vmatpush2.bf16.msra.mxu0 0
    %1204 = vmatprep.subr.bf16.mxu0 0
    %1205 = vmatpush2.bf16.msra.mxu0 0
    %1206 = vmatprep.subr.bf16.mxu0 0
    %1207 = vmatpush2.bf16.msra.mxu0 0
    %1208 = vmatprep.subr.bf16.mxu0 0
    %1209 = vmatpush2.bf16.msra.mxu0 0
    %1210 = vmatprep.subr.bf16.mxu0 0
    %1211 = vmatpush2.bf16.msra.mxu0 0
    %1212 = vmatprep.subr.bf16.mxu0 0
    %1213 = vmatpush2.bf16.msra.mxu0 0
    %1214 = vmatprep.mubr.bf16.mxu0 0
    %1215 = vmatmul.mubr.bf16.gmra.mxu0 %v1181
    %v1216 = vpop.f32.mrf.mxu0
    %v1217 = vadd.f32 0.0, %v1216
    %v1218 = vpop.f32.mrf.mxu0
    %v1219 = vpop.f32.mrf.mxu0
    %v1220 = vpop.f32.mrf.mxu0
    %1221 = vdwg.mxu0
    %v1222 = vpack.c.bf16 %v1217, %v1217
    %1223 = vmatprep.subr.bf16.mxu0 0
    %1224 = vmatpush1.bf16.msra.mxu0 %v158
    %1225 = vmatprep.subr.bf16.mxu0 0
    %1226 = vmatpush1.bf16.msra.mxu0 %v157
    %1227 = vmatprep.subr.bf16.mxu0 0
    %1228 = vmatpush1.bf16.msra.mxu0 %v156
    %1229 = vmatprep.subr.bf16.mxu0 0
    %1230 = vmatpush1.bf16.msra.mxu0 %v155
    %1231 = vmatprep.subr.bf16.mxu0 0
    %1232 = vmatpush1.bf16.msra.mxu0 %v154
    %1233 = vmatprep.subr.bf16.mxu0 0
    %1234 = vmatpush1.bf16.msra.mxu0 %v153
    %1235 = vmatprep.subr.bf16.mxu0 0
    %1236 = vmatpush1.bf16.msra.mxu0 %v152
    %1237 = vmatprep.subr.bf16.mxu0 0
    %1238 = vmatpush1.bf16.msra.mxu0 %v151
    %1239 = vmatprep.subr.bf16.mxu0 0
    %1240 = vmatpush2.bf16.msra.mxu0 0
    %1241 = vmatprep.subr.bf16.mxu0 0
    %1242 = vmatpush2.bf16.msra.mxu0 0
    %1243 = vmatprep.subr.bf16.mxu0 0
    %1244 = vmatpush2.bf16.msra.mxu0 0
    %1245 = vmatprep.subr.bf16.mxu0 0
    %1246 = vmatpush2.bf16.msra.mxu0 0
    %1247 = vmatprep.subr.bf16.mxu0 0
    %1248 = vmatpush2.bf16.msra.mxu0 0
    %1249 = vmatprep.subr.bf16.mxu0 0
    %1250 = vmatpush2.bf16.msra.mxu0 0
    %1251 = vmatprep.subr.bf16.mxu0 0
    %1252 = vmatpush2.bf16.msra.mxu0 0
    %1253 = vmatprep.subr.bf16.mxu0 0
    %1254 = vmatpush2.bf16.msra.mxu0 0
    %1255 = vmatprep.mubr.bf16.mxu0 0
    %1256 = vmatmul.mubr.bf16.gmra.mxu0 %v1222
    %v1257 = vpop.f32.mrf.mxu0
    %v1258 = vadd.f32 0.0, %v1257
    %v1259 = vpop.f32.mrf.mxu0
    %v1260 = vpop.f32.mrf.mxu0
    %v1261 = vpop.f32.mrf.mxu0
    %1262 = vdwg.mxu0
    %v1263 = vtanh.pop %v1258
    %v1264 = vadd.f32 %v1217, %v1263
    %v1265 = vpack.c.bf16 %v1264, %v1264
    %1266 = vmatprep.subr.bf16.mxu0 0
    %1267 = vmatpush1.bf16.msra.mxu0 %v249
    %1268 = vmatprep.subr.bf16.mxu0 0
    %1269 = vmatpush1.bf16.msra.mxu0 %v248
    %1270 = vmatprep.subr.bf16.mxu0 0
    %1271 = vmatpush1.bf16.msra.mxu0 %v247
    %1272 = vmatprep.subr.bf16.mxu0 0
    %1273 = vmatpush1.bf16.msra.mxu0 %v246
    %1274 = vmatprep.subr.bf16.mxu0 0
    %1275 = vmatpush1.bf16.msra.mxu0 %v245
    %1276 = vmatprep.subr.bf16.mxu0 0
    %1277 = vmatpush1.bf16.msra.mxu0 %v244
    %1278 = vmatprep.subr.bf16.mxu0 0
    %1279 = vmatpush1.bf16.msra.mxu0 %v243
    %1280 = vmatprep.subr.bf16.mxu0 0
    %1281 = vmatpush1.bf16.msra.mxu0 %v242
    %1282 = vmatprep.subr.bf16.mxu0 0
    %1283 = vmatpush2.bf16.msra.mxu0 0
    %1284 = vmatprep.subr.bf16.mxu0 0
    %1285 = vmatpush2.bf16.msra.mxu0 0
    %1286 = vmatprep.subr.bf16.mxu0 0
    %1287 = vmatpush2.bf16.msra.mxu0 0
    %1288 = vmatprep.subr.bf16.mxu0 0
    %1289 = vmatpush2.bf16.msra.mxu0 0
    %1290 = vmatprep.subr.bf16.mxu0 0
    %1291 = vmatpush2.bf16.msra.mxu0 0
    %1292 = vmatprep.subr.bf16.mxu0 0
    %1293 = vmatpush2.bf16.msra.mxu0 0
    %1294 = vmatprep.subr.bf16.mxu0 0
    %1295 = vmatpush2.bf16.msra.mxu0 0
    %1296 = vmatprep.subr.bf16.mxu0 0
    %1297 = vmatpush2.bf16.msra.mxu0 0
    %1298 = vmatprep.mubr.bf16.mxu0 0
    %1299 = vmatmul.mubr.bf16.gmra.mxu0 %v1265
    %v1300 = vpop.f32.mrf.mxu0
    %v1301 = vadd.f32 0.0, %v1300
    %v1302 = vpop.f32.mrf.mxu0
    %v1303 = vpop.f32.mrf.mxu0
    %v1304 = vpop.f32.mrf.mxu0
    %1305 = vdwg.mxu0
    %v1306 = vpack.c.bf16 %v1301, %v1301
    %1307 = vmatprep.subr.bf16.mxu0 0
    %1308 = vmatpush1.bf16.msra.mxu0 %v158
    %1309 = vmatprep.subr.bf16.mxu0 0
    %1310 = vmatpush1.bf16.msra.mxu0 %v157
    %1311 = vmatprep.subr.bf16.mxu0 0
    %1312 = vmatpush1.bf16.msra.mxu0 %v156
    %1313 = vmatprep.subr.bf16.mxu0 0
    %1314 = vmatpush1.bf16.msra.mxu0 %v155
    %1315 = vmatprep.subr.bf16.mxu0 0
    %1316 = vmatpush1.bf16.msra.mxu0 %v154
    %1317 = vmatprep.subr.bf16.mxu0 0
    %1318 = vmatpush1.bf16.msra.mxu0 %v153
    %1319 = vmatprep.subr.bf16.mxu0 0
    %1320 = vmatpush1.bf16.msra.mxu0 %v152
    %1321 = vmatprep.subr.bf16.mxu0 0
    %1322 = vmatpush1.bf16.msra.mxu0 %v151
    %1323 = vmatprep.subr.bf16.mxu0 0
    %1324 = vmatpush2.bf16.msra.mxu0 0
    %1325 = vmatprep.subr.bf16.mxu0 0
    %1326 = vmatpush2.bf16.msra.mxu0 0
    %1327 = vmatprep.subr.bf16.mxu0 0
    %1328 = vmatpush2.bf16.msra.mxu0 0
    %1329 = vmatprep.subr.bf16.mxu0 0
    %1330 = vmatpush2.bf16.msra.mxu0 0
    %1331 = vmatprep.subr.bf16.mxu0 0
    %1332 = vmatpush2.bf16.msra.mxu0 0
    %1333 = vmatprep.subr.bf16.mxu0 0
    %1334 = vmatpush2.bf16.msra.mxu0 0
    %1335 = vmatprep.subr.bf16.mxu0 0
    %1336 = vmatpush2.bf16.msra.mxu0 0
    %1337 = vmatprep.subr.bf16.mxu0 0
    %1338 = vmatpush2.bf16.msra.mxu0 0
    %1339 = vmatprep.mubr.bf16.mxu0 0
    %1340 = vmatmul.mubr.bf16.gmra.mxu0 %v1306
    %v1341 = vpop.f32.mrf.mxu0
    %v1342 = vadd.f32 0.0, %v1341
    %v1343 = vpop.f32.mrf.mxu0
    %v1344 = vpop.f32.mrf.mxu0
    %v1345 = vpop.f32.mrf.mxu0
    %1346 = vdwg.mxu0
    %v1347 = vtanh.pop %v1342
    %v1348 = vadd.f32 %v1301, %v1347
    %v1349 = vpack.c.bf16 %v1348, %v1348
    %1350 = vmatprep.subr.bf16.mxu0 0
    %1351 = vmatpush1.bf16.msra.mxu0 %v249
    %1352 = vmatprep.subr.bf16.mxu0 0
    %1353 = vmatpush1.bf16.msra.mxu0 %v248
    %1354 = vmatprep.subr.bf16.mxu0 0
    %1355 = vmatpush1.bf16.msra.mxu0 %v247
    %1356 = vmatprep.subr.bf16.mxu0 0
    %1357 = vmatpush1.bf16.msra.mxu0 %v246
    %1358 = vmatprep.subr.bf16.mxu0 0
    %1359 = vmatpush1.bf16.msra.mxu0 %v245
    %1360 = vmatprep.subr.bf16.mxu0 0
    %1361 = vmatpush1.bf16.msra.mxu0 %v244
    %1362 = vmatprep.subr.bf16.mxu0 0
    %1363 = vmatpush1.bf16.msra.mxu0 %v243
    %1364 = vmatprep.subr.bf16.mxu0 0
    %1365 = vmatpush1.bf16.msra.mxu0 %v242
    %1366 = vmatprep.subr.bf16.mxu0 0
    %1367 = vmatpush2.bf16.msra.mxu0 0
    %1368 = vmatprep.subr.bf16.mxu0 0
    %1369 = vmatpush2.bf16.msra.mxu0 0
    %1370 = vmatprep.subr.bf16.mxu0 0
    %1371 = vmatpush2.bf16.msra.mxu0 0
    %1372 = vmatprep.subr.bf16.mxu0 0
    %1373 = vmatpush2.bf16.msra.mxu0 0
    %1374 = vmatprep.subr.bf16.mxu0 0
    %1375 = vmatpush2.bf16.msra.mxu0 0
    %1376 = vmatprep.subr.bf16.mxu0 0
    %1377 = vmatpush2.bf16.msra.mxu0 0
    %1378 = vmatprep.subr.bf16.mxu0 0
    %1379 = vmatpush2.bf16.msra.mxu0 0
    %1380 = vmatprep.subr.bf16.mxu0 0
    %1381 = vmatpush2.bf16.msra.mxu0 0
    %1382 = vmatprep.mubr.bf16.mxu0 0
    %1383 = vmatmul.mubr.bf16.gmra.mxu0 %v1349
    %v1384 = vpop.f32.mrf.mxu0
    %v1385 = vadd.f32 0.0, %v1384
    %v1386 = vpop.f32.mrf.mxu0
    %v1387 = vpop.f32.mrf.mxu0
    %v1388 = vpop.f32.mrf.mxu0
    %1389 = vdwg.mxu0
    %v1390 = vpack.c.bf16 %v1385, %v1385
    %1391 = vmatprep.subr.bf16.mxu0 0
    %1392 = vmatpush1.bf16.msra.mxu0 %v158
    %1393 = vmatprep.subr.bf16.mxu0 0
    %1394 = vmatpush1.bf16.msra.mxu0 %v157
    %1395 = vmatprep.subr.bf16.mxu0 0
    %1396 = vmatpush1.bf16.msra.mxu0 %v156
    %1397 = vmatprep.subr.bf16.mxu0 0
    %1398 = vmatpush1.bf16.msra.mxu0 %v155
    %1399 = vmatprep.subr.bf16.mxu0 0
    %1400 = vmatpush1.bf16.msra.mxu0 %v154
    %1401 = vmatprep.subr.bf16.mxu0 0
    %1402 = vmatpush1.bf16.msra.mxu0 %v153
    %1403 = vmatprep.subr.bf16.mxu0 0
    %1404 = vmatpush1.bf16.msra.mxu0 %v152
    %1405 = vmatprep.subr.bf16.mxu0 0
    %1406 = vmatpush1.bf16.msra.mxu0 %v151
    %1407 = vmatprep.subr.bf16.mxu0 0
    %1408 = vmatpush2.bf16.msra.mxu0 0
    %1409 = vmatprep.subr.bf16.mxu0 0
    %1410 = vmatpush2.bf16.msra.mxu0 0
    %1411 = vmatprep.subr.bf16.mxu0 0
    %1412 = vmatpush2.bf16.msra.mxu0 0
    %1413 = vmatprep.subr.bf16.mxu0 0
    %1414 = vmatpush2.bf16.msra.mxu0 0
    %1415 = vmatprep.subr.bf16.mxu0 0
    %1416 = vmatpush2.bf16.msra.mxu0 0
    %1417 = vmatprep.subr.bf16.mxu0 0
    %1418 = vmatpush2.bf16.msra.mxu0 0
    %1419 = vmatprep.subr.bf16.mxu0 0
    %1420 = vmatpush2.bf16.msra.mxu0 0
    %1421 = vmatprep.subr.bf16.mxu0 0
    %1422 = vmatpush2.bf16.msra.mxu0 0
    %1423 = vmatprep.mubr.bf16.mxu0 0
    %1424 = vmatmul.mubr.bf16.gmra.mxu0 %v1390
    %v1425 = vpop.f32.mrf.mxu0
    %v1426 = vadd.f32 0.0, %v1425
    %v1427 = vpop.f32.mrf.mxu0
    %v1428 = vpop.f32.mrf.mxu0
    %v1429 = vpop.f32.mrf.mxu0
    %1430 = vdwg.mxu0
    %v1431 = vtanh.pop %v1426
    %v1432 = vadd.f32 %v1385, %v1431
    %v1433 = vpack.c.bf16 %v1432, %v1432
    %1434 = vmatprep.subr.bf16.mxu0 0
    %1435 = vmatpush1.bf16.msra.mxu0 %v249
    %1436 = vmatprep.subr.bf16.mxu0 0
    %1437 = vmatpush1.bf16.msra.mxu0 %v248
    %1438 = vmatprep.subr.bf16.mxu0 0
    %1439 = vmatpush1.bf16.msra.mxu0 %v247
    %1440 = vmatprep.subr.bf16.mxu0 0
    %1441 = vmatpush1.bf16.msra.mxu0 %v246
    %1442 = vmatprep.subr.bf16.mxu0 0
    %1443 = vmatpush1.bf16.msra.mxu0 %v245
    %1444 = vmatprep.subr.bf16.mxu0 0
    %1445 = vmatpush1.bf16.msra.mxu0 %v244
    %1446 = vmatprep.subr.bf16.mxu0 0
    %1447 = vmatpush1.bf16.msra.mxu0 %v243
    %1448 = vmatprep.subr.bf16.mxu0 0
    %1449 = vmatpush1.bf16.msra.mxu0 %v242
    %1450 = vmatprep.subr.bf16.mxu0 0
    %1451 = vmatpush2.bf16.msra.mxu0 0
    %1452 = vmatprep.subr.bf16.mxu0 0
    %1453 = vmatpush2.bf16.msra.mxu0 0
    %1454 = vmatprep.subr.bf16.mxu0 0
    %1455 = vmatpush2.bf16.msra.mxu0 0
    %1456 = vmatprep.subr.bf16.mxu0 0
    %1457 = vmatpush2.bf16.msra.mxu0 0
    %1458 = vmatprep.subr.bf16.mxu0 0
    %1459 = vmatpush2.bf16.msra.mxu0 0
    %1460 = vmatprep.subr.bf16.mxu0 0
    %1461 = vmatpush2.bf16.msra.mxu0 0
    %1462 = vmatprep.subr.bf16.mxu0 0
    %1463 = vmatpush2.bf16.msra.mxu0 0
    %1464 = vmatprep.subr.bf16.mxu0 0
    %1465 = vmatpush2.bf16.msra.mxu0 0
    %1466 = vmatprep.mubr.bf16.mxu0 0
    %1467 = vmatmul.mubr.bf16.gmra.mxu0 %v1433
    %v1468 = vpop.f32.mrf.mxu0
    %v1469 = vadd.f32 0.0, %v1468
    %v1470 = vpop.f32.mrf.mxu0
    %v1471 = vpop.f32.mrf.mxu0
    %v1472 = vpop.f32.mrf.mxu0
    %1473 = vdwg.mxu0
    %v1474 = vpack.c.bf16 %v1469, %v1469
    %1475 = vmatprep.subr.bf16.mxu0 0
    %1476 = vmatpush1.bf16.msra.mxu0 %v158
    %1477 = vmatprep.subr.bf16.mxu0 0
    %1478 = vmatpush1.bf16.msra.mxu0 %v157
    %1479 = vmatprep.subr.bf16.mxu0 0
    %1480 = vmatpush1.bf16.msra.mxu0 %v156
    %1481 = vmatprep.subr.bf16.mxu0 0
    %1482 = vmatpush1.bf16.msra.mxu0 %v155
    %1483 = vmatprep.subr.bf16.mxu0 0
    %1484 = vmatpush1.bf16.msra.mxu0 %v154
    %1485 = vmatprep.subr.bf16.mxu0 0
    %1486 = vmatpush1.bf16.msra.mxu0 %v153
    %1487 = vmatprep.subr.bf16.mxu0 0
    %1488 = vmatpush1.bf16.msra.mxu0 %v152
    %1489 = vmatprep.subr.bf16.mxu0 0
    %1490 = vmatpush1.bf16.msra.mxu0 %v151
    %1491 = vmatprep.subr.bf16.mxu0 0
    %1492 = vmatpush2.bf16.msra.mxu0 0
    %1493 = vmatprep.subr.bf16.mxu0 0
    %1494 = vmatpush2.bf16.msra.mxu0 0
    %1495 = vmatprep.subr.bf16.mxu0 0
    %1496 = vmatpush2.bf16.msra.mxu0 0
    %1497 = vmatprep.subr.bf16.mxu0 0
    %1498 = vmatpush2.bf16.msra.mxu0 0
    %1499 = vmatprep.subr.bf16.mxu0 0
    %1500 = vmatpush2.bf16.msra.mxu0 0
    %1501 = vmatprep.subr.bf16.mxu0 0
    %1502 = vmatpush2.bf16.msra.mxu0 0
    %1503 = vmatprep.subr.bf16.mxu0 0
    %1504 = vmatpush2.bf16.msra.mxu0 0
    %1505 = vmatprep.subr.bf16.mxu0 0
    %1506 = vmatpush2.bf16.msra.mxu0 0
    %1507 = vmatprep.mubr.bf16.mxu0 0
    %1508 = vmatmul.mubr.bf16.gmra.mxu0 %v1474
    %v1509 = vpop.f32.mrf.mxu0
    %v1510 = vadd.f32 0.0, %v1509
    %v1511 = vpop.f32.mrf.mxu0
    %v1512 = vpop.f32.mrf.mxu0
    %v1513 = vpop.f32.mrf.mxu0
    %1514 = vdwg.mxu0
    %v1515 = vtanh.pop %v1510
    %v1516 = vadd.f32 %v1469, %v1515
    %v1517 = vpack.c.bf16 %v1516, %v1516
    %1518 = vmatprep.subr.bf16.mxu0 0
    %1519 = vmatpush1.bf16.msra.mxu0 %v249
    %1520 = vmatprep.subr.bf16.mxu0 0
    %1521 = vmatpush1.bf16.msra.mxu0 %v248
    %1522 = vmatprep.subr.bf16.mxu0 0
    %1523 = vmatpush1.bf16.msra.mxu0 %v247
    %1524 = vmatprep.subr.bf16.mxu0 0
    %1525 = vmatpush1.bf16.msra.mxu0 %v246
    %1526 = vmatprep.subr.bf16.mxu0 0
    %1527 = vmatpush1.bf16.msra.mxu0 %v245
    %1528 = vmatprep.subr.bf16.mxu0 0
    %1529 = vmatpush1.bf16.msra.mxu0 %v244
    %1530 = vmatprep.subr.bf16.mxu0 0
    %1531 = vmatpush1.bf16.msra.mxu0 %v243
    %1532 = vmatprep.subr.bf16.mxu0 0
    %1533 = vmatpush1.bf16.msra.mxu0 %v242
    %1534 = vmatprep.subr.bf16.mxu0 0
    %1535 = vmatpush2.bf16.msra.mxu0 0
    %1536 = vmatprep.subr.bf16.mxu0 0
    %1537 = vmatpush2.bf16.msra.mxu0 0
    %1538 = vmatprep.subr.bf16.mxu0 0
    %1539 = vmatpush2.bf16.msra.mxu0 0
    %1540 = vmatprep.subr.bf16.mxu0 0
    %1541 = vmatpush2.bf16.msra.mxu0 0
    %1542 = vmatprep.subr.bf16.mxu0 0
    %1543 = vmatpush2.bf16.msra.mxu0 0
    %1544 = vmatprep.subr.bf16.mxu0 0
    %1545 = vmatpush2.bf16.msra.mxu0 0
    %1546 = vmatprep.subr.bf16.mxu0 0
    %1547 = vmatpush2.bf16.msra.mxu0 0
    %1548 = vmatprep.subr.bf16.mxu0 0
    %1549 = vmatpush2.bf16.msra.mxu0 0
    %1550 = vmatprep.mubr.bf16.mxu0 0
    %1551 = vmatmul.mubr.bf16.gmra.mxu0 %v1517
    %v1552 = vpop.f32.mrf.mxu0
    %v1553 = vadd.f32 0.0, %v1552
    %v1554 = vpop.f32.mrf.mxu0
    %v1555 = vpop.f32.mrf.mxu0
    %v1556 = vpop.f32.mrf.mxu0
    %1557 = vdwg.mxu0
    %v1558 = vpack.c.bf16 %v1553, %v1553
    %1559 = vmatprep.subr.bf16.mxu0 0
    %1560 = vmatpush1.bf16.msra.mxu0 %v158
    %1561 = vmatprep.subr.bf16.mxu0 0
    %1562 = vmatpush1.bf16.msra.mxu0 %v157
    %1563 = vmatprep.subr.bf16.mxu0 0
    %1564 = vmatpush1.bf16.msra.mxu0 %v156
    %1565 = vmatprep.subr.bf16.mxu0 0
    %1566 = vmatpush1.bf16.msra.mxu0 %v155
    %1567 = vmatprep.subr.bf16.mxu0 0
    %1568 = vmatpush1.bf16.msra.mxu0 %v154
    %1569 = vmatprep.subr.bf16.mxu0 0
    %1570 = vmatpush1.bf16.msra.mxu0 %v153
    %1571 = vmatprep.subr.bf16.mxu0 0
    %1572 = vmatpush1.bf16.msra.mxu0 %v152
    %1573 = vmatprep.subr.bf16.mxu0 0
    %1574 = vmatpush1.bf16.msra.mxu0 %v151
    %1575 = vmatprep.subr.bf16.mxu0 0
    %1576 = vmatpush2.bf16.msra.mxu0 0
    %1577 = vmatprep.subr.bf16.mxu0 0
    %1578 = vmatpush2.bf16.msra.mxu0 0
    %1579 = vmatprep.subr.bf16.mxu0 0
    %1580 = vmatpush2.bf16.msra.mxu0 0
    %1581 = vmatprep.subr.bf16.mxu0 0
    %1582 = vmatpush2.bf16.msra.mxu0 0
    %1583 = vmatprep.subr.bf16.mxu0 0
    %1584 = vmatpush2.bf16.msra.mxu0 0
    %1585 = vmatprep.subr.bf16.mxu0 0
    %1586 = vmatpush2.bf16.msra.mxu0 0
    %1587 = vmatprep.subr.bf16.mxu0 0
    %1588 = vmatpush2.bf16.msra.mxu0 0
    %1589 = vmatprep.subr.bf16.mxu0 0
    %1590 = vmatpush2.bf16.msra.mxu0 0
    %1591 = vmatprep.mubr.bf16.mxu0 0
    %1592 = vmatmul.mubr.bf16.gmra.mxu0 %v1558
    %v1593 = vpop.f32.mrf.mxu0
    %v1594 = vadd.f32 0.0, %v1593
    %v1595 = vpop.f32.mrf.mxu0
    %v1596 = vpop.f32.mrf.mxu0
    %v1597 = vpop.f32.mrf.mxu0
    %1598 = vdwg.mxu0
    %v1599 = vtanh.pop %v1594
    %v1600 = vadd.f32 %v1553, %v1599
    %v1601 = vpack.c.bf16 %v1600, %v1600
    %1602 = vmatprep.subr.bf16.mxu0 0
    %1603 = vmatpush1.bf16.msra.mxu0 %v249
    %1604 = vmatprep.subr.bf16.mxu0 0
    %1605 = vmatpush1.bf16.msra.mxu0 %v248
    %1606 = vmatprep.subr.bf16.mxu0 0
    %1607 = vmatpush1.bf16.msra.mxu0 %v247
    %1608 = vmatprep.subr.bf16.mxu0 0
    %1609 = vmatpush1.bf16.msra.mxu0 %v246
    %1610 = vmatprep.subr.bf16.mxu0 0
    %1611 = vmatpush1.bf16.msra.mxu0 %v245
    %1612 = vmatprep.subr.bf16.mxu0 0
    %1613 = vmatpush1.bf16.msra.mxu0 %v244
    %1614 = vmatprep.subr.bf16.mxu0 0
    %1615 = vmatpush1.bf16.msra.mxu0 %v243
    %1616 = vmatprep.subr.bf16.mxu0 0
    %1617 = vmatpush1.bf16.msra.mxu0 %v242
    %1618 = vmatprep.subr.bf16.mxu0 0
    %1619 = vmatpush2.bf16.msra.mxu0 0
    %1620 = vmatprep.subr.bf16.mxu0 0
    %1621 = vmatpush2.bf16.msra.mxu0 0
    %1622 = vmatprep.subr.bf16.mxu0 0
    %1623 = vmatpush2.bf16.msra.mxu0 0
    %1624 = vmatprep.subr.bf16.mxu0 0
    %1625 = vmatpush2.bf16.msra.mxu0 0
    %1626 = vmatprep.subr.bf16.mxu0 0
    %1627 = vmatpush2.bf16.msra.mxu0 0
    %1628 = vmatprep.subr.bf16.mxu0 0
    %1629 = vmatpush2.bf16.msra.mxu0 0
    %1630 = vmatprep.subr.bf16.mxu0 0
    %1631 = vmatpush2.bf16.msra.mxu0 0
    %1632 = vmatprep.subr.bf16.mxu0 0
    %1633 = vmatpush2.bf16.msra.mxu0 0
    %1634 = vmatprep.mubr.bf16.mxu0 0
    %1635 = vmatmul.mubr.bf16.gmra.mxu0 %v1601
    %v1636 = vpop.f32.mrf.mxu0
    %v1637 = vadd.f32 0.0, %v1636
    %v1638 = vpop.f32.mrf.mxu0
    %v1639 = vpop.f32.mrf.mxu0
    %v1640 = vpop.f32.mrf.mxu0
    %1641 = vdwg.mxu0
    %v1642 = vpack.c.bf16 %v1637, %v1637
    %1643 = vmatprep.subr.bf16.mxu0 0
    %1644 = vmatpush1.bf16.msra.mxu0 %v158
    %1645 = vmatprep.subr.bf16.mxu0 0
    %1646 = vmatpush1.bf16.msra.mxu0 %v157
    %1647 = vmatprep.subr.bf16.mxu0 0
    %1648 = vmatpush1.bf16.msra.mxu0 %v156
    %1649 = vmatprep.subr.bf16.mxu0 0
    %1650 = vmatpush1.bf16.msra.mxu0 %v155
    %1651 = vmatprep.subr.bf16.mxu0 0
    %1652 = vmatpush1.bf16.msra.mxu0 %v154
    %1653 = vmatprep.subr.bf16.mxu0 0
    %1654 = vmatpush1.bf16.msra.mxu0 %v153
    %1655 = vmatprep.subr.bf16.mxu0 0
    %1656 = vmatpush1.bf16.msra.mxu0 %v152
    %1657 = vmatprep.subr.bf16.mxu0 0
    %1658 = vmatpush1.bf16.msra.mxu0 %v151
    %1659 = vmatprep.subr.bf16.mxu0 0
    %1660 = vmatpush2.bf16.msra.mxu0 0
    %1661 = vmatprep.subr.bf16.mxu0 0
    %1662 = vmatpush2.bf16.msra.mxu0 0
    %1663 = vmatprep.subr.bf16.mxu0 0
    %1664 = vmatpush2.bf16.msra.mxu0 0
    %1665 = vmatprep.subr.bf16.mxu0 0
    %1666 = vmatpush2.bf16.msra.mxu0 0
    %1667 = vmatprep.subr.bf16.mxu0 0
    %1668 = vmatpush2.bf16.msra.mxu0 0
    %1669 = vmatprep.subr.bf16.mxu0 0
    %1670 = vmatpush2.bf16.msra.mxu0 0
    %1671 = vmatprep.subr.bf16.mxu0 0
    %1672 = vmatpush2.bf16.msra.mxu0 0
    %1673 = vmatprep.subr.bf16.mxu0 0
    %1674 = vmatpush2.bf16.msra.mxu0 0
    %1675 = vmatprep.mubr.bf16.mxu0 0
    %1676 = vmatmul.mubr.bf16.gmra.mxu0 %v1642
    %v1677 = vpop.f32.mrf.mxu0
    %v1678 = vadd.f32 0.0, %v1677
    %v1679 = vpop.f32.mrf.mxu0
    %v1680 = vpop.f32.mrf.mxu0
    %v1681 = vpop.f32.mrf.mxu0
    %1682 = vdwg.mxu0
    %v1683 = vtanh.pop %v1678
    %v1684 = vadd.f32 %v1637, %v1683
    %v1685 = vpack.c.bf16 %v1684, %v1684
    %1686 = vmatprep.subr.bf16.mxu0 0
    %1687 = vmatpush1.bf16.msra.mxu0 %v249
    %1688 = vmatprep.subr.bf16.mxu0 0
    %1689 = vmatpush1.bf16.msra.mxu0 %v248
    %1690 = vmatprep.subr.bf16.mxu0 0
    %1691 = vmatpush1.bf16.msra.mxu0 %v247
    %1692 = vmatprep.subr.bf16.mxu0 0
    %1693 = vmatpush1.bf16.msra.mxu0 %v246
    %1694 = vmatprep.subr.bf16.mxu0 0
    %1695 = vmatpush1.bf16.msra.mxu0 %v245
    %1696 = vmatprep.subr.bf16.mxu0 0
    %1697 = vmatpush1.bf16.msra.mxu0 %v244
    %1698 = vmatprep.subr.bf16.mxu0 0
    %1699 = vmatpush1.bf16.msra.mxu0 %v243
    %1700 = vmatprep.subr.bf16.mxu0 0
    %1701 = vmatpush1.bf16.msra.mxu0 %v242
    %1702 = vmatprep.subr.bf16.mxu0 0
    %1703 = vmatpush2.bf16.msra.mxu0 0
    %1704 = vmatprep.subr.bf16.mxu0 0
    %1705 = vmatpush2.bf16.msra.mxu0 0
    %1706 = vmatprep.subr.bf16.mxu0 0
    %1707 = vmatpush2.bf16.msra.mxu0 0
    %1708 = vmatprep.subr.bf16.mxu0 0
    %1709 = vmatpush2.bf16.msra.mxu0 0
    %1710 = vmatprep.subr.bf16.mxu0 0
    %1711 = vmatpush2.bf16.msra.mxu0 0
    %1712 = vmatprep.subr.bf16.mxu0 0
    %1713 = vmatpush2.bf16.msra.mxu0 0
    %1714 = vmatprep.subr.bf16.mxu0 0
    %1715 = vmatpush2.bf16.msra.mxu0 0
    %1716 = vmatprep.subr.bf16.mxu0 0
    %1717 = vmatpush2.bf16.msra.mxu0 0
    %1718 = vmatprep.mubr.bf16.mxu0 0
    %1719 = vmatmul.mubr.bf16.gmra.mxu0 %v1685
    %v1720 = vpop.f32.mrf.mxu0
    %v1721 = vadd.f32 0.0, %v1720
    %v1722 = vpop.f32.mrf.mxu0
    %v1723 = vpop.f32.mrf.mxu0
    %v1724 = vpop.f32.mrf.mxu0
    %1725 = vdwg.mxu0
    %v1726 = vpack.c.bf16 %v1721, %v1721
    %1727 = vmatprep.subr.bf16.mxu0 0
    %1728 = vmatpush1.bf16.msra.mxu0 %v158
    %1729 = vmatprep.subr.bf16.mxu0 0
    %1730 = vmatpush1.bf16.msra.mxu0 %v157
    %1731 = vmatprep.subr.bf16.mxu0 0
    %1732 = vmatpush1.bf16.msra.mxu0 %v156
    %1733 = vmatprep.subr.bf16.mxu0 0
    %1734 = vmatpush1.bf16.msra.mxu0 %v155
    %1735 = vmatprep.subr.bf16.mxu0 0
    %1736 = vmatpush1.bf16.msra.mxu0 %v154
    %1737 = vmatprep.subr.bf16.mxu0 0
    %1738 = vmatpush1.bf16.msra.mxu0 %v153
    %1739 = vmatprep.subr.bf16.mxu0 0
    %1740 = vmatpush1.bf16.msra.mxu0 %v152
    %1741 = vmatprep.subr.bf16.mxu0 0
    %1742 = vmatpush1.bf16.msra.mxu0 %v151
    %1743 = vmatprep.subr.bf16.mxu0 0
    %1744 = vmatpush2.bf16.msra.mxu0 0
    %1745 = vmatprep.subr.bf16.mxu0 0
    %1746 = vmatpush2.bf16.msra.mxu0 0
    %1747 = vmatprep.subr.bf16.mxu0 0
    %1748 = vmatpush2.bf16.msra.mxu0 0
    %1749 = vmatprep.subr.bf16.mxu0 0
    %1750 = vmatpush2.bf16.msra.mxu0 0
    %1751 = vmatprep.subr.bf16.mxu0 0
    %1752 = vmatpush2.bf16.msra.mxu0 0
    %1753 = vmatprep.subr.bf16.mxu0 0
    %1754 = vmatpush2.bf16.msra.mxu0 0
    %1755 = vmatprep.subr.bf16.mxu0 0
    %1756 = vmatpush2.bf16.msra.mxu0 0
    %1757 = vmatprep.subr.bf16.mxu0 0
    %1758 = vmatpush2.bf16.msra.mxu0 0
    %1759 = vmatprep.mubr.bf16.mxu0 0
    %1760 = vmatmul.mubr.bf16.gmra.mxu0 %v1726
    %v1761 = vpop.f32.mrf.mxu0
    %v1762 = vadd.f32 0.0, %v1761
    %v1763 = vpop.f32.mrf.mxu0
    %v1764 = vpop.f32.mrf.mxu0
    %v1765 = vpop.f32.mrf.mxu0
    %1766 = vdwg.mxu0
    %v1767 = vtanh.pop %v1762
    %v1768 = vadd.f32 %v1721, %v1767
    %v1769 = vpack.c.bf16 %v1768, %v1768
    %1770 = vmatprep.subr.bf16.mxu0 0
    %1771 = vmatpush1.bf16.msra.mxu0 %v249
    %1772 = vmatprep.subr.bf16.mxu0 0
    %1773 = vmatpush1.bf16.msra.mxu0 %v248
    %1774 = vmatprep.subr.bf16.mxu0 0
    %1775 = vmatpush1.bf16.msra.mxu0 %v247
    %1776 = vmatprep.subr.bf16.mxu0 0
    %1777 = vmatpush1.bf16.msra.mxu0 %v246
    %1778 = vmatprep.subr.bf16.mxu0 0
    %1779 = vmatpush1.bf16.msra.mxu0 %v245
    %1780 = vmatprep.subr.bf16.mxu0 0
    %1781 = vmatpush1.bf16.msra.mxu0 %v244
    %1782 = vmatprep.subr.bf16.mxu0 0
    %1783 = vmatpush1.bf16.msra.mxu0 %v243
    %1784 = vmatprep.subr.bf16.mxu0 0
    %1785 = vmatpush1.bf16.msra.mxu0 %v242
    %1786 = vmatprep.subr.bf16.mxu0 0
    %1787 = vmatpush2.bf16.msra.mxu0 0
    %1788 = vmatprep.subr.bf16.mxu0 0
    %1789 = vmatpush2.bf16.msra.mxu0 0
    %1790 = vmatprep.subr.bf16.mxu0 0
    %1791 = vmatpush2.bf16.msra.mxu0 0
    %1792 = vmatprep.subr.bf16.mxu0 0
    %1793 = vmatpush2.bf16.msra.mxu0 0
    %1794 = vmatprep.subr.bf16.mxu0 0
    %1795 = vmatpush2.bf16.msra.mxu0 0
    %1796 = vmatprep.subr.bf16.mxu0 0
    %1797 = vmatpush2.bf16.msra.mxu0 0
    %1798 = vmatprep.subr.bf16.mxu0 0
    %1799 = vmatpush2.bf16.msra.mxu0 0
    %1800 = vmatprep.subr.bf16.mxu0 0
    %1801 = vmatpush2.bf16.msra.mxu0 0
    %1802 = vmatprep.mubr.bf16.mxu0 0
    %1803 = vmatmul.mubr.bf16.gmra.mxu0 %v1769
    %v1804 = vpop.f32.mrf.mxu0
    %v1805 = vadd.f32 0.0, %v1804
    %v1806 = vpop.f32.mrf.mxu0
    %v1807 = vpop.f32.mrf.mxu0
    %v1808 = vpop.f32.mrf.mxu0
    %1809 = vdwg.mxu0
    %v1810 = vpack.c.bf16 %v1805, %v1805
    %1811 = vmatprep.subr.bf16.mxu0 0
    %1812 = vmatpush1.bf16.msra.mxu0 %v158
    %1813 = vmatprep.subr.bf16.mxu0 0
    %1814 = vmatpush1.bf16.msra.mxu0 %v157
    %1815 = vmatprep.subr.bf16.mxu0 0
    %1816 = vmatpush1.bf16.msra.mxu0 %v156
    %1817 = vmatprep.subr.bf16.mxu0 0
    %1818 = vmatpush1.bf16.msra.mxu0 %v155
    %1819 = vmatprep.subr.bf16.mxu0 0
    %1820 = vmatpush1.bf16.msra.mxu0 %v154
    %1821 = vmatprep.subr.bf16.mxu0 0
    %1822 = vmatpush1.bf16.msra.mxu0 %v153
    %1823 = vmatprep.subr.bf16.mxu0 0
    %1824 = vmatpush1.bf16.msra.mxu0 %v152
    %1825 = vmatprep.subr.bf16.mxu0 0
    %1826 = vmatpush1.bf16.msra.mxu0 %v151
    %1827 = vmatprep.subr.bf16.mxu0 0
    %1828 = vmatpush2.bf16.msra.mxu0 0
    %1829 = vmatprep.subr.bf16.mxu0 0
    %1830 = vmatpush2.bf16.msra.mxu0 0
    %1831 = vmatprep.subr.bf16.mxu0 0
    %1832 = vmatpush2.bf16.msra.mxu0 0
    %1833 = vmatprep.subr.bf16.mxu0 0
    %1834 = vmatpush2.bf16.msra.mxu0 0
    %1835 = vmatprep.subr.bf16.mxu0 0
    %1836 = vmatpush2.bf16.msra.mxu0 0
    %1837 = vmatprep.subr.bf16.mxu0 0
    %1838 = vmatpush2.bf16.msra.mxu0 0
    %1839 = vmatprep.subr.bf16.mxu0 0
    %1840 = vmatpush2.bf16.msra.mxu0 0
    %1841 = vmatprep.subr.bf16.mxu0 0
    %1842 = vmatpush2.bf16.msra.mxu0 0
    %1843 = vmatprep.mubr.bf16.mxu0 0
    %1844 = vmatmul.mubr.bf16.gmra.mxu0 %v1810
    %v1845 = vpop.f32.mrf.mxu0
    %v1846 = vadd.f32 0.0, %v1845
    %v1847 = vpop.f32.mrf.mxu0
    %v1848 = vpop.f32.mrf.mxu0
    %v1849 = vpop.f32.mrf.mxu0
    %1850 = vdwg.mxu0
    %v1851 = vtanh.pop %v1846
    %v1852 = vadd.f32 %v1805, %v1851
    %v1853 = vpack.c.bf16 %v1852, %v1852
    %1854 = vmatprep.subr.bf16.mxu0 0
    %1855 = vmatpush1.bf16.msra.mxu0 %v249
    %1856 = vmatprep.subr.bf16.mxu0 0
    %1857 = vmatpush1.bf16.msra.mxu0 %v248
    %1858 = vmatprep.subr.bf16.mxu0 0
    %1859 = vmatpush1.bf16.msra.mxu0 %v247
    %1860 = vmatprep.subr.bf16.mxu0 0
    %1861 = vmatpush1.bf16.msra.mxu0 %v246
    %1862 = vmatprep.subr.bf16.mxu0 0
    %1863 = vmatpush1.bf16.msra.mxu0 %v245
    %1864 = vmatprep.subr.bf16.mxu0 0
    %1865 = vmatpush1.bf16.msra.mxu0 %v244
    %1866 = vmatprep.subr.bf16.mxu0 0
    %1867 = vmatpush1.bf16.msra.mxu0 %v243
    %1868 = vmatprep.subr.bf16.mxu0 0
    %1869 = vmatpush1.bf16.msra.mxu0 %v242
    %1870 = vmatprep.subr.bf16.mxu0 0
    %1871 = vmatpush2.bf16.msra.mxu0 0
    %1872 = vmatprep.subr.bf16.mxu0 0
    %1873 = vmatpush2.bf16.msra.mxu0 0
    %1874 = vmatprep.subr.bf16.mxu0 0
    %1875 = vmatpush2.bf16.msra.mxu0 0
    %1876 = vmatprep.subr.bf16.mxu0 0
    %1877 = vmatpush2.bf16.msra.mxu0 0
    %1878 = vmatprep.subr.bf16.mxu0 0
    %1879 = vmatpush2.bf16.msra.mxu0 0
    %1880 = vmatprep.subr.bf16.mxu0 0
    %1881 = vmatpush2.bf16.msra.mxu0 0
    %1882 = vmatprep.subr.bf16.mxu0 0
    %1883 = vmatpush2.bf16.msra.mxu0 0
    %1884 = vmatprep.subr.bf16.mxu0 0
    %1885 = vmatpush2.bf16.msra.mxu0 0
    %1886 = vmatprep.mubr.bf16.mxu0 0
    %1887 = vmatmul.mubr.bf16.gmra.mxu0 %v1853
    %v1888 = vpop.f32.mrf.mxu0
    %v1889 = vadd.f32 0.0, %v1888
    %v1890 = vpop.f32.mrf.mxu0
    %v1891 = vpop.f32.mrf.mxu0
    %v1892 = vpop.f32.mrf.mxu0
    %1893 = vdwg.mxu0
    %v1894 = vpack.c.bf16 %v1889, %v1889
    %1895 = vmatprep.subr.bf16.mxu0 0
    %1896 = vmatpush1.bf16.msra.mxu0 %v158
    %1897 = vmatprep.subr.bf16.mxu0 0
    %1898 = vmatpush1.bf16.msra.mxu0 %v157
    %1899 = vmatprep.subr.bf16.mxu0 0
    %1900 = vmatpush1.bf16.msra.mxu0 %v156
    %1901 = vmatprep.subr.bf16.mxu0 0
    %1902 = vmatpush1.bf16.msra.mxu0 %v155
    %1903 = vmatprep.subr.bf16.mxu0 0
    %1904 = vmatpush1.bf16.msra.mxu0 %v154
    %1905 = vmatprep.subr.bf16.mxu0 0
    %1906 = vmatpush1.bf16.msra.mxu0 %v153
    %1907 = vmatprep.subr.bf16.mxu0 0
    %1908 = vmatpush1.bf16.msra.mxu0 %v152
    %1909 = vmatprep.subr.bf16.mxu0 0
    %1910 = vmatpush1.bf16.msra.mxu0 %v151
    %1911 = vmatprep.subr.bf16.mxu0 0
    %1912 = vmatpush2.bf16.msra.mxu0 0
    %1913 = vmatprep.subr.bf16.mxu0 0
    %1914 = vmatpush2.bf16.msra.mxu0 0
    %1915 = vmatprep.subr.bf16.mxu0 0
    %1916 = vmatpush2.bf16.msra.mxu0 0
    %1917 = vmatprep.subr.bf16.mxu0 0
    %1918 = vmatpush2.bf16.msra.mxu0 0
    %1919 = vmatprep.subr.bf16.mxu0 0
    %1920 = vmatpush2.bf16.msra.mxu0 0
    %1921 = vmatprep.subr.bf16.mxu0 0
    %1922 = vmatpush2.bf16.msra.mxu0 0
    %1923 = vmatprep.subr.bf16.mxu0 0
    %1924 = vmatpush2.bf16.msra.mxu0 0
    %1925 = vmatprep.subr.bf16.mxu0 0
    %1926 = vmatpush2.bf16.msra.mxu0 0
    %1927 = vmatprep.mubr.bf16.mxu0 0
    %1928 = vmatmul.mubr.bf16.gmra.mxu0 %v1894
    %v1929 = vpop.f32.mrf.mxu0
    %v1930 = vadd.f32 0.0, %v1929
    %v1931 = vpop.f32.mrf.mxu0
    %v1932 = vpop.f32.mrf.mxu0
    %v1933 = vpop.f32.mrf.mxu0
    %1934 = vdwg.mxu0
    %v1935 = vtanh.pop %v1930
    %v1936 = vadd.f32 %v1889, %v1935
    %v1937 = vpack.c.bf16 %v1936, %v1936
    %1938 = vmatprep.subr.bf16.mxu0 0
    %1939 = vmatpush1.bf16.msra.mxu0 %v249
    %1940 = vmatprep.subr.bf16.mxu0 0
    %1941 = vmatpush1.bf16.msra.mxu0 %v248
    %1942 = vmatprep.subr.bf16.mxu0 0
    %1943 = vmatpush1.bf16.msra.mxu0 %v247
    %1944 = vmatprep.subr.bf16.mxu0 0
    %1945 = vmatpush1.bf16.msra.mxu0 %v246
    %1946 = vmatprep.subr.bf16.mxu0 0
    %1947 = vmatpush1.bf16.msra.mxu0 %v245
    %1948 = vmatprep.subr.bf16.mxu0 0
    %1949 = vmatpush1.bf16.msra.mxu0 %v244
    %1950 = vmatprep.subr.bf16.mxu0 0
    %1951 = vmatpush1.bf16.msra.mxu0 %v243
    %1952 = vmatprep.subr.bf16.mxu0 0
    %1953 = vmatpush1.bf16.msra.mxu0 %v242
    %1954 = vmatprep.subr.bf16.mxu0 0
    %1955 = vmatpush2.bf16.msra.mxu0 0
    %1956 = vmatprep.subr.bf16.mxu0 0
    %1957 = vmatpush2.bf16.msra.mxu0 0
    %1958 = vmatprep.subr.bf16.mxu0 0
    %1959 = vmatpush2.bf16.msra.mxu0 0
    %1960 = vmatprep.subr.bf16.mxu0 0
    %1961 = vmatpush2.bf16.msra.mxu0 0
    %1962 = vmatprep.subr.bf16.mxu0 0
    %1963 = vmatpush2.bf16.msra.mxu0 0
    %1964 = vmatprep.subr.bf16.mxu0 0
    %1965 = vmatpush2.bf16.msra.mxu0 0
    %1966 = vmatprep.subr.bf16.mxu0 0
    %1967 = vmatpush2.bf16.msra.mxu0 0
    %1968 = vmatprep.subr.bf16.mxu0 0
    %1969 = vmatpush2.bf16.msra.mxu0 0
    %1970 = vmatprep.mubr.bf16.mxu0 0
    %1971 = vmatmul.mubr.bf16.gmra.mxu0 %v1937
    %v1972 = vpop.f32.mrf.mxu0
    %v1973 = vadd.f32 0.0, %v1972
    %v1974 = vpop.f32.mrf.mxu0
    %v1975 = vpop.f32.mrf.mxu0
    %v1976 = vpop.f32.mrf.mxu0
    %1977 = vdwg.mxu0
    %v1978 = vpack.c.bf16 %v1973, %v1973
    %1979 = vmatprep.subr.bf16.mxu0 0
    %1980 = vmatpush1.bf16.msra.mxu0 %v158
    %1981 = vmatprep.subr.bf16.mxu0 0
    %1982 = vmatpush1.bf16.msra.mxu0 %v157
    %1983 = vmatprep.subr.bf16.mxu0 0
    %1984 = vmatpush1.bf16.msra.mxu0 %v156
    %1985 = vmatprep.subr.bf16.mxu0 0
    %1986 = vmatpush1.bf16.msra.mxu0 %v155
    %1987 = vmatprep.subr.bf16.mxu0 0
    %1988 = vmatpush1.bf16.msra.mxu0 %v154
    %1989 = vmatprep.subr.bf16.mxu0 0
    %1990 = vmatpush1.bf16.msra.mxu0 %v153
    %1991 = vmatprep.subr.bf16.mxu0 0
    %1992 = vmatpush1.bf16.msra.mxu0 %v152
    %1993 = vmatprep.subr.bf16.mxu0 0
    %1994 = vmatpush1.bf16.msra.mxu0 %v151
    %1995 = vmatprep.subr.bf16.mxu0 0
    %1996 = vmatpush2.bf16.msra.mxu0 0
    %1997 = vmatprep.subr.bf16.mxu0 0
    %1998 = vmatpush2.bf16.msra.mxu0 0
    %1999 = vmatprep.subr.bf16.mxu0 0
    %2000 = vmatpush2.bf16.msra.mxu0 0
    %2001 = vmatprep.subr.bf16.mxu0 0
    %2002 = vmatpush2.bf16.msra.mxu0 0
    %2003 = vmatprep.subr.bf16.mxu0 0
    %2004 = vmatpush2.bf16.msra.mxu0 0
    %2005 = vmatprep.subr.bf16.mxu0 0
    %2006 = vmatpush2.bf16.msra.mxu0 0
    %2007 = vmatprep.subr.bf16.mxu0 0
    %2008 = vmatpush2.bf16.msra.mxu0 0
    %2009 = vmatprep.subr.bf16.mxu0 0
    %2010 = vmatpush2.bf16.msra.mxu0 0
    %2011 = vmatprep.mubr.bf16.mxu0 0
    %2012 = vmatmul.mubr.bf16.gmra.mxu0 %v1978
    %v2013 = vpop.f32.mrf.mxu0
    %v2014 = vadd.f32 0.0, %v2013
    %v2015 = vpop.f32.mrf.mxu0
    %v2016 = vpop.f32.mrf.mxu0
    %v2017 = vpop.f32.mrf.mxu0
    %2018 = vdwg.mxu0
    %v2019 = vtanh.pop %v2014
    %v2020 = vadd.f32 %v1973, %v2019
    %v2021 = vpack.c.bf16 %v2020, %v2020
    %2022 = vmatprep.subr.bf16.mxu0 0
    %2023 = vmatpush1.bf16.msra.mxu0 %v249
    %2024 = vmatprep.subr.bf16.mxu0 0
    %2025 = vmatpush1.bf16.msra.mxu0 %v248
    %2026 = vmatprep.subr.bf16.mxu0 0
    %2027 = vmatpush1.bf16.msra.mxu0 %v247
    %2028 = vmatprep.subr.bf16.mxu0 0
    %2029 = vmatpush1.bf16.msra.mxu0 %v246
    %2030 = vmatprep.subr.bf16.mxu0 0
    %2031 = vmatpush1.bf16.msra.mxu0 %v245
    %2032 = vmatprep.subr.bf16.mxu0 0
    %2033 = vmatpush1.bf16.msra.mxu0 %v244
    %2034 = vmatprep.subr.bf16.mxu0 0
    %2035 = vmatpush1.bf16.msra.mxu0 %v243
    %2036 = vmatprep.subr.bf16.mxu0 0
    %2037 = vmatpush1.bf16.msra.mxu0 %v242
    %2038 = vmatprep.subr.bf16.mxu0 0
    %2039 = vmatpush2.bf16.msra.mxu0 0
    %2040 = vmatprep.subr.bf16.mxu0 0
    %2041 = vmatpush2.bf16.msra.mxu0 0
    %2042 = vmatprep.subr.bf16.mxu0 0
    %2043 = vmatpush2.bf16.msra.mxu0 0
    %2044 = vmatprep.subr.bf16.mxu0 0
    %2045 = vmatpush2.bf16.msra.mxu0 0
    %2046 = vmatprep.subr.bf16.mxu0 0
    %2047 = vmatpush2.bf16.msra.mxu0 0
    %2048 = vmatprep.subr.bf16.mxu0 0
    %2049 = vmatpush2.bf16.msra.mxu0 0
    %2050 = vmatprep.subr.bf16.mxu0 0
    %2051 = vmatpush2.bf16.msra.mxu0 0
    %2052 = vmatprep.subr.bf16.mxu0 0
    %2053 = vmatpush2.bf16.msra.mxu0 0
    %2054 = vmatprep.mubr.bf16.mxu0 0
    %2055 = vmatmul.mubr.bf16.gmra.mxu0 %v2021
    %v2056 = vpop.f32.mrf.mxu0
    %v2057 = vadd.f32 0.0, %v2056
    %v2058 = vpop.f32.mrf.mxu0
    %v2059 = vpop.f32.mrf.mxu0
    %v2060 = vpop.f32.mrf.mxu0
    %2061 = vdwg.mxu0
    %v2062 = vpack.c.bf16 %v2057, %v2057
    %2063 = vmatprep.subr.bf16.mxu0 0
    %2064 = vmatpush1.bf16.msra.mxu0 %v158
    %2065 = vmatprep.subr.bf16.mxu0 0
    %2066 = vmatpush1.bf16.msra.mxu0 %v157
    %2067 = vmatprep.subr.bf16.mxu0 0
    %2068 = vmatpush1.bf16.msra.mxu0 %v156
    %2069 = vmatprep.subr.bf16.mxu0 0
    %2070 = vmatpush1.bf16.msra.mxu0 %v155
    %2071 = vmatprep.subr.bf16.mxu0 0
    %2072 = vmatpush1.bf16.msra.mxu0 %v154
    %2073 = vmatprep.subr.bf16.mxu0 0
    %2074 = vmatpush1.bf16.msra.mxu0 %v153
    %2075 = vmatprep.subr.bf16.mxu0 0
    %2076 = vmatpush1.bf16.msra.mxu0 %v152
    %2077 = vmatprep.subr.bf16.mxu0 0
    %2078 = vmatpush1.bf16.msra.mxu0 %v151
    %2079 = vmatprep.subr.bf16.mxu0 0
    %2080 = vmatpush2.bf16.msra.mxu0 0
    %2081 = vmatprep.subr.bf16.mxu0 0
    %2082 = vmatpush2.bf16.msra.mxu0 0
    %2083 = vmatprep.subr.bf16.mxu0 0
    %2084 = vmatpush2.bf16.msra.mxu0 0
    %2085 = vmatprep.subr.bf16.mxu0 0
    %2086 = vmatpush2.bf16.msra.mxu0 0
    %2087 = vmatprep.subr.bf16.mxu0 0
    %2088 = vmatpush2.bf16.msra.mxu0 0
    %2089 = vmatprep.subr.bf16.mxu0 0
    %2090 = vmatpush2.bf16.msra.mxu0 0
    %2091 = vmatprep.subr.bf16.mxu0 0
    %2092 = vmatpush2.bf16.msra.mxu0 0
    %2093 = vmatprep.subr.bf16.mxu0 0
    %2094 = vmatpush2.bf16.msra.mxu0 0
    %2095 = vmatprep.mubr.bf16.mxu0 0
    %2096 = vmatmul.mubr.bf16.gmra.mxu0 %v2062
    %v2097 = vpop.f32.mrf.mxu0
    %v2098 = vadd.f32 0.0, %v2097
    %v2099 = vpop.f32.mrf.mxu0
    %v2100 = vpop.f32.mrf.mxu0
    %v2101 = vpop.f32.mrf.mxu0
    %2102 = vdwg.mxu0
    %v2103 = vtanh.pop %v2098
    %v2104 = vadd.f32 %v2057, %v2103
    %v2105 = vpack.c.bf16 %v2104, %v2104
    %2106 = vmatprep.subr.bf16.mxu0 0
    %2107 = vmatpush1.bf16.msra.mxu0 %v249
    %2108 = vmatprep.subr.bf16.mxu0 0
    %2109 = vmatpush1.bf16.msra.mxu0 %v248
    %2110 = vmatprep.subr.bf16.mxu0 0
    %2111 = vmatpush1.bf16.msra.mxu0 %v247
    %2112 = vmatprep.subr.bf16.mxu0 0
    %2113 = vmatpush1.bf16.msra.mxu0 %v246
    %2114 = vmatprep.subr.bf16.mxu0 0
    %2115 = vmatpush1.bf16.msra.mxu0 %v245
    %2116 = vmatprep.subr.bf16.mxu0 0
    %2117 = vmatpush1.bf16.msra.mxu0 %v244
    %2118 = vmatprep.subr.bf16.mxu0 0
    %2119 = vmatpush1.bf16.msra.mxu0 %v243
    %2120 = vmatprep.subr.bf16.mxu0 0
    %2121 = vmatpush1.bf16.msra.mxu0 %v242
    %2122 = vmatprep.subr.bf16.mxu0 0
    %2123 = vmatpush2.bf16.msra.mxu0 0
    %2124 = vmatprep.subr.bf16.mxu0 0
    %2125 = vmatpush2.bf16.msra.mxu0 0
    %2126 = vmatprep.subr.bf16.mxu0 0
    %2127 = vmatpush2.bf16.msra.mxu0 0
    %2128 = vmatprep.subr.bf16.mxu0 0
    %2129 = vmatpush2.bf16.msra.mxu0 0
    %2130 = vmatprep.subr.bf16.mxu0 0
    %2131 = vmatpush2.bf16.msra.mxu0 0
    %2132 = vmatprep.subr.bf16.mxu0 0
    %2133 = vmatpush2.bf16.msra.mxu0 0
    %2134 = vmatprep.subr.bf16.mxu0 0
    %2135 = vmatpush2.bf16.msra.mxu0 0
    %2136 = vmatprep.subr.bf16.mxu0 0
    %2137 = vmatpush2.bf16.msra.mxu0 0
    %2138 = vmatprep.mubr.bf16.mxu0 0
    %2139 = vmatmul.mubr.bf16.gmra.mxu0 %v2105
    %v2140 = vpop.f32.mrf.mxu0
    %v2141 = vadd.f32 0.0, %v2140
    %v2142 = vpop.f32.mrf.mxu0
    %v2143 = vpop.f32.mrf.mxu0
    %v2144 = vpop.f32.mrf.mxu0
    %2145 = vdwg.mxu0
    %v2146 = vpack.c.bf16 %v2141, %v2141
    %2147 = vmatprep.subr.bf16.mxu0 0
    %2148 = vmatpush1.bf16.msra.mxu0 %v158
    %2149 = vmatprep.subr.bf16.mxu0 0
    %2150 = vmatpush1.bf16.msra.mxu0 %v157
    %2151 = vmatprep.subr.bf16.mxu0 0
    %2152 = vmatpush1.bf16.msra.mxu0 %v156
    %2153 = vmatprep.subr.bf16.mxu0 0
    %2154 = vmatpush1.bf16.msra.mxu0 %v155
    %2155 = vmatprep.subr.bf16.mxu0 0
    %2156 = vmatpush1.bf16.msra.mxu0 %v154
    %2157 = vmatprep.subr.bf16.mxu0 0
    %2158 = vmatpush1.bf16.msra.mxu0 %v153
    %2159 = vmatprep.subr.bf16.mxu0 0
    %2160 = vmatpush1.bf16.msra.mxu0 %v152
    %2161 = vmatprep.subr.bf16.mxu0 0
    %2162 = vmatpush1.bf16.msra.mxu0 %v151
    %2163 = vmatprep.subr.bf16.mxu0 0
    %2164 = vmatpush2.bf16.msra.mxu0 0
    %2165 = vmatprep.subr.bf16.mxu0 0
    %2166 = vmatpush2.bf16.msra.mxu0 0
    %2167 = vmatprep.subr.bf16.mxu0 0
    %2168 = vmatpush2.bf16.msra.mxu0 0
    %2169 = vmatprep.subr.bf16.mxu0 0
    %2170 = vmatpush2.bf16.msra.mxu0 0
    %2171 = vmatprep.subr.bf16.mxu0 0
    %2172 = vmatpush2.bf16.msra.mxu0 0
    %2173 = vmatprep.subr.bf16.mxu0 0
    %2174 = vmatpush2.bf16.msra.mxu0 0
    %2175 = vmatprep.subr.bf16.mxu0 0
    %2176 = vmatpush2.bf16.msra.mxu0 0
    %2177 = vmatprep.subr.bf16.mxu0 0
    %2178 = vmatpush2.bf16.msra.mxu0 0
    %2179 = vmatprep.mubr.bf16.mxu0 0
    %2180 = vmatmul.mubr.bf16.gmra.mxu0 %v2146
    %v2181 = vpop.f32.mrf.mxu0
    %v2182 = vadd.f32 0.0, %v2181
    %v2183 = vpop.f32.mrf.mxu0
    %v2184 = vpop.f32.mrf.mxu0
    %v2185 = vpop.f32.mrf.mxu0
    %2186 = vdwg.mxu0
    %v2187 = vtanh.pop %v2182
    %v2188 = vadd.f32 %v2141, %v2187
    %v2189 = vpack.c.bf16 %v2188, %v2188
    %2190 = vmatprep.subr.bf16.mxu0 0
    %2191 = vmatpush1.bf16.msra.mxu0 %v249
    %2192 = vmatprep.subr.bf16.mxu0 0
    %2193 = vmatpush1.bf16.msra.mxu0 %v248
    %2194 = vmatprep.subr.bf16.mxu0 0
    %2195 = vmatpush1.bf16.msra.mxu0 %v247
    %2196 = vmatprep.subr.bf16.mxu0 0
    %2197 = vmatpush1.bf16.msra.mxu0 %v246
    %2198 = vmatprep.subr.bf16.mxu0 0
    %2199 = vmatpush1.bf16.msra.mxu0 %v245
    %2200 = vmatprep.subr.bf16.mxu0 0
    %2201 = vmatpush1.bf16.msra.mxu0 %v244
    %2202 = vmatprep.subr.bf16.mxu0 0
    %2203 = vmatpush1.bf16.msra.mxu0 %v243
    %2204 = vmatprep.subr.bf16.mxu0 0
    %2205 = vmatpush1.bf16.msra.mxu0 %v242
    %2206 = vmatprep.subr.bf16.mxu0 0
    %2207 = vmatpush2.bf16.msra.mxu0 0
    %2208 = vmatprep.subr.bf16.mxu0 0
    %2209 = vmatpush2.bf16.msra.mxu0 0
    %2210 = vmatprep.subr.bf16.mxu0 0
    %2211 = vmatpush2.bf16.msra.mxu0 0
    %2212 = vmatprep.subr.bf16.mxu0 0
    %2213 = vmatpush2.bf16.msra.mxu0 0
    %2214 = vmatprep.subr.bf16.mxu0 0
    %2215 = vmatpush2.bf16.msra.mxu0 0
    %2216 = vmatprep.subr.bf16.mxu0 0
    %2217 = vmatpush2.bf16.msra.mxu0 0
    %2218 = vmatprep.subr.bf16.mxu0 0
    %2219 = vmatpush2.bf16.msra.mxu0 0
    %2220 = vmatprep.subr.bf16.mxu0 0
    %2221 = vmatpush2.bf16.msra.mxu0 0
    %2222 = vmatprep.mubr.bf16.mxu0 0
    %2223 = vmatmul.mubr.bf16.gmra.mxu0 %v2189
    %v2224 = vpop.f32.mrf.mxu0
    %v2225 = vadd.f32 0.0, %v2224
    %v2226 = vpop.f32.mrf.mxu0
    %v2227 = vpop.f32.mrf.mxu0
    %v2228 = vpop.f32.mrf.mxu0
    %2229 = vdwg.mxu0
    %v2230 = vpack.c.bf16 %v2225, %v2225
    %2231 = vmatprep.subr.bf16.mxu0 0
    %2232 = vmatpush1.bf16.msra.mxu0 %v158
    %2233 = vmatprep.subr.bf16.mxu0 0
    %2234 = vmatpush1.bf16.msra.mxu0 %v157
    %2235 = vmatprep.subr.bf16.mxu0 0
    %2236 = vmatpush1.bf16.msra.mxu0 %v156
    %2237 = vmatprep.subr.bf16.mxu0 0
    %2238 = vmatpush1.bf16.msra.mxu0 %v155
    %2239 = vmatprep.subr.bf16.mxu0 0
    %2240 = vmatpush1.bf16.msra.mxu0 %v154
    %2241 = vmatprep.subr.bf16.mxu0 0
    %2242 = vmatpush1.bf16.msra.mxu0 %v153
    %2243 = vmatprep.subr.bf16.mxu0 0
    %2244 = vmatpush1.bf16.msra.mxu0 %v152
    %2245 = vmatprep.subr.bf16.mxu0 0
    %2246 = vmatpush1.bf16.msra.mxu0 %v151
    %2247 = vmatprep.subr.bf16.mxu0 0
    %2248 = vmatpush2.bf16.msra.mxu0 0
    %2249 = vmatprep.subr.bf16.mxu0 0
    %2250 = vmatpush2.bf16.msra.mxu0 0
    %2251 = vmatprep.subr.bf16.mxu0 0
    %2252 = vmatpush2.bf16.msra.mxu0 0
    %2253 = vmatprep.subr.bf16.mxu0 0
    %2254 = vmatpush2.bf16.msra.mxu0 0
    %2255 = vmatprep.subr.bf16.mxu0 0
    %2256 = vmatpush2.bf16.msra.mxu0 0
    %2257 = vmatprep.subr.bf16.mxu0 0
    %2258 = vmatpush2.bf16.msra.mxu0 0
    %2259 = vmatprep.subr.bf16.mxu0 0
    %2260 = vmatpush2.bf16.msra.mxu0 0
    %2261 = vmatprep.subr.bf16.mxu0 0
    %2262 = vmatpush2.bf16.msra.mxu0 0
    %2263 = vmatprep.mubr.bf16.mxu0 0
    %2264 = vmatmul.mubr.bf16.gmra.mxu0 %v2230
    %v2265 = vpop.f32.mrf.mxu0
    %v2266 = vadd.f32 0.0, %v2265
    %v2267 = vpop.f32.mrf.mxu0
    %v2268 = vpop.f32.mrf.mxu0
    %v2269 = vpop.f32.mrf.mxu0
    %2270 = vdwg.mxu0
    %v2271 = vtanh.pop %v2266
    %v2272 = vadd.f32 %v2225, %v2271
    %v2273 = vpack.c.bf16 %v2272, %v2272
    %2274 = vmatprep.subr.bf16.mxu0 0
    %2275 = vmatpush1.bf16.msra.mxu0 %v249
    %2276 = vmatprep.subr.bf16.mxu0 0
    %2277 = vmatpush1.bf16.msra.mxu0 %v248
    %2278 = vmatprep.subr.bf16.mxu0 0
    %2279 = vmatpush1.bf16.msra.mxu0 %v247
    %2280 = vmatprep.subr.bf16.mxu0 0
    %2281 = vmatpush1.bf16.msra.mxu0 %v246
    %2282 = vmatprep.subr.bf16.mxu0 0
    %2283 = vmatpush1.bf16.msra.mxu0 %v245
    %2284 = vmatprep.subr.bf16.mxu0 0
    %2285 = vmatpush1.bf16.msra.mxu0 %v244
    %2286 = vmatprep.subr.bf16.mxu0 0
    %2287 = vmatpush1.bf16.msra.mxu0 %v243
    %2288 = vmatprep.subr.bf16.mxu0 0
    %2289 = vmatpush1.bf16.msra.mxu0 %v242
    %2290 = vmatprep.subr.bf16.mxu0 0
    %2291 = vmatpush2.bf16.msra.mxu0 0
    %2292 = vmatprep.subr.bf16.mxu0 0
    %2293 = vmatpush2.bf16.msra.mxu0 0
    %2294 = vmatprep.subr.bf16.mxu0 0
    %2295 = vmatpush2.bf16.msra.mxu0 0
    %2296 = vmatprep.subr.bf16.mxu0 0
    %2297 = vmatpush2.bf16.msra.mxu0 0
    %2298 = vmatprep.subr.bf16.mxu0 0
    %2299 = vmatpush2.bf16.msra.mxu0 0
    %2300 = vmatprep.subr.bf16.mxu0 0
    %2301 = vmatpush2.bf16.msra.mxu0 0
    %2302 = vmatprep.subr.bf16.mxu0 0
    %2303 = vmatpush2.bf16.msra.mxu0 0
    %2304 = vmatprep.subr.bf16.mxu0 0
    %2305 = vmatpush2.bf16.msra.mxu0 0
    %2306 = vmatprep.mubr.bf16.mxu0 0
    %2307 = vmatmul.mubr.bf16.gmra.mxu0 %v2273
    %v2308 = vpop.f32.mrf.mxu0
    %v2309 = vadd.f32 0.0, %v2308
    %v2310 = vpop.f32.mrf.mxu0
    %v2311 = vpop.f32.mrf.mxu0
    %v2312 = vpop.f32.mrf.mxu0
    %2313 = vdwg.mxu0
    %v2314 = vpack.c.bf16 %v2309, %v2309
    %2315 = vmatprep.subr.bf16.mxu0 0
    %2316 = vmatpush1.bf16.msra.mxu0 %v158
    %2317 = vmatprep.subr.bf16.mxu0 0
    %2318 = vmatpush1.bf16.msra.mxu0 %v157
    %2319 = vmatprep.subr.bf16.mxu0 0
    %2320 = vmatpush1.bf16.msra.mxu0 %v156
    %2321 = vmatprep.subr.bf16.mxu0 0
    %2322 = vmatpush1.bf16.msra.mxu0 %v155
    %2323 = vmatprep.subr.bf16.mxu0 0
    %2324 = vmatpush1.bf16.msra.mxu0 %v154
    %2325 = vmatprep.subr.bf16.mxu0 0
    %2326 = vmatpush1.bf16.msra.mxu0 %v153
    %2327 = vmatprep.subr.bf16.mxu0 0
    %2328 = vmatpush1.bf16.msra.mxu0 %v152
    %2329 = vmatprep.subr.bf16.mxu0 0
    %2330 = vmatpush1.bf16.msra.mxu0 %v151
    %2331 = vmatprep.subr.bf16.mxu0 0
    %2332 = vmatpush2.bf16.msra.mxu0 0
    %2333 = vmatprep.subr.bf16.mxu0 0
    %2334 = vmatpush2.bf16.msra.mxu0 0
    %2335 = vmatprep.subr.bf16.mxu0 0
    %2336 = vmatpush2.bf16.msra.mxu0 0
    %2337 = vmatprep.subr.bf16.mxu0 0
    %2338 = vmatpush2.bf16.msra.mxu0 0
    %2339 = vmatprep.subr.bf16.mxu0 0
    %2340 = vmatpush2.bf16.msra.mxu0 0
    %2341 = vmatprep.subr.bf16.mxu0 0
    %2342 = vmatpush2.bf16.msra.mxu0 0
    %2343 = vmatprep.subr.bf16.mxu0 0
    %2344 = vmatpush2.bf16.msra.mxu0 0
    %2345 = vmatprep.subr.bf16.mxu0 0
    %2346 = vmatpush2.bf16.msra.mxu0 0
    %2347 = vmatprep.mubr.bf16.mxu0 0
    %2348 = vmatmul.mubr.bf16.gmra.mxu0 %v2314
    %v2349 = vpop.f32.mrf.mxu0
    %v2350 = vadd.f32 0.0, %v2349
    %v2351 = vpop.f32.mrf.mxu0
    %v2352 = vpop.f32.mrf.mxu0
    %v2353 = vpop.f32.mrf.mxu0
    %2354 = vdwg.mxu0
    %v2355 = vtanh.pop %v2350
    %v2356 = vadd.f32 %v2309, %v2355
    %v2357 = vpack.c.bf16 %v2356, %v2356
    %2358 = vmatprep.subr.bf16.mxu0 0
    %2359 = vmatpush1.bf16.msra.mxu0 %v249
    %2360 = vmatprep.subr.bf16.mxu0 0
    %2361 = vmatpush1.bf16.msra.mxu0 %v248
    %2362 = vmatprep.subr.bf16.mxu0 0
    %2363 = vmatpush1.bf16.msra.mxu0 %v247
    %2364 = vmatprep.subr.bf16.mxu0 0
    %2365 = vmatpush1.bf16.msra.mxu0 %v246
    %2366 = vmatprep.subr.bf16.mxu0 0
    %2367 = vmatpush1.bf16.msra.mxu0 %v245
    %2368 = vmatprep.subr.bf16.mxu0 0
    %2369 = vmatpush1.bf16.msra.mxu0 %v244
    %2370 = vmatprep.subr.bf16.mxu0 0
    %2371 = vmatpush1.bf16.msra.mxu0 %v243
    %2372 = vmatprep.subr.bf16.mxu0 0
    %2373 = vmatpush1.bf16.msra.mxu0 %v242
    %2374 = vmatprep.subr.bf16.mxu0 0
    %2375 = vmatpush2.bf16.msra.mxu0 0
    %2376 = vmatprep.subr.bf16.mxu0 0
    %2377 = vmatpush2.bf16.msra.mxu0 0
    %2378 = vmatprep.subr.bf16.mxu0 0
    %2379 = vmatpush2.bf16.msra.mxu0 0
    %2380 = vmatprep.subr.bf16.mxu0 0
    %2381 = vmatpush2.bf16.msra.mxu0 0
    %2382 = vmatprep.subr.bf16.mxu0 0
    %2383 = vmatpush2.bf16.msra.mxu0 0
    %2384 = vmatprep.subr.bf16.mxu0 0
    %2385 = vmatpush2.bf16.msra.mxu0 0
    %2386 = vmatprep.subr.bf16.mxu0 0
    %2387 = vmatpush2.bf16.msra.mxu0 0
    %2388 = vmatprep.subr.bf16.mxu0 0
    %2389 = vmatpush2.bf16.msra.mxu0 0
    %2390 = vmatprep.mubr.bf16.mxu0 0
    %2391 = vmatmul.mubr.bf16.gmra.mxu0 %v2357
    %v2392 = vpop.f32.mrf.mxu0
    %v2393 = vadd.f32 0.0, %v2392
    %v2394 = vpop.f32.mrf.mxu0
    %v2395 = vpop.f32.mrf.mxu0
    %v2396 = vpop.f32.mrf.mxu0
    %2397 = vdwg.mxu0
    %v2398 = vpack.c.bf16 %v2393, %v2393
    %2399 = vmatprep.subr.bf16.mxu0 0
    %2400 = vmatpush1.bf16.msra.mxu0 %v158
    %2401 = vmatprep.subr.bf16.mxu0 0
    %2402 = vmatpush1.bf16.msra.mxu0 %v157
    %2403 = vmatprep.subr.bf16.mxu0 0
    %2404 = vmatpush1.bf16.msra.mxu0 %v156
    %2405 = vmatprep.subr.bf16.mxu0 0
    %2406 = vmatpush1.bf16.msra.mxu0 %v155
    %2407 = vmatprep.subr.bf16.mxu0 0
    %2408 = vmatpush1.bf16.msra.mxu0 %v154
    %2409 = vmatprep.subr.bf16.mxu0 0
    %2410 = vmatpush1.bf16.msra.mxu0 %v153
    %2411 = vmatprep.subr.bf16.mxu0 0
    %2412 = vmatpush1.bf16.msra.mxu0 %v152
    %2413 = vmatprep.subr.bf16.mxu0 0
    %2414 = vmatpush1.bf16.msra.mxu0 %v151
    %2415 = vmatprep.subr.bf16.mxu0 0
    %2416 = vmatpush2.bf16.msra.mxu0 0
    %2417 = vmatprep.subr.bf16.mxu0 0
    %2418 = vmatpush2.bf16.msra.mxu0 0
    %2419 = vmatprep.subr.bf16.mxu0 0
    %2420 = vmatpush2.bf16.msra.mxu0 0
    %2421 = vmatprep.subr.bf16.mxu0 0
    %2422 = vmatpush2.bf16.msra.mxu0 0
    %2423 = vmatprep.subr.bf16.mxu0 0
    %2424 = vmatpush2.bf16.msra.mxu0 0
    %2425 = vmatprep.subr.bf16.mxu0 0
    %2426 = vmatpush2.bf16.msra.mxu0 0
    %2427 = vmatprep.subr.bf16.mxu0 0
    %2428 = vmatpush2.bf16.msra.mxu0 0
    %2429 = vmatprep.subr.bf16.mxu0 0
    %2430 = vmatpush2.bf16.msra.mxu0 0
    %2431 = vmatprep.mubr.bf16.mxu0 0
    %2432 = vmatmul.mubr.bf16.gmra.mxu0 %v2398
    %v2433 = vpop.f32.mrf.mxu0
    %v2434 = vadd.f32 0.0, %v2433
    %v2435 = vpop.f32.mrf.mxu0
    %v2436 = vpop.f32.mrf.mxu0
    %v2437 = vpop.f32.mrf.mxu0
    %2438 = vdwg.mxu0
    %v2439 = vtanh.pop %v2434
    %v2440 = vadd.f32 %v2393, %v2439
    %v2441 = vpack.c.bf16 %v2440, %v2440
    %2442 = vmatprep.subr.bf16.mxu0 0
    %2443 = vmatpush1.bf16.msra.mxu0 %v249
    %2444 = vmatprep.subr.bf16.mxu0 0
    %2445 = vmatpush1.bf16.msra.mxu0 %v248
    %2446 = vmatprep.subr.bf16.mxu0 0
    %2447 = vmatpush1.bf16.msra.mxu0 %v247
    %2448 = vmatprep.subr.bf16.mxu0 0
    %2449 = vmatpush1.bf16.msra.mxu0 %v246
    %2450 = vmatprep.subr.bf16.mxu0 0
    %2451 = vmatpush1.bf16.msra.mxu0 %v245
    %2452 = vmatprep.subr.bf16.mxu0 0
    %2453 = vmatpush1.bf16.msra.mxu0 %v244
    %2454 = vmatprep.subr.bf16.mxu0 0
    %2455 = vmatpush1.bf16.msra.mxu0 %v243
    %2456 = vmatprep.subr.bf16.mxu0 0
    %2457 = vmatpush1.bf16.msra.mxu0 %v242
    %2458 = vmatprep.subr.bf16.mxu0 0
    %2459 = vmatpush2.bf16.msra.mxu0 0
    %2460 = vmatprep.subr.bf16.mxu0 0
    %2461 = vmatpush2.bf16.msra.mxu0 0
    %2462 = vmatprep.subr.bf16.mxu0 0
    %2463 = vmatpush2.bf16.msra.mxu0 0
    %2464 = vmatprep.subr.bf16.mxu0 0
    %2465 = vmatpush2.bf16.msra.mxu0 0
    %2466 = vmatprep.subr.bf16.mxu0 0
    %2467 = vmatpush2.bf16.msra.mxu0 0
    %2468 = vmatprep.subr.bf16.mxu0 0
    %2469 = vmatpush2.bf16.msra.mxu0 0
    %2470 = vmatprep.subr.bf16.mxu0 0
    %2471 = vmatpush2.bf16.msra.mxu0 0
    %2472 = vmatprep.subr.bf16.mxu0 0
    %2473 = vmatpush2.bf16.msra.mxu0 0
    %2474 = vmatprep.mubr.bf16.mxu0 0
    %2475 = vmatmul.mubr.bf16.gmra.mxu0 %v2441
    %v2476 = vpop.f32.mrf.mxu0
    %v2477 = vadd.f32 0.0, %v2476
    %v2478 = vpop.f32.mrf.mxu0
    %v2479 = vpop.f32.mrf.mxu0
    %v2480 = vpop.f32.mrf.mxu0
    %2481 = vdwg.mxu0
    %v2482 = vpack.c.bf16 %v2477, %v2477
    %2483 = vmatprep.subr.bf16.mxu0 0
    %2484 = vmatpush1.bf16.msra.mxu0 %v158
    %2485 = vmatprep.subr.bf16.mxu0 0
    %2486 = vmatpush1.bf16.msra.mxu0 %v157
    %2487 = vmatprep.subr.bf16.mxu0 0
    %2488 = vmatpush1.bf16.msra.mxu0 %v156
    %2489 = vmatprep.subr.bf16.mxu0 0
    %2490 = vmatpush1.bf16.msra.mxu0 %v155
    %2491 = vmatprep.subr.bf16.mxu0 0
    %2492 = vmatpush1.bf16.msra.mxu0 %v154
    %2493 = vmatprep.subr.bf16.mxu0 0
    %2494 = vmatpush1.bf16.msra.mxu0 %v153
    %2495 = vmatprep.subr.bf16.mxu0 0
    %2496 = vmatpush1.bf16.msra.mxu0 %v152
    %2497 = vmatprep.subr.bf16.mxu0 0
    %2498 = vmatpush1.bf16.msra.mxu0 %v151
    %2499 = vmatprep.subr.bf16.mxu0 0
    %2500 = vmatpush2.bf16.msra.mxu0 0
    %2501 = vmatprep.subr.bf16.mxu0 0
    %2502 = vmatpush2.bf16.msra.mxu0 0
    %2503 = vmatprep.subr.bf16.mxu0 0
    %2504 = vmatpush2.bf16.msra.mxu0 0
    %2505 = vmatprep.subr.bf16.mxu0 0
    %2506 = vmatpush2.bf16.msra.mxu0 0
    %2507 = vmatprep.subr.bf16.mxu0 0
    %2508 = vmatpush2.bf16.msra.mxu0 0
    %2509 = vmatprep.subr.bf16.mxu0 0
    %2510 = vmatpush2.bf16.msra.mxu0 0
    %2511 = vmatprep.subr.bf16.mxu0 0
    %2512 = vmatpush2.bf16.msra.mxu0 0
    %2513 = vmatprep.subr.bf16.mxu0 0
    %2514 = vmatpush2.bf16.msra.mxu0 0
    %2515 = vmatprep.mubr.bf16.mxu0 0
    %2516 = vmatmul.mubr.bf16.gmra.mxu0 %v2482
    %v2517 = vpop.f32.mrf.mxu0
    %v2518 = vadd.f32 0.0, %v2517
    %v2519 = vpop.f32.mrf.mxu0
    %v2520 = vpop.f32.mrf.mxu0
    %v2521 = vpop.f32.mrf.mxu0
    %2522 = vdwg.mxu0
    %v2523 = vtanh.pop %v2518
    %v2524 = vadd.f32 %v2477, %v2523
    %v2525 = vpack.c.bf16 %v2524, %v2524
    %2526 = vmatprep.subr.bf16.mxu0 0
    %2527 = vmatpush1.bf16.msra.mxu0 %v249
    %2528 = vmatprep.subr.bf16.mxu0 0
    %2529 = vmatpush1.bf16.msra.mxu0 %v248
    %2530 = vmatprep.subr.bf16.mxu0 0
    %2531 = vmatpush1.bf16.msra.mxu0 %v247
    %2532 = vmatprep.subr.bf16.mxu0 0
    %2533 = vmatpush1.bf16.msra.mxu0 %v246
    %2534 = vmatprep.subr.bf16.mxu0 0
    %2535 = vmatpush1.bf16.msra.mxu0 %v245
    %2536 = vmatprep.subr.bf16.mxu0 0
    %2537 = vmatpush1.bf16.msra.mxu0 %v244
    %2538 = vmatprep.subr.bf16.mxu0 0
    %2539 = vmatpush1.bf16.msra.mxu0 %v243
    %2540 = vmatprep.subr.bf16.mxu0 0
    %2541 = vmatpush1.bf16.msra.mxu0 %v242
    %2542 = vmatprep.subr.bf16.mxu0 0
    %2543 = vmatpush2.bf16.msra.mxu0 0
    %2544 = vmatprep.subr.bf16.mxu0 0
    %2545 = vmatpush2.bf16.msra.mxu0 0
    %2546 = vmatprep.subr.bf16.mxu0 0
    %2547 = vmatpush2.bf16.msra.mxu0 0
    %2548 = vmatprep.subr.bf16.mxu0 0
    %2549 = vmatpush2.bf16.msra.mxu0 0
    %2550 = vmatprep.subr.bf16.mxu0 0
    %2551 = vmatpush2.bf16.msra.mxu0 0
    %2552 = vmatprep.subr.bf16.mxu0 0
    %2553 = vmatpush2.bf16.msra.mxu0 0
    %2554 = vmatprep.subr.bf16.mxu0 0
    %2555 = vmatpush2.bf16.msra.mxu0 0
    %2556 = vmatprep.subr.bf16.mxu0 0
    %2557 = vmatpush2.bf16.msra.mxu0 0
    %2558 = vmatprep.mubr.bf16.mxu0 0
    %2559 = vmatmul.mubr.bf16.gmra.mxu0 %v2525
    %v2560 = vpop.f32.mrf.mxu0
    %v2561 = vadd.f32 0.0, %v2560
    %v2562 = vpop.f32.mrf.mxu0
    %v2563 = vpop.f32.mrf.mxu0
    %v2564 = vpop.f32.mrf.mxu0
    %2565 = vdwg.mxu0
    %v2566 = vpack.c.bf16 %v2561, %v2561
    %2567 = vmatprep.subr.bf16.mxu0 0
    %2568 = vmatpush1.bf16.msra.mxu0 %v158
    %2569 = vmatprep.subr.bf16.mxu0 0
    %2570 = vmatpush1.bf16.msra.mxu0 %v157
    %2571 = vmatprep.subr.bf16.mxu0 0
    %2572 = vmatpush1.bf16.msra.mxu0 %v156
    %2573 = vmatprep.subr.bf16.mxu0 0
    %2574 = vmatpush1.bf16.msra.mxu0 %v155
    %2575 = vmatprep.subr.bf16.mxu0 0
    %2576 = vmatpush1.bf16.msra.mxu0 %v154
    %2577 = vmatprep.subr.bf16.mxu0 0
    %2578 = vmatpush1.bf16.msra.mxu0 %v153
    %2579 = vmatprep.subr.bf16.mxu0 0
    %2580 = vmatpush1.bf16.msra.mxu0 %v152
    %2581 = vmatprep.subr.bf16.mxu0 0
    %2582 = vmatpush1.bf16.msra.mxu0 %v151
    %2583 = vmatprep.subr.bf16.mxu0 0
    %2584 = vmatpush2.bf16.msra.mxu0 0
    %2585 = vmatprep.subr.bf16.mxu0 0
    %2586 = vmatpush2.bf16.msra.mxu0 0
    %2587 = vmatprep.subr.bf16.mxu0 0
    %2588 = vmatpush2.bf16.msra.mxu0 0
    %2589 = vmatprep.subr.bf16.mxu0 0
    %2590 = vmatpush2.bf16.msra.mxu0 0
    %2591 = vmatprep.subr.bf16.mxu0 0
    %2592 = vmatpush2.bf16.msra.mxu0 0
    %2593 = vmatprep.subr.bf16.mxu0 0
    %2594 = vmatpush2.bf16.msra.mxu0 0
    %2595 = vmatprep.subr.bf16.mxu0 0
    %2596 = vmatpush2.bf16.msra.mxu0 0
    %2597 = vmatprep.subr.bf16.mxu0 0
    %2598 = vmatpush2.bf16.msra.mxu0 0
    %2599 = vmatprep.mubr.bf16.mxu0 0
    %2600 = vmatmul.mubr.bf16.gmra.mxu0 %v2566
    %v2601 = vpop.f32.mrf.mxu0
    %v2602 = vadd.f32 0.0, %v2601
    %v2603 = vpop.f32.mrf.mxu0
    %v2604 = vpop.f32.mrf.mxu0
    %v2605 = vpop.f32.mrf.mxu0
    %2606 = vdwg.mxu0
    %v2607 = vtanh.pop %v2602
    %v2608 = vadd.f32 %v2561, %v2607
    %v2609 = vpack.c.bf16 %v2608, %v2608
    %2610 = vmatprep.subr.bf16.mxu0 0
    %2611 = vmatpush1.bf16.msra.mxu0 %v249
    %2612 = vmatprep.subr.bf16.mxu0 0
    %2613 = vmatpush1.bf16.msra.mxu0 %v248
    %2614 = vmatprep.subr.bf16.mxu0 0
    %2615 = vmatpush1.bf16.msra.mxu0 %v247
    %2616 = vmatprep.subr.bf16.mxu0 0
    %2617 = vmatpush1.bf16.msra.mxu0 %v246
    %2618 = vmatprep.subr.bf16.mxu0 0
    %2619 = vmatpush1.bf16.msra.mxu0 %v245
    %2620 = vmatprep.subr.bf16.mxu0 0
    %2621 = vmatpush1.bf16.msra.mxu0 %v244
    %2622 = vmatprep.subr.bf16.mxu0 0
    %2623 = vmatpush1.bf16.msra.mxu0 %v243
    %2624 = vmatprep.subr.bf16.mxu0 0
    %2625 = vmatpush1.bf16.msra.mxu0 %v242
    %2626 = vmatprep.subr.bf16.mxu0 0
    %2627 = vmatpush2.bf16.msra.mxu0 0
    %2628 = vmatprep.subr.bf16.mxu0 0
    %2629 = vmatpush2.bf16.msra.mxu0 0
    %2630 = vmatprep.subr.bf16.mxu0 0
    %2631 = vmatpush2.bf16.msra.mxu0 0
    %2632 = vmatprep.subr.bf16.mxu0 0
    %2633 = vmatpush2.bf16.msra.mxu0 0
    %2634 = vmatprep.subr.bf16.mxu0 0
    %2635 = vmatpush2.bf16.msra.mxu0 0
    %2636 = vmatprep.subr.bf16.mxu0 0
    %2637 = vmatpush2.bf16.msra.mxu0 0
    %2638 = vmatprep.subr.bf16.mxu0 0
    %2639 = vmatpush2.bf16.msra.mxu0 0
    %2640 = vmatprep.subr.bf16.mxu0 0
    %2641 = vmatpush2.bf16.msra.mxu0 0
    %2642 = vmatprep.mubr.bf16.mxu0 0
    %2643 = vmatmul.mubr.bf16.gmra.mxu0 %v2609
    %v2644 = vpop.f32.mrf.mxu0
    %v2645 = vadd.f32 0.0, %v2644
    %v2646 = vpop.f32.mrf.mxu0
    %v2647 = vpop.f32.mrf.mxu0
    %v2648 = vpop.f32.mrf.mxu0
    %2649 = vdwg.mxu0
    %v2650 = vpack.c.bf16 %v2645, %v2645
    %2651 = vmatprep.subr.bf16.mxu0 0
    %2652 = vmatpush1.bf16.msra.mxu0 %v158
    %2653 = vmatprep.subr.bf16.mxu0 0
    %2654 = vmatpush1.bf16.msra.mxu0 %v157
    %2655 = vmatprep.subr.bf16.mxu0 0
    %2656 = vmatpush1.bf16.msra.mxu0 %v156
    %2657 = vmatprep.subr.bf16.mxu0 0
    %2658 = vmatpush1.bf16.msra.mxu0 %v155
    %2659 = vmatprep.subr.bf16.mxu0 0
    %2660 = vmatpush1.bf16.msra.mxu0 %v154
    %2661 = vmatprep.subr.bf16.mxu0 0
    %2662 = vmatpush1.bf16.msra.mxu0 %v153
    %2663 = vmatprep.subr.bf16.mxu0 0
    %2664 = vmatpush1.bf16.msra.mxu0 %v152
    %2665 = vmatprep.subr.bf16.mxu0 0
    %2666 = vmatpush1.bf16.msra.mxu0 %v151
    %2667 = vmatprep.subr.bf16.mxu0 0
    %2668 = vmatpush2.bf16.msra.mxu0 0
    %2669 = vmatprep.subr.bf16.mxu0 0
    %2670 = vmatpush2.bf16.msra.mxu0 0
    %2671 = vmatprep.subr.bf16.mxu0 0
    %2672 = vmatpush2.bf16.msra.mxu0 0
    %2673 = vmatprep.subr.bf16.mxu0 0
    %2674 = vmatpush2.bf16.msra.mxu0 0
    %2675 = vmatprep.subr.bf16.mxu0 0
    %2676 = vmatpush2.bf16.msra.mxu0 0
    %2677 = vmatprep.subr.bf16.mxu0 0
    %2678 = vmatpush2.bf16.msra.mxu0 0
    %2679 = vmatprep.subr.bf16.mxu0 0
    %2680 = vmatpush2.bf16.msra.mxu0 0
    %2681 = vmatprep.subr.bf16.mxu0 0
    %2682 = vmatpush2.bf16.msra.mxu0 0
    %2683 = vmatprep.mubr.bf16.mxu0 0
    %2684 = vmatmul.mubr.bf16.gmra.mxu0 %v2650
    %v2685 = vpop.f32.mrf.mxu0
    %v2686 = vadd.f32 0.0, %v2685
    %v2687 = vpop.f32.mrf.mxu0
    %v2688 = vpop.f32.mrf.mxu0
    %v2689 = vpop.f32.mrf.mxu0
    %2690 = vdwg.mxu0
    %v2691 = vtanh.pop %v2686
    %v2692 = vadd.f32 %v2645, %v2691
    %v2693 = vpack.c.bf16 %v2692, %v2692
    %2694 = vmatprep.subr.bf16.mxu0 0
    %2695 = vmatpush1.bf16.msra.mxu0 %v249
    %2696 = vmatprep.subr.bf16.mxu0 0
    %2697 = vmatpush1.bf16.msra.mxu0 %v248
    %2698 = vmatprep.subr.bf16.mxu0 0
    %2699 = vmatpush1.bf16.msra.mxu0 %v247
    %2700 = vmatprep.subr.bf16.mxu0 0
    %2701 = vmatpush1.bf16.msra.mxu0 %v246
    %2702 = vmatprep.subr.bf16.mxu0 0
    %2703 = vmatpush1.bf16.msra.mxu0 %v245
    %2704 = vmatprep.subr.bf16.mxu0 0
    %2705 = vmatpush1.bf16.msra.mxu0 %v244
    %2706 = vmatprep.subr.bf16.mxu0 0
    %2707 = vmatpush1.bf16.msra.mxu0 %v243
    %2708 = vmatprep.subr.bf16.mxu0 0
    %2709 = vmatpush1.bf16.msra.mxu0 %v242
    %2710 = vmatprep.subr.bf16.mxu0 0
    %2711 = vmatpush2.bf16.msra.mxu0 0
    %2712 = vmatprep.subr.bf16.mxu0 0
    %2713 = vmatpush2.bf16.msra.mxu0 0
    %2714 = vmatprep.subr.bf16.mxu0 0
    %2715 = vmatpush2.bf16.msra.mxu0 0
    %2716 = vmatprep.subr.bf16.mxu0 0
    %2717 = vmatpush2.bf16.msra.mxu0 0
    %2718 = vmatprep.subr.bf16.mxu0 0
    %2719 = vmatpush2.bf16.msra.mxu0 0
    %2720 = vmatprep.subr.bf16.mxu0 0
    %2721 = vmatpush2.bf16.msra.mxu0 0
    %2722 = vmatprep.subr.bf16.mxu0 0
    %2723 = vmatpush2.bf16.msra.mxu0 0
    %2724 = vmatprep.subr.bf16.mxu0 0
    %2725 = vmatpush2.bf16.msra.mxu0 0
    %2726 = vmatprep.mubr.bf16.mxu0 0
    %2727 = vmatmul.mubr.bf16.gmra.mxu0 %v2693
    %v2728 = vpop.f32.mrf.mxu0
    %v2729 = vadd.f32 0.0, %v2728
    %v2730 = vpop.f32.mrf.mxu0
    %v2731 = vpop.f32.mrf.mxu0
    %v2732 = vpop.f32.mrf.mxu0
    %2733 = vdwg.mxu0
    %v2734 = vpack.c.bf16 %v2729, %v2729
    %2735 = vmatprep.subr.bf16.mxu0 0
    %2736 = vmatpush1.bf16.msra.mxu0 %v158
    %2737 = vmatprep.subr.bf16.mxu0 0
    %2738 = vmatpush1.bf16.msra.mxu0 %v157
    %2739 = vmatprep.subr.bf16.mxu0 0
    %2740 = vmatpush1.bf16.msra.mxu0 %v156
    %2741 = vmatprep.subr.bf16.mxu0 0
    %2742 = vmatpush1.bf16.msra.mxu0 %v155
    %2743 = vmatprep.subr.bf16.mxu0 0
    %2744 = vmatpush1.bf16.msra.mxu0 %v154
    %2745 = vmatprep.subr.bf16.mxu0 0
    %2746 = vmatpush1.bf16.msra.mxu0 %v153
    %2747 = vmatprep.subr.bf16.mxu0 0
    %2748 = vmatpush1.bf16.msra.mxu0 %v152
    %2749 = vmatprep.subr.bf16.mxu0 0
    %2750 = vmatpush1.bf16.msra.mxu0 %v151
    %2751 = vmatprep.subr.bf16.mxu0 0
    %2752 = vmatpush2.bf16.msra.mxu0 0
    %2753 = vmatprep.subr.bf16.mxu0 0
    %2754 = vmatpush2.bf16.msra.mxu0 0
    %2755 = vmatprep.subr.bf16.mxu0 0
    %2756 = vmatpush2.bf16.msra.mxu0 0
    %2757 = vmatprep.subr.bf16.mxu0 0
    %2758 = vmatpush2.bf16.msra.mxu0 0
    %2759 = vmatprep.subr.bf16.mxu0 0
    %2760 = vmatpush2.bf16.msra.mxu0 0
    %2761 = vmatprep.subr.bf16.mxu0 0
    %2762 = vmatpush2.bf16.msra.mxu0 0
    %2763 = vmatprep.subr.bf16.mxu0 0
    %2764 = vmatpush2.bf16.msra.mxu0 0
    %2765 = vmatprep.subr.bf16.mxu0 0
    %2766 = vmatpush2.bf16.msra.mxu0 0
    %2767 = vmatprep.mubr.bf16.mxu0 0
    %2768 = vmatmul.mubr.bf16.gmra.mxu0 %v2734
    %v2769 = vpop.f32.mrf.mxu0
    %v2770 = vadd.f32 0.0, %v2769
    %v2771 = vpop.f32.mrf.mxu0
    %v2772 = vpop.f32.mrf.mxu0
    %v2773 = vpop.f32.mrf.mxu0
    %2774 = vdwg.mxu0
    %v2775 = vtanh.pop %v2770
    %v2776 = vadd.f32 %v2729, %v2775
    %v2777 = vpack.c.bf16 %v2776, %v2776
    %2778 = vmatprep.subr.bf16.mxu0 0
    %2779 = vmatpush1.bf16.msra.mxu0 %v249
    %2780 = vmatprep.subr.bf16.mxu0 0
    %2781 = vmatpush1.bf16.msra.mxu0 %v248
    %2782 = vmatprep.subr.bf16.mxu0 0
    %2783 = vmatpush1.bf16.msra.mxu0 %v247
    %2784 = vmatprep.subr.bf16.mxu0 0
    %2785 = vmatpush1.bf16.msra.mxu0 %v246
    %2786 = vmatprep.subr.bf16.mxu0 0
    %2787 = vmatpush1.bf16.msra.mxu0 %v245
    %2788 = vmatprep.subr.bf16.mxu0 0
    %2789 = vmatpush1.bf16.msra.mxu0 %v244
    %2790 = vmatprep.subr.bf16.mxu0 0
    %2791 = vmatpush1.bf16.msra.mxu0 %v243
    %2792 = vmatprep.subr.bf16.mxu0 0
    %2793 = vmatpush1.bf16.msra.mxu0 %v242
    %2794 = vmatprep.subr.bf16.mxu0 0
    %2795 = vmatpush2.bf16.msra.mxu0 0
    %2796 = vmatprep.subr.bf16.mxu0 0
    %2797 = vmatpush2.bf16.msra.mxu0 0
    %2798 = vmatprep.subr.bf16.mxu0 0
    %2799 = vmatpush2.bf16.msra.mxu0 0
    %2800 = vmatprep.subr.bf16.mxu0 0
    %2801 = vmatpush2.bf16.msra.mxu0 0
    %2802 = vmatprep.subr.bf16.mxu0 0
    %2803 = vmatpush2.bf16.msra.mxu0 0
    %2804 = vmatprep.subr.bf16.mxu0 0
    %2805 = vmatpush2.bf16.msra.mxu0 0
    %2806 = vmatprep.subr.bf16.mxu0 0
    %2807 = vmatpush2.bf16.msra.mxu0 0
    %2808 = vmatprep.subr.bf16.mxu0 0
    %2809 = vmatpush2.bf16.msra.mxu0 0
    %2810 = vmatprep.mubr.bf16.mxu0 0
    %2811 = vmatmul.mubr.bf16.gmra.mxu0 %v2777
    %v2812 = vpop.f32.mrf.mxu0
    %v2813 = vadd.f32 0.0, %v2812
    %v2814 = vpop.f32.mrf.mxu0
    %v2815 = vpop.f32.mrf.mxu0
    %v2816 = vpop.f32.mrf.mxu0
    %2817 = vdwg.mxu0
    %v2818 = vpack.c.bf16 %v2813, %v2813
    %2819 = vmatprep.subr.bf16.mxu0 0
    %2820 = vmatpush1.bf16.msra.mxu0 %v158
    %2821 = vmatprep.subr.bf16.mxu0 0
    %2822 = vmatpush1.bf16.msra.mxu0 %v157
    %2823 = vmatprep.subr.bf16.mxu0 0
    %2824 = vmatpush1.bf16.msra.mxu0 %v156
    %2825 = vmatprep.subr.bf16.mxu0 0
    %2826 = vmatpush1.bf16.msra.mxu0 %v155
    %2827 = vmatprep.subr.bf16.mxu0 0
    %2828 = vmatpush1.bf16.msra.mxu0 %v154
    %2829 = vmatprep.subr.bf16.mxu0 0
    %2830 = vmatpush1.bf16.msra.mxu0 %v153
    %2831 = vmatprep.subr.bf16.mxu0 0
    %2832 = vmatpush1.bf16.msra.mxu0 %v152
    %2833 = vmatprep.subr.bf16.mxu0 0
    %2834 = vmatpush1.bf16.msra.mxu0 %v151
    %2835 = vmatprep.subr.bf16.mxu0 0
    %2836 = vmatpush2.bf16.msra.mxu0 0
    %2837 = vmatprep.subr.bf16.mxu0 0
    %2838 = vmatpush2.bf16.msra.mxu0 0
    %2839 = vmatprep.subr.bf16.mxu0 0
    %2840 = vmatpush2.bf16.msra.mxu0 0
    %2841 = vmatprep.subr.bf16.mxu0 0
    %2842 = vmatpush2.bf16.msra.mxu0 0
    %2843 = vmatprep.subr.bf16.mxu0 0
    %2844 = vmatpush2.bf16.msra.mxu0 0
    %2845 = vmatprep.subr.bf16.mxu0 0
    %2846 = vmatpush2.bf16.msra.mxu0 0
    %2847 = vmatprep.subr.bf16.mxu0 0
    %2848 = vmatpush2.bf16.msra.mxu0 0
    %2849 = vmatprep.subr.bf16.mxu0 0
    %2850 = vmatpush2.bf16.msra.mxu0 0
    %2851 = vmatprep.mubr.bf16.mxu0 0
    %2852 = vmatmul.mubr.bf16.gmra.mxu0 %v2818
    %v2853 = vpop.f32.mrf.mxu0
    %v2854 = vadd.f32 0.0, %v2853
    %v2855 = vpop.f32.mrf.mxu0
    %v2856 = vpop.f32.mrf.mxu0
    %v2857 = vpop.f32.mrf.mxu0
    %2858 = vdwg.mxu0
    %v2859 = vtanh.pop %v2854
    %v2860 = vadd.f32 %v2813, %v2859
    %v2861 = vpack.c.bf16 %v2860, %v2860
    %2862 = vmatprep.subr.bf16.mxu0 0
    %2863 = vmatpush1.bf16.msra.mxu0 %v249
    %2864 = vmatprep.subr.bf16.mxu0 0
    %2865 = vmatpush1.bf16.msra.mxu0 %v248
    %2866 = vmatprep.subr.bf16.mxu0 0
    %2867 = vmatpush1.bf16.msra.mxu0 %v247
    %2868 = vmatprep.subr.bf16.mxu0 0
    %2869 = vmatpush1.bf16.msra.mxu0 %v246
    %2870 = vmatprep.subr.bf16.mxu0 0
    %2871 = vmatpush1.bf16.msra.mxu0 %v245
    %2872 = vmatprep.subr.bf16.mxu0 0
    %2873 = vmatpush1.bf16.msra.mxu0 %v244
    %2874 = vmatprep.subr.bf16.mxu0 0
    %2875 = vmatpush1.bf16.msra.mxu0 %v243
    %2876 = vmatprep.subr.bf16.mxu0 0
    %2877 = vmatpush1.bf16.msra.mxu0 %v242
    %2878 = vmatprep.subr.bf16.mxu0 0
    %2879 = vmatpush2.bf16.msra.mxu0 0
    %2880 = vmatprep.subr.bf16.mxu0 0
    %2881 = vmatpush2.bf16.msra.mxu0 0
    %2882 = vmatprep.subr.bf16.mxu0 0
    %2883 = vmatpush2.bf16.msra.mxu0 0
    %2884 = vmatprep.subr.bf16.mxu0 0
    %2885 = vmatpush2.bf16.msra.mxu0 0
    %2886 = vmatprep.subr.bf16.mxu0 0
    %2887 = vmatpush2.bf16.msra.mxu0 0
    %2888 = vmatprep.subr.bf16.mxu0 0
    %2889 = vmatpush2.bf16.msra.mxu0 0
    %2890 = vmatprep.subr.bf16.mxu0 0
    %2891 = vmatpush2.bf16.msra.mxu0 0
    %2892 = vmatprep.subr.bf16.mxu0 0
    %2893 = vmatpush2.bf16.msra.mxu0 0
    %2894 = vmatprep.mubr.bf16.mxu0 0
    %2895 = vmatmul.mubr.bf16.gmra.mxu0 %v2861
    %v2896 = vpop.f32.mrf.mxu0
    %v2897 = vadd.f32 0.0, %v2896
    %v2898 = vpop.f32.mrf.mxu0
    %v2899 = vpop.f32.mrf.mxu0
    %v2900 = vpop.f32.mrf.mxu0
    %2901 = vdwg.mxu0
    %v2902 = vpack.c.bf16 %v2897, %v2897
    %2903 = vmatprep.subr.bf16.mxu0 0
    %2904 = vmatpush1.bf16.msra.mxu0 %v158
    %2905 = vmatprep.subr.bf16.mxu0 0
    %2906 = vmatpush1.bf16.msra.mxu0 %v157
    %2907 = vmatprep.subr.bf16.mxu0 0
    %2908 = vmatpush1.bf16.msra.mxu0 %v156
    %2909 = vmatprep.subr.bf16.mxu0 0
    %2910 = vmatpush1.bf16.msra.mxu0 %v155
    %2911 = vmatprep.subr.bf16.mxu0 0
    %2912 = vmatpush1.bf16.msra.mxu0 %v154
    %2913 = vmatprep.subr.bf16.mxu0 0
    %2914 = vmatpush1.bf16.msra.mxu0 %v153
    %2915 = vmatprep.subr.bf16.mxu0 0
    %2916 = vmatpush1.bf16.msra.mxu0 %v152
    %2917 = vmatprep.subr.bf16.mxu0 0
    %2918 = vmatpush1.bf16.msra.mxu0 %v151
    %2919 = vmatprep.subr.bf16.mxu0 0
    %2920 = vmatpush2.bf16.msra.mxu0 0
    %2921 = vmatprep.subr.bf16.mxu0 0
    %2922 = vmatpush2.bf16.msra.mxu0 0
    %2923 = vmatprep.subr.bf16.mxu0 0
    %2924 = vmatpush2.bf16.msra.mxu0 0
    %2925 = vmatprep.subr.bf16.mxu0 0
    %2926 = vmatpush2.bf16.msra.mxu0 0
    %2927 = vmatprep.subr.bf16.mxu0 0
    %2928 = vmatpush2.bf16.msra.mxu0 0
    %2929 = vmatprep.subr.bf16.mxu0 0
    %2930 = vmatpush2.bf16.msra.mxu0 0
    %2931 = vmatprep.subr.bf16.mxu0 0
    %2932 = vmatpush2.bf16.msra.mxu0 0
    %2933 = vmatprep.subr.bf16.mxu0 0
    %2934 = vmatpush2.bf16.msra.mxu0 0
    %2935 = vmatprep.mubr.bf16.mxu0 0
    %2936 = vmatmul.mubr.bf16.gmra.mxu0 %v2902
    %v2937 = vpop.f32.mrf.mxu0
    %v2938 = vadd.f32 0.0, %v2937
    %v2939 = vpop.f32.mrf.mxu0
    %v2940 = vpop.f32.mrf.mxu0
    %v2941 = vpop.f32.mrf.mxu0
    %2942 = vdwg.mxu0
    %v2943 = vtanh.pop %v2938
    %v2944 = vadd.f32 %v2897, %v2943
    %v2945 = vpack.c.bf16 %v2944, %v2944
    %2946 = vmatprep.subr.bf16.mxu0 0
    %2947 = vmatpush1.bf16.msra.mxu0 %v249
    %2948 = vmatprep.subr.bf16.mxu0 0
    %2949 = vmatpush1.bf16.msra.mxu0 %v248
    %2950 = vmatprep.subr.bf16.mxu0 0
    %2951 = vmatpush1.bf16.msra.mxu0 %v247
    %2952 = vmatprep.subr.bf16.mxu0 0
    %2953 = vmatpush1.bf16.msra.mxu0 %v246
    %2954 = vmatprep.subr.bf16.mxu0 0
    %2955 = vmatpush1.bf16.msra.mxu0 %v245
    %2956 = vmatprep.subr.bf16.mxu0 0
    %2957 = vmatpush1.bf16.msra.mxu0 %v244
    %2958 = vmatprep.subr.bf16.mxu0 0
    %2959 = vmatpush1.bf16.msra.mxu0 %v243
    %2960 = vmatprep.subr.bf16.mxu0 0
    %2961 = vmatpush1.bf16.msra.mxu0 %v242
    %2962 = vmatprep.subr.bf16.mxu0 0
    %2963 = vmatpush2.bf16.msra.mxu0 0
    %2964 = vmatprep.subr.bf16.mxu0 0
    %2965 = vmatpush2.bf16.msra.mxu0 0
    %2966 = vmatprep.subr.bf16.mxu0 0
    %2967 = vmatpush2.bf16.msra.mxu0 0
    %2968 = vmatprep.subr.bf16.mxu0 0
    %2969 = vmatpush2.bf16.msra.mxu0 0
    %2970 = vmatprep.subr.bf16.mxu0 0
    %2971 = vmatpush2.bf16.msra.mxu0 0
    %2972 = vmatprep.subr.bf16.mxu0 0
    %2973 = vmatpush2.bf16.msra.mxu0 0
    %2974 = vmatprep.subr.bf16.mxu0 0
    %2975 = vmatpush2.bf16.msra.mxu0 0
    %2976 = vmatprep.subr.bf16.mxu0 0
    %2977 = vmatpush2.bf16.msra.mxu0 0
    %2978 = vmatprep.mubr.bf16.mxu0 0
    %2979 = vmatmul.mubr.bf16.gmra.mxu0 %v2945
    %v2980 = vpop.f32.mrf.mxu0
    %v2981 = vadd.f32 0.0, %v2980
    %v2982 = vpop.f32.mrf.mxu0
    %v2983 = vpop.f32.mrf.mxu0
    %v2984 = vpop.f32.mrf.mxu0
    %2985 = vdwg.mxu0
    %v2986 = vpack.c.bf16 %v2981, %v2981
    %2987 = vmatprep.subr.bf16.mxu0 0
    %2988 = vmatpush1.bf16.msra.mxu0 %v158
    %2989 = vmatprep.subr.bf16.mxu0 0
    %2990 = vmatpush1.bf16.msra.mxu0 %v157
    %2991 = vmatprep.subr.bf16.mxu0 0
    %2992 = vmatpush1.bf16.msra.mxu0 %v156
    %2993 = vmatprep.subr.bf16.mxu0 0
    %2994 = vmatpush1.bf16.msra.mxu0 %v155
    %2995 = vmatprep.subr.bf16.mxu0 0
    %2996 = vmatpush1.bf16.msra.mxu0 %v154
    %2997 = vmatprep.subr.bf16.mxu0 0
    %2998 = vmatpush1.bf16.msra.mxu0 %v153
    %2999 = vmatprep.subr.bf16.mxu0 0
    %3000 = vmatpush1.bf16.msra.mxu0 %v152
    %3001 = vmatprep.subr.bf16.mxu0 0
    %3002 = vmatpush1.bf16.msra.mxu0 %v151
    %3003 = vmatprep.subr.bf16.mxu0 0
    %3004 = vmatpush2.bf16.msra.mxu0 0
    %3005 = vmatprep.subr.bf16.mxu0 0
    %3006 = vmatpush2.bf16.msra.mxu0 0
    %3007 = vmatprep.subr.bf16.mxu0 0
    %3008 = vmatpush2.bf16.msra.mxu0 0
    %3009 = vmatprep.subr.bf16.mxu0 0
    %3010 = vmatpush2.bf16.msra.mxu0 0
    %3011 = vmatprep.subr.bf16.mxu0 0
    %3012 = vmatpush2.bf16.msra.mxu0 0
    %3013 = vmatprep.subr.bf16.mxu0 0
    %3014 = vmatpush2.bf16.msra.mxu0 0
    %3015 = vmatprep.subr.bf16.mxu0 0
    %3016 = vmatpush2.bf16.msra.mxu0 0
    %3017 = vmatprep.subr.bf16.mxu0 0
    %3018 = vmatpush2.bf16.msra.mxu0 0
    %3019 = vmatprep.mubr.bf16.mxu0 0
    %3020 = vmatmul.mubr.bf16.gmra.mxu0 %v2986
    %v3021 = vpop.f32.mrf.mxu0
    %v3022 = vadd.f32 0.0, %v3021
    %v3023 = vpop.f32.mrf.mxu0
    %v3024 = vpop.f32.mrf.mxu0
    %v3025 = vpop.f32.mrf.mxu0
    %3026 = vdwg.mxu0
    %v3027 = vtanh.pop %v3022
    %v3028 = vadd.f32 %v2981, %v3027
    %v3029 = vpack.c.bf16 %v3028, %v3028
    %3030 = vmatprep.subr.bf16.mxu0 0
    %3031 = vmatpush1.bf16.msra.mxu0 %v249
    %3032 = vmatprep.subr.bf16.mxu0 0
    %3033 = vmatpush1.bf16.msra.mxu0 %v248
    %3034 = vmatprep.subr.bf16.mxu0 0
    %3035 = vmatpush1.bf16.msra.mxu0 %v247
    %3036 = vmatprep.subr.bf16.mxu0 0
    %3037 = vmatpush1.bf16.msra.mxu0 %v246
    %3038 = vmatprep.subr.bf16.mxu0 0
    %3039 = vmatpush1.bf16.msra.mxu0 %v245
    %3040 = vmatprep.subr.bf16.mxu0 0
    %3041 = vmatpush1.bf16.msra.mxu0 %v244
    %3042 = vmatprep.subr.bf16.mxu0 0
    %3043 = vmatpush1.bf16.msra.mxu0 %v243
    %3044 = vmatprep.subr.bf16.mxu0 0
    %3045 = vmatpush1.bf16.msra.mxu0 %v242
    %3046 = vmatprep.subr.bf16.mxu0 0
    %3047 = vmatpush2.bf16.msra.mxu0 0
    %3048 = vmatprep.subr.bf16.mxu0 0
    %3049 = vmatpush2.bf16.msra.mxu0 0
    %3050 = vmatprep.subr.bf16.mxu0 0
    %3051 = vmatpush2.bf16.msra.mxu0 0
    %3052 = vmatprep.subr.bf16.mxu0 0
    %3053 = vmatpush2.bf16.msra.mxu0 0
    %3054 = vmatprep.subr.bf16.mxu0 0
    %3055 = vmatpush2.bf16.msra.mxu0 0
    %3056 = vmatprep.subr.bf16.mxu0 0
    %3057 = vmatpush2.bf16.msra.mxu0 0
    %3058 = vmatprep.subr.bf16.mxu0 0
    %3059 = vmatpush2.bf16.msra.mxu0 0
    %3060 = vmatprep.subr.bf16.mxu0 0
    %3061 = vmatpush2.bf16.msra.mxu0 0
    %3062 = vmatprep.mubr.bf16.mxu0 0
    %3063 = vmatmul.mubr.bf16.gmra.mxu0 %v3029
    %v3064 = vpop.f32.mrf.mxu0
    %v3065 = vadd.f32 0.0, %v3064
    %v3066 = vpop.f32.mrf.mxu0
    %v3067 = vpop.f32.mrf.mxu0
    %v3068 = vpop.f32.mrf.mxu0
    %3069 = vdwg.mxu0
    %v3070 = vpack.c.bf16 %v3065, %v3065
    %3071 = vmatprep.subr.bf16.mxu0 0
    %3072 = vmatpush1.bf16.msra.mxu0 %v158
    %3073 = vmatprep.subr.bf16.mxu0 0
    %3074 = vmatpush1.bf16.msra.mxu0 %v157
    %3075 = vmatprep.subr.bf16.mxu0 0
    %3076 = vmatpush1.bf16.msra.mxu0 %v156
    %3077 = vmatprep.subr.bf16.mxu0 0
    %3078 = vmatpush1.bf16.msra.mxu0 %v155
    %3079 = vmatprep.subr.bf16.mxu0 0
    %3080 = vmatpush1.bf16.msra.mxu0 %v154
    %3081 = vmatprep.subr.bf16.mxu0 0
    %3082 = vmatpush1.bf16.msra.mxu0 %v153
    %3083 = vmatprep.subr.bf16.mxu0 0
    %3084 = vmatpush1.bf16.msra.mxu0 %v152
    %3085 = vmatprep.subr.bf16.mxu0 0
    %3086 = vmatpush1.bf16.msra.mxu0 %v151
    %3087 = vmatprep.subr.bf16.mxu0 0
    %3088 = vmatpush2.bf16.msra.mxu0 0
    %3089 = vmatprep.subr.bf16.mxu0 0
    %3090 = vmatpush2.bf16.msra.mxu0 0
    %3091 = vmatprep.subr.bf16.mxu0 0
    %3092 = vmatpush2.bf16.msra.mxu0 0
    %3093 = vmatprep.subr.bf16.mxu0 0
    %3094 = vmatpush2.bf16.msra.mxu0 0
    %3095 = vmatprep.subr.bf16.mxu0 0
    %3096 = vmatpush2.bf16.msra.mxu0 0
    %3097 = vmatprep.subr.bf16.mxu0 0
    %3098 = vmatpush2.bf16.msra.mxu0 0
    %3099 = vmatprep.subr.bf16.mxu0 0
    %3100 = vmatpush2.bf16.msra.mxu0 0
    %3101 = vmatprep.subr.bf16.mxu0 0
    %3102 = vmatpush2.bf16.msra.mxu0 0
    %3103 = vmatprep.mubr.bf16.mxu0 0
    %3104 = vmatmul.mubr.bf16.gmra.mxu0 %v3070
    %v3105 = vpop.f32.mrf.mxu0
    %v3106 = vadd.f32 0.0, %v3105
    %v3107 = vpop.f32.mrf.mxu0
    %v3108 = vpop.f32.mrf.mxu0
    %v3109 = vpop.f32.mrf.mxu0
    %3110 = vdwg.mxu0
    %v3111 = vtanh.pop %v3106
    %v3112 = vadd.f32 %v3065, %v3111
    %v3113 = vpack.c.bf16 %v3112, %v3112
    %3114 = vmatprep.subr.bf16.mxu0 0
    %3115 = vmatpush1.bf16.msra.mxu0 %v249
    %3116 = vmatprep.subr.bf16.mxu0 0
    %3117 = vmatpush1.bf16.msra.mxu0 %v248
    %3118 = vmatprep.subr.bf16.mxu0 0
    %3119 = vmatpush1.bf16.msra.mxu0 %v247
    %3120 = vmatprep.subr.bf16.mxu0 0
    %3121 = vmatpush1.bf16.msra.mxu0 %v246
    %3122 = vmatprep.subr.bf16.mxu0 0
    %3123 = vmatpush1.bf16.msra.mxu0 %v245
    %3124 = vmatprep.subr.bf16.mxu0 0
    %3125 = vmatpush1.bf16.msra.mxu0 %v244
    %3126 = vmatprep.subr.bf16.mxu0 0
    %3127 = vmatpush1.bf16.msra.mxu0 %v243
    %3128 = vmatprep.subr.bf16.mxu0 0
    %3129 = vmatpush1.bf16.msra.mxu0 %v242
    %3130 = vmatprep.subr.bf16.mxu0 0
    %3131 = vmatpush2.bf16.msra.mxu0 0
    %3132 = vmatprep.subr.bf16.mxu0 0
    %3133 = vmatpush2.bf16.msra.mxu0 0
    %3134 = vmatprep.subr.bf16.mxu0 0
    %3135 = vmatpush2.bf16.msra.mxu0 0
    %3136 = vmatprep.subr.bf16.mxu0 0
    %3137 = vmatpush2.bf16.msra.mxu0 0
    %3138 = vmatprep.subr.bf16.mxu0 0
    %3139 = vmatpush2.bf16.msra.mxu0 0
    %3140 = vmatprep.subr.bf16.mxu0 0
    %3141 = vmatpush2.bf16.msra.mxu0 0
    %3142 = vmatprep.subr.bf16.mxu0 0
    %3143 = vmatpush2.bf16.msra.mxu0 0
    %3144 = vmatprep.subr.bf16.mxu0 0
    %3145 = vmatpush2.bf16.msra.mxu0 0
    %3146 = vmatprep.mubr.bf16.mxu0 0
    %3147 = vmatmul.mubr.bf16.gmra.mxu0 %v3113
    %v3148 = vpop.f32.mrf.mxu0
    %v3149 = vadd.f32 0.0, %v3148
    %v3150 = vpop.f32.mrf.mxu0
    %v3151 = vpop.f32.mrf.mxu0
    %v3152 = vpop.f32.mrf.mxu0
    %3153 = vdwg.mxu0
    %v3154 = vpack.c.bf16 %v3149, %v3149
    %3155 = vmatprep.subr.bf16.mxu0 0
    %3156 = vmatpush1.bf16.msra.mxu0 %v158
    %3157 = vmatprep.subr.bf16.mxu0 0
    %3158 = vmatpush1.bf16.msra.mxu0 %v157
    %3159 = vmatprep.subr.bf16.mxu0 0
    %3160 = vmatpush1.bf16.msra.mxu0 %v156
    %3161 = vmatprep.subr.bf16.mxu0 0
    %3162 = vmatpush1.bf16.msra.mxu0 %v155
    %3163 = vmatprep.subr.bf16.mxu0 0
    %3164 = vmatpush1.bf16.msra.mxu0 %v154
    %3165 = vmatprep.subr.bf16.mxu0 0
    %3166 = vmatpush1.bf16.msra.mxu0 %v153
    %3167 = vmatprep.subr.bf16.mxu0 0
    %3168 = vmatpush1.bf16.msra.mxu0 %v152
    %3169 = vmatprep.subr.bf16.mxu0 0
    %3170 = vmatpush1.bf16.msra.mxu0 %v151
    %3171 = vmatprep.subr.bf16.mxu0 0
    %3172 = vmatpush2.bf16.msra.mxu0 0
    %3173 = vmatprep.subr.bf16.mxu0 0
    %3174 = vmatpush2.bf16.msra.mxu0 0
    %3175 = vmatprep.subr.bf16.mxu0 0
    %3176 = vmatpush2.bf16.msra.mxu0 0
    %3177 = vmatprep.subr.bf16.mxu0 0
    %3178 = vmatpush2.bf16.msra.mxu0 0
    %3179 = vmatprep.subr.bf16.mxu0 0
    %3180 = vmatpush2.bf16.msra.mxu0 0
    %3181 = vmatprep.subr.bf16.mxu0 0
    %3182 = vmatpush2.bf16.msra.mxu0 0
    %3183 = vmatprep.subr.bf16.mxu0 0
    %3184 = vmatpush2.bf16.msra.mxu0 0
    %3185 = vmatprep.subr.bf16.mxu0 0
    %3186 = vmatpush2.bf16.msra.mxu0 0
    %3187 = vmatprep.mubr.bf16.mxu0 0
    %3188 = vmatmul.mubr.bf16.gmra.mxu0 %v3154
    %v3189 = vpop.f32.mrf.mxu0
    %v3190 = vadd.f32 0.0, %v3189
    %v3191 = vpop.f32.mrf.mxu0
    %v3192 = vpop.f32.mrf.mxu0
    %v3193 = vpop.f32.mrf.mxu0
    %3194 = vdwg.mxu0
    %v3195 = vtanh.pop %v3190
    %v3196 = vadd.f32 %v3149, %v3195
    %v3197 = vpack.c.bf16 %v3196, %v3196
    %3198 = vmatprep.subr.bf16.mxu0 0
    %3199 = vmatpush1.bf16.msra.mxu0 %v249
    %3200 = vmatprep.subr.bf16.mxu0 0
    %3201 = vmatpush1.bf16.msra.mxu0 %v248
    %3202 = vmatprep.subr.bf16.mxu0 0
    %3203 = vmatpush1.bf16.msra.mxu0 %v247
    %3204 = vmatprep.subr.bf16.mxu0 0
    %3205 = vmatpush1.bf16.msra.mxu0 %v246
    %3206 = vmatprep.subr.bf16.mxu0 0
    %3207 = vmatpush1.bf16.msra.mxu0 %v245
    %3208 = vmatprep.subr.bf16.mxu0 0
    %3209 = vmatpush1.bf16.msra.mxu0 %v244
    %3210 = vmatprep.subr.bf16.mxu0 0
    %3211 = vmatpush1.bf16.msra.mxu0 %v243
    %3212 = vmatprep.subr.bf16.mxu0 0
    %3213 = vmatpush1.bf16.msra.mxu0 %v242
    %3214 = vmatprep.subr.bf16.mxu0 0
    %3215 = vmatpush2.bf16.msra.mxu0 0
    %3216 = vmatprep.subr.bf16.mxu0 0
    %3217 = vmatpush2.bf16.msra.mxu0 0
    %3218 = vmatprep.subr.bf16.mxu0 0
    %3219 = vmatpush2.bf16.msra.mxu0 0
    %3220 = vmatprep.subr.bf16.mxu0 0
    %3221 = vmatpush2.bf16.msra.mxu0 0
    %3222 = vmatprep.subr.bf16.mxu0 0
    %3223 = vmatpush2.bf16.msra.mxu0 0
    %3224 = vmatprep.subr.bf16.mxu0 0
    %3225 = vmatpush2.bf16.msra.mxu0 0
    %3226 = vmatprep.subr.bf16.mxu0 0
    %3227 = vmatpush2.bf16.msra.mxu0 0
    %3228 = vmatprep.subr.bf16.mxu0 0
    %3229 = vmatpush2.bf16.msra.mxu0 0
    %3230 = vmatprep.mubr.bf16.mxu0 0
    %3231 = vmatmul.mubr.bf16.gmra.mxu0 %v3197
    %v3232 = vpop.f32.mrf.mxu0
    %v3233 = vadd.f32 0.0, %v3232
    %v3234 = vpop.f32.mrf.mxu0
    %v3235 = vpop.f32.mrf.mxu0
    %v3236 = vpop.f32.mrf.mxu0
    %3237 = vdwg.mxu0
    %v3238 = vpack.c.bf16 %v3233, %v3233
    %3239 = vmatprep.subr.bf16.mxu0 0
    %3240 = vmatpush1.bf16.msra.mxu0 %v158
    %3241 = vmatprep.subr.bf16.mxu0 0
    %3242 = vmatpush1.bf16.msra.mxu0 %v157
    %3243 = vmatprep.subr.bf16.mxu0 0
    %3244 = vmatpush1.bf16.msra.mxu0 %v156
    %3245 = vmatprep.subr.bf16.mxu0 0
    %3246 = vmatpush1.bf16.msra.mxu0 %v155
    %3247 = vmatprep.subr.bf16.mxu0 0
    %3248 = vmatpush1.bf16.msra.mxu0 %v154
    %3249 = vmatprep.subr.bf16.mxu0 0
    %3250 = vmatpush1.bf16.msra.mxu0 %v153
    %3251 = vmatprep.subr.bf16.mxu0 0
    %3252 = vmatpush1.bf16.msra.mxu0 %v152
    %3253 = vmatprep.subr.bf16.mxu0 0
    %3254 = vmatpush1.bf16.msra.mxu0 %v151
    %3255 = vmatprep.subr.bf16.mxu0 0
    %3256 = vmatpush2.bf16.msra.mxu0 0
    %3257 = vmatprep.subr.bf16.mxu0 0
    %3258 = vmatpush2.bf16.msra.mxu0 0
    %3259 = vmatprep.subr.bf16.mxu0 0
    %3260 = vmatpush2.bf16.msra.mxu0 0
    %3261 = vmatprep.subr.bf16.mxu0 0
    %3262 = vmatpush2.bf16.msra.mxu0 0
    %3263 = vmatprep.subr.bf16.mxu0 0
    %3264 = vmatpush2.bf16.msra.mxu0 0
    %3265 = vmatprep.subr.bf16.mxu0 0
    %3266 = vmatpush2.bf16.msra.mxu0 0
    %3267 = vmatprep.subr.bf16.mxu0 0
    %3268 = vmatpush2.bf16.msra.mxu0 0
    %3269 = vmatprep.subr.bf16.mxu0 0
    %3270 = vmatpush2.bf16.msra.mxu0 0
    %3271 = vmatprep.mubr.bf16.mxu0 0
    %3272 = vmatmul.mubr.bf16.gmra.mxu0 %v3238
    %v3273 = vpop.f32.mrf.mxu0
    %v3274 = vadd.f32 0.0, %v3273
    %v3275 = vpop.f32.mrf.mxu0
    %v3276 = vpop.f32.mrf.mxu0
    %v3277 = vpop.f32.mrf.mxu0
    %3278 = vdwg.mxu0
    %v3279 = vtanh.pop %v3274
    %v3280 = vadd.f32 %v3233, %v3279
    %v3281 = vpack.c.bf16 %v3280, %v3280
    %3282 = vmatprep.subr.bf16.mxu0 0
    %3283 = vmatpush1.bf16.msra.mxu0 %v249
    %3284 = vmatprep.subr.bf16.mxu0 0
    %3285 = vmatpush1.bf16.msra.mxu0 %v248
    %3286 = vmatprep.subr.bf16.mxu0 0
    %3287 = vmatpush1.bf16.msra.mxu0 %v247
    %3288 = vmatprep.subr.bf16.mxu0 0
    %3289 = vmatpush1.bf16.msra.mxu0 %v246
    %3290 = vmatprep.subr.bf16.mxu0 0
    %3291 = vmatpush1.bf16.msra.mxu0 %v245
    %3292 = vmatprep.subr.bf16.mxu0 0
    %3293 = vmatpush1.bf16.msra.mxu0 %v244
    %3294 = vmatprep.subr.bf16.mxu0 0
    %3295 = vmatpush1.bf16.msra.mxu0 %v243
    %3296 = vmatprep.subr.bf16.mxu0 0
    %3297 = vmatpush1.bf16.msra.mxu0 %v242
    %3298 = vmatprep.subr.bf16.mxu0 0
    %3299 = vmatpush2.bf16.msra.mxu0 0
    %3300 = vmatprep.subr.bf16.mxu0 0
    %3301 = vmatpush2.bf16.msra.mxu0 0
    %3302 = vmatprep.subr.bf16.mxu0 0
    %3303 = vmatpush2.bf16.msra.mxu0 0
    %3304 = vmatprep.subr.bf16.mxu0 0
    %3305 = vmatpush2.bf16.msra.mxu0 0
    %3306 = vmatprep.subr.bf16.mxu0 0
    %3307 = vmatpush2.bf16.msra.mxu0 0
    %3308 = vmatprep.subr.bf16.mxu0 0
    %3309 = vmatpush2.bf16.msra.mxu0 0
    %3310 = vmatprep.subr.bf16.mxu0 0
    %3311 = vmatpush2.bf16.msra.mxu0 0
    %3312 = vmatprep.subr.bf16.mxu0 0
    %3313 = vmatpush2.bf16.msra.mxu0 0
    %3314 = vmatprep.mubr.bf16.mxu0 0
    %3315 = vmatmul.mubr.bf16.gmra.mxu0 %v3281
    %v3316 = vpop.f32.mrf.mxu0
    %v3317 = vadd.f32 0.0, %v3316
    %v3318 = vpop.f32.mrf.mxu0
    %v3319 = vpop.f32.mrf.mxu0
    %v3320 = vpop.f32.mrf.mxu0
    %3321 = vdwg.mxu0
    %v3322 = vpack.c.bf16 %v3317, %v3317
    %3323 = vmatprep.subr.bf16.mxu0 0
    %3324 = vmatpush1.bf16.msra.mxu0 %v158
    %3325 = vmatprep.subr.bf16.mxu0 0
    %3326 = vmatpush1.bf16.msra.mxu0 %v157
    %3327 = vmatprep.subr.bf16.mxu0 0
    %3328 = vmatpush1.bf16.msra.mxu0 %v156
    %3329 = vmatprep.subr.bf16.mxu0 0
    %3330 = vmatpush1.bf16.msra.mxu0 %v155
    %3331 = vmatprep.subr.bf16.mxu0 0
    %3332 = vmatpush1.bf16.msra.mxu0 %v154
    %3333 = vmatprep.subr.bf16.mxu0 0
    %3334 = vmatpush1.bf16.msra.mxu0 %v153
    %3335 = vmatprep.subr.bf16.mxu0 0
    %3336 = vmatpush1.bf16.msra.mxu0 %v152
    %3337 = vmatprep.subr.bf16.mxu0 0
    %3338 = vmatpush1.bf16.msra.mxu0 %v151
    %3339 = vmatprep.subr.bf16.mxu0 0
    %3340 = vmatpush2.bf16.msra.mxu0 0
    %3341 = vmatprep.subr.bf16.mxu0 0
    %3342 = vmatpush2.bf16.msra.mxu0 0
    %3343 = vmatprep.subr.bf16.mxu0 0
    %3344 = vmatpush2.bf16.msra.mxu0 0
    %3345 = vmatprep.subr.bf16.mxu0 0
    %3346 = vmatpush2.bf16.msra.mxu0 0
    %3347 = vmatprep.subr.bf16.mxu0 0
    %3348 = vmatpush2.bf16.msra.mxu0 0
    %3349 = vmatprep.subr.bf16.mxu0 0
    %3350 = vmatpush2.bf16.msra.mxu0 0
    %3351 = vmatprep.subr.bf16.mxu0 0
    %3352 = vmatpush2.bf16.msra.mxu0 0
    %3353 = vmatprep.subr.bf16.mxu0 0
    %3354 = vmatpush2.bf16.msra.mxu0 0
    %3355 = vmatprep.mubr.bf16.mxu0 0
    %3356 = vmatmul.mubr.bf16.gmra.mxu0 %v3322
    %v3357 = vpop.f32.mrf.mxu0
    %v3358 = vadd.f32 0.0, %v3357
    %v3359 = vpop.f32.mrf.mxu0
    %v3360 = vpop.f32.mrf.mxu0
    %v3361 = vpop.f32.mrf.mxu0
    %3362 = vdwg.mxu0
    %v3363 = vtanh.pop %v3358
    %v3364 = vadd.f32 %v3317, %v3363
    %v3365 = vpack.c.bf16 %v3364, %v3364
    %3366 = vmatprep.subr.bf16.mxu0 0
    %3367 = vmatpush1.bf16.msra.mxu0 %v249
    %3368 = vmatprep.subr.bf16.mxu0 0
    %3369 = vmatpush1.bf16.msra.mxu0 %v248
    %3370 = vmatprep.subr.bf16.mxu0 0
    %3371 = vmatpush1.bf16.msra.mxu0 %v247
    %3372 = vmatprep.subr.bf16.mxu0 0
    %3373 = vmatpush1.bf16.msra.mxu0 %v246
    %3374 = vmatprep.subr.bf16.mxu0 0
    %3375 = vmatpush1.bf16.msra.mxu0 %v245
    %3376 = vmatprep.subr.bf16.mxu0 0
    %3377 = vmatpush1.bf16.msra.mxu0 %v244
    %3378 = vmatprep.subr.bf16.mxu0 0
    %3379 = vmatpush1.bf16.msra.mxu0 %v243
    %3380 = vmatprep.subr.bf16.mxu0 0
    %3381 = vmatpush1.bf16.msra.mxu0 %v242
    %3382 = vmatprep.subr.bf16.mxu0 0
    %3383 = vmatpush2.bf16.msra.mxu0 0
    %3384 = vmatprep.subr.bf16.mxu0 0
    %3385 = vmatpush2.bf16.msra.mxu0 0
    %3386 = vmatprep.subr.bf16.mxu0 0
    %3387 = vmatpush2.bf16.msra.mxu0 0
    %3388 = vmatprep.subr.bf16.mxu0 0
    %3389 = vmatpush2.bf16.msra.mxu0 0
    %3390 = vmatprep.subr.bf16.mxu0 0
    %3391 = vmatpush2.bf16.msra.mxu0 0
    %3392 = vmatprep.subr.bf16.mxu0 0
    %3393 = vmatpush2.bf16.msra.mxu0 0
    %3394 = vmatprep.subr.bf16.mxu0 0
    %3395 = vmatpush2.bf16.msra.mxu0 0
    %3396 = vmatprep.subr.bf16.mxu0 0
    %3397 = vmatpush2.bf16.msra.mxu0 0
    %3398 = vmatprep.mubr.bf16.mxu0 0
    %3399 = vmatmul.mubr.bf16.gmra.mxu0 %v3365
    %v3400 = vpop.f32.mrf.mxu0
    %v3401 = vadd.f32 0.0, %v3400
    %v3402 = vpop.f32.mrf.mxu0
    %v3403 = vpop.f32.mrf.mxu0
    %v3404 = vpop.f32.mrf.mxu0
    %3405 = vdwg.mxu0
    %v3406 = vpack.c.bf16 %v3401, %v3401
    %3407 = vmatprep.subr.bf16.mxu0 0
    %3408 = vmatpush1.bf16.msra.mxu0 %v158
    %3409 = vmatprep.subr.bf16.mxu0 0
    %3410 = vmatpush1.bf16.msra.mxu0 %v157
    %3411 = vmatprep.subr.bf16.mxu0 0
    %3412 = vmatpush1.bf16.msra.mxu0 %v156
    %3413 = vmatprep.subr.bf16.mxu0 0
    %3414 = vmatpush1.bf16.msra.mxu0 %v155
    %3415 = vmatprep.subr.bf16.mxu0 0
    %3416 = vmatpush1.bf16.msra.mxu0 %v154
    %3417 = vmatprep.subr.bf16.mxu0 0
    %3418 = vmatpush1.bf16.msra.mxu0 %v153
    %3419 = vmatprep.subr.bf16.mxu0 0
    %3420 = vmatpush1.bf16.msra.mxu0 %v152
    %3421 = vmatprep.subr.bf16.mxu0 0
    %3422 = vmatpush1.bf16.msra.mxu0 %v151
    %3423 = vmatprep.subr.bf16.mxu0 0
    %3424 = vmatpush2.bf16.msra.mxu0 0
    %3425 = vmatprep.subr.bf16.mxu0 0
    %3426 = vmatpush2.bf16.msra.mxu0 0
    %3427 = vmatprep.subr.bf16.mxu0 0
    %3428 = vmatpush2.bf16.msra.mxu0 0
    %3429 = vmatprep.subr.bf16.mxu0 0
    %3430 = vmatpush2.bf16.msra.mxu0 0
    %3431 = vmatprep.subr.bf16.mxu0 0
    %3432 = vmatpush2.bf16.msra.mxu0 0
    %3433 = vmatprep.subr.bf16.mxu0 0
    %3434 = vmatpush2.bf16.msra.mxu0 0
    %3435 = vmatprep.subr.bf16.mxu0 0
    %3436 = vmatpush2.bf16.msra.mxu0 0
    %3437 = vmatprep.subr.bf16.mxu0 0
    %3438 = vmatpush2.bf16.msra.mxu0 0
    %3439 = vmatprep.mubr.bf16.mxu0 0
    %3440 = vmatmul.mubr.bf16.gmra.mxu0 %v3406
    %v3441 = vpop.f32.mrf.mxu0
    %v3442 = vadd.f32 0.0, %v3441
    %v3443 = vpop.f32.mrf.mxu0
    %v3444 = vpop.f32.mrf.mxu0
    %v3445 = vpop.f32.mrf.mxu0
    %3446 = vdwg.mxu0
    %v3447 = vtanh.pop %v3442
    %v3448 = vadd.f32 %v3401, %v3447
    %v3449 = vpack.c.bf16 %v3448, %v3448
    %3450 = vmatprep.subr.bf16.mxu0 0
    %3451 = vmatpush1.bf16.msra.mxu0 %v249
    %3452 = vmatprep.subr.bf16.mxu0 0
    %3453 = vmatpush1.bf16.msra.mxu0 %v248
    %3454 = vmatprep.subr.bf16.mxu0 0
    %3455 = vmatpush1.bf16.msra.mxu0 %v247
    %3456 = vmatprep.subr.bf16.mxu0 0
    %3457 = vmatpush1.bf16.msra.mxu0 %v246
    %3458 = vmatprep.subr.bf16.mxu0 0
    %3459 = vmatpush1.bf16.msra.mxu0 %v245
    %3460 = vmatprep.subr.bf16.mxu0 0
    %3461 = vmatpush1.bf16.msra.mxu0 %v244
    %3462 = vmatprep.subr.bf16.mxu0 0
    %3463 = vmatpush1.bf16.msra.mxu0 %v243
    %3464 = vmatprep.subr.bf16.mxu0 0
    %3465 = vmatpush1.bf16.msra.mxu0 %v242
    %3466 = vmatprep.subr.bf16.mxu0 0
    %3467 = vmatpush2.bf16.msra.mxu0 0
    %3468 = vmatprep.subr.bf16.mxu0 0
    %3469 = vmatpush2.bf16.msra.mxu0 0
    %3470 = vmatprep.subr.bf16.mxu0 0
    %3471 = vmatpush2.bf16.msra.mxu0 0
    %3472 = vmatprep.subr.bf16.mxu0 0
    %3473 = vmatpush2.bf16.msra.mxu0 0
    %3474 = vmatprep.subr.bf16.mxu0 0
    %3475 = vmatpush2.bf16.msra.mxu0 0
    %3476 = vmatprep.subr.bf16.mxu0 0
    %3477 = vmatpush2.bf16.msra.mxu0 0
    %3478 = vmatprep.subr.bf16.mxu0 0
    %3479 = vmatpush2.bf16.msra.mxu0 0
    %3480 = vmatprep.subr.bf16.mxu0 0
    %3481 = vmatpush2.bf16.msra.mxu0 0
    %3482 = vmatprep.mubr.bf16.mxu0 0
    %3483 = vmatmul.mubr.bf16.gmra.mxu0 %v3449
    %v3484 = vpop.f32.mrf.mxu0
    %v3485 = vadd.f32 0.0, %v3484
    %v3486 = vpop.f32.mrf.mxu0
    %v3487 = vpop.f32.mrf.mxu0
    %v3488 = vpop.f32.mrf.mxu0
    %3489 = vdwg.mxu0
    %v3490 = vpack.c.bf16 %v3485, %v3485
    %3491 = vmatprep.subr.bf16.mxu0 0
    %3492 = vmatpush1.bf16.msra.mxu0 %v158
    %3493 = vmatprep.subr.bf16.mxu0 0
    %3494 = vmatpush1.bf16.msra.mxu0 %v157
    %3495 = vmatprep.subr.bf16.mxu0 0
    %3496 = vmatpush1.bf16.msra.mxu0 %v156
    %3497 = vmatprep.subr.bf16.mxu0 0
    %3498 = vmatpush1.bf16.msra.mxu0 %v155
    %3499 = vmatprep.subr.bf16.mxu0 0
    %3500 = vmatpush1.bf16.msra.mxu0 %v154
    %3501 = vmatprep.subr.bf16.mxu0 0
    %3502 = vmatpush1.bf16.msra.mxu0 %v153
    %3503 = vmatprep.subr.bf16.mxu0 0
    %3504 = vmatpush1.bf16.msra.mxu0 %v152
    %3505 = vmatprep.subr.bf16.mxu0 0
    %3506 = vmatpush1.bf16.msra.mxu0 %v151
    %3507 = vmatprep.subr.bf16.mxu0 0
    %3508 = vmatpush2.bf16.msra.mxu0 0
    %3509 = vmatprep.subr.bf16.mxu0 0
    %3510 = vmatpush2.bf16.msra.mxu0 0
    %3511 = vmatprep.subr.bf16.mxu0 0
    %3512 = vmatpush2.bf16.msra.mxu0 0
    %3513 = vmatprep.subr.bf16.mxu0 0
    %3514 = vmatpush2.bf16.msra.mxu0 0
    %3515 = vmatprep.subr.bf16.mxu0 0
    %3516 = vmatpush2.bf16.msra.mxu0 0
    %3517 = vmatprep.subr.bf16.mxu0 0
    %3518 = vmatpush2.bf16.msra.mxu0 0
    %3519 = vmatprep.subr.bf16.mxu0 0
    %3520 = vmatpush2.bf16.msra.mxu0 0
    %3521 = vmatprep.subr.bf16.mxu0 0
    %3522 = vmatpush2.bf16.msra.mxu0 0
    %3523 = vmatprep.mubr.bf16.mxu0 0
    %3524 = vmatmul.mubr.bf16.gmra.mxu0 %v3490
    %v3525 = vpop.f32.mrf.mxu0
    %v3526 = vadd.f32 0.0, %v3525
    %v3527 = vpop.f32.mrf.mxu0
    %v3528 = vpop.f32.mrf.mxu0
    %v3529 = vpop.f32.mrf.mxu0
    %3530 = vdwg.mxu0
    %v3531 = vtanh.pop %v3526
    %v3532 = vadd.f32 %v3485, %v3531
    %v3533 = vpack.c.bf16 %v3532, %v3532
    %3534 = vmatprep.subr.bf16.mxu0 0
    %3535 = vmatpush1.bf16.msra.mxu0 %v249
    %3536 = vmatprep.subr.bf16.mxu0 0
    %3537 = vmatpush1.bf16.msra.mxu0 %v248
    %3538 = vmatprep.subr.bf16.mxu0 0
    %3539 = vmatpush1.bf16.msra.mxu0 %v247
    %3540 = vmatprep.subr.bf16.mxu0 0
    %3541 = vmatpush1.bf16.msra.mxu0 %v246
    %3542 = vmatprep.subr.bf16.mxu0 0
    %3543 = vmatpush1.bf16.msra.mxu0 %v245
    %3544 = vmatprep.subr.bf16.mxu0 0
    %3545 = vmatpush1.bf16.msra.mxu0 %v244
    %3546 = vmatprep.subr.bf16.mxu0 0
    %3547 = vmatpush1.bf16.msra.mxu0 %v243
    %3548 = vmatprep.subr.bf16.mxu0 0
    %3549 = vmatpush1.bf16.msra.mxu0 %v242
    %3550 = vmatprep.subr.bf16.mxu0 0
    %3551 = vmatpush2.bf16.msra.mxu0 0
    %3552 = vmatprep.subr.bf16.mxu0 0
    %3553 = vmatpush2.bf16.msra.mxu0 0
    %3554 = vmatprep.subr.bf16.mxu0 0
    %3555 = vmatpush2.bf16.msra.mxu0 0
    %3556 = vmatprep.subr.bf16.mxu0 0
    %3557 = vmatpush2.bf16.msra.mxu0 0
    %3558 = vmatprep.subr.bf16.mxu0 0
    %3559 = vmatpush2.bf16.msra.mxu0 0
    %3560 = vmatprep.subr.bf16.mxu0 0
    %3561 = vmatpush2.bf16.msra.mxu0 0
    %3562 = vmatprep.subr.bf16.mxu0 0
    %3563 = vmatpush2.bf16.msra.mxu0 0
    %3564 = vmatprep.subr.bf16.mxu0 0
    %3565 = vmatpush2.bf16.msra.mxu0 0
    %3566 = vmatprep.mubr.bf16.mxu0 0
    %3567 = vmatmul.mubr.bf16.gmra.mxu0 %v3533
    %v3568 = vpop.f32.mrf.mxu0
    %v3569 = vadd.f32 0.0, %v3568
    %v3570 = vpop.f32.mrf.mxu0
    %v3571 = vpop.f32.mrf.mxu0
    %v3572 = vpop.f32.mrf.mxu0
    %3573 = vdwg.mxu0
    %v3574 = vpack.c.bf16 %v3569, %v3569
    %3575 = vmatprep.subr.bf16.mxu0 0
    %3576 = vmatpush1.bf16.msra.mxu0 %v158
    %3577 = vmatprep.subr.bf16.mxu0 0
    %3578 = vmatpush1.bf16.msra.mxu0 %v157
    %3579 = vmatprep.subr.bf16.mxu0 0
    %3580 = vmatpush1.bf16.msra.mxu0 %v156
    %3581 = vmatprep.subr.bf16.mxu0 0
    %3582 = vmatpush1.bf16.msra.mxu0 %v155
    %3583 = vmatprep.subr.bf16.mxu0 0
    %3584 = vmatpush1.bf16.msra.mxu0 %v154
    %3585 = vmatprep.subr.bf16.mxu0 0
    %3586 = vmatpush1.bf16.msra.mxu0 %v153
    %3587 = vmatprep.subr.bf16.mxu0 0
    %3588 = vmatpush1.bf16.msra.mxu0 %v152
    %3589 = vmatprep.subr.bf16.mxu0 0
    %3590 = vmatpush1.bf16.msra.mxu0 %v151
    %3591 = vmatprep.subr.bf16.mxu0 0
    %3592 = vmatpush2.bf16.msra.mxu0 0
    %3593 = vmatprep.subr.bf16.mxu0 0
    %3594 = vmatpush2.bf16.msra.mxu0 0
    %3595 = vmatprep.subr.bf16.mxu0 0
    %3596 = vmatpush2.bf16.msra.mxu0 0
    %3597 = vmatprep.subr.bf16.mxu0 0
    %3598 = vmatpush2.bf16.msra.mxu0 0
    %3599 = vmatprep.subr.bf16.mxu0 0
    %3600 = vmatpush2.bf16.msra.mxu0 0
    %3601 = vmatprep.subr.bf16.mxu0 0
    %3602 = vmatpush2.bf16.msra.mxu0 0
    %3603 = vmatprep.subr.bf16.mxu0 0
    %3604 = vmatpush2.bf16.msra.mxu0 0
    %3605 = vmatprep.subr.bf16.mxu0 0
    %3606 = vmatpush2.bf16.msra.mxu0 0
    %3607 = vmatprep.mubr.bf16.mxu0 0
    %3608 = vmatmul.mubr.bf16.gmra.mxu0 %v3574
    %v3609 = vpop.f32.mrf.mxu0
    %v3610 = vadd.f32 0.0, %v3609
    %v3611 = vpop.f32.mrf.mxu0
    %v3612 = vpop.f32.mrf.mxu0
    %v3613 = vpop.f32.mrf.mxu0
    %3614 = vdwg.mxu0
    %v3615 = vtanh.pop %v3610
    %v3616 = vadd.f32 %v3569, %v3615
    %v3617 = vpack.c.bf16 %v3616, %v3616
    %3618 = vmatprep.subr.bf16.mxu0 0
    %3619 = vmatpush1.bf16.msra.mxu0 %v249
    %3620 = vmatprep.subr.bf16.mxu0 0
    %3621 = vmatpush1.bf16.msra.mxu0 %v248
    %3622 = vmatprep.subr.bf16.mxu0 0
    %3623 = vmatpush1.bf16.msra.mxu0 %v247
    %3624 = vmatprep.subr.bf16.mxu0 0
    %3625 = vmatpush1.bf16.msra.mxu0 %v246
    %3626 = vmatprep.subr.bf16.mxu0 0
    %3627 = vmatpush1.bf16.msra.mxu0 %v245
    %3628 = vmatprep.subr.bf16.mxu0 0
    %3629 = vmatpush1.bf16.msra.mxu0 %v244
    %3630 = vmatprep.subr.bf16.mxu0 0
    %3631 = vmatpush1.bf16.msra.mxu0 %v243
    %3632 = vmatprep.subr.bf16.mxu0 0
    %3633 = vmatpush1.bf16.msra.mxu0 %v242
    %3634 = vmatprep.subr.bf16.mxu0 0
    %3635 = vmatpush2.bf16.msra.mxu0 0
    %3636 = vmatprep.subr.bf16.mxu0 0
    %3637 = vmatpush2.bf16.msra.mxu0 0
    %3638 = vmatprep.subr.bf16.mxu0 0
    %3639 = vmatpush2.bf16.msra.mxu0 0
    %3640 = vmatprep.subr.bf16.mxu0 0
    %3641 = vmatpush2.bf16.msra.mxu0 0
    %3642 = vmatprep.subr.bf16.mxu0 0
    %3643 = vmatpush2.bf16.msra.mxu0 0
    %3644 = vmatprep.subr.bf16.mxu0 0
    %3645 = vmatpush2.bf16.msra.mxu0 0
    %3646 = vmatprep.subr.bf16.mxu0 0
    %3647 = vmatpush2.bf16.msra.mxu0 0
    %3648 = vmatprep.subr.bf16.mxu0 0
    %3649 = vmatpush2.bf16.msra.mxu0 0
    %3650 = vmatprep.mubr.bf16.mxu0 0
    %3651 = vmatmul.mubr.bf16.gmra.mxu0 %v3617
    %v3652 = vpop.f32.mrf.mxu0
    %v3653 = vadd.f32 0.0, %v3652
    %v3654 = vpop.f32.mrf.mxu0
    %v3655 = vpop.f32.mrf.mxu0
    %v3656 = vpop.f32.mrf.mxu0
    %3657 = vdwg.mxu0
    %v3658 = vpack.c.bf16 %v3653, %v3653
    %3659 = vmatprep.subr.bf16.mxu0 0
    %3660 = vmatpush1.bf16.msra.mxu0 %v158
    %3661 = vmatprep.subr.bf16.mxu0 0
    %3662 = vmatpush1.bf16.msra.mxu0 %v157
    %3663 = vmatprep.subr.bf16.mxu0 0
    %3664 = vmatpush1.bf16.msra.mxu0 %v156
    %3665 = vmatprep.subr.bf16.mxu0 0
    %3666 = vmatpush1.bf16.msra.mxu0 %v155
    %3667 = vmatprep.subr.bf16.mxu0 0
    %3668 = vmatpush1.bf16.msra.mxu0 %v154
    %3669 = vmatprep.subr.bf16.mxu0 0
    %3670 = vmatpush1.bf16.msra.mxu0 %v153
    %3671 = vmatprep.subr.bf16.mxu0 0
    %3672 = vmatpush1.bf16.msra.mxu0 %v152
    %3673 = vmatprep.subr.bf16.mxu0 0
    %3674 = vmatpush1.bf16.msra.mxu0 %v151
    %3675 = vmatprep.subr.bf16.mxu0 0
    %3676 = vmatpush2.bf16.msra.mxu0 0
    %3677 = vmatprep.subr.bf16.mxu0 0
    %3678 = vmatpush2.bf16.msra.mxu0 0
    %3679 = vmatprep.subr.bf16.mxu0 0
    %3680 = vmatpush2.bf16.msra.mxu0 0
    %3681 = vmatprep.subr.bf16.mxu0 0
    %3682 = vmatpush2.bf16.msra.mxu0 0
    %3683 = vmatprep.subr.bf16.mxu0 0
    %3684 = vmatpush2.bf16.msra.mxu0 0
    %3685 = vmatprep.subr.bf16.mxu0 0
    %3686 = vmatpush2.bf16.msra.mxu0 0
    %3687 = vmatprep.subr.bf16.mxu0 0
    %3688 = vmatpush2.bf16.msra.mxu0 0
    %3689 = vmatprep.subr.bf16.mxu0 0
    %3690 = vmatpush2.bf16.msra.mxu0 0
    %3691 = vmatprep.mubr.bf16.mxu0 0
    %3692 = vmatmul.mubr.bf16.gmra.mxu0 %v3658
    %v3693 = vpop.f32.mrf.mxu0
    %v3694 = vadd.f32 0.0, %v3693
    %v3695 = vpop.f32.mrf.mxu0
    %v3696 = vpop.f32.mrf.mxu0
    %v3697 = vpop.f32.mrf.mxu0
    %3698 = vdwg.mxu0
    %v3699 = vtanh.pop %v3694
    %v3700 = vadd.f32 %v3653, %v3699
    %v3701 = vpack.c.bf16 %v3700, %v3700
    %3702 = vmatprep.subr.bf16.mxu0 0
    %3703 = vmatpush1.bf16.msra.mxu0 %v249
    %3704 = vmatprep.subr.bf16.mxu0 0
    %3705 = vmatpush1.bf16.msra.mxu0 %v248
    %3706 = vmatprep.subr.bf16.mxu0 0
    %3707 = vmatpush1.bf16.msra.mxu0 %v247
    %3708 = vmatprep.subr.bf16.mxu0 0
    %3709 = vmatpush1.bf16.msra.mxu0 %v246
    %3710 = vmatprep.subr.bf16.mxu0 0
    %3711 = vmatpush1.bf16.msra.mxu0 %v245
    %3712 = vmatprep.subr.bf16.mxu0 0
    %3713 = vmatpush1.bf16.msra.mxu0 %v244
    %3714 = vmatprep.subr.bf16.mxu0 0
    %3715 = vmatpush1.bf16.msra.mxu0 %v243
    %3716 = vmatprep.subr.bf16.mxu0 0
    %3717 = vmatpush1.bf16.msra.mxu0 %v242
    %3718 = vmatprep.subr.bf16.mxu0 0
    %3719 = vmatpush2.bf16.msra.mxu0 0
    %3720 = vmatprep.subr.bf16.mxu0 0
    %3721 = vmatpush2.bf16.msra.mxu0 0
    %3722 = vmatprep.subr.bf16.mxu0 0
    %3723 = vmatpush2.bf16.msra.mxu0 0
    %3724 = vmatprep.subr.bf16.mxu0 0
    %3725 = vmatpush2.bf16.msra.mxu0 0
    %3726 = vmatprep.subr.bf16.mxu0 0
    %3727 = vmatpush2.bf16.msra.mxu0 0
    %3728 = vmatprep.subr.bf16.mxu0 0
    %3729 = vmatpush2.bf16.msra.mxu0 0
    %3730 = vmatprep.subr.bf16.mxu0 0
    %3731 = vmatpush2.bf16.msra.mxu0 0
    %3732 = vmatprep.subr.bf16.mxu0 0
    %3733 = vmatpush2.bf16.msra.mxu0 0
    %3734 = vmatprep.mubr.bf16.mxu0 0
    %3735 = vmatmul.mubr.bf16.gmra.mxu0 %v3701
    %v3736 = vpop.f32.mrf.mxu0
    %v3737 = vadd.f32 0.0, %v3736
    %v3738 = vpop.f32.mrf.mxu0
    %v3739 = vpop.f32.mrf.mxu0
    %v3740 = vpop.f32.mrf.mxu0
    %3741 = vdwg.mxu0
    %v3742 = vpack.c.bf16 %v3737, %v3737
    %3743 = vmatprep.subr.bf16.mxu0 0
    %3744 = vmatpush1.bf16.msra.mxu0 %v158
    %3745 = vmatprep.subr.bf16.mxu0 0
    %3746 = vmatpush1.bf16.msra.mxu0 %v157
    %3747 = vmatprep.subr.bf16.mxu0 0
    %3748 = vmatpush1.bf16.msra.mxu0 %v156
    %3749 = vmatprep.subr.bf16.mxu0 0
    %3750 = vmatpush1.bf16.msra.mxu0 %v155
    %3751 = vmatprep.subr.bf16.mxu0 0
    %3752 = vmatpush1.bf16.msra.mxu0 %v154
    %3753 = vmatprep.subr.bf16.mxu0 0
    %3754 = vmatpush1.bf16.msra.mxu0 %v153
    %3755 = vmatprep.subr.bf16.mxu0 0
    %3756 = vmatpush1.bf16.msra.mxu0 %v152
    %3757 = vmatprep.subr.bf16.mxu0 0
    %3758 = vmatpush1.bf16.msra.mxu0 %v151
    %3759 = vmatprep.subr.bf16.mxu0 0
    %3760 = vmatpush2.bf16.msra.mxu0 0
    %3761 = vmatprep.subr.bf16.mxu0 0
    %3762 = vmatpush2.bf16.msra.mxu0 0
    %3763 = vmatprep.subr.bf16.mxu0 0
    %3764 = vmatpush2.bf16.msra.mxu0 0
    %3765 = vmatprep.subr.bf16.mxu0 0
    %3766 = vmatpush2.bf16.msra.mxu0 0
    %3767 = vmatprep.subr.bf16.mxu0 0
    %3768 = vmatpush2.bf16.msra.mxu0 0
    %3769 = vmatprep.subr.bf16.mxu0 0
    %3770 = vmatpush2.bf16.msra.mxu0 0
    %3771 = vmatprep.subr.bf16.mxu0 0
    %3772 = vmatpush2.bf16.msra.mxu0 0
    %3773 = vmatprep.subr.bf16.mxu0 0
    %3774 = vmatpush2.bf16.msra.mxu0 0
    %3775 = vmatprep.mubr.bf16.mxu0 0
    %3776 = vmatmul.mubr.bf16.gmra.mxu0 %v3742
    %v3777 = vpop.f32.mrf.mxu0
    %v3778 = vadd.f32 0.0, %v3777
    %v3779 = vpop.f32.mrf.mxu0
    %v3780 = vpop.f32.mrf.mxu0
    %v3781 = vpop.f32.mrf.mxu0
    %3782 = vdwg.mxu0
    %v3783 = vtanh.pop %v3778
    %v3784 = vadd.f32 %v3737, %v3783
    %v3785 = vpack.c.bf16 %v3784, %v3784
    %3786 = vmatprep.subr.bf16.mxu0 0
    %3787 = vmatpush1.bf16.msra.mxu0 %v249
    %3788 = vmatprep.subr.bf16.mxu0 0
    %3789 = vmatpush1.bf16.msra.mxu0 %v248
    %3790 = vmatprep.subr.bf16.mxu0 0
    %3791 = vmatpush1.bf16.msra.mxu0 %v247
    %3792 = vmatprep.subr.bf16.mxu0 0
    %3793 = vmatpush1.bf16.msra.mxu0 %v246
    %3794 = vmatprep.subr.bf16.mxu0 0
    %3795 = vmatpush1.bf16.msra.mxu0 %v245
    %3796 = vmatprep.subr.bf16.mxu0 0
    %3797 = vmatpush1.bf16.msra.mxu0 %v244
    %3798 = vmatprep.subr.bf16.mxu0 0
    %3799 = vmatpush1.bf16.msra.mxu0 %v243
    %3800 = vmatprep.subr.bf16.mxu0 0
    %3801 = vmatpush1.bf16.msra.mxu0 %v242
    %3802 = vmatprep.subr.bf16.mxu0 0
    %3803 = vmatpush2.bf16.msra.mxu0 0
    %3804 = vmatprep.subr.bf16.mxu0 0
    %3805 = vmatpush2.bf16.msra.mxu0 0
    %3806 = vmatprep.subr.bf16.mxu0 0
    %3807 = vmatpush2.bf16.msra.mxu0 0
    %3808 = vmatprep.subr.bf16.mxu0 0
    %3809 = vmatpush2.bf16.msra.mxu0 0
    %3810 = vmatprep.subr.bf16.mxu0 0
    %3811 = vmatpush2.bf16.msra.mxu0 0
    %3812 = vmatprep.subr.bf16.mxu0 0
    %3813 = vmatpush2.bf16.msra.mxu0 0
    %3814 = vmatprep.subr.bf16.mxu0 0
    %3815 = vmatpush2.bf16.msra.mxu0 0
    %3816 = vmatprep.subr.bf16.mxu0 0
    %3817 = vmatpush2.bf16.msra.mxu0 0
    %3818 = vmatprep.mubr.bf16.mxu0 0
    %3819 = vmatmul.mubr.bf16.gmra.mxu0 %v3785
    %v3820 = vpop.f32.mrf.mxu0
    %v3821 = vadd.f32 0.0, %v3820
    %v3822 = vpop.f32.mrf.mxu0
    %v3823 = vpop.f32.mrf.mxu0
    %v3824 = vpop.f32.mrf.mxu0
    %3825 = vdwg.mxu0
    %v3826 = vpack.c.bf16 %v3821, %v3821
    %3827 = vmatprep.subr.bf16.mxu0 0
    %3828 = vmatpush1.bf16.msra.mxu0 %v158
    %3829 = vmatprep.subr.bf16.mxu0 0
    %3830 = vmatpush1.bf16.msra.mxu0 %v157
    %3831 = vmatprep.subr.bf16.mxu0 0
    %3832 = vmatpush1.bf16.msra.mxu0 %v156
    %3833 = vmatprep.subr.bf16.mxu0 0
    %3834 = vmatpush1.bf16.msra.mxu0 %v155
    %3835 = vmatprep.subr.bf16.mxu0 0
    %3836 = vmatpush1.bf16.msra.mxu0 %v154
    %3837 = vmatprep.subr.bf16.mxu0 0
    %3838 = vmatpush1.bf16.msra.mxu0 %v153
    %3839 = vmatprep.subr.bf16.mxu0 0
    %3840 = vmatpush1.bf16.msra.mxu0 %v152
    %3841 = vmatprep.subr.bf16.mxu0 0
    %3842 = vmatpush1.bf16.msra.mxu0 %v151
    %3843 = vmatprep.subr.bf16.mxu0 0
    %3844 = vmatpush2.bf16.msra.mxu0 0
    %3845 = vmatprep.subr.bf16.mxu0 0
    %3846 = vmatpush2.bf16.msra.mxu0 0
    %3847 = vmatprep.subr.bf16.mxu0 0
    %3848 = vmatpush2.bf16.msra.mxu0 0
    %3849 = vmatprep.subr.bf16.mxu0 0
    %3850 = vmatpush2.bf16.msra.mxu0 0
    %3851 = vmatprep.subr.bf16.mxu0 0
    %3852 = vmatpush2.bf16.msra.mxu0 0
    %3853 = vmatprep.subr.bf16.mxu0 0
    %3854 = vmatpush2.bf16.msra.mxu0 0
    %3855 = vmatprep.subr.bf16.mxu0 0
    %3856 = vmatpush2.bf16.msra.mxu0 0
    %3857 = vmatprep.subr.bf16.mxu0 0
    %3858 = vmatpush2.bf16.msra.mxu0 0
    %3859 = vmatprep.mubr.bf16.mxu0 0
    %3860 = vmatmul.mubr.bf16.gmra.mxu0 %v3826
    %v3861 = vpop.f32.mrf.mxu0
    %v3862 = vadd.f32 0.0, %v3861
    %v3863 = vpop.f32.mrf.mxu0
    %v3864 = vpop.f32.mrf.mxu0
    %v3865 = vpop.f32.mrf.mxu0
    %3866 = vdwg.mxu0
    %v3867 = vtanh.pop %v3862
    %v3868 = vadd.f32 %v3821, %v3867
    %v3869 = vpack.c.bf16 %v3868, %v3868
    %3870 = vmatprep.subr.bf16.mxu0 0
    %3871 = vmatpush1.bf16.msra.mxu0 %v249
    %3872 = vmatprep.subr.bf16.mxu0 0
    %3873 = vmatpush1.bf16.msra.mxu0 %v248
    %3874 = vmatprep.subr.bf16.mxu0 0
    %3875 = vmatpush1.bf16.msra.mxu0 %v247
    %3876 = vmatprep.subr.bf16.mxu0 0
    %3877 = vmatpush1.bf16.msra.mxu0 %v246
    %3878 = vmatprep.subr.bf16.mxu0 0
    %3879 = vmatpush1.bf16.msra.mxu0 %v245
    %3880 = vmatprep.subr.bf16.mxu0 0
    %3881 = vmatpush1.bf16.msra.mxu0 %v244
    %3882 = vmatprep.subr.bf16.mxu0 0
    %3883 = vmatpush1.bf16.msra.mxu0 %v243
    %3884 = vmatprep.subr.bf16.mxu0 0
    %3885 = vmatpush1.bf16.msra.mxu0 %v242
    %3886 = vmatprep.subr.bf16.mxu0 0
    %3887 = vmatpush2.bf16.msra.mxu0 0
    %3888 = vmatprep.subr.bf16.mxu0 0
    %3889 = vmatpush2.bf16.msra.mxu0 0
    %3890 = vmatprep.subr.bf16.mxu0 0
    %3891 = vmatpush2.bf16.msra.mxu0 0
    %3892 = vmatprep.subr.bf16.mxu0 0
    %3893 = vmatpush2.bf16.msra.mxu0 0
    %3894 = vmatprep.subr.bf16.mxu0 0
    %3895 = vmatpush2.bf16.msra.mxu0 0
    %3896 = vmatprep.subr.bf16.mxu0 0
    %3897 = vmatpush2.bf16.msra.mxu0 0
    %3898 = vmatprep.subr.bf16.mxu0 0
    %3899 = vmatpush2.bf16.msra.mxu0 0
    %3900 = vmatprep.subr.bf16.mxu0 0
    %3901 = vmatpush2.bf16.msra.mxu0 0
    %3902 = vmatprep.mubr.bf16.mxu0 0
    %3903 = vmatmul.mubr.bf16.gmra.mxu0 %v3869
    %v3904 = vpop.f32.mrf.mxu0
    %v3905 = vadd.f32 0.0, %v3904
    %v3906 = vpop.f32.mrf.mxu0
    %v3907 = vpop.f32.mrf.mxu0
    %v3908 = vpop.f32.mrf.mxu0
    %3909 = vdwg.mxu0
    %v3910 = vpack.c.bf16 %v3905, %v3905
    %3911 = vmatprep.subr.bf16.mxu0 0
    %3912 = vmatpush1.bf16.msra.mxu0 %v158
    %3913 = vmatprep.subr.bf16.mxu0 0
    %3914 = vmatpush1.bf16.msra.mxu0 %v157
    %3915 = vmatprep.subr.bf16.mxu0 0
    %3916 = vmatpush1.bf16.msra.mxu0 %v156
    %3917 = vmatprep.subr.bf16.mxu0 0
    %3918 = vmatpush1.bf16.msra.mxu0 %v155
    %3919 = vmatprep.subr.bf16.mxu0 0
    %3920 = vmatpush1.bf16.msra.mxu0 %v154
    %3921 = vmatprep.subr.bf16.mxu0 0
    %3922 = vmatpush1.bf16.msra.mxu0 %v153
    %3923 = vmatprep.subr.bf16.mxu0 0
    %3924 = vmatpush1.bf16.msra.mxu0 %v152
    %3925 = vmatprep.subr.bf16.mxu0 0
    %3926 = vmatpush1.bf16.msra.mxu0 %v151
    %3927 = vmatprep.subr.bf16.mxu0 0
    %3928 = vmatpush2.bf16.msra.mxu0 0
    %3929 = vmatprep.subr.bf16.mxu0 0
    %3930 = vmatpush2.bf16.msra.mxu0 0
    %3931 = vmatprep.subr.bf16.mxu0 0
    %3932 = vmatpush2.bf16.msra.mxu0 0
    %3933 = vmatprep.subr.bf16.mxu0 0
    %3934 = vmatpush2.bf16.msra.mxu0 0
    %3935 = vmatprep.subr.bf16.mxu0 0
    %3936 = vmatpush2.bf16.msra.mxu0 0
    %3937 = vmatprep.subr.bf16.mxu0 0
    %3938 = vmatpush2.bf16.msra.mxu0 0
    %3939 = vmatprep.subr.bf16.mxu0 0
    %3940 = vmatpush2.bf16.msra.mxu0 0
    %3941 = vmatprep.subr.bf16.mxu0 0
    %3942 = vmatpush2.bf16.msra.mxu0 0
    %3943 = vmatprep.mubr.bf16.mxu0 0
    %3944 = vmatmul.mubr.bf16.gmra.mxu0 %v3910
    %v3945 = vpop.f32.mrf.mxu0
    %v3946 = vadd.f32 0.0, %v3945
    %v3947 = vpop.f32.mrf.mxu0
    %v3948 = vpop.f32.mrf.mxu0
    %v3949 = vpop.f32.mrf.mxu0
    %3950 = vdwg.mxu0
    %v3951 = vtanh.pop %v3946
    %v3952 = vadd.f32 %v3905, %v3951
    %v3953 = vpack.c.bf16 %v3952, %v3952
    %3954 = vmatprep.subr.bf16.mxu0 0
    %3955 = vmatpush1.bf16.msra.mxu0 %v249
    %3956 = vmatprep.subr.bf16.mxu0 0
    %3957 = vmatpush1.bf16.msra.mxu0 %v248
    %3958 = vmatprep.subr.bf16.mxu0 0
    %3959 = vmatpush1.bf16.msra.mxu0 %v247
    %3960 = vmatprep.subr.bf16.mxu0 0
    %3961 = vmatpush1.bf16.msra.mxu0 %v246
    %3962 = vmatprep.subr.bf16.mxu0 0
    %3963 = vmatpush1.bf16.msra.mxu0 %v245
    %3964 = vmatprep.subr.bf16.mxu0 0
    %3965 = vmatpush1.bf16.msra.mxu0 %v244
    %3966 = vmatprep.subr.bf16.mxu0 0
    %3967 = vmatpush1.bf16.msra.mxu0 %v243
    %3968 = vmatprep.subr.bf16.mxu0 0
    %3969 = vmatpush1.bf16.msra.mxu0 %v242
    %3970 = vmatprep.subr.bf16.mxu0 0
    %3971 = vmatpush2.bf16.msra.mxu0 0
    %3972 = vmatprep.subr.bf16.mxu0 0
    %3973 = vmatpush2.bf16.msra.mxu0 0
    %3974 = vmatprep.subr.bf16.mxu0 0
    %3975 = vmatpush2.bf16.msra.mxu0 0
    %3976 = vmatprep.subr.bf16.mxu0 0
    %3977 = vmatpush2.bf16.msra.mxu0 0
    %3978 = vmatprep.subr.bf16.mxu0 0
    %3979 = vmatpush2.bf16.msra.mxu0 0
    %3980 = vmatprep.subr.bf16.mxu0 0
    %3981 = vmatpush2.bf16.msra.mxu0 0
    %3982 = vmatprep.subr.bf16.mxu0 0
    %3983 = vmatpush2.bf16.msra.mxu0 0
    %3984 = vmatprep.subr.bf16.mxu0 0
    %3985 = vmatpush2.bf16.msra.mxu0 0
    %3986 = vmatprep.mubr.bf16.mxu0 0
    %3987 = vmatmul.mubr.bf16.gmra.mxu0 %v3953
    %v3988 = vpop.f32.mrf.mxu0
    %v3989 = vadd.f32 0.0, %v3988
    %v3990 = vpop.f32.mrf.mxu0
    %v3991 = vpop.f32.mrf.mxu0
    %v3992 = vpop.f32.mrf.mxu0
    %3993 = vdwg.mxu0
    %v3994 = vpack.c.bf16 %v3989, %v3989
    %3995 = vmatprep.subr.bf16.mxu0 0
    %3996 = vmatpush1.bf16.msra.mxu0 %v158
    %3997 = vmatprep.subr.bf16.mxu0 0
    %3998 = vmatpush1.bf16.msra.mxu0 %v157
    %3999 = vmatprep.subr.bf16.mxu0 0
    %4000 = vmatpush1.bf16.msra.mxu0 %v156
    %4001 = vmatprep.subr.bf16.mxu0 0
    %4002 = vmatpush1.bf16.msra.mxu0 %v155
    %4003 = vmatprep.subr.bf16.mxu0 0
    %4004 = vmatpush1.bf16.msra.mxu0 %v154
    %4005 = vmatprep.subr.bf16.mxu0 0
    %4006 = vmatpush1.bf16.msra.mxu0 %v153
    %4007 = vmatprep.subr.bf16.mxu0 0
    %4008 = vmatpush1.bf16.msra.mxu0 %v152
    %4009 = vmatprep.subr.bf16.mxu0 0
    %4010 = vmatpush1.bf16.msra.mxu0 %v151
    %4011 = vmatprep.subr.bf16.mxu0 0
    %4012 = vmatpush2.bf16.msra.mxu0 0
    %4013 = vmatprep.subr.bf16.mxu0 0
    %4014 = vmatpush2.bf16.msra.mxu0 0
    %4015 = vmatprep.subr.bf16.mxu0 0
    %4016 = vmatpush2.bf16.msra.mxu0 0
    %4017 = vmatprep.subr.bf16.mxu0 0
    %4018 = vmatpush2.bf16.msra.mxu0 0
    %4019 = vmatprep.subr.bf16.mxu0 0
    %4020 = vmatpush2.bf16.msra.mxu0 0
    %4021 = vmatprep.subr.bf16.mxu0 0
    %4022 = vmatpush2.bf16.msra.mxu0 0
    %4023 = vmatprep.subr.bf16.mxu0 0
    %4024 = vmatpush2.bf16.msra.mxu0 0
    %4025 = vmatprep.subr.bf16.mxu0 0
    %4026 = vmatpush2.bf16.msra.mxu0 0
    %4027 = vmatprep.mubr.bf16.mxu0 0
    %4028 = vmatmul.mubr.bf16.gmra.mxu0 %v3994
    %v4029 = vpop.f32.mrf.mxu0
    %v4030 = vadd.f32 0.0, %v4029
    %v4031 = vpop.f32.mrf.mxu0
    %v4032 = vpop.f32.mrf.mxu0
    %v4033 = vpop.f32.mrf.mxu0
    %4034 = vdwg.mxu0
    %v4035 = vtanh.pop %v4030
    %v4036 = vadd.f32 %v3989, %v4035
    %v4037 = vpack.c.bf16 %v4036, %v4036
    %4038 = vmatprep.subr.bf16.mxu0 0
    %4039 = vmatpush1.bf16.msra.mxu0 %v249
    %4040 = vmatprep.subr.bf16.mxu0 0
    %4041 = vmatpush1.bf16.msra.mxu0 %v248
    %4042 = vmatprep.subr.bf16.mxu0 0
    %4043 = vmatpush1.bf16.msra.mxu0 %v247
    %4044 = vmatprep.subr.bf16.mxu0 0
    %4045 = vmatpush1.bf16.msra.mxu0 %v246
    %4046 = vmatprep.subr.bf16.mxu0 0
    %4047 = vmatpush1.bf16.msra.mxu0 %v245
    %4048 = vmatprep.subr.bf16.mxu0 0
    %4049 = vmatpush1.bf16.msra.mxu0 %v244
    %4050 = vmatprep.subr.bf16.mxu0 0
    %4051 = vmatpush1.bf16.msra.mxu0 %v243
    %4052 = vmatprep.subr.bf16.mxu0 0
    %4053 = vmatpush1.bf16.msra.mxu0 %v242
    %4054 = vmatprep.subr.bf16.mxu0 0
    %4055 = vmatpush2.bf16.msra.mxu0 0
    %4056 = vmatprep.subr.bf16.mxu0 0
    %4057 = vmatpush2.bf16.msra.mxu0 0
    %4058 = vmatprep.subr.bf16.mxu0 0
    %4059 = vmatpush2.bf16.msra.mxu0 0
    %4060 = vmatprep.subr.bf16.mxu0 0
    %4061 = vmatpush2.bf16.msra.mxu0 0
    %4062 = vmatprep.subr.bf16.mxu0 0
    %4063 = vmatpush2.bf16.msra.mxu0 0
    %4064 = vmatprep.subr.bf16.mxu0 0
    %4065 = vmatpush2.bf16.msra.mxu0 0
    %4066 = vmatprep.subr.bf16.mxu0 0
    %4067 = vmatpush2.bf16.msra.mxu0 0
    %4068 = vmatprep.subr.bf16.mxu0 0
    %4069 = vmatpush2.bf16.msra.mxu0 0
    %4070 = vmatprep.mubr.bf16.mxu0 0
    %4071 = vmatmul.mubr.bf16.gmra.mxu0 %v4037
    %v4072 = vpop.f32.mrf.mxu0
    %v4073 = vadd.f32 0.0, %v4072
    %v4074 = vpop.f32.mrf.mxu0
    %v4075 = vpop.f32.mrf.mxu0
    %v4076 = vpop.f32.mrf.mxu0
    %4077 = vdwg.mxu0
    %v4078 = vpack.c.bf16 %v4073, %v4073
    %4079 = vmatprep.subr.bf16.mxu0 0
    %4080 = vmatpush1.bf16.msra.mxu0 %v158
    %4081 = vmatprep.subr.bf16.mxu0 0
    %4082 = vmatpush1.bf16.msra.mxu0 %v157
    %4083 = vmatprep.subr.bf16.mxu0 0
    %4084 = vmatpush1.bf16.msra.mxu0 %v156
    %4085 = vmatprep.subr.bf16.mxu0 0
    %4086 = vmatpush1.bf16.msra.mxu0 %v155
    %4087 = vmatprep.subr.bf16.mxu0 0
    %4088 = vmatpush1.bf16.msra.mxu0 %v154
    %4089 = vmatprep.subr.bf16.mxu0 0
    %4090 = vmatpush1.bf16.msra.mxu0 %v153
    %4091 = vmatprep.subr.bf16.mxu0 0
    %4092 = vmatpush1.bf16.msra.mxu0 %v152
    %4093 = vmatprep.subr.bf16.mxu0 0
    %4094 = vmatpush1.bf16.msra.mxu0 %v151
    %4095 = vmatprep.subr.bf16.mxu0 0
    %4096 = vmatpush2.bf16.msra.mxu0 0
    %4097 = vmatprep.subr.bf16.mxu0 0
    %4098 = vmatpush2.bf16.msra.mxu0 0
    %4099 = vmatprep.subr.bf16.mxu0 0
    %4100 = vmatpush2.bf16.msra.mxu0 0
    %4101 = vmatprep.subr.bf16.mxu0 0
    %4102 = vmatpush2.bf16.msra.mxu0 0
    %4103 = vmatprep.subr.bf16.mxu0 0
    %4104 = vmatpush2.bf16.msra.mxu0 0
    %4105 = vmatprep.subr.bf16.mxu0 0
    %4106 = vmatpush2.bf16.msra.mxu0 0
    %4107 = vmatprep.subr.bf16.mxu0 0
    %4108 = vmatpush2.bf16.msra.mxu0 0
    %4109 = vmatprep.subr.bf16.mxu0 0
    %4110 = vmatpush2.bf16.msra.mxu0 0
    %4111 = vmatprep.mubr.bf16.mxu0 0
    %4112 = vmatmul.mubr.bf16.gmra.mxu0 %v4078
    %v4113 = vpop.f32.mrf.mxu0
    %v4114 = vadd.f32 0.0, %v4113
    %v4115 = vpop.f32.mrf.mxu0
    %v4116 = vpop.f32.mrf.mxu0
    %v4117 = vpop.f32.mrf.mxu0
    %4118 = vdwg.mxu0
    %v4119 = vtanh.pop %v4114
    %v4120 = vadd.f32 %v4073, %v4119
    %v4121 = vpack.c.bf16 %v4120, %v4120
    %4122 = vmatprep.subr.bf16.mxu0 0
    %4123 = vmatpush1.bf16.msra.mxu0 %v249
    %4124 = vmatprep.subr.bf16.mxu0 0
    %4125 = vmatpush1.bf16.msra.mxu0 %v248
    %4126 = vmatprep.subr.bf16.mxu0 0
    %4127 = vmatpush1.bf16.msra.mxu0 %v247
    %4128 = vmatprep.subr.bf16.mxu0 0
    %4129 = vmatpush1.bf16.msra.mxu0 %v246
    %4130 = vmatprep.subr.bf16.mxu0 0
    %4131 = vmatpush1.bf16.msra.mxu0 %v245
    %4132 = vmatprep.subr.bf16.mxu0 0
    %4133 = vmatpush1.bf16.msra.mxu0 %v244
    %4134 = vmatprep.subr.bf16.mxu0 0
    %4135 = vmatpush1.bf16.msra.mxu0 %v243
    %4136 = vmatprep.subr.bf16.mxu0 0
    %4137 = vmatpush1.bf16.msra.mxu0 %v242
    %4138 = vmatprep.subr.bf16.mxu0 0
    %4139 = vmatpush2.bf16.msra.mxu0 0
    %4140 = vmatprep.subr.bf16.mxu0 0
    %4141 = vmatpush2.bf16.msra.mxu0 0
    %4142 = vmatprep.subr.bf16.mxu0 0
    %4143 = vmatpush2.bf16.msra.mxu0 0
    %4144 = vmatprep.subr.bf16.mxu0 0
    %4145 = vmatpush2.bf16.msra.mxu0 0
    %4146 = vmatprep.subr.bf16.mxu0 0
    %4147 = vmatpush2.bf16.msra.mxu0 0
    %4148 = vmatprep.subr.bf16.mxu0 0
    %4149 = vmatpush2.bf16.msra.mxu0 0
    %4150 = vmatprep.subr.bf16.mxu0 0
    %4151 = vmatpush2.bf16.msra.mxu0 0
    %4152 = vmatprep.subr.bf16.mxu0 0
    %4153 = vmatpush2.bf16.msra.mxu0 0
    %4154 = vmatprep.mubr.bf16.mxu0 0
    %4155 = vmatmul.mubr.bf16.gmra.mxu0 %v4121
    %v4156 = vpop.f32.mrf.mxu0
    %v4157 = vadd.f32 0.0, %v4156
    %v4158 = vpop.f32.mrf.mxu0
    %v4159 = vpop.f32.mrf.mxu0
    %v4160 = vpop.f32.mrf.mxu0
    %4161 = vdwg.mxu0
    %v4162 = vpack.c.bf16 %v4157, %v4157
    %4163 = vmatprep.subr.bf16.mxu0 0
    %4164 = vmatpush1.bf16.msra.mxu0 %v158
    %4165 = vmatprep.subr.bf16.mxu0 0
    %4166 = vmatpush1.bf16.msra.mxu0 %v157
    %4167 = vmatprep.subr.bf16.mxu0 0
    %4168 = vmatpush1.bf16.msra.mxu0 %v156
    %4169 = vmatprep.subr.bf16.mxu0 0
    %4170 = vmatpush1.bf16.msra.mxu0 %v155
    %4171 = vmatprep.subr.bf16.mxu0 0
    %4172 = vmatpush1.bf16.msra.mxu0 %v154
    %4173 = vmatprep.subr.bf16.mxu0 0
    %4174 = vmatpush1.bf16.msra.mxu0 %v153
    %4175 = vmatprep.subr.bf16.mxu0 0
    %4176 = vmatpush1.bf16.msra.mxu0 %v152
    %4177 = vmatprep.subr.bf16.mxu0 0
    %4178 = vmatpush1.bf16.msra.mxu0 %v151
    %4179 = vmatprep.subr.bf16.mxu0 0
    %4180 = vmatpush2.bf16.msra.mxu0 0
    %4181 = vmatprep.subr.bf16.mxu0 0
    %4182 = vmatpush2.bf16.msra.mxu0 0
    %4183 = vmatprep.subr.bf16.mxu0 0
    %4184 = vmatpush2.bf16.msra.mxu0 0
    %4185 = vmatprep.subr.bf16.mxu0 0
    %4186 = vmatpush2.bf16.msra.mxu0 0
    %4187 = vmatprep.subr.bf16.mxu0 0
    %4188 = vmatpush2.bf16.msra.mxu0 0
    %4189 = vmatprep.subr.bf16.mxu0 0
    %4190 = vmatpush2.bf16.msra.mxu0 0
    %4191 = vmatprep.subr.bf16.mxu0 0
    %4192 = vmatpush2.bf16.msra.mxu0 0
    %4193 = vmatprep.subr.bf16.mxu0 0
    %4194 = vmatpush2.bf16.msra.mxu0 0
    %4195 = vmatprep.mubr.bf16.mxu0 0
    %4196 = vmatmul.mubr.bf16.gmra.mxu0 %v4162
    %v4197 = vpop.f32.mrf.mxu0
    %v4198 = vadd.f32 0.0, %v4197
    %v4199 = vpop.f32.mrf.mxu0
    %v4200 = vpop.f32.mrf.mxu0
    %v4201 = vpop.f32.mrf.mxu0
    %4202 = vdwg.mxu0
    %v4203 = vtanh.pop %v4198
    %v4204 = vadd.f32 %v4157, %v4203
    %v4205 = vpack.c.bf16 %v4204, %v4204
    %4206 = vmatprep.subr.bf16.mxu0 0
    %4207 = vmatpush1.bf16.msra.mxu0 %v249
    %4208 = vmatprep.subr.bf16.mxu0 0
    %4209 = vmatpush1.bf16.msra.mxu0 %v248
    %4210 = vmatprep.subr.bf16.mxu0 0
    %4211 = vmatpush1.bf16.msra.mxu0 %v247
    %4212 = vmatprep.subr.bf16.mxu0 0
    %4213 = vmatpush1.bf16.msra.mxu0 %v246
    %4214 = vmatprep.subr.bf16.mxu0 0
    %4215 = vmatpush1.bf16.msra.mxu0 %v245
    %4216 = vmatprep.subr.bf16.mxu0 0
    %4217 = vmatpush1.bf16.msra.mxu0 %v244
    %4218 = vmatprep.subr.bf16.mxu0 0
    %4219 = vmatpush1.bf16.msra.mxu0 %v243
    %4220 = vmatprep.subr.bf16.mxu0 0
    %4221 = vmatpush1.bf16.msra.mxu0 %v242
    %4222 = vmatprep.subr.bf16.mxu0 0
    %4223 = vmatpush2.bf16.msra.mxu0 0
    %4224 = vmatprep.subr.bf16.mxu0 0
    %4225 = vmatpush2.bf16.msra.mxu0 0
    %4226 = vmatprep.subr.bf16.mxu0 0
    %4227 = vmatpush2.bf16.msra.mxu0 0
    %4228 = vmatprep.subr.bf16.mxu0 0
    %4229 = vmatpush2.bf16.msra.mxu0 0
    %4230 = vmatprep.subr.bf16.mxu0 0
    %4231 = vmatpush2.bf16.msra.mxu0 0
    %4232 = vmatprep.subr.bf16.mxu0 0
    %4233 = vmatpush2.bf16.msra.mxu0 0
    %4234 = vmatprep.subr.bf16.mxu0 0
    %4235 = vmatpush2.bf16.msra.mxu0 0
    %4236 = vmatprep.subr.bf16.mxu0 0
    %4237 = vmatpush2.bf16.msra.mxu0 0
    %4238 = vmatprep.mubr.bf16.mxu0 0
    %4239 = vmatmul.mubr.bf16.gmra.mxu0 %v4205
    %v4240 = vpop.f32.mrf.mxu0
    %v4241 = vadd.f32 0.0, %v4240
    %v4242 = vpop.f32.mrf.mxu0
    %v4243 = vpop.f32.mrf.mxu0
    %v4244 = vpop.f32.mrf.mxu0
    %4245 = vdwg.mxu0
    %v4246 = vpack.c.bf16 %v4241, %v4241
    %4247 = vmatprep.subr.bf16.mxu0 0
    %4248 = vmatpush1.bf16.msra.mxu0 %v158
    %4249 = vmatprep.subr.bf16.mxu0 0
    %4250 = vmatpush1.bf16.msra.mxu0 %v157
    %4251 = vmatprep.subr.bf16.mxu0 0
    %4252 = vmatpush1.bf16.msra.mxu0 %v156
    %4253 = vmatprep.subr.bf16.mxu0 0
    %4254 = vmatpush1.bf16.msra.mxu0 %v155
    %4255 = vmatprep.subr.bf16.mxu0 0
    %4256 = vmatpush1.bf16.msra.mxu0 %v154
    %4257 = vmatprep.subr.bf16.mxu0 0
    %4258 = vmatpush1.bf16.msra.mxu0 %v153
    %4259 = vmatprep.subr.bf16.mxu0 0
    %4260 = vmatpush1.bf16.msra.mxu0 %v152
    %4261 = vmatprep.subr.bf16.mxu0 0
    %4262 = vmatpush1.bf16.msra.mxu0 %v151
    %4263 = vmatprep.subr.bf16.mxu0 0
    %4264 = vmatpush2.bf16.msra.mxu0 0
    %4265 = vmatprep.subr.bf16.mxu0 0
    %4266 = vmatpush2.bf16.msra.mxu0 0
    %4267 = vmatprep.subr.bf16.mxu0 0
    %4268 = vmatpush2.bf16.msra.mxu0 0
    %4269 = vmatprep.subr.bf16.mxu0 0
    %4270 = vmatpush2.bf16.msra.mxu0 0
    %4271 = vmatprep.subr.bf16.mxu0 0
    %4272 = vmatpush2.bf16.msra.mxu0 0
    %4273 = vmatprep.subr.bf16.mxu0 0
    %4274 = vmatpush2.bf16.msra.mxu0 0
    %4275 = vmatprep.subr.bf16.mxu0 0
    %4276 = vmatpush2.bf16.msra.mxu0 0
    %4277 = vmatprep.subr.bf16.mxu0 0
    %4278 = vmatpush2.bf16.msra.mxu0 0
    %4279 = vmatprep.mubr.bf16.mxu0 0
    %4280 = vmatmul.mubr.bf16.gmra.mxu0 %v4246
    %v4281 = vpop.f32.mrf.mxu0
    %v4282 = vadd.f32 0.0, %v4281
    %v4283 = vpop.f32.mrf.mxu0
    %v4284 = vpop.f32.mrf.mxu0
    %v4285 = vpop.f32.mrf.mxu0
    %4286 = vdwg.mxu0
    %v4287 = vtanh.pop %v4282
    %v4288 = vadd.f32 %v4241, %v4287
    %v4289 = vpack.c.bf16 %v4288, %v4288
    %4290 = vmatprep.subr.bf16.mxu0 0
    %4291 = vmatpush1.bf16.msra.mxu0 %v249
    %4292 = vmatprep.subr.bf16.mxu0 0
    %4293 = vmatpush1.bf16.msra.mxu0 %v248
    %4294 = vmatprep.subr.bf16.mxu0 0
    %4295 = vmatpush1.bf16.msra.mxu0 %v247
    %4296 = vmatprep.subr.bf16.mxu0 0
    %4297 = vmatpush1.bf16.msra.mxu0 %v246
    %4298 = vmatprep.subr.bf16.mxu0 0
    %4299 = vmatpush1.bf16.msra.mxu0 %v245
    %4300 = vmatprep.subr.bf16.mxu0 0
    %4301 = vmatpush1.bf16.msra.mxu0 %v244
    %4302 = vmatprep.subr.bf16.mxu0 0
    %4303 = vmatpush1.bf16.msra.mxu0 %v243
    %4304 = vmatprep.subr.bf16.mxu0 0
    %4305 = vmatpush1.bf16.msra.mxu0 %v242
    %4306 = vmatprep.subr.bf16.mxu0 0
    %4307 = vmatpush2.bf16.msra.mxu0 0
    %4308 = vmatprep.subr.bf16.mxu0 0
    %4309 = vmatpush2.bf16.msra.mxu0 0
    %4310 = vmatprep.subr.bf16.mxu0 0
    %4311 = vmatpush2.bf16.msra.mxu0 0
    %4312 = vmatprep.subr.bf16.mxu0 0
    %4313 = vmatpush2.bf16.msra.mxu0 0
    %4314 = vmatprep.subr.bf16.mxu0 0
    %4315 = vmatpush2.bf16.msra.mxu0 0
    %4316 = vmatprep.subr.bf16.mxu0 0
    %4317 = vmatpush2.bf16.msra.mxu0 0
    %4318 = vmatprep.subr.bf16.mxu0 0
    %4319 = vmatpush2.bf16.msra.mxu0 0
    %4320 = vmatprep.subr.bf16.mxu0 0
    %4321 = vmatpush2.bf16.msra.mxu0 0
    %4322 = vmatprep.mubr.bf16.mxu0 0
    %4323 = vmatmul.mubr.bf16.gmra.mxu0 %v4289
    %v4324 = vpop.f32.mrf.mxu0
    %v4325 = vadd.f32 0.0, %v4324
    %v4326 = vpop.f32.mrf.mxu0
    %v4327 = vpop.f32.mrf.mxu0
    %v4328 = vpop.f32.mrf.mxu0
    %4329 = vdwg.mxu0
    %v4330 = vpack.c.bf16 %v4325, %v4325
    %4331 = vmatprep.subr.bf16.mxu0 0
    %4332 = vmatpush1.bf16.msra.mxu0 %v158
    %4333 = vmatprep.subr.bf16.mxu0 0
    %4334 = vmatpush1.bf16.msra.mxu0 %v157
    %4335 = vmatprep.subr.bf16.mxu0 0
    %4336 = vmatpush1.bf16.msra.mxu0 %v156
    %4337 = vmatprep.subr.bf16.mxu0 0
    %4338 = vmatpush1.bf16.msra.mxu0 %v155
    %4339 = vmatprep.subr.bf16.mxu0 0
    %4340 = vmatpush1.bf16.msra.mxu0 %v154
    %4341 = vmatprep.subr.bf16.mxu0 0
    %4342 = vmatpush1.bf16.msra.mxu0 %v153
    %4343 = vmatprep.subr.bf16.mxu0 0
    %4344 = vmatpush1.bf16.msra.mxu0 %v152
    %4345 = vmatprep.subr.bf16.mxu0 0
    %4346 = vmatpush1.bf16.msra.mxu0 %v151
    %4347 = vmatprep.subr.bf16.mxu0 0
    %4348 = vmatpush2.bf16.msra.mxu0 0
    %4349 = vmatprep.subr.bf16.mxu0 0
    %4350 = vmatpush2.bf16.msra.mxu0 0
    %4351 = vmatprep.subr.bf16.mxu0 0
    %4352 = vmatpush2.bf16.msra.mxu0 0
    %4353 = vmatprep.subr.bf16.mxu0 0
    %4354 = vmatpush2.bf16.msra.mxu0 0
    %4355 = vmatprep.subr.bf16.mxu0 0
    %4356 = vmatpush2.bf16.msra.mxu0 0
    %4357 = vmatprep.subr.bf16.mxu0 0
    %4358 = vmatpush2.bf16.msra.mxu0 0
    %4359 = vmatprep.subr.bf16.mxu0 0
    %4360 = vmatpush2.bf16.msra.mxu0 0
    %4361 = vmatprep.subr.bf16.mxu0 0
    %4362 = vmatpush2.bf16.msra.mxu0 0
    %4363 = vmatprep.mubr.bf16.mxu0 0
    %4364 = vmatmul.mubr.bf16.gmra.mxu0 %v4330
    %v4365 = vpop.f32.mrf.mxu0
    %v4366 = vadd.f32 0.0, %v4365
    %v4367 = vpop.f32.mrf.mxu0
    %v4368 = vpop.f32.mrf.mxu0
    %v4369 = vpop.f32.mrf.mxu0
    %4370 = vdwg.mxu0
    %v4371 = vtanh.pop %v4366
    %v4372 = vadd.f32 %v4325, %v4371
    %v4373 = vpack.c.bf16 %v4372, %v4372
    %4374 = vmatprep.subr.bf16.mxu0 0
    %4375 = vmatpush1.bf16.msra.mxu0 %v249
    %4376 = vmatprep.subr.bf16.mxu0 0
    %4377 = vmatpush1.bf16.msra.mxu0 %v248
    %4378 = vmatprep.subr.bf16.mxu0 0
    %4379 = vmatpush1.bf16.msra.mxu0 %v247
    %4380 = vmatprep.subr.bf16.mxu0 0
    %4381 = vmatpush1.bf16.msra.mxu0 %v246
    %4382 = vmatprep.subr.bf16.mxu0 0
    %4383 = vmatpush1.bf16.msra.mxu0 %v245
    %4384 = vmatprep.subr.bf16.mxu0 0
    %4385 = vmatpush1.bf16.msra.mxu0 %v244
    %4386 = vmatprep.subr.bf16.mxu0 0
    %4387 = vmatpush1.bf16.msra.mxu0 %v243
    %4388 = vmatprep.subr.bf16.mxu0 0
    %4389 = vmatpush1.bf16.msra.mxu0 %v242
    %4390 = vmatprep.subr.bf16.mxu0 0
    %4391 = vmatpush2.bf16.msra.mxu0 0
    %4392 = vmatprep.subr.bf16.mxu0 0
    %4393 = vmatpush2.bf16.msra.mxu0 0
    %4394 = vmatprep.subr.bf16.mxu0 0
    %4395 = vmatpush2.bf16.msra.mxu0 0
    %4396 = vmatprep.subr.bf16.mxu0 0
    %4397 = vmatpush2.bf16.msra.mxu0 0
    %4398 = vmatprep.subr.bf16.mxu0 0
    %4399 = vmatpush2.bf16.msra.mxu0 0
    %4400 = vmatprep.subr.bf16.mxu0 0
    %4401 = vmatpush2.bf16.msra.mxu0 0
    %4402 = vmatprep.subr.bf16.mxu0 0
    %4403 = vmatpush2.bf16.msra.mxu0 0
    %4404 = vmatprep.subr.bf16.mxu0 0
    %4405 = vmatpush2.bf16.msra.mxu0 0
    %4406 = vmatprep.mubr.bf16.mxu0 0
    %4407 = vmatmul.mubr.bf16.gmra.mxu0 %v4373
    %v4408 = vpop.f32.mrf.mxu0
    %v4409 = vadd.f32 0.0, %v4408
    %v4410 = vpop.f32.mrf.mxu0
    %v4411 = vpop.f32.mrf.mxu0
    %v4412 = vpop.f32.mrf.mxu0
    %4413 = vdwg.mxu0
    %v4414 = vpack.c.bf16 %v4409, %v4409
    %4415 = vmatprep.subr.bf16.mxu0 0
    %4416 = vmatpush1.bf16.msra.mxu0 %v158
    %4417 = vmatprep.subr.bf16.mxu0 0
    %4418 = vmatpush1.bf16.msra.mxu0 %v157
    %4419 = vmatprep.subr.bf16.mxu0 0
    %4420 = vmatpush1.bf16.msra.mxu0 %v156
    %4421 = vmatprep.subr.bf16.mxu0 0
    %4422 = vmatpush1.bf16.msra.mxu0 %v155
    %4423 = vmatprep.subr.bf16.mxu0 0
    %4424 = vmatpush1.bf16.msra.mxu0 %v154
    %4425 = vmatprep.subr.bf16.mxu0 0
    %4426 = vmatpush1.bf16.msra.mxu0 %v153
    %4427 = vmatprep.subr.bf16.mxu0 0
    %4428 = vmatpush1.bf16.msra.mxu0 %v152
    %4429 = vmatprep.subr.bf16.mxu0 0
    %4430 = vmatpush1.bf16.msra.mxu0 %v151
    %4431 = vmatprep.subr.bf16.mxu0 0
    %4432 = vmatpush2.bf16.msra.mxu0 0
    %4433 = vmatprep.subr.bf16.mxu0 0
    %4434 = vmatpush2.bf16.msra.mxu0 0
    %4435 = vmatprep.subr.bf16.mxu0 0
    %4436 = vmatpush2.bf16.msra.mxu0 0
    %4437 = vmatprep.subr.bf16.mxu0 0
    %4438 = vmatpush2.bf16.msra.mxu0 0
    %4439 = vmatprep.subr.bf16.mxu0 0
    %4440 = vmatpush2.bf16.msra.mxu0 0
    %4441 = vmatprep.subr.bf16.mxu0 0
    %4442 = vmatpush2.bf16.msra.mxu0 0
    %4443 = vmatprep.subr.bf16.mxu0 0
    %4444 = vmatpush2.bf16.msra.mxu0 0
    %4445 = vmatprep.subr.bf16.mxu0 0
    %4446 = vmatpush2.bf16.msra.mxu0 0
    %4447 = vmatprep.mubr.bf16.mxu0 0
    %4448 = vmatmul.mubr.bf16.gmra.mxu0 %v4414
    %v4449 = vpop.f32.mrf.mxu0
    %v4450 = vadd.f32 0.0, %v4449
    %v4451 = vpop.f32.mrf.mxu0
    %v4452 = vpop.f32.mrf.mxu0
    %v4453 = vpop.f32.mrf.mxu0
    %4454 = vdwg.mxu0
    %v4455 = vtanh.pop %v4450
    %v4456 = vadd.f32 %v4409, %v4455
    %v4457 = vpack.c.bf16 %v4456, %v4456
    %4458 = vmatprep.subr.bf16.mxu0 0
    %4459 = vmatpush1.bf16.msra.mxu0 %v249
    %4460 = vmatprep.subr.bf16.mxu0 0
    %4461 = vmatpush1.bf16.msra.mxu0 %v248
    %4462 = vmatprep.subr.bf16.mxu0 0
    %4463 = vmatpush1.bf16.msra.mxu0 %v247
    %4464 = vmatprep.subr.bf16.mxu0 0
    %4465 = vmatpush1.bf16.msra.mxu0 %v246
    %4466 = vmatprep.subr.bf16.mxu0 0
    %4467 = vmatpush1.bf16.msra.mxu0 %v245
    %4468 = vmatprep.subr.bf16.mxu0 0
    %4469 = vmatpush1.bf16.msra.mxu0 %v244
    %4470 = vmatprep.subr.bf16.mxu0 0
    %4471 = vmatpush1.bf16.msra.mxu0 %v243
    %4472 = vmatprep.subr.bf16.mxu0 0
    %4473 = vmatpush1.bf16.msra.mxu0 %v242
    %4474 = vmatprep.subr.bf16.mxu0 0
    %4475 = vmatpush2.bf16.msra.mxu0 0
    %4476 = vmatprep.subr.bf16.mxu0 0
    %4477 = vmatpush2.bf16.msra.mxu0 0
    %4478 = vmatprep.subr.bf16.mxu0 0
    %4479 = vmatpush2.bf16.msra.mxu0 0
    %4480 = vmatprep.subr.bf16.mxu0 0
    %4481 = vmatpush2.bf16.msra.mxu0 0
    %4482 = vmatprep.subr.bf16.mxu0 0
    %4483 = vmatpush2.bf16.msra.mxu0 0
    %4484 = vmatprep.subr.bf16.mxu0 0
    %4485 = vmatpush2.bf16.msra.mxu0 0
    %4486 = vmatprep.subr.bf16.mxu0 0
    %4487 = vmatpush2.bf16.msra.mxu0 0
    %4488 = vmatprep.subr.bf16.mxu0 0
    %4489 = vmatpush2.bf16.msra.mxu0 0
    %4490 = vmatprep.mubr.bf16.mxu0 0
    %4491 = vmatmul.mubr.bf16.gmra.mxu0 %v4457
    %v4492 = vpop.f32.mrf.mxu0
    %v4493 = vadd.f32 0.0, %v4492
    %v4494 = vpop.f32.mrf.mxu0
    %v4495 = vpop.f32.mrf.mxu0
    %v4496 = vpop.f32.mrf.mxu0
    %4497 = vdwg.mxu0
    %v4498 = vpack.c.bf16 %v4493, %v4493
    %4499 = vmatprep.subr.bf16.mxu0 0
    %4500 = vmatpush1.bf16.msra.mxu0 %v158
    %4501 = vmatprep.subr.bf16.mxu0 0
    %4502 = vmatpush1.bf16.msra.mxu0 %v157
    %4503 = vmatprep.subr.bf16.mxu0 0
    %4504 = vmatpush1.bf16.msra.mxu0 %v156
    %4505 = vmatprep.subr.bf16.mxu0 0
    %4506 = vmatpush1.bf16.msra.mxu0 %v155
    %4507 = vmatprep.subr.bf16.mxu0 0
    %4508 = vmatpush1.bf16.msra.mxu0 %v154
    %4509 = vmatprep.subr.bf16.mxu0 0
    %4510 = vmatpush1.bf16.msra.mxu0 %v153
    %4511 = vmatprep.subr.bf16.mxu0 0
    %4512 = vmatpush1.bf16.msra.mxu0 %v152
    %4513 = vmatprep.subr.bf16.mxu0 0
    %4514 = vmatpush1.bf16.msra.mxu0 %v151
    %4515 = vmatprep.subr.bf16.mxu0 0
    %4516 = vmatpush2.bf16.msra.mxu0 0
    %4517 = vmatprep.subr.bf16.mxu0 0
    %4518 = vmatpush2.bf16.msra.mxu0 0
    %4519 = vmatprep.subr.bf16.mxu0 0
    %4520 = vmatpush2.bf16.msra.mxu0 0
    %4521 = vmatprep.subr.bf16.mxu0 0
    %4522 = vmatpush2.bf16.msra.mxu0 0
    %4523 = vmatprep.subr.bf16.mxu0 0
    %4524 = vmatpush2.bf16.msra.mxu0 0
    %4525 = vmatprep.subr.bf16.mxu0 0
    %4526 = vmatpush2.bf16.msra.mxu0 0
    %4527 = vmatprep.subr.bf16.mxu0 0
    %4528 = vmatpush2.bf16.msra.mxu0 0
    %4529 = vmatprep.subr.bf16.mxu0 0
    %4530 = vmatpush2.bf16.msra.mxu0 0
    %4531 = vmatprep.mubr.bf16.mxu0 0
    %4532 = vmatmul.mubr.bf16.gmra.mxu0 %v4498
    %v4533 = vpop.f32.mrf.mxu0
    %v4534 = vadd.f32 0.0, %v4533
    %v4535 = vpop.f32.mrf.mxu0
    %v4536 = vpop.f32.mrf.mxu0
    %v4537 = vpop.f32.mrf.mxu0
    %4538 = vdwg.mxu0
    %v4539 = vtanh.pop %v4534
    %v4540 = vadd.f32 %v4493, %v4539
    %v4541 = vpack.c.bf16 %v4540, %v4540
    %4542 = vmatprep.subr.bf16.mxu0 0
    %4543 = vmatpush1.bf16.msra.mxu0 %v249
    %4544 = vmatprep.subr.bf16.mxu0 0
    %4545 = vmatpush1.bf16.msra.mxu0 %v248
    %4546 = vmatprep.subr.bf16.mxu0 0
    %4547 = vmatpush1.bf16.msra.mxu0 %v247
    %4548 = vmatprep.subr.bf16.mxu0 0
    %4549 = vmatpush1.bf16.msra.mxu0 %v246
    %4550 = vmatprep.subr.bf16.mxu0 0
    %4551 = vmatpush1.bf16.msra.mxu0 %v245
    %4552 = vmatprep.subr.bf16.mxu0 0
    %4553 = vmatpush1.bf16.msra.mxu0 %v244
    %4554 = vmatprep.subr.bf16.mxu0 0
    %4555 = vmatpush1.bf16.msra.mxu0 %v243
    %4556 = vmatprep.subr.bf16.mxu0 0
    %4557 = vmatpush1.bf16.msra.mxu0 %v242
    %4558 = vmatprep.subr.bf16.mxu0 0
    %4559 = vmatpush2.bf16.msra.mxu0 0
    %4560 = vmatprep.subr.bf16.mxu0 0
    %4561 = vmatpush2.bf16.msra.mxu0 0
    %4562 = vmatprep.subr.bf16.mxu0 0
    %4563 = vmatpush2.bf16.msra.mxu0 0
    %4564 = vmatprep.subr.bf16.mxu0 0
    %4565 = vmatpush2.bf16.msra.mxu0 0
    %4566 = vmatprep.subr.bf16.mxu0 0
    %4567 = vmatpush2.bf16.msra.mxu0 0
    %4568 = vmatprep.subr.bf16.mxu0 0
    %4569 = vmatpush2.bf16.msra.mxu0 0
    %4570 = vmatprep.subr.bf16.mxu0 0
    %4571 = vmatpush2.bf16.msra.mxu0 0
    %4572 = vmatprep.subr.bf16.mxu0 0
    %4573 = vmatpush2.bf16.msra.mxu0 0
    %4574 = vmatprep.mubr.bf16.mxu0 0
    %4575 = vmatmul.mubr.bf16.gmra.mxu0 %v4541
    %v4576 = vpop.f32.mrf.mxu0
    %v4577 = vadd.f32 0.0, %v4576
    %v4578 = vpop.f32.mrf.mxu0
    %v4579 = vpop.f32.mrf.mxu0
    %v4580 = vpop.f32.mrf.mxu0
    %4581 = vdwg.mxu0
    %v4582 = vpack.c.bf16 %v4577, %v4577
    %4583 = vmatprep.subr.bf16.mxu0 0
    %4584 = vmatpush1.bf16.msra.mxu0 %v158
    %4585 = vmatprep.subr.bf16.mxu0 0
    %4586 = vmatpush1.bf16.msra.mxu0 %v157
    %4587 = vmatprep.subr.bf16.mxu0 0
    %4588 = vmatpush1.bf16.msra.mxu0 %v156
    %4589 = vmatprep.subr.bf16.mxu0 0
    %4590 = vmatpush1.bf16.msra.mxu0 %v155
    %4591 = vmatprep.subr.bf16.mxu0 0
    %4592 = vmatpush1.bf16.msra.mxu0 %v154
    %4593 = vmatprep.subr.bf16.mxu0 0
    %4594 = vmatpush1.bf16.msra.mxu0 %v153
    %4595 = vmatprep.subr.bf16.mxu0 0
    %4596 = vmatpush1.bf16.msra.mxu0 %v152
    %4597 = vmatprep.subr.bf16.mxu0 0
    %4598 = vmatpush1.bf16.msra.mxu0 %v151
    %4599 = vmatprep.subr.bf16.mxu0 0
    %4600 = vmatpush2.bf16.msra.mxu0 0
    %4601 = vmatprep.subr.bf16.mxu0 0
    %4602 = vmatpush2.bf16.msra.mxu0 0
    %4603 = vmatprep.subr.bf16.mxu0 0
    %4604 = vmatpush2.bf16.msra.mxu0 0
    %4605 = vmatprep.subr.bf16.mxu0 0
    %4606 = vmatpush2.bf16.msra.mxu0 0
    %4607 = vmatprep.subr.bf16.mxu0 0
    %4608 = vmatpush2.bf16.msra.mxu0 0
    %4609 = vmatprep.subr.bf16.mxu0 0
    %4610 = vmatpush2.bf16.msra.mxu0 0
    %4611 = vmatprep.subr.bf16.mxu0 0
    %4612 = vmatpush2.bf16.msra.mxu0 0
    %4613 = vmatprep.subr.bf16.mxu0 0
    %4614 = vmatpush2.bf16.msra.mxu0 0
    %4615 = vmatprep.mubr.bf16.mxu0 0
    %4616 = vmatmul.mubr.bf16.gmra.mxu0 %v4582
    %v4617 = vpop.f32.mrf.mxu0
    %v4618 = vadd.f32 0.0, %v4617
    %v4619 = vpop.f32.mrf.mxu0
    %v4620 = vpop.f32.mrf.mxu0
    %v4621 = vpop.f32.mrf.mxu0
    %4622 = vdwg.mxu0
    %v4623 = vtanh.pop %v4618
    %v4624 = vadd.f32 %v4577, %v4623
    %v4625 = vpack.c.bf16 %v4624, %v4624
    %4626 = vmatprep.subr.bf16.mxu0 0
    %4627 = vmatpush1.bf16.msra.mxu0 %v249
    %4628 = vmatprep.subr.bf16.mxu0 0
    %4629 = vmatpush1.bf16.msra.mxu0 %v248
    %4630 = vmatprep.subr.bf16.mxu0 0
    %4631 = vmatpush1.bf16.msra.mxu0 %v247
    %4632 = vmatprep.subr.bf16.mxu0 0
    %4633 = vmatpush1.bf16.msra.mxu0 %v246
    %4634 = vmatprep.subr.bf16.mxu0 0
    %4635 = vmatpush1.bf16.msra.mxu0 %v245
    %4636 = vmatprep.subr.bf16.mxu0 0
    %4637 = vmatpush1.bf16.msra.mxu0 %v244
    %4638 = vmatprep.subr.bf16.mxu0 0
    %4639 = vmatpush1.bf16.msra.mxu0 %v243
    %4640 = vmatprep.subr.bf16.mxu0 0
    %4641 = vmatpush1.bf16.msra.mxu0 %v242
    %4642 = vmatprep.subr.bf16.mxu0 0
    %4643 = vmatpush2.bf16.msra.mxu0 0
    %4644 = vmatprep.subr.bf16.mxu0 0
    %4645 = vmatpush2.bf16.msra.mxu0 0
    %4646 = vmatprep.subr.bf16.mxu0 0
    %4647 = vmatpush2.bf16.msra.mxu0 0
    %4648 = vmatprep.subr.bf16.mxu0 0
    %4649 = vmatpush2.bf16.msra.mxu0 0
    %4650 = vmatprep.subr.bf16.mxu0 0
    %4651 = vmatpush2.bf16.msra.mxu0 0
    %4652 = vmatprep.subr.bf16.mxu0 0
    %4653 = vmatpush2.bf16.msra.mxu0 0
    %4654 = vmatprep.subr.bf16.mxu0 0
    %4655 = vmatpush2.bf16.msra.mxu0 0
    %4656 = vmatprep.subr.bf16.mxu0 0
    %4657 = vmatpush2.bf16.msra.mxu0 0
    %4658 = vmatprep.mubr.bf16.mxu0 0
    %4659 = vmatmul.mubr.bf16.gmra.mxu0 %v4625
    %v4660 = vpop.f32.mrf.mxu0
    %v4661 = vadd.f32 0.0, %v4660
    %v4662 = vpop.f32.mrf.mxu0
    %v4663 = vpop.f32.mrf.mxu0
    %v4664 = vpop.f32.mrf.mxu0
    %4665 = vdwg.mxu0
    %v4666 = vpack.c.bf16 %v4661, %v4661
    %4667 = vmatprep.subr.bf16.mxu0 0
    %4668 = vmatpush1.bf16.msra.mxu0 %v158
    %4669 = vmatprep.subr.bf16.mxu0 0
    %4670 = vmatpush1.bf16.msra.mxu0 %v157
    %4671 = vmatprep.subr.bf16.mxu0 0
    %4672 = vmatpush1.bf16.msra.mxu0 %v156
    %4673 = vmatprep.subr.bf16.mxu0 0
    %4674 = vmatpush1.bf16.msra.mxu0 %v155
    %4675 = vmatprep.subr.bf16.mxu0 0
    %4676 = vmatpush1.bf16.msra.mxu0 %v154
    %4677 = vmatprep.subr.bf16.mxu0 0
    %4678 = vmatpush1.bf16.msra.mxu0 %v153
    %4679 = vmatprep.subr.bf16.mxu0 0
    %4680 = vmatpush1.bf16.msra.mxu0 %v152
    %4681 = vmatprep.subr.bf16.mxu0 0
    %4682 = vmatpush1.bf16.msra.mxu0 %v151
    %4683 = vmatprep.subr.bf16.mxu0 0
    %4684 = vmatpush2.bf16.msra.mxu0 0
    %4685 = vmatprep.subr.bf16.mxu0 0
    %4686 = vmatpush2.bf16.msra.mxu0 0
    %4687 = vmatprep.subr.bf16.mxu0 0
    %4688 = vmatpush2.bf16.msra.mxu0 0
    %4689 = vmatprep.subr.bf16.mxu0 0
    %4690 = vmatpush2.bf16.msra.mxu0 0
    %4691 = vmatprep.subr.bf16.mxu0 0
    %4692 = vmatpush2.bf16.msra.mxu0 0
    %4693 = vmatprep.subr.bf16.mxu0 0
    %4694 = vmatpush2.bf16.msra.mxu0 0
    %4695 = vmatprep.subr.bf16.mxu0 0
    %4696 = vmatpush2.bf16.msra.mxu0 0
    %4697 = vmatprep.subr.bf16.mxu0 0
    %4698 = vmatpush2.bf16.msra.mxu0 0
    %4699 = vmatprep.mubr.bf16.mxu0 0
    %4700 = vmatmul.mubr.bf16.gmra.mxu0 %v4666
    %v4701 = vpop.f32.mrf.mxu0
    %v4702 = vadd.f32 0.0, %v4701
    %v4703 = vpop.f32.mrf.mxu0
    %v4704 = vpop.f32.mrf.mxu0
    %v4705 = vpop.f32.mrf.mxu0
    %4706 = vdwg.mxu0
    %v4707 = vtanh.pop %v4702
    %v4708 = vadd.f32 %v4661, %v4707
    %v4709 = vpack.c.bf16 %v4708, %v4708
    %4710 = vmatprep.subr.bf16.mxu0 0
    %4711 = vmatpush1.bf16.msra.mxu0 %v249
    %4712 = vmatprep.subr.bf16.mxu0 0
    %4713 = vmatpush1.bf16.msra.mxu0 %v248
    %4714 = vmatprep.subr.bf16.mxu0 0
    %4715 = vmatpush1.bf16.msra.mxu0 %v247
    %4716 = vmatprep.subr.bf16.mxu0 0
    %4717 = vmatpush1.bf16.msra.mxu0 %v246
    %4718 = vmatprep.subr.bf16.mxu0 0
    %4719 = vmatpush1.bf16.msra.mxu0 %v245
    %4720 = vmatprep.subr.bf16.mxu0 0
    %4721 = vmatpush1.bf16.msra.mxu0 %v244
    %4722 = vmatprep.subr.bf16.mxu0 0
    %4723 = vmatpush1.bf16.msra.mxu0 %v243
    %4724 = vmatprep.subr.bf16.mxu0 0
    %4725 = vmatpush1.bf16.msra.mxu0 %v242
    %4726 = vmatprep.subr.bf16.mxu0 0
    %4727 = vmatpush2.bf16.msra.mxu0 0
    %4728 = vmatprep.subr.bf16.mxu0 0
    %4729 = vmatpush2.bf16.msra.mxu0 0
    %4730 = vmatprep.subr.bf16.mxu0 0
    %4731 = vmatpush2.bf16.msra.mxu0 0
    %4732 = vmatprep.subr.bf16.mxu0 0
    %4733 = vmatpush2.bf16.msra.mxu0 0
    %4734 = vmatprep.subr.bf16.mxu0 0
    %4735 = vmatpush2.bf16.msra.mxu0 0
    %4736 = vmatprep.subr.bf16.mxu0 0
    %4737 = vmatpush2.bf16.msra.mxu0 0
    %4738 = vmatprep.subr.bf16.mxu0 0
    %4739 = vmatpush2.bf16.msra.mxu0 0
    %4740 = vmatprep.subr.bf16.mxu0 0
    %4741 = vmatpush2.bf16.msra.mxu0 0
    %4742 = vmatprep.mubr.bf16.mxu0 0
    %4743 = vmatmul.mubr.bf16.gmra.mxu0 %v4709
    %v4744 = vpop.f32.mrf.mxu0
    %v4745 = vadd.f32 0.0, %v4744
    %v4746 = vpop.f32.mrf.mxu0
    %v4747 = vpop.f32.mrf.mxu0
    %v4748 = vpop.f32.mrf.mxu0
    %4749 = vdwg.mxu0
    %v4750 = vpack.c.bf16 %v4745, %v4745
    %4751 = vmatprep.subr.bf16.mxu0 0
    %4752 = vmatpush1.bf16.msra.mxu0 %v158
    %4753 = vmatprep.subr.bf16.mxu0 0
    %4754 = vmatpush1.bf16.msra.mxu0 %v157
    %4755 = vmatprep.subr.bf16.mxu0 0
    %4756 = vmatpush1.bf16.msra.mxu0 %v156
    %4757 = vmatprep.subr.bf16.mxu0 0
    %4758 = vmatpush1.bf16.msra.mxu0 %v155
    %4759 = vmatprep.subr.bf16.mxu0 0
    %4760 = vmatpush1.bf16.msra.mxu0 %v154
    %4761 = vmatprep.subr.bf16.mxu0 0
    %4762 = vmatpush1.bf16.msra.mxu0 %v153
    %4763 = vmatprep.subr.bf16.mxu0 0
    %4764 = vmatpush1.bf16.msra.mxu0 %v152
    %4765 = vmatprep.subr.bf16.mxu0 0
    %4766 = vmatpush1.bf16.msra.mxu0 %v151
    %4767 = vmatprep.subr.bf16.mxu0 0
    %4768 = vmatpush2.bf16.msra.mxu0 0
    %4769 = vmatprep.subr.bf16.mxu0 0
    %4770 = vmatpush2.bf16.msra.mxu0 0
    %4771 = vmatprep.subr.bf16.mxu0 0
    %4772 = vmatpush2.bf16.msra.mxu0 0
    %4773 = vmatprep.subr.bf16.mxu0 0
    %4774 = vmatpush2.bf16.msra.mxu0 0
    %4775 = vmatprep.subr.bf16.mxu0 0
    %4776 = vmatpush2.bf16.msra.mxu0 0
    %4777 = vmatprep.subr.bf16.mxu0 0
    %4778 = vmatpush2.bf16.msra.mxu0 0
    %4779 = vmatprep.subr.bf16.mxu0 0
    %4780 = vmatpush2.bf16.msra.mxu0 0
    %4781 = vmatprep.subr.bf16.mxu0 0
    %4782 = vmatpush2.bf16.msra.mxu0 0
    %4783 = vmatprep.mubr.bf16.mxu0 0
    %4784 = vmatmul.mubr.bf16.gmra.mxu0 %v4750
    %v4785 = vpop.f32.mrf.mxu0
    %v4786 = vadd.f32 0.0, %v4785
    %v4787 = vpop.f32.mrf.mxu0
    %v4788 = vpop.f32.mrf.mxu0
    %v4789 = vpop.f32.mrf.mxu0
    %4790 = vdwg.mxu0
    %v4791 = vtanh.pop %v4786
    %v4792 = vadd.f32 %v4745, %v4791
    %v4793 = vpack.c.bf16 %v4792, %v4792
    %4794 = vmatprep.subr.bf16.mxu0 0
    %4795 = vmatpush1.bf16.msra.mxu0 %v249
    %4796 = vmatprep.subr.bf16.mxu0 0
    %4797 = vmatpush1.bf16.msra.mxu0 %v248
    %4798 = vmatprep.subr.bf16.mxu0 0
    %4799 = vmatpush1.bf16.msra.mxu0 %v247
    %4800 = vmatprep.subr.bf16.mxu0 0
    %4801 = vmatpush1.bf16.msra.mxu0 %v246
    %4802 = vmatprep.subr.bf16.mxu0 0
    %4803 = vmatpush1.bf16.msra.mxu0 %v245
    %4804 = vmatprep.subr.bf16.mxu0 0
    %4805 = vmatpush1.bf16.msra.mxu0 %v244
    %4806 = vmatprep.subr.bf16.mxu0 0
    %4807 = vmatpush1.bf16.msra.mxu0 %v243
    %4808 = vmatprep.subr.bf16.mxu0 0
    %4809 = vmatpush1.bf16.msra.mxu0 %v242
    %4810 = vmatprep.subr.bf16.mxu0 0
    %4811 = vmatpush2.bf16.msra.mxu0 0
    %4812 = vmatprep.subr.bf16.mxu0 0
    %4813 = vmatpush2.bf16.msra.mxu0 0
    %4814 = vmatprep.subr.bf16.mxu0 0
    %4815 = vmatpush2.bf16.msra.mxu0 0
    %4816 = vmatprep.subr.bf16.mxu0 0
    %4817 = vmatpush2.bf16.msra.mxu0 0
    %4818 = vmatprep.subr.bf16.mxu0 0
    %4819 = vmatpush2.bf16.msra.mxu0 0
    %4820 = vmatprep.subr.bf16.mxu0 0
    %4821 = vmatpush2.bf16.msra.mxu0 0
    %4822 = vmatprep.subr.bf16.mxu0 0
    %4823 = vmatpush2.bf16.msra.mxu0 0
    %4824 = vmatprep.subr.bf16.mxu0 0
    %4825 = vmatpush2.bf16.msra.mxu0 0
    %4826 = vmatprep.mubr.bf16.mxu0 0
    %4827 = vmatmul.mubr.bf16.gmra.mxu0 %v4793
    %v4828 = vpop.f32.mrf.mxu0
    %v4829 = vadd.f32 0.0, %v4828
    %v4830 = vpop.f32.mrf.mxu0
    %v4831 = vpop.f32.mrf.mxu0
    %v4832 = vpop.f32.mrf.mxu0
    %4833 = vdwg.mxu0
    %v4834 = vpack.c.bf16 %v4829, %v4829
    %4835 = vmatprep.subr.bf16.mxu0 0
    %4836 = vmatpush1.bf16.msra.mxu0 %v158
    %4837 = vmatprep.subr.bf16.mxu0 0
    %4838 = vmatpush1.bf16.msra.mxu0 %v157
    %4839 = vmatprep.subr.bf16.mxu0 0
    %4840 = vmatpush1.bf16.msra.mxu0 %v156
    %4841 = vmatprep.subr.bf16.mxu0 0
    %4842 = vmatpush1.bf16.msra.mxu0 %v155
    %4843 = vmatprep.subr.bf16.mxu0 0
    %4844 = vmatpush1.bf16.msra.mxu0 %v154
    %4845 = vmatprep.subr.bf16.mxu0 0
    %4846 = vmatpush1.bf16.msra.mxu0 %v153
    %4847 = vmatprep.subr.bf16.mxu0 0
    %4848 = vmatpush1.bf16.msra.mxu0 %v152
    %4849 = vmatprep.subr.bf16.mxu0 0
    %4850 = vmatpush1.bf16.msra.mxu0 %v151
    %4851 = vmatprep.subr.bf16.mxu0 0
    %4852 = vmatpush2.bf16.msra.mxu0 0
    %4853 = vmatprep.subr.bf16.mxu0 0
    %4854 = vmatpush2.bf16.msra.mxu0 0
    %4855 = vmatprep.subr.bf16.mxu0 0
    %4856 = vmatpush2.bf16.msra.mxu0 0
    %4857 = vmatprep.subr.bf16.mxu0 0
    %4858 = vmatpush2.bf16.msra.mxu0 0
    %4859 = vmatprep.subr.bf16.mxu0 0
    %4860 = vmatpush2.bf16.msra.mxu0 0
    %4861 = vmatprep.subr.bf16.mxu0 0
    %4862 = vmatpush2.bf16.msra.mxu0 0
    %4863 = vmatprep.subr.bf16.mxu0 0
    %4864 = vmatpush2.bf16.msra.mxu0 0
    %4865 = vmatprep.subr.bf16.mxu0 0
    %4866 = vmatpush2.bf16.msra.mxu0 0
    %4867 = vmatprep.mubr.bf16.mxu0 0
    %4868 = vmatmul.mubr.bf16.gmra.mxu0 %v4834
    %v4869 = vpop.f32.mrf.mxu0
    %v4870 = vadd.f32 0.0, %v4869
    %v4871 = vpop.f32.mrf.mxu0
    %v4872 = vpop.f32.mrf.mxu0
    %v4873 = vpop.f32.mrf.mxu0
    %4874 = vdwg.mxu0
    %v4875 = vtanh.pop %v4870
    %v4876 = vadd.f32 %v4829, %v4875
    %v4877 = vpack.c.bf16 %v4876, %v4876
    %4878 = vmatprep.subr.bf16.mxu0 0
    %4879 = vmatpush1.bf16.msra.mxu0 %v249
    %4880 = vmatprep.subr.bf16.mxu0 0
    %4881 = vmatpush1.bf16.msra.mxu0 %v248
    %4882 = vmatprep.subr.bf16.mxu0 0
    %4883 = vmatpush1.bf16.msra.mxu0 %v247
    %4884 = vmatprep.subr.bf16.mxu0 0
    %4885 = vmatpush1.bf16.msra.mxu0 %v246
    %4886 = vmatprep.subr.bf16.mxu0 0
    %4887 = vmatpush1.bf16.msra.mxu0 %v245
    %4888 = vmatprep.subr.bf16.mxu0 0
    %4889 = vmatpush1.bf16.msra.mxu0 %v244
    %4890 = vmatprep.subr.bf16.mxu0 0
    %4891 = vmatpush1.bf16.msra.mxu0 %v243
    %4892 = vmatprep.subr.bf16.mxu0 0
    %4893 = vmatpush1.bf16.msra.mxu0 %v242
    %4894 = vmatprep.subr.bf16.mxu0 0
    %4895 = vmatpush2.bf16.msra.mxu0 0
    %4896 = vmatprep.subr.bf16.mxu0 0
    %4897 = vmatpush2.bf16.msra.mxu0 0
    %4898 = vmatprep.subr.bf16.mxu0 0
    %4899 = vmatpush2.bf16.msra.mxu0 0
    %4900 = vmatprep.subr.bf16.mxu0 0
    %4901 = vmatpush2.bf16.msra.mxu0 0
    %4902 = vmatprep.subr.bf16.mxu0 0
    %4903 = vmatpush2.bf16.msra.mxu0 0
    %4904 = vmatprep.subr.bf16.mxu0 0
    %4905 = vmatpush2.bf16.msra.mxu0 0
    %4906 = vmatprep.subr.bf16.mxu0 0
    %4907 = vmatpush2.bf16.msra.mxu0 0
    %4908 = vmatprep.subr.bf16.mxu0 0
    %4909 = vmatpush2.bf16.msra.mxu0 0
    %4910 = vmatprep.mubr.bf16.mxu0 0
    %4911 = vmatmul.mubr.bf16.gmra.mxu0 %v4877
    %v4912 = vpop.f32.mrf.mxu0
    %v4913 = vadd.f32 0.0, %v4912
    %v4914 = vpop.f32.mrf.mxu0
    %v4915 = vpop.f32.mrf.mxu0
    %v4916 = vpop.f32.mrf.mxu0
    %4917 = vdwg.mxu0
    %v4918 = vpack.c.bf16 %v4913, %v4913
    %4919 = vmatprep.subr.bf16.mxu0 0
    %4920 = vmatpush1.bf16.msra.mxu0 %v158
    %4921 = vmatprep.subr.bf16.mxu0 0
    %4922 = vmatpush1.bf16.msra.mxu0 %v157
    %4923 = vmatprep.subr.bf16.mxu0 0
    %4924 = vmatpush1.bf16.msra.mxu0 %v156
    %4925 = vmatprep.subr.bf16.mxu0 0
    %4926 = vmatpush1.bf16.msra.mxu0 %v155
    %4927 = vmatprep.subr.bf16.mxu0 0
    %4928 = vmatpush1.bf16.msra.mxu0 %v154
    %4929 = vmatprep.subr.bf16.mxu0 0
    %4930 = vmatpush1.bf16.msra.mxu0 %v153
    %4931 = vmatprep.subr.bf16.mxu0 0
    %4932 = vmatpush1.bf16.msra.mxu0 %v152
    %4933 = vmatprep.subr.bf16.mxu0 0
    %4934 = vmatpush1.bf16.msra.mxu0 %v151
    %4935 = vmatprep.subr.bf16.mxu0 0
    %4936 = vmatpush2.bf16.msra.mxu0 0
    %4937 = vmatprep.subr.bf16.mxu0 0
    %4938 = vmatpush2.bf16.msra.mxu0 0
    %4939 = vmatprep.subr.bf16.mxu0 0
    %4940 = vmatpush2.bf16.msra.mxu0 0
    %4941 = vmatprep.subr.bf16.mxu0 0
    %4942 = vmatpush2.bf16.msra.mxu0 0
    %4943 = vmatprep.subr.bf16.mxu0 0
    %4944 = vmatpush2.bf16.msra.mxu0 0
    %4945 = vmatprep.subr.bf16.mxu0 0
    %4946 = vmatpush2.bf16.msra.mxu0 0
    %4947 = vmatprep.subr.bf16.mxu0 0
    %4948 = vmatpush2.bf16.msra.mxu0 0
    %4949 = vmatprep.subr.bf16.mxu0 0
    %4950 = vmatpush2.bf16.msra.mxu0 0
    %4951 = vmatprep.mubr.bf16.mxu0 0
    %4952 = vmatmul.mubr.bf16.gmra.mxu0 %v4918
    %v4953 = vpop.f32.mrf.mxu0
    %v4954 = vadd.f32 0.0, %v4953
    %v4955 = vpop.f32.mrf.mxu0
    %v4956 = vpop.f32.mrf.mxu0
    %v4957 = vpop.f32.mrf.mxu0
    %4958 = vdwg.mxu0
    %v4959 = vtanh.pop %v4954
    %v4960 = vadd.f32 %v4913, %v4959
    %v4961 = vpack.c.bf16 %v4960, %v4960
    %4962 = vmatprep.subr.bf16.mxu0 0
    %4963 = vmatpush1.bf16.msra.mxu0 %v249
    %4964 = vmatprep.subr.bf16.mxu0 0
    %4965 = vmatpush1.bf16.msra.mxu0 %v248
    %4966 = vmatprep.subr.bf16.mxu0 0
    %4967 = vmatpush1.bf16.msra.mxu0 %v247
    %4968 = vmatprep.subr.bf16.mxu0 0
    %4969 = vmatpush1.bf16.msra.mxu0 %v246
    %4970 = vmatprep.subr.bf16.mxu0 0
    %4971 = vmatpush1.bf16.msra.mxu0 %v245
    %4972 = vmatprep.subr.bf16.mxu0 0
    %4973 = vmatpush1.bf16.msra.mxu0 %v244
    %4974 = vmatprep.subr.bf16.mxu0 0
    %4975 = vmatpush1.bf16.msra.mxu0 %v243
    %4976 = vmatprep.subr.bf16.mxu0 0
    %4977 = vmatpush1.bf16.msra.mxu0 %v242
    %4978 = vmatprep.subr.bf16.mxu0 0
    %4979 = vmatpush2.bf16.msra.mxu0 0
    %4980 = vmatprep.subr.bf16.mxu0 0
    %4981 = vmatpush2.bf16.msra.mxu0 0
    %4982 = vmatprep.subr.bf16.mxu0 0
    %4983 = vmatpush2.bf16.msra.mxu0 0
    %4984 = vmatprep.subr.bf16.mxu0 0
    %4985 = vmatpush2.bf16.msra.mxu0 0
    %4986 = vmatprep.subr.bf16.mxu0 0
    %4987 = vmatpush2.bf16.msra.mxu0 0
    %4988 = vmatprep.subr.bf16.mxu0 0
    %4989 = vmatpush2.bf16.msra.mxu0 0
    %4990 = vmatprep.subr.bf16.mxu0 0
    %4991 = vmatpush2.bf16.msra.mxu0 0
    %4992 = vmatprep.subr.bf16.mxu0 0
    %4993 = vmatpush2.bf16.msra.mxu0 0
    %4994 = vmatprep.mubr.bf16.mxu0 0
    %4995 = vmatmul.mubr.bf16.gmra.mxu0 %v4961
    %v4996 = vpop.f32.mrf.mxu0
    %v4997 = vadd.f32 0.0, %v4996
    %v4998 = vpop.f32.mrf.mxu0
    %v4999 = vpop.f32.mrf.mxu0
    %v5000 = vpop.f32.mrf.mxu0
    %5001 = vdwg.mxu0
    %v5002 = vpack.c.bf16 %v4997, %v4997
    %5003 = vmatprep.subr.bf16.mxu0 0
    %5004 = vmatpush1.bf16.msra.mxu0 %v158
    %5005 = vmatprep.subr.bf16.mxu0 0
    %5006 = vmatpush1.bf16.msra.mxu0 %v157
    %5007 = vmatprep.subr.bf16.mxu0 0
    %5008 = vmatpush1.bf16.msra.mxu0 %v156
    %5009 = vmatprep.subr.bf16.mxu0 0
    %5010 = vmatpush1.bf16.msra.mxu0 %v155
    %5011 = vmatprep.subr.bf16.mxu0 0
    %5012 = vmatpush1.bf16.msra.mxu0 %v154
    %5013 = vmatprep.subr.bf16.mxu0 0
    %5014 = vmatpush1.bf16.msra.mxu0 %v153
    %5015 = vmatprep.subr.bf16.mxu0 0
    %5016 = vmatpush1.bf16.msra.mxu0 %v152
    %5017 = vmatprep.subr.bf16.mxu0 0
    %5018 = vmatpush1.bf16.msra.mxu0 %v151
    %5019 = vmatprep.subr.bf16.mxu0 0
    %5020 = vmatpush2.bf16.msra.mxu0 0
    %5021 = vmatprep.subr.bf16.mxu0 0
    %5022 = vmatpush2.bf16.msra.mxu0 0
    %5023 = vmatprep.subr.bf16.mxu0 0
    %5024 = vmatpush2.bf16.msra.mxu0 0
    %5025 = vmatprep.subr.bf16.mxu0 0
    %5026 = vmatpush2.bf16.msra.mxu0 0
    %5027 = vmatprep.subr.bf16.mxu0 0
    %5028 = vmatpush2.bf16.msra.mxu0 0
    %5029 = vmatprep.subr.bf16.mxu0 0
    %5030 = vmatpush2.bf16.msra.mxu0 0
    %5031 = vmatprep.subr.bf16.mxu0 0
    %5032 = vmatpush2.bf16.msra.mxu0 0
    %5033 = vmatprep.subr.bf16.mxu0 0
    %5034 = vmatpush2.bf16.msra.mxu0 0
    %5035 = vmatprep.mubr.bf16.mxu0 0
    %5036 = vmatmul.mubr.bf16.gmra.mxu0 %v5002
    %v5037 = vpop.f32.mrf.mxu0
    %v5038 = vadd.f32 0.0, %v5037
    %v5039 = vpop.f32.mrf.mxu0
    %v5040 = vpop.f32.mrf.mxu0
    %v5041 = vpop.f32.mrf.mxu0
    %5042 = vdwg.mxu0
    %v5043 = vtanh.pop %v5038
    %v5044 = vadd.f32 %v4997, %v5043
    %v5045 = vpack.c.bf16 %v5044, %v5044
    %5046 = vmatprep.subr.bf16.mxu0 0
    %5047 = vmatpush1.bf16.msra.mxu0 %v249
    %5048 = vmatprep.subr.bf16.mxu0 0
    %5049 = vmatpush1.bf16.msra.mxu0 %v248
    %5050 = vmatprep.subr.bf16.mxu0 0
    %5051 = vmatpush1.bf16.msra.mxu0 %v247
    %5052 = vmatprep.subr.bf16.mxu0 0
    %5053 = vmatpush1.bf16.msra.mxu0 %v246
    %5054 = vmatprep.subr.bf16.mxu0 0
    %5055 = vmatpush1.bf16.msra.mxu0 %v245
    %5056 = vmatprep.subr.bf16.mxu0 0
    %5057 = vmatpush1.bf16.msra.mxu0 %v244
    %5058 = vmatprep.subr.bf16.mxu0 0
    %5059 = vmatpush1.bf16.msra.mxu0 %v243
    %5060 = vmatprep.subr.bf16.mxu0 0
    %5061 = vmatpush1.bf16.msra.mxu0 %v242
    %5062 = vmatprep.subr.bf16.mxu0 0
    %5063 = vmatpush2.bf16.msra.mxu0 0
    %5064 = vmatprep.subr.bf16.mxu0 0
    %5065 = vmatpush2.bf16.msra.mxu0 0
    %5066 = vmatprep.subr.bf16.mxu0 0
    %5067 = vmatpush2.bf16.msra.mxu0 0
    %5068 = vmatprep.subr.bf16.mxu0 0
    %5069 = vmatpush2.bf16.msra.mxu0 0
    %5070 = vmatprep.subr.bf16.mxu0 0
    %5071 = vmatpush2.bf16.msra.mxu0 0
    %5072 = vmatprep.subr.bf16.mxu0 0
    %5073 = vmatpush2.bf16.msra.mxu0 0
    %5074 = vmatprep.subr.bf16.mxu0 0
    %5075 = vmatpush2.bf16.msra.mxu0 0
    %5076 = vmatprep.subr.bf16.mxu0 0
    %5077 = vmatpush2.bf16.msra.mxu0 0
    %5078 = vmatprep.mubr.bf16.mxu0 0
    %5079 = vmatmul.mubr.bf16.gmra.mxu0 %v5045
    %v5080 = vpop.f32.mrf.mxu0
    %v5081 = vadd.f32 0.0, %v5080
    %v5082 = vpop.f32.mrf.mxu0
    %v5083 = vpop.f32.mrf.mxu0
    %v5084 = vpop.f32.mrf.mxu0
    %5085 = vdwg.mxu0
    %v5086 = vpack.c.bf16 %v5081, %v5081
    %5087 = vmatprep.subr.bf16.mxu0 0
    %5088 = vmatpush1.bf16.msra.mxu0 %v158
    %5089 = vmatprep.subr.bf16.mxu0 0
    %5090 = vmatpush1.bf16.msra.mxu0 %v157
    %5091 = vmatprep.subr.bf16.mxu0 0
    %5092 = vmatpush1.bf16.msra.mxu0 %v156
    %5093 = vmatprep.subr.bf16.mxu0 0
    %5094 = vmatpush1.bf16.msra.mxu0 %v155
    %5095 = vmatprep.subr.bf16.mxu0 0
    %5096 = vmatpush1.bf16.msra.mxu0 %v154
    %5097 = vmatprep.subr.bf16.mxu0 0
    %5098 = vmatpush1.bf16.msra.mxu0 %v153
    %5099 = vmatprep.subr.bf16.mxu0 0
    %5100 = vmatpush1.bf16.msra.mxu0 %v152
    %5101 = vmatprep.subr.bf16.mxu0 0
    %5102 = vmatpush1.bf16.msra.mxu0 %v151
    %5103 = vmatprep.subr.bf16.mxu0 0
    %5104 = vmatpush2.bf16.msra.mxu0 0
    %5105 = vmatprep.subr.bf16.mxu0 0
    %5106 = vmatpush2.bf16.msra.mxu0 0
    %5107 = vmatprep.subr.bf16.mxu0 0
    %5108 = vmatpush2.bf16.msra.mxu0 0
    %5109 = vmatprep.subr.bf16.mxu0 0
    %5110 = vmatpush2.bf16.msra.mxu0 0
    %5111 = vmatprep.subr.bf16.mxu0 0
    %5112 = vmatpush2.bf16.msra.mxu0 0
    %5113 = vmatprep.subr.bf16.mxu0 0
    %5114 = vmatpush2.bf16.msra.mxu0 0
    %5115 = vmatprep.subr.bf16.mxu0 0
    %5116 = vmatpush2.bf16.msra.mxu0 0
    %5117 = vmatprep.subr.bf16.mxu0 0
    %5118 = vmatpush2.bf16.msra.mxu0 0
    %5119 = vmatprep.mubr.bf16.mxu0 0
    %5120 = vmatmul.mubr.bf16.gmra.mxu0 %v5086
    %v5121 = vpop.f32.mrf.mxu0
    %v5122 = vadd.f32 0.0, %v5121
    %v5123 = vpop.f32.mrf.mxu0
    %v5124 = vpop.f32.mrf.mxu0
    %v5125 = vpop.f32.mrf.mxu0
    %5126 = vdwg.mxu0
    %v5127 = vtanh.pop %v5122
    %v5128 = vadd.f32 %v5081, %v5127
    %v5129 = vpack.c.bf16 %v5128, %v5128
    %5130 = vmatprep.subr.bf16.mxu0 0
    %5131 = vmatpush1.bf16.msra.mxu0 %v249
    %5132 = vmatprep.subr.bf16.mxu0 0
    %5133 = vmatpush1.bf16.msra.mxu0 %v248
    %5134 = vmatprep.subr.bf16.mxu0 0
    %5135 = vmatpush1.bf16.msra.mxu0 %v247
    %5136 = vmatprep.subr.bf16.mxu0 0
    %5137 = vmatpush1.bf16.msra.mxu0 %v246
    %5138 = vmatprep.subr.bf16.mxu0 0
    %5139 = vmatpush1.bf16.msra.mxu0 %v245
    %5140 = vmatprep.subr.bf16.mxu0 0
    %5141 = vmatpush1.bf16.msra.mxu0 %v244
    %5142 = vmatprep.subr.bf16.mxu0 0
    %5143 = vmatpush1.bf16.msra.mxu0 %v243
    %5144 = vmatprep.subr.bf16.mxu0 0
    %5145 = vmatpush1.bf16.msra.mxu0 %v242
    %5146 = vmatprep.subr.bf16.mxu0 0
    %5147 = vmatpush2.bf16.msra.mxu0 0
    %5148 = vmatprep.subr.bf16.mxu0 0
    %5149 = vmatpush2.bf16.msra.mxu0 0
    %5150 = vmatprep.subr.bf16.mxu0 0
    %5151 = vmatpush2.bf16.msra.mxu0 0
    %5152 = vmatprep.subr.bf16.mxu0 0
    %5153 = vmatpush2.bf16.msra.mxu0 0
    %5154 = vmatprep.subr.bf16.mxu0 0
    %5155 = vmatpush2.bf16.msra.mxu0 0
    %5156 = vmatprep.subr.bf16.mxu0 0
    %5157 = vmatpush2.bf16.msra.mxu0 0
    %5158 = vmatprep.subr.bf16.mxu0 0
    %5159 = vmatpush2.bf16.msra.mxu0 0
    %5160 = vmatprep.subr.bf16.mxu0 0
    %5161 = vmatpush2.bf16.msra.mxu0 0
    %5162 = vmatprep.mubr.bf16.mxu0 0
    %5163 = vmatmul.mubr.bf16.gmra.mxu0 %v5129
    %v5164 = vpop.f32.mrf.mxu0
    %v5165 = vadd.f32 0.0, %v5164
    %v5166 = vpop.f32.mrf.mxu0
    %v5167 = vpop.f32.mrf.mxu0
    %v5168 = vpop.f32.mrf.mxu0
    %5169 = vdwg.mxu0
    %v5170 = vpack.c.bf16 %v5165, %v5165
    %5171 = vmatprep.subr.bf16.mxu0 0
    %5172 = vmatpush1.bf16.msra.mxu0 %v158
    %5173 = vmatprep.subr.bf16.mxu0 0
    %5174 = vmatpush1.bf16.msra.mxu0 %v157
    %5175 = vmatprep.subr.bf16.mxu0 0
    %5176 = vmatpush1.bf16.msra.mxu0 %v156
    %5177 = vmatprep.subr.bf16.mxu0 0
    %5178 = vmatpush1.bf16.msra.mxu0 %v155
    %5179 = vmatprep.subr.bf16.mxu0 0
    %5180 = vmatpush1.bf16.msra.mxu0 %v154
    %5181 = vmatprep.subr.bf16.mxu0 0
    %5182 = vmatpush1.bf16.msra.mxu0 %v153
    %5183 = vmatprep.subr.bf16.mxu0 0
    %5184 = vmatpush1.bf16.msra.mxu0 %v152
    %5185 = vmatprep.subr.bf16.mxu0 0
    %5186 = vmatpush1.bf16.msra.mxu0 %v151
    %5187 = vmatprep.subr.bf16.mxu0 0
    %5188 = vmatpush2.bf16.msra.mxu0 0
    %5189 = vmatprep.subr.bf16.mxu0 0
    %5190 = vmatpush2.bf16.msra.mxu0 0
    %5191 = vmatprep.subr.bf16.mxu0 0
    %5192 = vmatpush2.bf16.msra.mxu0 0
    %5193 = vmatprep.subr.bf16.mxu0 0
    %5194 = vmatpush2.bf16.msra.mxu0 0
    %5195 = vmatprep.subr.bf16.mxu0 0
    %5196 = vmatpush2.bf16.msra.mxu0 0
    %5197 = vmatprep.subr.bf16.mxu0 0
    %5198 = vmatpush2.bf16.msra.mxu0 0
    %5199 = vmatprep.subr.bf16.mxu0 0
    %5200 = vmatpush2.bf16.msra.mxu0 0
    %5201 = vmatprep.subr.bf16.mxu0 0
    %5202 = vmatpush2.bf16.msra.mxu0 0
    %5203 = vmatprep.mubr.bf16.mxu0 0
    %5204 = vmatmul.mubr.bf16.gmra.mxu0 %v5170
    %v5205 = vpop.f32.mrf.mxu0
    %v5206 = vadd.f32 0.0, %v5205
    %v5207 = vpop.f32.mrf.mxu0
    %v5208 = vpop.f32.mrf.mxu0
    %v5209 = vpop.f32.mrf.mxu0
    %5210 = vdwg.mxu0
    %v5211 = vtanh.pop %v5206
    %v5212 = vadd.f32 %v5165, %v5211
    %v5213 = vpack.c.bf16 %v5212, %v5212
    %5214 = vmatprep.subr.bf16.mxu0 0
    %5215 = vmatpush1.bf16.msra.mxu0 %v249
    %5216 = vmatprep.subr.bf16.mxu0 0
    %5217 = vmatpush1.bf16.msra.mxu0 %v248
    %5218 = vmatprep.subr.bf16.mxu0 0
    %5219 = vmatpush1.bf16.msra.mxu0 %v247
    %5220 = vmatprep.subr.bf16.mxu0 0
    %5221 = vmatpush1.bf16.msra.mxu0 %v246
    %5222 = vmatprep.subr.bf16.mxu0 0
    %5223 = vmatpush1.bf16.msra.mxu0 %v245
    %5224 = vmatprep.subr.bf16.mxu0 0
    %5225 = vmatpush1.bf16.msra.mxu0 %v244
    %5226 = vmatprep.subr.bf16.mxu0 0
    %5227 = vmatpush1.bf16.msra.mxu0 %v243
    %5228 = vmatprep.subr.bf16.mxu0 0
    %5229 = vmatpush1.bf16.msra.mxu0 %v242
    %5230 = vmatprep.subr.bf16.mxu0 0
    %5231 = vmatpush2.bf16.msra.mxu0 0
    %5232 = vmatprep.subr.bf16.mxu0 0
    %5233 = vmatpush2.bf16.msra.mxu0 0
    %5234 = vmatprep.subr.bf16.mxu0 0
    %5235 = vmatpush2.bf16.msra.mxu0 0
    %5236 = vmatprep.subr.bf16.mxu0 0
    %5237 = vmatpush2.bf16.msra.mxu0 0
    %5238 = vmatprep.subr.bf16.mxu0 0
    %5239 = vmatpush2.bf16.msra.mxu0 0
    %5240 = vmatprep.subr.bf16.mxu0 0
    %5241 = vmatpush2.bf16.msra.mxu0 0
    %5242 = vmatprep.subr.bf16.mxu0 0
    %5243 = vmatpush2.bf16.msra.mxu0 0
    %5244 = vmatprep.subr.bf16.mxu0 0
    %5245 = vmatpush2.bf16.msra.mxu0 0
    %5246 = vmatprep.mubr.bf16.mxu0 0
    %5247 = vmatmul.mubr.bf16.gmra.mxu0 %v5213
    %v5248 = vpop.f32.mrf.mxu0
    %v5249 = vadd.f32 0.0, %v5248
    %v5250 = vpop.f32.mrf.mxu0
    %v5251 = vpop.f32.mrf.mxu0
    %v5252 = vpop.f32.mrf.mxu0
    %5253 = vdwg.mxu0
    %v5254 = vpack.c.bf16 %v5249, %v5249
    %5255 = vmatprep.subr.bf16.mxu0 0
    %5256 = vmatpush1.bf16.msra.mxu0 %v158
    %5257 = vmatprep.subr.bf16.mxu0 0
    %5258 = vmatpush1.bf16.msra.mxu0 %v157
    %5259 = vmatprep.subr.bf16.mxu0 0
    %5260 = vmatpush1.bf16.msra.mxu0 %v156
    %5261 = vmatprep.subr.bf16.mxu0 0
    %5262 = vmatpush1.bf16.msra.mxu0 %v155
    %5263 = vmatprep.subr.bf16.mxu0 0
    %5264 = vmatpush1.bf16.msra.mxu0 %v154
    %5265 = vmatprep.subr.bf16.mxu0 0
    %5266 = vmatpush1.bf16.msra.mxu0 %v153
    %5267 = vmatprep.subr.bf16.mxu0 0
    %5268 = vmatpush1.bf16.msra.mxu0 %v152
    %5269 = vmatprep.subr.bf16.mxu0 0
    %5270 = vmatpush1.bf16.msra.mxu0 %v151
    %5271 = vmatprep.subr.bf16.mxu0 0
    %5272 = vmatpush2.bf16.msra.mxu0 0
    %5273 = vmatprep.subr.bf16.mxu0 0
    %5274 = vmatpush2.bf16.msra.mxu0 0
    %5275 = vmatprep.subr.bf16.mxu0 0
    %5276 = vmatpush2.bf16.msra.mxu0 0
    %5277 = vmatprep.subr.bf16.mxu0 0
    %5278 = vmatpush2.bf16.msra.mxu0 0
    %5279 = vmatprep.subr.bf16.mxu0 0
    %5280 = vmatpush2.bf16.msra.mxu0 0
    %5281 = vmatprep.subr.bf16.mxu0 0
    %5282 = vmatpush2.bf16.msra.mxu0 0
    %5283 = vmatprep.subr.bf16.mxu0 0
    %5284 = vmatpush2.bf16.msra.mxu0 0
    %5285 = vmatprep.subr.bf16.mxu0 0
    %5286 = vmatpush2.bf16.msra.mxu0 0
    %5287 = vmatprep.mubr.bf16.mxu0 0
    %5288 = vmatmul.mubr.bf16.gmra.mxu0 %v5254
    %v5289 = vpop.f32.mrf.mxu0
    %v5290 = vadd.f32 0.0, %v5289
    %v5291 = vpop.f32.mrf.mxu0
    %v5292 = vpop.f32.mrf.mxu0
    %v5293 = vpop.f32.mrf.mxu0
    %5294 = vdwg.mxu0
    %v5295 = vtanh.pop %v5290
    %v5296 = vadd.f32 %v5249, %v5295
    %v5297 = vpack.c.bf16 %v5296, %v5296
    %5298 = vmatprep.subr.bf16.mxu0 0
    %5299 = vmatpush1.bf16.msra.mxu0 %v249
    %5300 = vmatprep.subr.bf16.mxu0 0
    %5301 = vmatpush1.bf16.msra.mxu0 %v248
    %5302 = vmatprep.subr.bf16.mxu0 0
    %5303 = vmatpush1.bf16.msra.mxu0 %v247
    %5304 = vmatprep.subr.bf16.mxu0 0
    %5305 = vmatpush1.bf16.msra.mxu0 %v246
    %5306 = vmatprep.subr.bf16.mxu0 0
    %5307 = vmatpush1.bf16.msra.mxu0 %v245
    %5308 = vmatprep.subr.bf16.mxu0 0
    %5309 = vmatpush1.bf16.msra.mxu0 %v244
    %5310 = vmatprep.subr.bf16.mxu0 0
    %5311 = vmatpush1.bf16.msra.mxu0 %v243
    %5312 = vmatprep.subr.bf16.mxu0 0
    %5313 = vmatpush1.bf16.msra.mxu0 %v242
    %5314 = vmatprep.subr.bf16.mxu0 0
    %5315 = vmatpush2.bf16.msra.mxu0 0
    %5316 = vmatprep.subr.bf16.mxu0 0
    %5317 = vmatpush2.bf16.msra.mxu0 0
    %5318 = vmatprep.subr.bf16.mxu0 0
    %5319 = vmatpush2.bf16.msra.mxu0 0
    %5320 = vmatprep.subr.bf16.mxu0 0
    %5321 = vmatpush2.bf16.msra.mxu0 0
    %5322 = vmatprep.subr.bf16.mxu0 0
    %5323 = vmatpush2.bf16.msra.mxu0 0
    %5324 = vmatprep.subr.bf16.mxu0 0
    %5325 = vmatpush2.bf16.msra.mxu0 0
    %5326 = vmatprep.subr.bf16.mxu0 0
    %5327 = vmatpush2.bf16.msra.mxu0 0
    %5328 = vmatprep.subr.bf16.mxu0 0
    %5329 = vmatpush2.bf16.msra.mxu0 0
    %5330 = vmatprep.mubr.bf16.mxu0 0
    %5331 = vmatmul.mubr.bf16.gmra.mxu0 %v5297
    %v5332 = vpop.f32.mrf.mxu0
    %v5333 = vadd.f32 0.0, %v5332
    %v5334 = vpop.f32.mrf.mxu0
    %v5335 = vpop.f32.mrf.mxu0
    %v5336 = vpop.f32.mrf.mxu0
    %5337 = vdwg.mxu0
    %v5338 = vpack.c.bf16 %v5333, %v5333
    %5339 = vmatprep.subr.bf16.mxu0 0
    %5340 = vmatpush1.bf16.msra.mxu0 %v158
    %5341 = vmatprep.subr.bf16.mxu0 0
    %5342 = vmatpush1.bf16.msra.mxu0 %v157
    %5343 = vmatprep.subr.bf16.mxu0 0
    %5344 = vmatpush1.bf16.msra.mxu0 %v156
    %5345 = vmatprep.subr.bf16.mxu0 0
    %5346 = vmatpush1.bf16.msra.mxu0 %v155
    %5347 = vmatprep.subr.bf16.mxu0 0
    %5348 = vmatpush1.bf16.msra.mxu0 %v154
    %5349 = vmatprep.subr.bf16.mxu0 0
    %5350 = vmatpush1.bf16.msra.mxu0 %v153
    %5351 = vmatprep.subr.bf16.mxu0 0
    %5352 = vmatpush1.bf16.msra.mxu0 %v152
    %5353 = vmatprep.subr.bf16.mxu0 0
    %5354 = vmatpush1.bf16.msra.mxu0 %v151
    %5355 = vmatprep.subr.bf16.mxu0 0
    %5356 = vmatpush2.bf16.msra.mxu0 0
    %5357 = vmatprep.subr.bf16.mxu0 0
    %5358 = vmatpush2.bf16.msra.mxu0 0
    %5359 = vmatprep.subr.bf16.mxu0 0
    %5360 = vmatpush2.bf16.msra.mxu0 0
    %5361 = vmatprep.subr.bf16.mxu0 0
    %5362 = vmatpush2.bf16.msra.mxu0 0
    %5363 = vmatprep.subr.bf16.mxu0 0
    %5364 = vmatpush2.bf16.msra.mxu0 0
    %5365 = vmatprep.subr.bf16.mxu0 0
    %5366 = vmatpush2.bf16.msra.mxu0 0
    %5367 = vmatprep.subr.bf16.mxu0 0
    %5368 = vmatpush2.bf16.msra.mxu0 0
    %5369 = vmatprep.subr.bf16.mxu0 0
    %5370 = vmatpush2.bf16.msra.mxu0 0
    %5371 = vmatprep.mubr.bf16.mxu0 0
    %5372 = vmatmul.mubr.bf16.gmra.mxu0 %v5338
    %v5373 = vpop.f32.mrf.mxu0
    %v5374 = vadd.f32 0.0, %v5373
    %v5375 = vpop.f32.mrf.mxu0
    %v5376 = vpop.f32.mrf.mxu0
    %v5377 = vpop.f32.mrf.mxu0
    %5378 = vdwg.mxu0
    %v5379 = vtanh.pop %v5374
    %v5380 = vadd.f32 %v5333, %v5379
    %v5381 = vpack.c.bf16 %v5380, %v5380
    %5382 = vmatprep.subr.bf16.mxu0 0
    %5383 = vmatpush1.bf16.msra.mxu0 %v249
    %5384 = vmatprep.subr.bf16.mxu0 0
    %5385 = vmatpush1.bf16.msra.mxu0 %v248
    %5386 = vmatprep.subr.bf16.mxu0 0
    %5387 = vmatpush1.bf16.msra.mxu0 %v247
    %5388 = vmatprep.subr.bf16.mxu0 0
    %5389 = vmatpush1.bf16.msra.mxu0 %v246
    %5390 = vmatprep.subr.bf16.mxu0 0
    %5391 = vmatpush1.bf16.msra.mxu0 %v245
    %5392 = vmatprep.subr.bf16.mxu0 0
    %5393 = vmatpush1.bf16.msra.mxu0 %v244
    %5394 = vmatprep.subr.bf16.mxu0 0
    %5395 = vmatpush1.bf16.msra.mxu0 %v243
    %5396 = vmatprep.subr.bf16.mxu0 0
    %5397 = vmatpush1.bf16.msra.mxu0 %v242
    %5398 = vmatprep.subr.bf16.mxu0 0
    %5399 = vmatpush2.bf16.msra.mxu0 0
    %5400 = vmatprep.subr.bf16.mxu0 0
    %5401 = vmatpush2.bf16.msra.mxu0 0
    %5402 = vmatprep.subr.bf16.mxu0 0
    %5403 = vmatpush2.bf16.msra.mxu0 0
    %5404 = vmatprep.subr.bf16.mxu0 0
    %5405 = vmatpush2.bf16.msra.mxu0 0
    %5406 = vmatprep.subr.bf16.mxu0 0
    %5407 = vmatpush2.bf16.msra.mxu0 0
    %5408 = vmatprep.subr.bf16.mxu0 0
    %5409 = vmatpush2.bf16.msra.mxu0 0
    %5410 = vmatprep.subr.bf16.mxu0 0
    %5411 = vmatpush2.bf16.msra.mxu0 0
    %5412 = vmatprep.subr.bf16.mxu0 0
    %5413 = vmatpush2.bf16.msra.mxu0 0
    %5414 = vmatprep.mubr.bf16.mxu0 0
    %5415 = vmatmul.mubr.bf16.gmra.mxu0 %v5381
    %v5416 = vpop.f32.mrf.mxu0
    %v5417 = vadd.f32 0.0, %v5416
    %v5418 = vpop.f32.mrf.mxu0
    %v5419 = vpop.f32.mrf.mxu0
    %v5420 = vpop.f32.mrf.mxu0
    %5421 = vdwg.mxu0
    %v5422 = vpack.c.bf16 %v5417, %v5417
    %5423 = vmatprep.subr.bf16.mxu0 0
    %5424 = vmatpush1.bf16.msra.mxu0 %v158
    %5425 = vmatprep.subr.bf16.mxu0 0
    %5426 = vmatpush1.bf16.msra.mxu0 %v157
    %5427 = vmatprep.subr.bf16.mxu0 0
    %5428 = vmatpush1.bf16.msra.mxu0 %v156
    %5429 = vmatprep.subr.bf16.mxu0 0
    %5430 = vmatpush1.bf16.msra.mxu0 %v155
    %5431 = vmatprep.subr.bf16.mxu0 0
    %5432 = vmatpush1.bf16.msra.mxu0 %v154
    %5433 = vmatprep.subr.bf16.mxu0 0
    %5434 = vmatpush1.bf16.msra.mxu0 %v153
    %5435 = vmatprep.subr.bf16.mxu0 0
    %5436 = vmatpush1.bf16.msra.mxu0 %v152
    %5437 = vmatprep.subr.bf16.mxu0 0
    %5438 = vmatpush1.bf16.msra.mxu0 %v151
    %5439 = vmatprep.subr.bf16.mxu0 0
    %5440 = vmatpush2.bf16.msra.mxu0 0
    %5441 = vmatprep.subr.bf16.mxu0 0
    %5442 = vmatpush2.bf16.msra.mxu0 0
    %5443 = vmatprep.subr.bf16.mxu0 0
    %5444 = vmatpush2.bf16.msra.mxu0 0
    %5445 = vmatprep.subr.bf16.mxu0 0
    %5446 = vmatpush2.bf16.msra.mxu0 0
    %5447 = vmatprep.subr.bf16.mxu0 0
    %5448 = vmatpush2.bf16.msra.mxu0 0
    %5449 = vmatprep.subr.bf16.mxu0 0
    %5450 = vmatpush2.bf16.msra.mxu0 0
    %5451 = vmatprep.subr.bf16.mxu0 0
    %5452 = vmatpush2.bf16.msra.mxu0 0
    %5453 = vmatprep.subr.bf16.mxu0 0
    %5454 = vmatpush2.bf16.msra.mxu0 0
    %5455 = vmatprep.mubr.bf16.mxu0 0
    %5456 = vmatmul.mubr.bf16.gmra.mxu0 %v5422
    %v5457 = vpop.f32.mrf.mxu0
    %v5458 = vadd.f32 0.0, %v5457
    %v5459 = vpop.f32.mrf.mxu0
    %v5460 = vpop.f32.mrf.mxu0
    %v5461 = vpop.f32.mrf.mxu0
    %5462 = vdwg.mxu0
    %v5463 = vtanh.pop %v5458
    %v5464 = vadd.f32 %v5417, %v5463
    %v5465 = vpack.c.bf16 %v5464, %v5464
    %5466 = vmatprep.subr.bf16.mxu0 0
    %5467 = vmatpush1.bf16.msra.mxu0 %v249
    %5468 = vmatprep.subr.bf16.mxu0 0
    %5469 = vmatpush1.bf16.msra.mxu0 %v248
    %5470 = vmatprep.subr.bf16.mxu0 0
    %5471 = vmatpush1.bf16.msra.mxu0 %v247
    %5472 = vmatprep.subr.bf16.mxu0 0
    %5473 = vmatpush1.bf16.msra.mxu0 %v246
    %5474 = vmatprep.subr.bf16.mxu0 0
    %5475 = vmatpush1.bf16.msra.mxu0 %v245
    %5476 = vmatprep.subr.bf16.mxu0 0
    %5477 = vmatpush1.bf16.msra.mxu0 %v244
    %5478 = vmatprep.subr.bf16.mxu0 0
    %5479 = vmatpush1.bf16.msra.mxu0 %v243
    %5480 = vmatprep.subr.bf16.mxu0 0
    %5481 = vmatpush1.bf16.msra.mxu0 %v242
    %5482 = vmatprep.subr.bf16.mxu0 0
    %5483 = vmatpush2.bf16.msra.mxu0 0
    %5484 = vmatprep.subr.bf16.mxu0 0
    %5485 = vmatpush2.bf16.msra.mxu0 0
    %5486 = vmatprep.subr.bf16.mxu0 0
    %5487 = vmatpush2.bf16.msra.mxu0 0
    %5488 = vmatprep.subr.bf16.mxu0 0
    %5489 = vmatpush2.bf16.msra.mxu0 0
    %5490 = vmatprep.subr.bf16.mxu0 0
    %5491 = vmatpush2.bf16.msra.mxu0 0
    %5492 = vmatprep.subr.bf16.mxu0 0
    %5493 = vmatpush2.bf16.msra.mxu0 0
    %5494 = vmatprep.subr.bf16.mxu0 0
    %5495 = vmatpush2.bf16.msra.mxu0 0
    %5496 = vmatprep.subr.bf16.mxu0 0
    %5497 = vmatpush2.bf16.msra.mxu0 0
    %5498 = vmatprep.mubr.bf16.mxu0 0
    %5499 = vmatmul.mubr.bf16.gmra.mxu0 %v5465
    %v5500 = vpop.f32.mrf.mxu0
    %v5501 = vadd.f32 0.0, %v5500
    %v5502 = vpop.f32.mrf.mxu0
    %v5503 = vpop.f32.mrf.mxu0
    %v5504 = vpop.f32.mrf.mxu0
    %5505 = vdwg.mxu0
    %v5506 = vpack.c.bf16 %v5501, %v5501
    %5507 = vmatprep.subr.bf16.mxu0 0
    %5508 = vmatpush1.bf16.msra.mxu0 %v158
    %5509 = vmatprep.subr.bf16.mxu0 0
    %5510 = vmatpush1.bf16.msra.mxu0 %v157
    %5511 = vmatprep.subr.bf16.mxu0 0
    %5512 = vmatpush1.bf16.msra.mxu0 %v156
    %5513 = vmatprep.subr.bf16.mxu0 0
    %5514 = vmatpush1.bf16.msra.mxu0 %v155
    %5515 = vmatprep.subr.bf16.mxu0 0
    %5516 = vmatpush1.bf16.msra.mxu0 %v154
    %5517 = vmatprep.subr.bf16.mxu0 0
    %5518 = vmatpush1.bf16.msra.mxu0 %v153
    %5519 = vmatprep.subr.bf16.mxu0 0
    %5520 = vmatpush1.bf16.msra.mxu0 %v152
    %5521 = vmatprep.subr.bf16.mxu0 0
    %5522 = vmatpush1.bf16.msra.mxu0 %v151
    %5523 = vmatprep.subr.bf16.mxu0 0
    %5524 = vmatpush2.bf16.msra.mxu0 0
    %5525 = vmatprep.subr.bf16.mxu0 0
    %5526 = vmatpush2.bf16.msra.mxu0 0
    %5527 = vmatprep.subr.bf16.mxu0 0
    %5528 = vmatpush2.bf16.msra.mxu0 0
    %5529 = vmatprep.subr.bf16.mxu0 0
    %5530 = vmatpush2.bf16.msra.mxu0 0
    %5531 = vmatprep.subr.bf16.mxu0 0
    %5532 = vmatpush2.bf16.msra.mxu0 0
    %5533 = vmatprep.subr.bf16.mxu0 0
    %5534 = vmatpush2.bf16.msra.mxu0 0
    %5535 = vmatprep.subr.bf16.mxu0 0
    %5536 = vmatpush2.bf16.msra.mxu0 0
    %5537 = vmatprep.subr.bf16.mxu0 0
    %5538 = vmatpush2.bf16.msra.mxu0 0
    %5539 = vmatprep.mubr.bf16.mxu0 0
    %5540 = vmatmul.mubr.bf16.gmra.mxu0 %v5506
    %v5541 = vpop.f32.mrf.mxu0
    %v5542 = vadd.f32 0.0, %v5541
    %v5543 = vpop.f32.mrf.mxu0
    %v5544 = vpop.f32.mrf.mxu0
    %v5545 = vpop.f32.mrf.mxu0
    %5546 = vdwg.mxu0
    %v5547 = vtanh.pop %v5542
    %v5548 = vadd.f32 %v5501, %v5547
    %v5549 = vpack.c.bf16 %v5548, %v5548
    %5550 = vmatprep.subr.bf16.mxu0 0
    %5551 = vmatpush1.bf16.msra.mxu0 %v249
    %5552 = vmatprep.subr.bf16.mxu0 0
    %5553 = vmatpush1.bf16.msra.mxu0 %v248
    %5554 = vmatprep.subr.bf16.mxu0 0
    %5555 = vmatpush1.bf16.msra.mxu0 %v247
    %5556 = vmatprep.subr.bf16.mxu0 0
    %5557 = vmatpush1.bf16.msra.mxu0 %v246
    %5558 = vmatprep.subr.bf16.mxu0 0
    %5559 = vmatpush1.bf16.msra.mxu0 %v245
    %5560 = vmatprep.subr.bf16.mxu0 0
    %5561 = vmatpush1.bf16.msra.mxu0 %v244
    %5562 = vmatprep.subr.bf16.mxu0 0
    %5563 = vmatpush1.bf16.msra.mxu0 %v243
    %5564 = vmatprep.subr.bf16.mxu0 0
    %5565 = vmatpush1.bf16.msra.mxu0 %v242
    %5566 = vmatprep.subr.bf16.mxu0 0
    %5567 = vmatpush2.bf16.msra.mxu0 0
    %5568 = vmatprep.subr.bf16.mxu0 0
    %5569 = vmatpush2.bf16.msra.mxu0 0
    %5570 = vmatprep.subr.bf16.mxu0 0
    %5571 = vmatpush2.bf16.msra.mxu0 0
    %5572 = vmatprep.subr.bf16.mxu0 0
    %5573 = vmatpush2.bf16.msra.mxu0 0
    %5574 = vmatprep.subr.bf16.mxu0 0
    %5575 = vmatpush2.bf16.msra.mxu0 0
    %5576 = vmatprep.subr.bf16.mxu0 0
    %5577 = vmatpush2.bf16.msra.mxu0 0
    %5578 = vmatprep.subr.bf16.mxu0 0
    %5579 = vmatpush2.bf16.msra.mxu0 0
    %5580 = vmatprep.subr.bf16.mxu0 0
    %5581 = vmatpush2.bf16.msra.mxu0 0
    %5582 = vmatprep.mubr.bf16.mxu0 0
    %5583 = vmatmul.mubr.bf16.gmra.mxu0 %v5549
    %v5584 = vpop.f32.mrf.mxu0
    %v5585 = vadd.f32 0.0, %v5584
    %v5586 = vpop.f32.mrf.mxu0
    %v5587 = vpop.f32.mrf.mxu0
    %v5588 = vpop.f32.mrf.mxu0
    %5589 = vdwg.mxu0
    %v5590 = vpack.c.bf16 %v5585, %v5585
    %5591 = vmatprep.subr.bf16.mxu0 0
    %5592 = vmatpush1.bf16.msra.mxu0 %v158
    %5593 = vmatprep.subr.bf16.mxu0 0
    %5594 = vmatpush1.bf16.msra.mxu0 %v157
    %5595 = vmatprep.subr.bf16.mxu0 0
    %5596 = vmatpush1.bf16.msra.mxu0 %v156
    %5597 = vmatprep.subr.bf16.mxu0 0
    %5598 = vmatpush1.bf16.msra.mxu0 %v155
    %5599 = vmatprep.subr.bf16.mxu0 0
    %5600 = vmatpush1.bf16.msra.mxu0 %v154
    %5601 = vmatprep.subr.bf16.mxu0 0
    %5602 = vmatpush1.bf16.msra.mxu0 %v153
    %5603 = vmatprep.subr.bf16.mxu0 0
    %5604 = vmatpush1.bf16.msra.mxu0 %v152
    %5605 = vmatprep.subr.bf16.mxu0 0
    %5606 = vmatpush1.bf16.msra.mxu0 %v151
    %5607 = vmatprep.subr.bf16.mxu0 0
    %5608 = vmatpush2.bf16.msra.mxu0 0
    %5609 = vmatprep.subr.bf16.mxu0 0
    %5610 = vmatpush2.bf16.msra.mxu0 0
    %5611 = vmatprep.subr.bf16.mxu0 0
    %5612 = vmatpush2.bf16.msra.mxu0 0
    %5613 = vmatprep.subr.bf16.mxu0 0
    %5614 = vmatpush2.bf16.msra.mxu0 0
    %5615 = vmatprep.subr.bf16.mxu0 0
    %5616 = vmatpush2.bf16.msra.mxu0 0
    %5617 = vmatprep.subr.bf16.mxu0 0
    %5618 = vmatpush2.bf16.msra.mxu0 0
    %5619 = vmatprep.subr.bf16.mxu0 0
    %5620 = vmatpush2.bf16.msra.mxu0 0
    %5621 = vmatprep.subr.bf16.mxu0 0
    %5622 = vmatpush2.bf16.msra.mxu0 0
    %5623 = vmatprep.mubr.bf16.mxu0 0
    %5624 = vmatmul.mubr.bf16.gmra.mxu0 %v5590
    %v5625 = vpop.f32.mrf.mxu0
    %v5626 = vadd.f32 0.0, %v5625
    %v5627 = vpop.f32.mrf.mxu0
    %v5628 = vpop.f32.mrf.mxu0
    %v5629 = vpop.f32.mrf.mxu0
    %5630 = vdwg.mxu0
    %v5631 = vtanh.pop %v5626
    %v5632 = vadd.f32 %v5585, %v5631
    %v5633 = vpack.c.bf16 %v5632, %v5632
    %5634 = vmatprep.subr.bf16.mxu0 0
    %5635 = vmatpush1.bf16.msra.mxu0 %v249
    %5636 = vmatprep.subr.bf16.mxu0 0
    %5637 = vmatpush1.bf16.msra.mxu0 %v248
    %5638 = vmatprep.subr.bf16.mxu0 0
    %5639 = vmatpush1.bf16.msra.mxu0 %v247
    %5640 = vmatprep.subr.bf16.mxu0 0
    %5641 = vmatpush1.bf16.msra.mxu0 %v246
    %5642 = vmatprep.subr.bf16.mxu0 0
    %5643 = vmatpush1.bf16.msra.mxu0 %v245
    %5644 = vmatprep.subr.bf16.mxu0 0
    %5645 = vmatpush1.bf16.msra.mxu0 %v244
    %5646 = vmatprep.subr.bf16.mxu0 0
    %5647 = vmatpush1.bf16.msra.mxu0 %v243
    %5648 = vmatprep.subr.bf16.mxu0 0
    %5649 = vmatpush1.bf16.msra.mxu0 %v242
    %5650 = vmatprep.subr.bf16.mxu0 0
    %5651 = vmatpush2.bf16.msra.mxu0 0
    %5652 = vmatprep.subr.bf16.mxu0 0
    %5653 = vmatpush2.bf16.msra.mxu0 0
    %5654 = vmatprep.subr.bf16.mxu0 0
    %5655 = vmatpush2.bf16.msra.mxu0 0
    %5656 = vmatprep.subr.bf16.mxu0 0
    %5657 = vmatpush2.bf16.msra.mxu0 0
    %5658 = vmatprep.subr.bf16.mxu0 0
    %5659 = vmatpush2.bf16.msra.mxu0 0
    %5660 = vmatprep.subr.bf16.mxu0 0
    %5661 = vmatpush2.bf16.msra.mxu0 0
    %5662 = vmatprep.subr.bf16.mxu0 0
    %5663 = vmatpush2.bf16.msra.mxu0 0
    %5664 = vmatprep.subr.bf16.mxu0 0
    %5665 = vmatpush2.bf16.msra.mxu0 0
    %5666 = vmatprep.mubr.bf16.mxu0 0
    %5667 = vmatmul.mubr.bf16.gmra.mxu0 %v5633
    %v5668 = vpop.f32.mrf.mxu0
    %v5669 = vadd.f32 0.0, %v5668
    %v5670 = vpop.f32.mrf.mxu0
    %v5671 = vpop.f32.mrf.mxu0
    %v5672 = vpop.f32.mrf.mxu0
    %5673 = vdwg.mxu0
    %v5674 = vpack.c.bf16 %v5669, %v5669
    %5675 = vmatprep.subr.bf16.mxu0 0
    %5676 = vmatpush1.bf16.msra.mxu0 %v158
    %5677 = vmatprep.subr.bf16.mxu0 0
    %5678 = vmatpush1.bf16.msra.mxu0 %v157
    %5679 = vmatprep.subr.bf16.mxu0 0
    %5680 = vmatpush1.bf16.msra.mxu0 %v156
    %5681 = vmatprep.subr.bf16.mxu0 0
    %5682 = vmatpush1.bf16.msra.mxu0 %v155
    %5683 = vmatprep.subr.bf16.mxu0 0
    %5684 = vmatpush1.bf16.msra.mxu0 %v154
    %5685 = vmatprep.subr.bf16.mxu0 0
    %5686 = vmatpush1.bf16.msra.mxu0 %v153
    %5687 = vmatprep.subr.bf16.mxu0 0
    %5688 = vmatpush1.bf16.msra.mxu0 %v152
    %5689 = vmatprep.subr.bf16.mxu0 0
    %5690 = vmatpush1.bf16.msra.mxu0 %v151
    %5691 = vmatprep.subr.bf16.mxu0 0
    %5692 = vmatpush2.bf16.msra.mxu0 0
    %5693 = vmatprep.subr.bf16.mxu0 0
    %5694 = vmatpush2.bf16.msra.mxu0 0
    %5695 = vmatprep.subr.bf16.mxu0 0
    %5696 = vmatpush2.bf16.msra.mxu0 0
    %5697 = vmatprep.subr.bf16.mxu0 0
    %5698 = vmatpush2.bf16.msra.mxu0 0
    %5699 = vmatprep.subr.bf16.mxu0 0
    %5700 = vmatpush2.bf16.msra.mxu0 0
    %5701 = vmatprep.subr.bf16.mxu0 0
    %5702 = vmatpush2.bf16.msra.mxu0 0
    %5703 = vmatprep.subr.bf16.mxu0 0
    %5704 = vmatpush2.bf16.msra.mxu0 0
    %5705 = vmatprep.subr.bf16.mxu0 0
    %5706 = vmatpush2.bf16.msra.mxu0 0
    %5707 = vmatprep.mubr.bf16.mxu0 0
    %5708 = vmatmul.mubr.bf16.gmra.mxu0 %v5674
    %v5709 = vpop.f32.mrf.mxu0
    %v5710 = vadd.f32 0.0, %v5709
    %v5711 = vpop.f32.mrf.mxu0
    %v5712 = vpop.f32.mrf.mxu0
    %v5713 = vpop.f32.mrf.mxu0
    %5714 = vdwg.mxu0
    %v5715 = vtanh.pop %v5710
    %v5716 = vadd.f32 %v5669, %v5715
    %v5717 = vpack.c.bf16 %v5716, %v5716
    %5718 = vmatprep.subr.bf16.mxu0 0
    %5719 = vmatpush1.bf16.msra.mxu0 %v249
    %5720 = vmatprep.subr.bf16.mxu0 0
    %5721 = vmatpush1.bf16.msra.mxu0 %v248
    %5722 = vmatprep.subr.bf16.mxu0 0
    %5723 = vmatpush1.bf16.msra.mxu0 %v247
    %5724 = vmatprep.subr.bf16.mxu0 0
    %5725 = vmatpush1.bf16.msra.mxu0 %v246
    %5726 = vmatprep.subr.bf16.mxu0 0
    %5727 = vmatpush1.bf16.msra.mxu0 %v245
    %5728 = vmatprep.subr.bf16.mxu0 0
    %5729 = vmatpush1.bf16.msra.mxu0 %v244
    %5730 = vmatprep.subr.bf16.mxu0 0
    %5731 = vmatpush1.bf16.msra.mxu0 %v243
    %5732 = vmatprep.subr.bf16.mxu0 0
    %5733 = vmatpush1.bf16.msra.mxu0 %v242
    %5734 = vmatprep.subr.bf16.mxu0 0
    %5735 = vmatpush2.bf16.msra.mxu0 0
    %5736 = vmatprep.subr.bf16.mxu0 0
    %5737 = vmatpush2.bf16.msra.mxu0 0
    %5738 = vmatprep.subr.bf16.mxu0 0
    %5739 = vmatpush2.bf16.msra.mxu0 0
    %5740 = vmatprep.subr.bf16.mxu0 0
    %5741 = vmatpush2.bf16.msra.mxu0 0
    %5742 = vmatprep.subr.bf16.mxu0 0
    %5743 = vmatpush2.bf16.msra.mxu0 0
    %5744 = vmatprep.subr.bf16.mxu0 0
    %5745 = vmatpush2.bf16.msra.mxu0 0
    %5746 = vmatprep.subr.bf16.mxu0 0
    %5747 = vmatpush2.bf16.msra.mxu0 0
    %5748 = vmatprep.subr.bf16.mxu0 0
    %5749 = vmatpush2.bf16.msra.mxu0 0
    %5750 = vmatprep.mubr.bf16.mxu0 0
    %5751 = vmatmul.mubr.bf16.gmra.mxu0 %v5717
    %v5752 = vpop.f32.mrf.mxu0
    %v5753 = vadd.f32 0.0, %v5752
    %v5754 = vpop.f32.mrf.mxu0
    %v5755 = vpop.f32.mrf.mxu0
    %v5756 = vpop.f32.mrf.mxu0
    %5757 = vdwg.mxu0
    %v5758 = vpack.c.bf16 %v5753, %v5753
    %5759 = vmatprep.subr.bf16.mxu0 0
    %5760 = vmatpush1.bf16.msra.mxu0 %v158
    %5761 = vmatprep.subr.bf16.mxu0 0
    %5762 = vmatpush1.bf16.msra.mxu0 %v157
    %5763 = vmatprep.subr.bf16.mxu0 0
    %5764 = vmatpush1.bf16.msra.mxu0 %v156
    %5765 = vmatprep.subr.bf16.mxu0 0
    %5766 = vmatpush1.bf16.msra.mxu0 %v155
    %5767 = vmatprep.subr.bf16.mxu0 0
    %5768 = vmatpush1.bf16.msra.mxu0 %v154
    %5769 = vmatprep.subr.bf16.mxu0 0
    %5770 = vmatpush1.bf16.msra.mxu0 %v153
    %5771 = vmatprep.subr.bf16.mxu0 0
    %5772 = vmatpush1.bf16.msra.mxu0 %v152
    %5773 = vmatprep.subr.bf16.mxu0 0
    %5774 = vmatpush1.bf16.msra.mxu0 %v151
    %5775 = vmatprep.subr.bf16.mxu0 0
    %5776 = vmatpush2.bf16.msra.mxu0 0
    %5777 = vmatprep.subr.bf16.mxu0 0
    %5778 = vmatpush2.bf16.msra.mxu0 0
    %5779 = vmatprep.subr.bf16.mxu0 0
    %5780 = vmatpush2.bf16.msra.mxu0 0
    %5781 = vmatprep.subr.bf16.mxu0 0
    %5782 = vmatpush2.bf16.msra.mxu0 0
    %5783 = vmatprep.subr.bf16.mxu0 0
    %5784 = vmatpush2.bf16.msra.mxu0 0
    %5785 = vmatprep.subr.bf16.mxu0 0
    %5786 = vmatpush2.bf16.msra.mxu0 0
    %5787 = vmatprep.subr.bf16.mxu0 0
    %5788 = vmatpush2.bf16.msra.mxu0 0
    %5789 = vmatprep.subr.bf16.mxu0 0
    %5790 = vmatpush2.bf16.msra.mxu0 0
    %5791 = vmatprep.mubr.bf16.mxu0 0
    %5792 = vmatmul.mubr.bf16.gmra.mxu0 %v5758
    %v5793 = vpop.f32.mrf.mxu0
    %v5794 = vadd.f32 0.0, %v5793
    %v5795 = vpop.f32.mrf.mxu0
    %v5796 = vpop.f32.mrf.mxu0
    %v5797 = vpop.f32.mrf.mxu0
    %5798 = vdwg.mxu0
    %v5799 = vtanh.pop %v5794
    %v5800 = vadd.f32 %v5753, %v5799
    %v5801 = vpack.c.bf16 %v5800, %v5800
    %5802 = vmatprep.subr.bf16.mxu0 0
    %5803 = vmatpush1.bf16.msra.mxu0 %v249
    %5804 = vmatprep.subr.bf16.mxu0 0
    %5805 = vmatpush1.bf16.msra.mxu0 %v248
    %5806 = vmatprep.subr.bf16.mxu0 0
    %5807 = vmatpush1.bf16.msra.mxu0 %v247
    %5808 = vmatprep.subr.bf16.mxu0 0
    %5809 = vmatpush1.bf16.msra.mxu0 %v246
    %5810 = vmatprep.subr.bf16.mxu0 0
    %5811 = vmatpush1.bf16.msra.mxu0 %v245
    %5812 = vmatprep.subr.bf16.mxu0 0
    %5813 = vmatpush1.bf16.msra.mxu0 %v244
    %5814 = vmatprep.subr.bf16.mxu0 0
    %5815 = vmatpush1.bf16.msra.mxu0 %v243
    %5816 = vmatprep.subr.bf16.mxu0 0
    %5817 = vmatpush1.bf16.msra.mxu0 %v242
    %5818 = vmatprep.subr.bf16.mxu0 0
    %5819 = vmatpush2.bf16.msra.mxu0 0
    %5820 = vmatprep.subr.bf16.mxu0 0
    %5821 = vmatpush2.bf16.msra.mxu0 0
    %5822 = vmatprep.subr.bf16.mxu0 0
    %5823 = vmatpush2.bf16.msra.mxu0 0
    %5824 = vmatprep.subr.bf16.mxu0 0
    %5825 = vmatpush2.bf16.msra.mxu0 0
    %5826 = vmatprep.subr.bf16.mxu0 0
    %5827 = vmatpush2.bf16.msra.mxu0 0
    %5828 = vmatprep.subr.bf16.mxu0 0
    %5829 = vmatpush2.bf16.msra.mxu0 0
    %5830 = vmatprep.subr.bf16.mxu0 0
    %5831 = vmatpush2.bf16.msra.mxu0 0
    %5832 = vmatprep.subr.bf16.mxu0 0
    %5833 = vmatpush2.bf16.msra.mxu0 0
    %5834 = vmatprep.mubr.bf16.mxu0 0
    %5835 = vmatmul.mubr.bf16.gmra.mxu0 %v5801
    %v5836 = vpop.f32.mrf.mxu0
    %v5837 = vadd.f32 0.0, %v5836
    %v5838 = vpop.f32.mrf.mxu0
    %v5839 = vpop.f32.mrf.mxu0
    %v5840 = vpop.f32.mrf.mxu0
    %5841 = vdwg.mxu0
    %v5842 = vpack.c.bf16 %v5837, %v5837
    %5843 = vmatprep.subr.bf16.mxu0 0
    %5844 = vmatpush1.bf16.msra.mxu0 %v158
    %5845 = vmatprep.subr.bf16.mxu0 0
    %5846 = vmatpush1.bf16.msra.mxu0 %v157
    %5847 = vmatprep.subr.bf16.mxu0 0
    %5848 = vmatpush1.bf16.msra.mxu0 %v156
    %5849 = vmatprep.subr.bf16.mxu0 0
    %5850 = vmatpush1.bf16.msra.mxu0 %v155
    %5851 = vmatprep.subr.bf16.mxu0 0
    %5852 = vmatpush1.bf16.msra.mxu0 %v154
    %5853 = vmatprep.subr.bf16.mxu0 0
    %5854 = vmatpush1.bf16.msra.mxu0 %v153
    %5855 = vmatprep.subr.bf16.mxu0 0
    %5856 = vmatpush1.bf16.msra.mxu0 %v152
    %5857 = vmatprep.subr.bf16.mxu0 0
    %5858 = vmatpush1.bf16.msra.mxu0 %v151
    %5859 = vmatprep.subr.bf16.mxu0 0
    %5860 = vmatpush2.bf16.msra.mxu0 0
    %5861 = vmatprep.subr.bf16.mxu0 0
    %5862 = vmatpush2.bf16.msra.mxu0 0
    %5863 = vmatprep.subr.bf16.mxu0 0
    %5864 = vmatpush2.bf16.msra.mxu0 0
    %5865 = vmatprep.subr.bf16.mxu0 0
    %5866 = vmatpush2.bf16.msra.mxu0 0
    %5867 = vmatprep.subr.bf16.mxu0 0
    %5868 = vmatpush2.bf16.msra.mxu0 0
    %5869 = vmatprep.subr.bf16.mxu0 0
    %5870 = vmatpush2.bf16.msra.mxu0 0
    %5871 = vmatprep.subr.bf16.mxu0 0
    %5872 = vmatpush2.bf16.msra.mxu0 0
    %5873 = vmatprep.subr.bf16.mxu0 0
    %5874 = vmatpush2.bf16.msra.mxu0 0
    %5875 = vmatprep.mubr.bf16.mxu0 0
    %5876 = vmatmul.mubr.bf16.gmra.mxu0 %v5842
    %v5877 = vpop.f32.mrf.mxu0
    %v5878 = vadd.f32 0.0, %v5877
    %v5879 = vpop.f32.mrf.mxu0
    %v5880 = vpop.f32.mrf.mxu0
    %v5881 = vpop.f32.mrf.mxu0
    %5882 = vdwg.mxu0
    %v5883 = vtanh.pop %v5878
    %v5884 = vadd.f32 %v5837, %v5883
    %v5885 = vpack.c.bf16 %v5884, %v5884
    %5886 = vmatprep.subr.bf16.mxu0 0
    %5887 = vmatpush1.bf16.msra.mxu0 %v249
    %5888 = vmatprep.subr.bf16.mxu0 0
    %5889 = vmatpush1.bf16.msra.mxu0 %v248
    %5890 = vmatprep.subr.bf16.mxu0 0
    %5891 = vmatpush1.bf16.msra.mxu0 %v247
    %5892 = vmatprep.subr.bf16.mxu0 0
    %5893 = vmatpush1.bf16.msra.mxu0 %v246
    %5894 = vmatprep.subr.bf16.mxu0 0
    %5895 = vmatpush1.bf16.msra.mxu0 %v245
    %5896 = vmatprep.subr.bf16.mxu0 0
    %5897 = vmatpush1.bf16.msra.mxu0 %v244
    %5898 = vmatprep.subr.bf16.mxu0 0
    %5899 = vmatpush1.bf16.msra.mxu0 %v243
    %5900 = vmatprep.subr.bf16.mxu0 0
    %5901 = vmatpush1.bf16.msra.mxu0 %v242
    %5902 = vmatprep.subr.bf16.mxu0 0
    %5903 = vmatpush2.bf16.msra.mxu0 0
    %5904 = vmatprep.subr.bf16.mxu0 0
    %5905 = vmatpush2.bf16.msra.mxu0 0
    %5906 = vmatprep.subr.bf16.mxu0 0
    %5907 = vmatpush2.bf16.msra.mxu0 0
    %5908 = vmatprep.subr.bf16.mxu0 0
    %5909 = vmatpush2.bf16.msra.mxu0 0
    %5910 = vmatprep.subr.bf16.mxu0 0
    %5911 = vmatpush2.bf16.msra.mxu0 0
    %5912 = vmatprep.subr.bf16.mxu0 0
    %5913 = vmatpush2.bf16.msra.mxu0 0
    %5914 = vmatprep.subr.bf16.mxu0 0
    %5915 = vmatpush2.bf16.msra.mxu0 0
    %5916 = vmatprep.subr.bf16.mxu0 0
    %5917 = vmatpush2.bf16.msra.mxu0 0
    %5918 = vmatprep.mubr.bf16.mxu0 0
    %5919 = vmatmul.mubr.bf16.gmra.mxu0 %v5885
    %v5920 = vpop.f32.mrf.mxu0
    %v5921 = vadd.f32 0.0, %v5920
    %v5922 = vpop.f32.mrf.mxu0
    %v5923 = vpop.f32.mrf.mxu0
    %v5924 = vpop.f32.mrf.mxu0
    %5925 = vdwg.mxu0
    %v5926 = vpack.c.bf16 %v5921, %v5921
    %5927 = vmatprep.subr.bf16.mxu0 0
    %5928 = vmatpush1.bf16.msra.mxu0 %v158
    %5929 = vmatprep.subr.bf16.mxu0 0
    %5930 = vmatpush1.bf16.msra.mxu0 %v157
    %5931 = vmatprep.subr.bf16.mxu0 0
    %5932 = vmatpush1.bf16.msra.mxu0 %v156
    %5933 = vmatprep.subr.bf16.mxu0 0
    %5934 = vmatpush1.bf16.msra.mxu0 %v155
    %5935 = vmatprep.subr.bf16.mxu0 0
    %5936 = vmatpush1.bf16.msra.mxu0 %v154
    %5937 = vmatprep.subr.bf16.mxu0 0
    %5938 = vmatpush1.bf16.msra.mxu0 %v153
    %5939 = vmatprep.subr.bf16.mxu0 0
    %5940 = vmatpush1.bf16.msra.mxu0 %v152
    %5941 = vmatprep.subr.bf16.mxu0 0
    %5942 = vmatpush1.bf16.msra.mxu0 %v151
    %5943 = vmatprep.subr.bf16.mxu0 0
    %5944 = vmatpush2.bf16.msra.mxu0 0
    %5945 = vmatprep.subr.bf16.mxu0 0
    %5946 = vmatpush2.bf16.msra.mxu0 0
    %5947 = vmatprep.subr.bf16.mxu0 0
    %5948 = vmatpush2.bf16.msra.mxu0 0
    %5949 = vmatprep.subr.bf16.mxu0 0
    %5950 = vmatpush2.bf16.msra.mxu0 0
    %5951 = vmatprep.subr.bf16.mxu0 0
    %5952 = vmatpush2.bf16.msra.mxu0 0
    %5953 = vmatprep.subr.bf16.mxu0 0
    %5954 = vmatpush2.bf16.msra.mxu0 0
    %5955 = vmatprep.subr.bf16.mxu0 0
    %5956 = vmatpush2.bf16.msra.mxu0 0
    %5957 = vmatprep.subr.bf16.mxu0 0
    %5958 = vmatpush2.bf16.msra.mxu0 0
    %5959 = vmatprep.mubr.bf16.mxu0 0
    %5960 = vmatmul.mubr.bf16.gmra.mxu0 %v5926
    %v5961 = vpop.f32.mrf.mxu0
    %v5962 = vadd.f32 0.0, %v5961
    %v5963 = vpop.f32.mrf.mxu0
    %v5964 = vpop.f32.mrf.mxu0
    %v5965 = vpop.f32.mrf.mxu0
    %5966 = vdwg.mxu0
    %v5967 = vtanh.pop %v5962
    %v5968 = vadd.f32 %v5921, %v5967
    %v5969 = vpack.c.bf16 %v5968, %v5968
    %5970 = vmatprep.subr.bf16.mxu0 0
    %5971 = vmatpush1.bf16.msra.mxu0 %v249
    %5972 = vmatprep.subr.bf16.mxu0 0
    %5973 = vmatpush1.bf16.msra.mxu0 %v248
    %5974 = vmatprep.subr.bf16.mxu0 0
    %5975 = vmatpush1.bf16.msra.mxu0 %v247
    %5976 = vmatprep.subr.bf16.mxu0 0
    %5977 = vmatpush1.bf16.msra.mxu0 %v246
    %5978 = vmatprep.subr.bf16.mxu0 0
    %5979 = vmatpush1.bf16.msra.mxu0 %v245
    %5980 = vmatprep.subr.bf16.mxu0 0
    %5981 = vmatpush1.bf16.msra.mxu0 %v244
    %5982 = vmatprep.subr.bf16.mxu0 0
    %5983 = vmatpush1.bf16.msra.mxu0 %v243
    %5984 = vmatprep.subr.bf16.mxu0 0
    %5985 = vmatpush1.bf16.msra.mxu0 %v242
    %5986 = vmatprep.subr.bf16.mxu0 0
    %5987 = vmatpush2.bf16.msra.mxu0 0
    %5988 = vmatprep.subr.bf16.mxu0 0
    %5989 = vmatpush2.bf16.msra.mxu0 0
    %5990 = vmatprep.subr.bf16.mxu0 0
    %5991 = vmatpush2.bf16.msra.mxu0 0
    %5992 = vmatprep.subr.bf16.mxu0 0
    %5993 = vmatpush2.bf16.msra.mxu0 0
    %5994 = vmatprep.subr.bf16.mxu0 0
    %5995 = vmatpush2.bf16.msra.mxu0 0
    %5996 = vmatprep.subr.bf16.mxu0 0
    %5997 = vmatpush2.bf16.msra.mxu0 0
    %5998 = vmatprep.subr.bf16.mxu0 0
    %5999 = vmatpush2.bf16.msra.mxu0 0
    %6000 = vmatprep.subr.bf16.mxu0 0
    %6001 = vmatpush2.bf16.msra.mxu0 0
    %6002 = vmatprep.mubr.bf16.mxu0 0
    %6003 = vmatmul.mubr.bf16.gmra.mxu0 %v5969
    %v6004 = vpop.f32.mrf.mxu0
    %v6005 = vadd.f32 0.0, %v6004
    %v6006 = vpop.f32.mrf.mxu0
    %v6007 = vpop.f32.mrf.mxu0
    %v6008 = vpop.f32.mrf.mxu0
    %6009 = vdwg.mxu0
    %v6010 = vpack.c.bf16 %v6005, %v6005
    %6011 = vmatprep.subr.bf16.mxu0 0
    %6012 = vmatpush1.bf16.msra.mxu0 %v158
    %6013 = vmatprep.subr.bf16.mxu0 0
    %6014 = vmatpush1.bf16.msra.mxu0 %v157
    %6015 = vmatprep.subr.bf16.mxu0 0
    %6016 = vmatpush1.bf16.msra.mxu0 %v156
    %6017 = vmatprep.subr.bf16.mxu0 0
    %6018 = vmatpush1.bf16.msra.mxu0 %v155
    %6019 = vmatprep.subr.bf16.mxu0 0
    %6020 = vmatpush1.bf16.msra.mxu0 %v154
    %6021 = vmatprep.subr.bf16.mxu0 0
    %6022 = vmatpush1.bf16.msra.mxu0 %v153
    %6023 = vmatprep.subr.bf16.mxu0 0
    %6024 = vmatpush1.bf16.msra.mxu0 %v152
    %6025 = vmatprep.subr.bf16.mxu0 0
    %6026 = vmatpush1.bf16.msra.mxu0 %v151
    %6027 = vmatprep.subr.bf16.mxu0 0
    %6028 = vmatpush2.bf16.msra.mxu0 0
    %6029 = vmatprep.subr.bf16.mxu0 0
    %6030 = vmatpush2.bf16.msra.mxu0 0
    %6031 = vmatprep.subr.bf16.mxu0 0
    %6032 = vmatpush2.bf16.msra.mxu0 0
    %6033 = vmatprep.subr.bf16.mxu0 0
    %6034 = vmatpush2.bf16.msra.mxu0 0
    %6035 = vmatprep.subr.bf16.mxu0 0
    %6036 = vmatpush2.bf16.msra.mxu0 0
    %6037 = vmatprep.subr.bf16.mxu0 0
    %6038 = vmatpush2.bf16.msra.mxu0 0
    %6039 = vmatprep.subr.bf16.mxu0 0
    %6040 = vmatpush2.bf16.msra.mxu0 0
    %6041 = vmatprep.subr.bf16.mxu0 0
    %6042 = vmatpush2.bf16.msra.mxu0 0
    %6043 = vmatprep.mubr.bf16.mxu0 0
    %6044 = vmatmul.mubr.bf16.gmra.mxu0 %v6010
    %v6045 = vpop.f32.mrf.mxu0
    %v6046 = vadd.f32 0.0, %v6045
    %v6047 = vpop.f32.mrf.mxu0
    %v6048 = vpop.f32.mrf.mxu0
    %v6049 = vpop.f32.mrf.mxu0
    %6050 = vdwg.mxu0
    %v6051 = vtanh.pop %v6046
    %v6052 = vadd.f32 %v6005, %v6051
    %v6053 = vpack.c.bf16 %v6052, %v6052
    %6054 = vmatprep.subr.bf16.mxu0 0
    %6055 = vmatpush1.bf16.msra.mxu0 %v249
    %6056 = vmatprep.subr.bf16.mxu0 0
    %6057 = vmatpush1.bf16.msra.mxu0 %v248
    %6058 = vmatprep.subr.bf16.mxu0 0
    %6059 = vmatpush1.bf16.msra.mxu0 %v247
    %6060 = vmatprep.subr.bf16.mxu0 0
    %6061 = vmatpush1.bf16.msra.mxu0 %v246
    %6062 = vmatprep.subr.bf16.mxu0 0
    %6063 = vmatpush1.bf16.msra.mxu0 %v245
    %6064 = vmatprep.subr.bf16.mxu0 0
    %6065 = vmatpush1.bf16.msra.mxu0 %v244
    %6066 = vmatprep.subr.bf16.mxu0 0
    %6067 = vmatpush1.bf16.msra.mxu0 %v243
    %6068 = vmatprep.subr.bf16.mxu0 0
    %6069 = vmatpush1.bf16.msra.mxu0 %v242
    %6070 = vmatprep.subr.bf16.mxu0 0
    %6071 = vmatpush2.bf16.msra.mxu0 0
    %6072 = vmatprep.subr.bf16.mxu0 0
    %6073 = vmatpush2.bf16.msra.mxu0 0
    %6074 = vmatprep.subr.bf16.mxu0 0
    %6075 = vmatpush2.bf16.msra.mxu0 0
    %6076 = vmatprep.subr.bf16.mxu0 0
    %6077 = vmatpush2.bf16.msra.mxu0 0
    %6078 = vmatprep.subr.bf16.mxu0 0
    %6079 = vmatpush2.bf16.msra.mxu0 0
    %6080 = vmatprep.subr.bf16.mxu0 0
    %6081 = vmatpush2.bf16.msra.mxu0 0
    %6082 = vmatprep.subr.bf16.mxu0 0
    %6083 = vmatpush2.bf16.msra.mxu0 0
    %6084 = vmatprep.subr.bf16.mxu0 0
    %6085 = vmatpush2.bf16.msra.mxu0 0
    %6086 = vmatprep.mubr.bf16.mxu0 0
    %6087 = vmatmul.mubr.bf16.gmra.mxu0 %v6053
    %v6088 = vpop.f32.mrf.mxu0
    %v6089 = vadd.f32 0.0, %v6088
    %v6090 = vpop.f32.mrf.mxu0
    %v6091 = vpop.f32.mrf.mxu0
    %v6092 = vpop.f32.mrf.mxu0
    %6093 = vdwg.mxu0
    %v6094 = vpack.c.bf16 %v6089, %v6089
    %6095 = vmatprep.subr.bf16.mxu0 0
    %6096 = vmatpush1.bf16.msra.mxu0 %v158
    %6097 = vmatprep.subr.bf16.mxu0 0
    %6098 = vmatpush1.bf16.msra.mxu0 %v157
    %6099 = vmatprep.subr.bf16.mxu0 0
    %6100 = vmatpush1.bf16.msra.mxu0 %v156
    %6101 = vmatprep.subr.bf16.mxu0 0
    %6102 = vmatpush1.bf16.msra.mxu0 %v155
    %6103 = vmatprep.subr.bf16.mxu0 0
    %6104 = vmatpush1.bf16.msra.mxu0 %v154
    %6105 = vmatprep.subr.bf16.mxu0 0
    %6106 = vmatpush1.bf16.msra.mxu0 %v153
    %6107 = vmatprep.subr.bf16.mxu0 0
    %6108 = vmatpush1.bf16.msra.mxu0 %v152
    %6109 = vmatprep.subr.bf16.mxu0 0
    %6110 = vmatpush1.bf16.msra.mxu0 %v151
    %6111 = vmatprep.subr.bf16.mxu0 0
    %6112 = vmatpush2.bf16.msra.mxu0 0
    %6113 = vmatprep.subr.bf16.mxu0 0
    %6114 = vmatpush2.bf16.msra.mxu0 0
    %6115 = vmatprep.subr.bf16.mxu0 0
    %6116 = vmatpush2.bf16.msra.mxu0 0
    %6117 = vmatprep.subr.bf16.mxu0 0
    %6118 = vmatpush2.bf16.msra.mxu0 0
    %6119 = vmatprep.subr.bf16.mxu0 0
    %6120 = vmatpush2.bf16.msra.mxu0 0
    %6121 = vmatprep.subr.bf16.mxu0 0
    %6122 = vmatpush2.bf16.msra.mxu0 0
    %6123 = vmatprep.subr.bf16.mxu0 0
    %6124 = vmatpush2.bf16.msra.mxu0 0
    %6125 = vmatprep.subr.bf16.mxu0 0
    %6126 = vmatpush2.bf16.msra.mxu0 0
    %6127 = vmatprep.mubr.bf16.mxu0 0
    %6128 = vmatmul.mubr.bf16.gmra.mxu0 %v6094
    %v6129 = vpop.f32.mrf.mxu0
    %v6130 = vadd.f32 0.0, %v6129
    %v6131 = vpop.f32.mrf.mxu0
    %v6132 = vpop.f32.mrf.mxu0
    %v6133 = vpop.f32.mrf.mxu0
    %6134 = vdwg.mxu0
    %v6135 = vtanh.pop %v6130
    %v6136 = vadd.f32 %v6089, %v6135
    %v6137 = vpack.c.bf16 %v6136, %v6136
    %6138 = vmatprep.subr.bf16.mxu0 0
    %6139 = vmatpush1.bf16.msra.mxu0 %v249
    %6140 = vmatprep.subr.bf16.mxu0 0
    %6141 = vmatpush1.bf16.msra.mxu0 %v248
    %6142 = vmatprep.subr.bf16.mxu0 0
    %6143 = vmatpush1.bf16.msra.mxu0 %v247
    %6144 = vmatprep.subr.bf16.mxu0 0
    %6145 = vmatpush1.bf16.msra.mxu0 %v246
    %6146 = vmatprep.subr.bf16.mxu0 0
    %6147 = vmatpush1.bf16.msra.mxu0 %v245
    %6148 = vmatprep.subr.bf16.mxu0 0
    %6149 = vmatpush1.bf16.msra.mxu0 %v244
    %6150 = vmatprep.subr.bf16.mxu0 0
    %6151 = vmatpush1.bf16.msra.mxu0 %v243
    %6152 = vmatprep.subr.bf16.mxu0 0
    %6153 = vmatpush1.bf16.msra.mxu0 %v242
    %6154 = vmatprep.subr.bf16.mxu0 0
    %6155 = vmatpush2.bf16.msra.mxu0 0
    %6156 = vmatprep.subr.bf16.mxu0 0
    %6157 = vmatpush2.bf16.msra.mxu0 0
    %6158 = vmatprep.subr.bf16.mxu0 0
    %6159 = vmatpush2.bf16.msra.mxu0 0
    %6160 = vmatprep.subr.bf16.mxu0 0
    %6161 = vmatpush2.bf16.msra.mxu0 0
    %6162 = vmatprep.subr.bf16.mxu0 0
    %6163 = vmatpush2.bf16.msra.mxu0 0
    %6164 = vmatprep.subr.bf16.mxu0 0
    %6165 = vmatpush2.bf16.msra.mxu0 0
    %6166 = vmatprep.subr.bf16.mxu0 0
    %6167 = vmatpush2.bf16.msra.mxu0 0
    %6168 = vmatprep.subr.bf16.mxu0 0
    %6169 = vmatpush2.bf16.msra.mxu0 0
    %6170 = vmatprep.mubr.bf16.mxu0 0
    %6171 = vmatmul.mubr.bf16.gmra.mxu0 %v6137
    %v6172 = vpop.f32.mrf.mxu0
    %v6173 = vadd.f32 0.0, %v6172
    %v6174 = vpop.f32.mrf.mxu0
    %v6175 = vpop.f32.mrf.mxu0
    %v6176 = vpop.f32.mrf.mxu0
    %6177 = vdwg.mxu0
    %v6178 = vpack.c.bf16 %v6173, %v6173
    %6179 = vmatprep.subr.bf16.mxu0 0
    %6180 = vmatpush1.bf16.msra.mxu0 %v158
    %6181 = vmatprep.subr.bf16.mxu0 0
    %6182 = vmatpush1.bf16.msra.mxu0 %v157
    %6183 = vmatprep.subr.bf16.mxu0 0
    %6184 = vmatpush1.bf16.msra.mxu0 %v156
    %6185 = vmatprep.subr.bf16.mxu0 0
    %6186 = vmatpush1.bf16.msra.mxu0 %v155
    %6187 = vmatprep.subr.bf16.mxu0 0
    %6188 = vmatpush1.bf16.msra.mxu0 %v154
    %6189 = vmatprep.subr.bf16.mxu0 0
    %6190 = vmatpush1.bf16.msra.mxu0 %v153
    %6191 = vmatprep.subr.bf16.mxu0 0
    %6192 = vmatpush1.bf16.msra.mxu0 %v152
    %6193 = vmatprep.subr.bf16.mxu0 0
    %6194 = vmatpush1.bf16.msra.mxu0 %v151
    %6195 = vmatprep.subr.bf16.mxu0 0
    %6196 = vmatpush2.bf16.msra.mxu0 0
    %6197 = vmatprep.subr.bf16.mxu0 0
    %6198 = vmatpush2.bf16.msra.mxu0 0
    %6199 = vmatprep.subr.bf16.mxu0 0
    %6200 = vmatpush2.bf16.msra.mxu0 0
    %6201 = vmatprep.subr.bf16.mxu0 0
    %6202 = vmatpush2.bf16.msra.mxu0 0
    %6203 = vmatprep.subr.bf16.mxu0 0
    %6204 = vmatpush2.bf16.msra.mxu0 0
    %6205 = vmatprep.subr.bf16.mxu0 0
    %6206 = vmatpush2.bf16.msra.mxu0 0
    %6207 = vmatprep.subr.bf16.mxu0 0
    %6208 = vmatpush2.bf16.msra.mxu0 0
    %6209 = vmatprep.subr.bf16.mxu0 0
    %6210 = vmatpush2.bf16.msra.mxu0 0
    %6211 = vmatprep.mubr.bf16.mxu0 0
    %6212 = vmatmul.mubr.bf16.gmra.mxu0 %v6178
    %v6213 = vpop.f32.mrf.mxu0
    %v6214 = vadd.f32 0.0, %v6213
    %v6215 = vpop.f32.mrf.mxu0
    %v6216 = vpop.f32.mrf.mxu0
    %v6217 = vpop.f32.mrf.mxu0
    %6218 = vdwg.mxu0
    %v6219 = vtanh.pop %v6214
    %v6220 = vadd.f32 %v6173, %v6219
    %v6221 = vpack.c.bf16 %v6220, %v6220
    %6222 = vmatprep.subr.bf16.mxu0 0
    %6223 = vmatpush1.bf16.msra.mxu0 %v249
    %6224 = vmatprep.subr.bf16.mxu0 0
    %6225 = vmatpush1.bf16.msra.mxu0 %v248
    %6226 = vmatprep.subr.bf16.mxu0 0
    %6227 = vmatpush1.bf16.msra.mxu0 %v247
    %6228 = vmatprep.subr.bf16.mxu0 0
    %6229 = vmatpush1.bf16.msra.mxu0 %v246
    %6230 = vmatprep.subr.bf16.mxu0 0
    %6231 = vmatpush1.bf16.msra.mxu0 %v245
    %6232 = vmatprep.subr.bf16.mxu0 0
    %6233 = vmatpush1.bf16.msra.mxu0 %v244
    %6234 = vmatprep.subr.bf16.mxu0 0
    %6235 = vmatpush1.bf16.msra.mxu0 %v243
    %6236 = vmatprep.subr.bf16.mxu0 0
    %6237 = vmatpush1.bf16.msra.mxu0 %v242
    %6238 = vmatprep.subr.bf16.mxu0 0
    %6239 = vmatpush2.bf16.msra.mxu0 0
    %6240 = vmatprep.subr.bf16.mxu0 0
    %6241 = vmatpush2.bf16.msra.mxu0 0
    %6242 = vmatprep.subr.bf16.mxu0 0
    %6243 = vmatpush2.bf16.msra.mxu0 0
    %6244 = vmatprep.subr.bf16.mxu0 0
    %6245 = vmatpush2.bf16.msra.mxu0 0
    %6246 = vmatprep.subr.bf16.mxu0 0
    %6247 = vmatpush2.bf16.msra.mxu0 0
    %6248 = vmatprep.subr.bf16.mxu0 0
    %6249 = vmatpush2.bf16.msra.mxu0 0
    %6250 = vmatprep.subr.bf16.mxu0 0
    %6251 = vmatpush2.bf16.msra.mxu0 0
    %6252 = vmatprep.subr.bf16.mxu0 0
    %6253 = vmatpush2.bf16.msra.mxu0 0
    %6254 = vmatprep.mubr.bf16.mxu0 0
    %6255 = vmatmul.mubr.bf16.gmra.mxu0 %v6221
    %v6256 = vpop.f32.mrf.mxu0
    %v6257 = vadd.f32 0.0, %v6256
    %v6258 = vpop.f32.mrf.mxu0
    %v6259 = vpop.f32.mrf.mxu0
    %v6260 = vpop.f32.mrf.mxu0
    %6261 = vdwg.mxu0
    %v6262 = vpack.c.bf16 %v6257, %v6257
    %6263 = vmatprep.subr.bf16.mxu0 0
    %6264 = vmatpush1.bf16.msra.mxu0 %v158
    %6265 = vmatprep.subr.bf16.mxu0 0
    %6266 = vmatpush1.bf16.msra.mxu0 %v157
    %6267 = vmatprep.subr.bf16.mxu0 0
    %6268 = vmatpush1.bf16.msra.mxu0 %v156
    %6269 = vmatprep.subr.bf16.mxu0 0
    %6270 = vmatpush1.bf16.msra.mxu0 %v155
    %6271 = vmatprep.subr.bf16.mxu0 0
    %6272 = vmatpush1.bf16.msra.mxu0 %v154
    %6273 = vmatprep.subr.bf16.mxu0 0
    %6274 = vmatpush1.bf16.msra.mxu0 %v153
    %6275 = vmatprep.subr.bf16.mxu0 0
    %6276 = vmatpush1.bf16.msra.mxu0 %v152
    %6277 = vmatprep.subr.bf16.mxu0 0
    %6278 = vmatpush1.bf16.msra.mxu0 %v151
    %6279 = vmatprep.subr.bf16.mxu0 0
    %6280 = vmatpush2.bf16.msra.mxu0 0
    %6281 = vmatprep.subr.bf16.mxu0 0
    %6282 = vmatpush2.bf16.msra.mxu0 0
    %6283 = vmatprep.subr.bf16.mxu0 0
    %6284 = vmatpush2.bf16.msra.mxu0 0
    %6285 = vmatprep.subr.bf16.mxu0 0
    %6286 = vmatpush2.bf16.msra.mxu0 0
    %6287 = vmatprep.subr.bf16.mxu0 0
    %6288 = vmatpush2.bf16.msra.mxu0 0
    %6289 = vmatprep.subr.bf16.mxu0 0
    %6290 = vmatpush2.bf16.msra.mxu0 0
    %6291 = vmatprep.subr.bf16.mxu0 0
    %6292 = vmatpush2.bf16.msra.mxu0 0
    %6293 = vmatprep.subr.bf16.mxu0 0
    %6294 = vmatpush2.bf16.msra.mxu0 0
    %6295 = vmatprep.mubr.bf16.mxu0 0
    %6296 = vmatmul.mubr.bf16.gmra.mxu0 %v6262
    %v6297 = vpop.f32.mrf.mxu0
    %v6298 = vadd.f32 0.0, %v6297
    %v6299 = vpop.f32.mrf.mxu0
    %v6300 = vpop.f32.mrf.mxu0
    %v6301 = vpop.f32.mrf.mxu0
    %6302 = vdwg.mxu0
    %v6303 = vtanh.pop %v6298
    %v6304 = vadd.f32 %v6257, %v6303
    %v6305 = vpack.c.bf16 %v6304, %v6304
    %6306 = vmatprep.subr.bf16.mxu0 0
    %6307 = vmatpush1.bf16.msra.mxu0 %v249
    %6308 = vmatprep.subr.bf16.mxu0 0
    %6309 = vmatpush1.bf16.msra.mxu0 %v248
    %6310 = vmatprep.subr.bf16.mxu0 0
    %6311 = vmatpush1.bf16.msra.mxu0 %v247
    %6312 = vmatprep.subr.bf16.mxu0 0
    %6313 = vmatpush1.bf16.msra.mxu0 %v246
    %6314 = vmatprep.subr.bf16.mxu0 0
    %6315 = vmatpush1.bf16.msra.mxu0 %v245
    %6316 = vmatprep.subr.bf16.mxu0 0
    %6317 = vmatpush1.bf16.msra.mxu0 %v244
    %6318 = vmatprep.subr.bf16.mxu0 0
    %6319 = vmatpush1.bf16.msra.mxu0 %v243
    %6320 = vmatprep.subr.bf16.mxu0 0
    %6321 = vmatpush1.bf16.msra.mxu0 %v242
    %6322 = vmatprep.subr.bf16.mxu0 0
    %6323 = vmatpush2.bf16.msra.mxu0 0
    %6324 = vmatprep.subr.bf16.mxu0 0
    %6325 = vmatpush2.bf16.msra.mxu0 0
    %6326 = vmatprep.subr.bf16.mxu0 0
    %6327 = vmatpush2.bf16.msra.mxu0 0
    %6328 = vmatprep.subr.bf16.mxu0 0
    %6329 = vmatpush2.bf16.msra.mxu0 0
    %6330 = vmatprep.subr.bf16.mxu0 0
    %6331 = vmatpush2.bf16.msra.mxu0 0
    %6332 = vmatprep.subr.bf16.mxu0 0
    %6333 = vmatpush2.bf16.msra.mxu0 0
    %6334 = vmatprep.subr.bf16.mxu0 0
    %6335 = vmatpush2.bf16.msra.mxu0 0
    %6336 = vmatprep.subr.bf16.mxu0 0
    %6337 = vmatpush2.bf16.msra.mxu0 0
    %6338 = vmatprep.mubr.bf16.mxu0 0
    %6339 = vmatmul.mubr.bf16.gmra.mxu0 %v6305
    %v6340 = vpop.f32.mrf.mxu0
    %v6341 = vadd.f32 0.0, %v6340
    %v6342 = vpop.f32.mrf.mxu0
    %v6343 = vpop.f32.mrf.mxu0
    %v6344 = vpop.f32.mrf.mxu0
    %6345 = vdwg.mxu0
    %v6346 = vpack.c.bf16 %v6341, %v6341
    %6347 = vmatprep.subr.bf16.mxu0 0
    %6348 = vmatpush1.bf16.msra.mxu0 %v158
    %6349 = vmatprep.subr.bf16.mxu0 0
    %6350 = vmatpush1.bf16.msra.mxu0 %v157
    %6351 = vmatprep.subr.bf16.mxu0 0
    %6352 = vmatpush1.bf16.msra.mxu0 %v156
    %6353 = vmatprep.subr.bf16.mxu0 0
    %6354 = vmatpush1.bf16.msra.mxu0 %v155
    %6355 = vmatprep.subr.bf16.mxu0 0
    %6356 = vmatpush1.bf16.msra.mxu0 %v154
    %6357 = vmatprep.subr.bf16.mxu0 0
    %6358 = vmatpush1.bf16.msra.mxu0 %v153
    %6359 = vmatprep.subr.bf16.mxu0 0
    %6360 = vmatpush1.bf16.msra.mxu0 %v152
    %6361 = vmatprep.subr.bf16.mxu0 0
    %6362 = vmatpush1.bf16.msra.mxu0 %v151
    %6363 = vmatprep.subr.bf16.mxu0 0
    %6364 = vmatpush2.bf16.msra.mxu0 0
    %6365 = vmatprep.subr.bf16.mxu0 0
    %6366 = vmatpush2.bf16.msra.mxu0 0
    %6367 = vmatprep.subr.bf16.mxu0 0
    %6368 = vmatpush2.bf16.msra.mxu0 0
    %6369 = vmatprep.subr.bf16.mxu0 0
    %6370 = vmatpush2.bf16.msra.mxu0 0
    %6371 = vmatprep.subr.bf16.mxu0 0
    %6372 = vmatpush2.bf16.msra.mxu0 0
    %6373 = vmatprep.subr.bf16.mxu0 0
    %6374 = vmatpush2.bf16.msra.mxu0 0
    %6375 = vmatprep.subr.bf16.mxu0 0
    %6376 = vmatpush2.bf16.msra.mxu0 0
    %6377 = vmatprep.subr.bf16.mxu0 0
    %6378 = vmatpush2.bf16.msra.mxu0 0
    %6379 = vmatprep.mubr.bf16.mxu0 0
    %6380 = vmatmul.mubr.bf16.gmra.mxu0 %v6346
    %v6381 = vpop.f32.mrf.mxu0
    %v6382 = vadd.f32 0.0, %v6381
    %v6383 = vpop.f32.mrf.mxu0
    %v6384 = vpop.f32.mrf.mxu0
    %v6385 = vpop.f32.mrf.mxu0
    %6386 = vdwg.mxu0
    %v6387 = vtanh.pop %v6382
    %v6388 = vadd.f32 %v6341, %v6387
    %v6389 = vpack.c.bf16 %v6388, %v6388
    %6390 = vmatprep.subr.bf16.mxu0 0
    %6391 = vmatpush1.bf16.msra.mxu0 %v249
    %6392 = vmatprep.subr.bf16.mxu0 0
    %6393 = vmatpush1.bf16.msra.mxu0 %v248
    %6394 = vmatprep.subr.bf16.mxu0 0
    %6395 = vmatpush1.bf16.msra.mxu0 %v247
    %6396 = vmatprep.subr.bf16.mxu0 0
    %6397 = vmatpush1.bf16.msra.mxu0 %v246
    %6398 = vmatprep.subr.bf16.mxu0 0
    %6399 = vmatpush1.bf16.msra.mxu0 %v245
    %6400 = vmatprep.subr.bf16.mxu0 0
    %6401 = vmatpush1.bf16.msra.mxu0 %v244
    %6402 = vmatprep.subr.bf16.mxu0 0
    %6403 = vmatpush1.bf16.msra.mxu0 %v243
    %6404 = vmatprep.subr.bf16.mxu0 0
    %6405 = vmatpush1.bf16.msra.mxu0 %v242
    %6406 = vmatprep.subr.bf16.mxu0 0
    %6407 = vmatpush2.bf16.msra.mxu0 0
    %6408 = vmatprep.subr.bf16.mxu0 0
    %6409 = vmatpush2.bf16.msra.mxu0 0
    %6410 = vmatprep.subr.bf16.mxu0 0
    %6411 = vmatpush2.bf16.msra.mxu0 0
    %6412 = vmatprep.subr.bf16.mxu0 0
    %6413 = vmatpush2.bf16.msra.mxu0 0
    %6414 = vmatprep.subr.bf16.mxu0 0
    %6415 = vmatpush2.bf16.msra.mxu0 0
    %6416 = vmatprep.subr.bf16.mxu0 0
    %6417 = vmatpush2.bf16.msra.mxu0 0
    %6418 = vmatprep.subr.bf16.mxu0 0
    %6419 = vmatpush2.bf16.msra.mxu0 0
    %6420 = vmatprep.subr.bf16.mxu0 0
    %6421 = vmatpush2.bf16.msra.mxu0 0
    %6422 = vmatprep.mubr.bf16.mxu0 0
    %6423 = vmatmul.mubr.bf16.gmra.mxu0 %v6389
    %v6424 = vpop.f32.mrf.mxu0
    %v6425 = vadd.f32 0.0, %v6424
    %v6426 = vpop.f32.mrf.mxu0
    %v6427 = vpop.f32.mrf.mxu0
    %v6428 = vpop.f32.mrf.mxu0
    %6429 = vdwg.mxu0
    %v6430 = vpack.c.bf16 %v6425, %v6425
    %6431 = vmatprep.subr.bf16.mxu0 0
    %6432 = vmatpush1.bf16.msra.mxu0 %v158
    %6433 = vmatprep.subr.bf16.mxu0 0
    %6434 = vmatpush1.bf16.msra.mxu0 %v157
    %6435 = vmatprep.subr.bf16.mxu0 0
    %6436 = vmatpush1.bf16.msra.mxu0 %v156
    %6437 = vmatprep.subr.bf16.mxu0 0
    %6438 = vmatpush1.bf16.msra.mxu0 %v155
    %6439 = vmatprep.subr.bf16.mxu0 0
    %6440 = vmatpush1.bf16.msra.mxu0 %v154
    %6441 = vmatprep.subr.bf16.mxu0 0
    %6442 = vmatpush1.bf16.msra.mxu0 %v153
    %6443 = vmatprep.subr.bf16.mxu0 0
    %6444 = vmatpush1.bf16.msra.mxu0 %v152
    %6445 = vmatprep.subr.bf16.mxu0 0
    %6446 = vmatpush1.bf16.msra.mxu0 %v151
    %6447 = vmatprep.subr.bf16.mxu0 0
    %6448 = vmatpush2.bf16.msra.mxu0 0
    %6449 = vmatprep.subr.bf16.mxu0 0
    %6450 = vmatpush2.bf16.msra.mxu0 0
    %6451 = vmatprep.subr.bf16.mxu0 0
    %6452 = vmatpush2.bf16.msra.mxu0 0
    %6453 = vmatprep.subr.bf16.mxu0 0
    %6454 = vmatpush2.bf16.msra.mxu0 0
    %6455 = vmatprep.subr.bf16.mxu0 0
    %6456 = vmatpush2.bf16.msra.mxu0 0
    %6457 = vmatprep.subr.bf16.mxu0 0
    %6458 = vmatpush2.bf16.msra.mxu0 0
    %6459 = vmatprep.subr.bf16.mxu0 0
    %6460 = vmatpush2.bf16.msra.mxu0 0
    %6461 = vmatprep.subr.bf16.mxu0 0
    %6462 = vmatpush2.bf16.msra.mxu0 0
    %6463 = vmatprep.mubr.bf16.mxu0 0
    %6464 = vmatmul.mubr.bf16.gmra.mxu0 %v6430
    %v6465 = vpop.f32.mrf.mxu0
    %v6466 = vadd.f32 0.0, %v6465
    %v6467 = vpop.f32.mrf.mxu0
    %v6468 = vpop.f32.mrf.mxu0
    %v6469 = vpop.f32.mrf.mxu0
    %6470 = vdwg.mxu0
    %v6471 = vtanh.pop %v6466
    %v6472 = vadd.f32 %v6425, %v6471
    %v6473 = vpack.c.bf16 %v6472, %v6472
    %6474 = vmatprep.subr.bf16.mxu0 0
    %6475 = vmatpush1.bf16.msra.mxu0 %v249
    %6476 = vmatprep.subr.bf16.mxu0 0
    %6477 = vmatpush1.bf16.msra.mxu0 %v248
    %6478 = vmatprep.subr.bf16.mxu0 0
    %6479 = vmatpush1.bf16.msra.mxu0 %v247
    %6480 = vmatprep.subr.bf16.mxu0 0
    %6481 = vmatpush1.bf16.msra.mxu0 %v246
    %6482 = vmatprep.subr.bf16.mxu0 0
    %6483 = vmatpush1.bf16.msra.mxu0 %v245
    %6484 = vmatprep.subr.bf16.mxu0 0
    %6485 = vmatpush1.bf16.msra.mxu0 %v244
    %6486 = vmatprep.subr.bf16.mxu0 0
    %6487 = vmatpush1.bf16.msra.mxu0 %v243
    %6488 = vmatprep.subr.bf16.mxu0 0
    %6489 = vmatpush1.bf16.msra.mxu0 %v242
    %6490 = vmatprep.subr.bf16.mxu0 0
    %6491 = vmatpush2.bf16.msra.mxu0 0
    %6492 = vmatprep.subr.bf16.mxu0 0
    %6493 = vmatpush2.bf16.msra.mxu0 0
    %6494 = vmatprep.subr.bf16.mxu0 0
    %6495 = vmatpush2.bf16.msra.mxu0 0
    %6496 = vmatprep.subr.bf16.mxu0 0
    %6497 = vmatpush2.bf16.msra.mxu0 0
    %6498 = vmatprep.subr.bf16.mxu0 0
    %6499 = vmatpush2.bf16.msra.mxu0 0
    %6500 = vmatprep.subr.bf16.mxu0 0
    %6501 = vmatpush2.bf16.msra.mxu0 0
    %6502 = vmatprep.subr.bf16.mxu0 0
    %6503 = vmatpush2.bf16.msra.mxu0 0
    %6504 = vmatprep.subr.bf16.mxu0 0
    %6505 = vmatpush2.bf16.msra.mxu0 0
    %6506 = vmatprep.mubr.bf16.mxu0 0
    %6507 = vmatmul.mubr.bf16.gmra.mxu0 %v6473
    %v6508 = vpop.f32.mrf.mxu0
    %v6509 = vadd.f32 0.0, %v6508
    %v6510 = vpop.f32.mrf.mxu0
    %v6511 = vpop.f32.mrf.mxu0
    %v6512 = vpop.f32.mrf.mxu0
    %6513 = vdwg.mxu0
    %v6514 = vpack.c.bf16 %v6509, %v6509
    %6515 = vmatprep.subr.bf16.mxu0 0
    %6516 = vmatpush1.bf16.msra.mxu0 %v158
    %6517 = vmatprep.subr.bf16.mxu0 0
    %6518 = vmatpush1.bf16.msra.mxu0 %v157
    %6519 = vmatprep.subr.bf16.mxu0 0
    %6520 = vmatpush1.bf16.msra.mxu0 %v156
    %6521 = vmatprep.subr.bf16.mxu0 0
    %6522 = vmatpush1.bf16.msra.mxu0 %v155
    %6523 = vmatprep.subr.bf16.mxu0 0
    %6524 = vmatpush1.bf16.msra.mxu0 %v154
    %6525 = vmatprep.subr.bf16.mxu0 0
    %6526 = vmatpush1.bf16.msra.mxu0 %v153
    %6527 = vmatprep.subr.bf16.mxu0 0
    %6528 = vmatpush1.bf16.msra.mxu0 %v152
    %6529 = vmatprep.subr.bf16.mxu0 0
    %6530 = vmatpush1.bf16.msra.mxu0 %v151
    %6531 = vmatprep.subr.bf16.mxu0 0
    %6532 = vmatpush2.bf16.msra.mxu0 0
    %6533 = vmatprep.subr.bf16.mxu0 0
    %6534 = vmatpush2.bf16.msra.mxu0 0
    %6535 = vmatprep.subr.bf16.mxu0 0
    %6536 = vmatpush2.bf16.msra.mxu0 0
    %6537 = vmatprep.subr.bf16.mxu0 0
    %6538 = vmatpush2.bf16.msra.mxu0 0
    %6539 = vmatprep.subr.bf16.mxu0 0
    %6540 = vmatpush2.bf16.msra.mxu0 0
    %6541 = vmatprep.subr.bf16.mxu0 0
    %6542 = vmatpush2.bf16.msra.mxu0 0
    %6543 = vmatprep.subr.bf16.mxu0 0
    %6544 = vmatpush2.bf16.msra.mxu0 0
    %6545 = vmatprep.subr.bf16.mxu0 0
    %6546 = vmatpush2.bf16.msra.mxu0 0
    %6547 = vmatprep.mubr.bf16.mxu0 0
    %6548 = vmatmul.mubr.bf16.gmra.mxu0 %v6514
    %v6549 = vpop.f32.mrf.mxu0
    %v6550 = vadd.f32 0.0, %v6549
    %v6551 = vpop.f32.mrf.mxu0
    %v6552 = vpop.f32.mrf.mxu0
    %v6553 = vpop.f32.mrf.mxu0
    %6554 = vdwg.mxu0
    %v6555 = vtanh.pop %v6550
    %v6556 = vadd.f32 %v6509, %v6555
    %v6557 = vpack.c.bf16 %v6556, %v6556
    %6558 = vmatprep.subr.bf16.mxu0 0
    %6559 = vmatpush1.bf16.msra.mxu0 %v249
    %6560 = vmatprep.subr.bf16.mxu0 0
    %6561 = vmatpush1.bf16.msra.mxu0 %v248
    %6562 = vmatprep.subr.bf16.mxu0 0
    %6563 = vmatpush1.bf16.msra.mxu0 %v247
    %6564 = vmatprep.subr.bf16.mxu0 0
    %6565 = vmatpush1.bf16.msra.mxu0 %v246
    %6566 = vmatprep.subr.bf16.mxu0 0
    %6567 = vmatpush1.bf16.msra.mxu0 %v245
    %6568 = vmatprep.subr.bf16.mxu0 0
    %6569 = vmatpush1.bf16.msra.mxu0 %v244
    %6570 = vmatprep.subr.bf16.mxu0 0
    %6571 = vmatpush1.bf16.msra.mxu0 %v243
    %6572 = vmatprep.subr.bf16.mxu0 0
    %6573 = vmatpush1.bf16.msra.mxu0 %v242
    %6574 = vmatprep.subr.bf16.mxu0 0
    %6575 = vmatpush2.bf16.msra.mxu0 0
    %6576 = vmatprep.subr.bf16.mxu0 0
    %6577 = vmatpush2.bf16.msra.mxu0 0
    %6578 = vmatprep.subr.bf16.mxu0 0
    %6579 = vmatpush2.bf16.msra.mxu0 0
    %6580 = vmatprep.subr.bf16.mxu0 0
    %6581 = vmatpush2.bf16.msra.mxu0 0
    %6582 = vmatprep.subr.bf16.mxu0 0
    %6583 = vmatpush2.bf16.msra.mxu0 0
    %6584 = vmatprep.subr.bf16.mxu0 0
    %6585 = vmatpush2.bf16.msra.mxu0 0
    %6586 = vmatprep.subr.bf16.mxu0 0
    %6587 = vmatpush2.bf16.msra.mxu0 0
    %6588 = vmatprep.subr.bf16.mxu0 0
    %6589 = vmatpush2.bf16.msra.mxu0 0
    %6590 = vmatprep.mubr.bf16.mxu0 0
    %6591 = vmatmul.mubr.bf16.gmra.mxu0 %v6557
    %v6592 = vpop.f32.mrf.mxu0
    %v6593 = vadd.f32 0.0, %v6592
    %v6594 = vpop.f32.mrf.mxu0
    %v6595 = vpop.f32.mrf.mxu0
    %v6596 = vpop.f32.mrf.mxu0
    %6597 = vdwg.mxu0
    %v6598 = vpack.c.bf16 %v6593, %v6593
    %6599 = vmatprep.subr.bf16.mxu0 0
    %6600 = vmatpush1.bf16.msra.mxu0 %v158
    %6601 = vmatprep.subr.bf16.mxu0 0
    %6602 = vmatpush1.bf16.msra.mxu0 %v157
    %6603 = vmatprep.subr.bf16.mxu0 0
    %6604 = vmatpush1.bf16.msra.mxu0 %v156
    %6605 = vmatprep.subr.bf16.mxu0 0
    %6606 = vmatpush1.bf16.msra.mxu0 %v155
    %6607 = vmatprep.subr.bf16.mxu0 0
    %6608 = vmatpush1.bf16.msra.mxu0 %v154
    %6609 = vmatprep.subr.bf16.mxu0 0
    %6610 = vmatpush1.bf16.msra.mxu0 %v153
    %6611 = vmatprep.subr.bf16.mxu0 0
    %6612 = vmatpush1.bf16.msra.mxu0 %v152
    %6613 = vmatprep.subr.bf16.mxu0 0
    %6614 = vmatpush1.bf16.msra.mxu0 %v151
    %6615 = vmatprep.subr.bf16.mxu0 0
    %6616 = vmatpush2.bf16.msra.mxu0 0
    %6617 = vmatprep.subr.bf16.mxu0 0
    %6618 = vmatpush2.bf16.msra.mxu0 0
    %6619 = vmatprep.subr.bf16.mxu0 0
    %6620 = vmatpush2.bf16.msra.mxu0 0
    %6621 = vmatprep.subr.bf16.mxu0 0
    %6622 = vmatpush2.bf16.msra.mxu0 0
    %6623 = vmatprep.subr.bf16.mxu0 0
    %6624 = vmatpush2.bf16.msra.mxu0 0
    %6625 = vmatprep.subr.bf16.mxu0 0
    %6626 = vmatpush2.bf16.msra.mxu0 0
    %6627 = vmatprep.subr.bf16.mxu0 0
    %6628 = vmatpush2.bf16.msra.mxu0 0
    %6629 = vmatprep.subr.bf16.mxu0 0
    %6630 = vmatpush2.bf16.msra.mxu0 0
    %6631 = vmatprep.mubr.bf16.mxu0 0
    %6632 = vmatmul.mubr.bf16.gmra.mxu0 %v6598
    %v6633 = vpop.f32.mrf.mxu0
    %v6634 = vadd.f32 0.0, %v6633
    %v6635 = vpop.f32.mrf.mxu0
    %v6636 = vpop.f32.mrf.mxu0
    %v6637 = vpop.f32.mrf.mxu0
    %6638 = vdwg.mxu0
    %v6639 = vtanh.pop %v6634
    %v6640 = vadd.f32 %v6593, %v6639
    %v6641 = vpack.c.bf16 %v6640, %v6640
    %6642 = vmatprep.subr.bf16.mxu0 0
    %6643 = vmatpush1.bf16.msra.mxu0 %v249
    %6644 = vmatprep.subr.bf16.mxu0 0
    %6645 = vmatpush1.bf16.msra.mxu0 %v248
    %6646 = vmatprep.subr.bf16.mxu0 0
    %6647 = vmatpush1.bf16.msra.mxu0 %v247
    %6648 = vmatprep.subr.bf16.mxu0 0
    %6649 = vmatpush1.bf16.msra.mxu0 %v246
    %6650 = vmatprep.subr.bf16.mxu0 0
    %6651 = vmatpush1.bf16.msra.mxu0 %v245
    %6652 = vmatprep.subr.bf16.mxu0 0
    %6653 = vmatpush1.bf16.msra.mxu0 %v244
    %6654 = vmatprep.subr.bf16.mxu0 0
    %6655 = vmatpush1.bf16.msra.mxu0 %v243
    %6656 = vmatprep.subr.bf16.mxu0 0
    %6657 = vmatpush1.bf16.msra.mxu0 %v242
    %6658 = vmatprep.subr.bf16.mxu0 0
    %6659 = vmatpush2.bf16.msra.mxu0 0
    %6660 = vmatprep.subr.bf16.mxu0 0
    %6661 = vmatpush2.bf16.msra.mxu0 0
    %6662 = vmatprep.subr.bf16.mxu0 0
    %6663 = vmatpush2.bf16.msra.mxu0 0
    %6664 = vmatprep.subr.bf16.mxu0 0
    %6665 = vmatpush2.bf16.msra.mxu0 0
    %6666 = vmatprep.subr.bf16.mxu0 0
    %6667 = vmatpush2.bf16.msra.mxu0 0
    %6668 = vmatprep.subr.bf16.mxu0 0
    %6669 = vmatpush2.bf16.msra.mxu0 0
    %6670 = vmatprep.subr.bf16.mxu0 0
    %6671 = vmatpush2.bf16.msra.mxu0 0
    %6672 = vmatprep.subr.bf16.mxu0 0
    %6673 = vmatpush2.bf16.msra.mxu0 0
    %6674 = vmatprep.mubr.bf16.mxu0 0
    %6675 = vmatmul.mubr.bf16.gmra.mxu0 %v6641
    %v6676 = vpop.f32.mrf.mxu0
    %v6677 = vadd.f32 0.0, %v6676
    %v6678 = vpop.f32.mrf.mxu0
    %v6679 = vpop.f32.mrf.mxu0
    %v6680 = vpop.f32.mrf.mxu0
    %6681 = vdwg.mxu0
    %v6682 = vpack.c.bf16 %v6677, %v6677
    %6683 = vmatprep.subr.bf16.mxu0 0
    %6684 = vmatpush1.bf16.msra.mxu0 %v158
    %6685 = vmatprep.subr.bf16.mxu0 0
    %6686 = vmatpush1.bf16.msra.mxu0 %v157
    %6687 = vmatprep.subr.bf16.mxu0 0
    %6688 = vmatpush1.bf16.msra.mxu0 %v156
    %6689 = vmatprep.subr.bf16.mxu0 0
    %6690 = vmatpush1.bf16.msra.mxu0 %v155
    %6691 = vmatprep.subr.bf16.mxu0 0
    %6692 = vmatpush1.bf16.msra.mxu0 %v154
    %6693 = vmatprep.subr.bf16.mxu0 0
    %6694 = vmatpush1.bf16.msra.mxu0 %v153
    %6695 = vmatprep.subr.bf16.mxu0 0
    %6696 = vmatpush1.bf16.msra.mxu0 %v152
    %6697 = vmatprep.subr.bf16.mxu0 0
    %6698 = vmatpush1.bf16.msra.mxu0 %v151
    %6699 = vmatprep.subr.bf16.mxu0 0
    %6700 = vmatpush2.bf16.msra.mxu0 0
    %6701 = vmatprep.subr.bf16.mxu0 0
    %6702 = vmatpush2.bf16.msra.mxu0 0
    %6703 = vmatprep.subr.bf16.mxu0 0
    %6704 = vmatpush2.bf16.msra.mxu0 0
    %6705 = vmatprep.subr.bf16.mxu0 0
    %6706 = vmatpush2.bf16.msra.mxu0 0
    %6707 = vmatprep.subr.bf16.mxu0 0
    %6708 = vmatpush2.bf16.msra.mxu0 0
    %6709 = vmatprep.subr.bf16.mxu0 0
    %6710 = vmatpush2.bf16.msra.mxu0 0
    %6711 = vmatprep.subr.bf16.mxu0 0
    %6712 = vmatpush2.bf16.msra.mxu0 0
    %6713 = vmatprep.subr.bf16.mxu0 0
    %6714 = vmatpush2.bf16.msra.mxu0 0
    %6715 = vmatprep.mubr.bf16.mxu0 0
    %6716 = vmatmul.mubr.bf16.gmra.mxu0 %v6682
    %v6717 = vpop.f32.mrf.mxu0
    %v6718 = vadd.f32 0.0, %v6717
    %v6719 = vpop.f32.mrf.mxu0
    %v6720 = vpop.f32.mrf.mxu0
    %v6721 = vpop.f32.mrf.mxu0
    %6722 = vdwg.mxu0
    %v6723 = vtanh.pop %v6718
    %v6724 = vadd.f32 %v6677, %v6723
    %v6725 = vpack.c.bf16 %v6724, %v6724
    %6726 = vmatprep.subr.bf16.mxu0 0
    %6727 = vmatpush1.bf16.msra.mxu0 %v249
    %6728 = vmatprep.subr.bf16.mxu0 0
    %6729 = vmatpush1.bf16.msra.mxu0 %v248
    %6730 = vmatprep.subr.bf16.mxu0 0
    %6731 = vmatpush1.bf16.msra.mxu0 %v247
    %6732 = vmatprep.subr.bf16.mxu0 0
    %6733 = vmatpush1.bf16.msra.mxu0 %v246
    %6734 = vmatprep.subr.bf16.mxu0 0
    %6735 = vmatpush1.bf16.msra.mxu0 %v245
    %6736 = vmatprep.subr.bf16.mxu0 0
    %6737 = vmatpush1.bf16.msra.mxu0 %v244
    %6738 = vmatprep.subr.bf16.mxu0 0
    %6739 = vmatpush1.bf16.msra.mxu0 %v243
    %6740 = vmatprep.subr.bf16.mxu0 0
    %6741 = vmatpush1.bf16.msra.mxu0 %v242
    %6742 = vmatprep.subr.bf16.mxu0 0
    %6743 = vmatpush2.bf16.msra.mxu0 0
    %6744 = vmatprep.subr.bf16.mxu0 0
    %6745 = vmatpush2.bf16.msra.mxu0 0
    %6746 = vmatprep.subr.bf16.mxu0 0
    %6747 = vmatpush2.bf16.msra.mxu0 0
    %6748 = vmatprep.subr.bf16.mxu0 0
    %6749 = vmatpush2.bf16.msra.mxu0 0
    %6750 = vmatprep.subr.bf16.mxu0 0
    %6751 = vmatpush2.bf16.msra.mxu0 0
    %6752 = vmatprep.subr.bf16.mxu0 0
    %6753 = vmatpush2.bf16.msra.mxu0 0
    %6754 = vmatprep.subr.bf16.mxu0 0
    %6755 = vmatpush2.bf16.msra.mxu0 0
    %6756 = vmatprep.subr.bf16.mxu0 0
    %6757 = vmatpush2.bf16.msra.mxu0 0
    %6758 = vmatprep.mubr.bf16.mxu0 0
    %6759 = vmatmul.mubr.bf16.gmra.mxu0 %v6725
    %v6760 = vpop.f32.mrf.mxu0
    %v6761 = vadd.f32 0.0, %v6760
    %v6762 = vpop.f32.mrf.mxu0
    %v6763 = vpop.f32.mrf.mxu0
    %v6764 = vpop.f32.mrf.mxu0
    %6765 = vdwg.mxu0
    %v6766 = vpack.c.bf16 %v6761, %v6761
    %6767 = vmatprep.subr.bf16.mxu0 0
    %6768 = vmatpush1.bf16.msra.mxu0 %v158
    %6769 = vmatprep.subr.bf16.mxu0 0
    %6770 = vmatpush1.bf16.msra.mxu0 %v157
    %6771 = vmatprep.subr.bf16.mxu0 0
    %6772 = vmatpush1.bf16.msra.mxu0 %v156
    %6773 = vmatprep.subr.bf16.mxu0 0
    %6774 = vmatpush1.bf16.msra.mxu0 %v155
    %6775 = vmatprep.subr.bf16.mxu0 0
    %6776 = vmatpush1.bf16.msra.mxu0 %v154
    %6777 = vmatprep.subr.bf16.mxu0 0
    %6778 = vmatpush1.bf16.msra.mxu0 %v153
    %6779 = vmatprep.subr.bf16.mxu0 0
    %6780 = vmatpush1.bf16.msra.mxu0 %v152
    %6781 = vmatprep.subr.bf16.mxu0 0
    %6782 = vmatpush1.bf16.msra.mxu0 %v151
    %6783 = vmatprep.subr.bf16.mxu0 0
    %6784 = vmatpush2.bf16.msra.mxu0 0
    %6785 = vmatprep.subr.bf16.mxu0 0
    %6786 = vmatpush2.bf16.msra.mxu0 0
    %6787 = vmatprep.subr.bf16.mxu0 0
    %6788 = vmatpush2.bf16.msra.mxu0 0
    %6789 = vmatprep.subr.bf16.mxu0 0
    %6790 = vmatpush2.bf16.msra.mxu0 0
    %6791 = vmatprep.subr.bf16.mxu0 0
    %6792 = vmatpush2.bf16.msra.mxu0 0
    %6793 = vmatprep.subr.bf16.mxu0 0
    %6794 = vmatpush2.bf16.msra.mxu0 0
    %6795 = vmatprep.subr.bf16.mxu0 0
    %6796 = vmatpush2.bf16.msra.mxu0 0
    %6797 = vmatprep.subr.bf16.mxu0 0
    %6798 = vmatpush2.bf16.msra.mxu0 0
    %6799 = vmatprep.mubr.bf16.mxu0 0
    %6800 = vmatmul.mubr.bf16.gmra.mxu0 %v6766
    %v6801 = vpop.f32.mrf.mxu0
    %v6802 = vadd.f32 0.0, %v6801
    %v6803 = vpop.f32.mrf.mxu0
    %v6804 = vpop.f32.mrf.mxu0
    %v6805 = vpop.f32.mrf.mxu0
    %6806 = vdwg.mxu0
    %v6807 = vtanh.pop %v6802
    %v6808 = vadd.f32 %v6761, %v6807
    %v6809 = vpack.c.bf16 %v6808, %v6808
    %6810 = vmatprep.subr.bf16.mxu0 0
    %6811 = vmatpush1.bf16.msra.mxu0 %v249
    %6812 = vmatprep.subr.bf16.mxu0 0
    %6813 = vmatpush1.bf16.msra.mxu0 %v248
    %6814 = vmatprep.subr.bf16.mxu0 0
    %6815 = vmatpush1.bf16.msra.mxu0 %v247
    %6816 = vmatprep.subr.bf16.mxu0 0
    %6817 = vmatpush1.bf16.msra.mxu0 %v246
    %6818 = vmatprep.subr.bf16.mxu0 0
    %6819 = vmatpush1.bf16.msra.mxu0 %v245
    %6820 = vmatprep.subr.bf16.mxu0 0
    %6821 = vmatpush1.bf16.msra.mxu0 %v244
    %6822 = vmatprep.subr.bf16.mxu0 0
    %6823 = vmatpush1.bf16.msra.mxu0 %v243
    %6824 = vmatprep.subr.bf16.mxu0 0
    %6825 = vmatpush1.bf16.msra.mxu0 %v242
    %6826 = vmatprep.subr.bf16.mxu0 0
    %6827 = vmatpush2.bf16.msra.mxu0 0
    %6828 = vmatprep.subr.bf16.mxu0 0
    %6829 = vmatpush2.bf16.msra.mxu0 0
    %6830 = vmatprep.subr.bf16.mxu0 0
    %6831 = vmatpush2.bf16.msra.mxu0 0
    %6832 = vmatprep.subr.bf16.mxu0 0
    %6833 = vmatpush2.bf16.msra.mxu0 0
    %6834 = vmatprep.subr.bf16.mxu0 0
    %6835 = vmatpush2.bf16.msra.mxu0 0
    %6836 = vmatprep.subr.bf16.mxu0 0
    %6837 = vmatpush2.bf16.msra.mxu0 0
    %6838 = vmatprep.subr.bf16.mxu0 0
    %6839 = vmatpush2.bf16.msra.mxu0 0
    %6840 = vmatprep.subr.bf16.mxu0 0
    %6841 = vmatpush2.bf16.msra.mxu0 0
    %6842 = vmatprep.mubr.bf16.mxu0 0
    %6843 = vmatmul.mubr.bf16.gmra.mxu0 %v6809
    %v6844 = vpop.f32.mrf.mxu0
    %v6845 = vadd.f32 0.0, %v6844
    %v6846 = vpop.f32.mrf.mxu0
    %v6847 = vpop.f32.mrf.mxu0
    %v6848 = vpop.f32.mrf.mxu0
    %6849 = vdwg.mxu0
    %v6850 = vpack.c.bf16 %v6845, %v6845
    %6851 = vmatprep.subr.bf16.mxu0 0
    %6852 = vmatpush1.bf16.msra.mxu0 %v158
    %6853 = vmatprep.subr.bf16.mxu0 0
    %6854 = vmatpush1.bf16.msra.mxu0 %v157
    %6855 = vmatprep.subr.bf16.mxu0 0
    %6856 = vmatpush1.bf16.msra.mxu0 %v156
    %6857 = vmatprep.subr.bf16.mxu0 0
    %6858 = vmatpush1.bf16.msra.mxu0 %v155
    %6859 = vmatprep.subr.bf16.mxu0 0
    %6860 = vmatpush1.bf16.msra.mxu0 %v154
    %6861 = vmatprep.subr.bf16.mxu0 0
    %6862 = vmatpush1.bf16.msra.mxu0 %v153
    %6863 = vmatprep.subr.bf16.mxu0 0
    %6864 = vmatpush1.bf16.msra.mxu0 %v152
    %6865 = vmatprep.subr.bf16.mxu0 0
    %6866 = vmatpush1.bf16.msra.mxu0 %v151
    %6867 = vmatprep.subr.bf16.mxu0 0
    %6868 = vmatpush2.bf16.msra.mxu0 0
    %6869 = vmatprep.subr.bf16.mxu0 0
    %6870 = vmatpush2.bf16.msra.mxu0 0
    %6871 = vmatprep.subr.bf16.mxu0 0
    %6872 = vmatpush2.bf16.msra.mxu0 0
    %6873 = vmatprep.subr.bf16.mxu0 0
    %6874 = vmatpush2.bf16.msra.mxu0 0
    %6875 = vmatprep.subr.bf16.mxu0 0
    %6876 = vmatpush2.bf16.msra.mxu0 0
    %6877 = vmatprep.subr.bf16.mxu0 0
    %6878 = vmatpush2.bf16.msra.mxu0 0
    %6879 = vmatprep.subr.bf16.mxu0 0
    %6880 = vmatpush2.bf16.msra.mxu0 0
    %6881 = vmatprep.subr.bf16.mxu0 0
    %6882 = vmatpush2.bf16.msra.mxu0 0
    %6883 = vmatprep.mubr.bf16.mxu0 0
    %6884 = vmatmul.mubr.bf16.gmra.mxu0 %v6850
    %v6885 = vpop.f32.mrf.mxu0
    %v6886 = vadd.f32 0.0, %v6885
    %v6887 = vpop.f32.mrf.mxu0
    %v6888 = vpop.f32.mrf.mxu0
    %v6889 = vpop.f32.mrf.mxu0
    %6890 = vdwg.mxu0
    %v6891 = vtanh.pop %v6886
    %v6892 = vadd.f32 %v6845, %v6891
    %v6893 = vpack.c.bf16 %v6892, %v6892
    %6894 = vmatprep.subr.bf16.mxu0 0
    %6895 = vmatpush1.bf16.msra.mxu0 %v249
    %6896 = vmatprep.subr.bf16.mxu0 0
    %6897 = vmatpush1.bf16.msra.mxu0 %v248
    %6898 = vmatprep.subr.bf16.mxu0 0
    %6899 = vmatpush1.bf16.msra.mxu0 %v247
    %6900 = vmatprep.subr.bf16.mxu0 0
    %6901 = vmatpush1.bf16.msra.mxu0 %v246
    %6902 = vmatprep.subr.bf16.mxu0 0
    %6903 = vmatpush1.bf16.msra.mxu0 %v245
    %6904 = vmatprep.subr.bf16.mxu0 0
    %6905 = vmatpush1.bf16.msra.mxu0 %v244
    %6906 = vmatprep.subr.bf16.mxu0 0
    %6907 = vmatpush1.bf16.msra.mxu0 %v243
    %6908 = vmatprep.subr.bf16.mxu0 0
    %6909 = vmatpush1.bf16.msra.mxu0 %v242
    %6910 = vmatprep.subr.bf16.mxu0 0
    %6911 = vmatpush2.bf16.msra.mxu0 0
    %6912 = vmatprep.subr.bf16.mxu0 0
    %6913 = vmatpush2.bf16.msra.mxu0 0
    %6914 = vmatprep.subr.bf16.mxu0 0
    %6915 = vmatpush2.bf16.msra.mxu0 0
    %6916 = vmatprep.subr.bf16.mxu0 0
    %6917 = vmatpush2.bf16.msra.mxu0 0
    %6918 = vmatprep.subr.bf16.mxu0 0
    %6919 = vmatpush2.bf16.msra.mxu0 0
    %6920 = vmatprep.subr.bf16.mxu0 0
    %6921 = vmatpush2.bf16.msra.mxu0 0
    %6922 = vmatprep.subr.bf16.mxu0 0
    %6923 = vmatpush2.bf16.msra.mxu0 0
    %6924 = vmatprep.subr.bf16.mxu0 0
    %6925 = vmatpush2.bf16.msra.mxu0 0
    %6926 = vmatprep.mubr.bf16.mxu0 0
    %6927 = vmatmul.mubr.bf16.gmra.mxu0 %v6893
    %v6928 = vpop.f32.mrf.mxu0
    %v6929 = vadd.f32 0.0, %v6928
    %v6930 = vpop.f32.mrf.mxu0
    %v6931 = vpop.f32.mrf.mxu0
    %v6932 = vpop.f32.mrf.mxu0
    %6933 = vdwg.mxu0
    %v6934 = vpack.c.bf16 %v6929, %v6929
    %6935 = vmatprep.subr.bf16.mxu0 0
    %6936 = vmatpush1.bf16.msra.mxu0 %v158
    %6937 = vmatprep.subr.bf16.mxu0 0
    %6938 = vmatpush1.bf16.msra.mxu0 %v157
    %6939 = vmatprep.subr.bf16.mxu0 0
    %6940 = vmatpush1.bf16.msra.mxu0 %v156
    %6941 = vmatprep.subr.bf16.mxu0 0
    %6942 = vmatpush1.bf16.msra.mxu0 %v155
    %6943 = vmatprep.subr.bf16.mxu0 0
    %6944 = vmatpush1.bf16.msra.mxu0 %v154
    %6945 = vmatprep.subr.bf16.mxu0 0
    %6946 = vmatpush1.bf16.msra.mxu0 %v153
    %6947 = vmatprep.subr.bf16.mxu0 0
    %6948 = vmatpush1.bf16.msra.mxu0 %v152
    %6949 = vmatprep.subr.bf16.mxu0 0
    %6950 = vmatpush1.bf16.msra.mxu0 %v151
    %6951 = vmatprep.subr.bf16.mxu0 0
    %6952 = vmatpush2.bf16.msra.mxu0 0
    %6953 = vmatprep.subr.bf16.mxu0 0
    %6954 = vmatpush2.bf16.msra.mxu0 0
    %6955 = vmatprep.subr.bf16.mxu0 0
    %6956 = vmatpush2.bf16.msra.mxu0 0
    %6957 = vmatprep.subr.bf16.mxu0 0
    %6958 = vmatpush2.bf16.msra.mxu0 0
    %6959 = vmatprep.subr.bf16.mxu0 0
    %6960 = vmatpush2.bf16.msra.mxu0 0
    %6961 = vmatprep.subr.bf16.mxu0 0
    %6962 = vmatpush2.bf16.msra.mxu0 0
    %6963 = vmatprep.subr.bf16.mxu0 0
    %6964 = vmatpush2.bf16.msra.mxu0 0
    %6965 = vmatprep.subr.bf16.mxu0 0
    %6966 = vmatpush2.bf16.msra.mxu0 0
    %6967 = vmatprep.mubr.bf16.mxu0 0
    %6968 = vmatmul.mubr.bf16.gmra.mxu0 %v6934
    %v6969 = vpop.f32.mrf.mxu0
    %v6970 = vadd.f32 0.0, %v6969
    %v6971 = vpop.f32.mrf.mxu0
    %v6972 = vpop.f32.mrf.mxu0
    %v6973 = vpop.f32.mrf.mxu0
    %6974 = vdwg.mxu0
    %v6975 = vtanh.pop %v6970
    %v6976 = vadd.f32 %v6929, %v6975
    %v6977 = vpack.c.bf16 %v6976, %v6976
    %6978 = vmatprep.subr.bf16.mxu0 0
    %6979 = vmatpush1.bf16.msra.mxu0 %v249
    %6980 = vmatprep.subr.bf16.mxu0 0
    %6981 = vmatpush1.bf16.msra.mxu0 %v248
    %6982 = vmatprep.subr.bf16.mxu0 0
    %6983 = vmatpush1.bf16.msra.mxu0 %v247
    %6984 = vmatprep.subr.bf16.mxu0 0
    %6985 = vmatpush1.bf16.msra.mxu0 %v246
    %6986 = vmatprep.subr.bf16.mxu0 0
    %6987 = vmatpush1.bf16.msra.mxu0 %v245
    %6988 = vmatprep.subr.bf16.mxu0 0
    %6989 = vmatpush1.bf16.msra.mxu0 %v244
    %6990 = vmatprep.subr.bf16.mxu0 0
    %6991 = vmatpush1.bf16.msra.mxu0 %v243
    %6992 = vmatprep.subr.bf16.mxu0 0
    %6993 = vmatpush1.bf16.msra.mxu0 %v242
    %6994 = vmatprep.subr.bf16.mxu0 0
    %6995 = vmatpush2.bf16.msra.mxu0 0
    %6996 = vmatprep.subr.bf16.mxu0 0
    %6997 = vmatpush2.bf16.msra.mxu0 0
    %6998 = vmatprep.subr.bf16.mxu0 0
    %6999 = vmatpush2.bf16.msra.mxu0 0
    %7000 = vmatprep.subr.bf16.mxu0 0
    %7001 = vmatpush2.bf16.msra.mxu0 0
    %7002 = vmatprep.subr.bf16.mxu0 0
    %7003 = vmatpush2.bf16.msra.mxu0 0
    %7004 = vmatprep.subr.bf16.mxu0 0
    %7005 = vmatpush2.bf16.msra.mxu0 0
    %7006 = vmatprep.subr.bf16.mxu0 0
    %7007 = vmatpush2.bf16.msra.mxu0 0
    %7008 = vmatprep.subr.bf16.mxu0 0
    %7009 = vmatpush2.bf16.msra.mxu0 0
    %7010 = vmatprep.mubr.bf16.mxu0 0
    %7011 = vmatmul.mubr.bf16.gmra.mxu0 %v6977
    %v7012 = vpop.f32.mrf.mxu0
    %v7013 = vadd.f32 0.0, %v7012
    %v7014 = vpop.f32.mrf.mxu0
    %v7015 = vpop.f32.mrf.mxu0
    %v7016 = vpop.f32.mrf.mxu0
    %7017 = vdwg.mxu0
    %v7018 = vpack.c.bf16 %v7013, %v7013
    %7019 = vmatprep.subr.bf16.mxu0 0
    %7020 = vmatpush1.bf16.msra.mxu0 %v158
    %7021 = vmatprep.subr.bf16.mxu0 0
    %7022 = vmatpush1.bf16.msra.mxu0 %v157
    %7023 = vmatprep.subr.bf16.mxu0 0
    %7024 = vmatpush1.bf16.msra.mxu0 %v156
    %7025 = vmatprep.subr.bf16.mxu0 0
    %7026 = vmatpush1.bf16.msra.mxu0 %v155
    %7027 = vmatprep.subr.bf16.mxu0 0
    %7028 = vmatpush1.bf16.msra.mxu0 %v154
    %7029 = vmatprep.subr.bf16.mxu0 0
    %7030 = vmatpush1.bf16.msra.mxu0 %v153
    %7031 = vmatprep.subr.bf16.mxu0 0
    %7032 = vmatpush1.bf16.msra.mxu0 %v152
    %7033 = vmatprep.subr.bf16.mxu0 0
    %7034 = vmatpush1.bf16.msra.mxu0 %v151
    %7035 = vmatprep.subr.bf16.mxu0 0
    %7036 = vmatpush2.bf16.msra.mxu0 0
    %7037 = vmatprep.subr.bf16.mxu0 0
    %7038 = vmatpush2.bf16.msra.mxu0 0
    %7039 = vmatprep.subr.bf16.mxu0 0
    %7040 = vmatpush2.bf16.msra.mxu0 0
    %7041 = vmatprep.subr.bf16.mxu0 0
    %7042 = vmatpush2.bf16.msra.mxu0 0
    %7043 = vmatprep.subr.bf16.mxu0 0
    %7044 = vmatpush2.bf16.msra.mxu0 0
    %7045 = vmatprep.subr.bf16.mxu0 0
    %7046 = vmatpush2.bf16.msra.mxu0 0
    %7047 = vmatprep.subr.bf16.mxu0 0
    %7048 = vmatpush2.bf16.msra.mxu0 0
    %7049 = vmatprep.subr.bf16.mxu0 0
    %7050 = vmatpush2.bf16.msra.mxu0 0
    %7051 = vmatprep.mubr.bf16.mxu0 0
    %7052 = vmatmul.mubr.bf16.gmra.mxu0 %v7018
    %v7053 = vpop.f32.mrf.mxu0
    %v7054 = vadd.f32 0.0, %v7053
    %v7055 = vpop.f32.mrf.mxu0
    %v7056 = vpop.f32.mrf.mxu0
    %v7057 = vpop.f32.mrf.mxu0
    %7058 = vdwg.mxu0
    %v7059 = vtanh.pop %v7054
    %v7060 = vadd.f32 %v7013, %v7059
    %v7061 = vpack.c.bf16 %v7060, %v7060
    %7062 = vmatprep.subr.bf16.mxu0 0
    %7063 = vmatpush1.bf16.msra.mxu0 %v249
    %7064 = vmatprep.subr.bf16.mxu0 0
    %7065 = vmatpush1.bf16.msra.mxu0 %v248
    %7066 = vmatprep.subr.bf16.mxu0 0
    %7067 = vmatpush1.bf16.msra.mxu0 %v247
    %7068 = vmatprep.subr.bf16.mxu0 0
    %7069 = vmatpush1.bf16.msra.mxu0 %v246
    %7070 = vmatprep.subr.bf16.mxu0 0
    %7071 = vmatpush1.bf16.msra.mxu0 %v245
    %7072 = vmatprep.subr.bf16.mxu0 0
    %7073 = vmatpush1.bf16.msra.mxu0 %v244
    %7074 = vmatprep.subr.bf16.mxu0 0
    %7075 = vmatpush1.bf16.msra.mxu0 %v243
    %7076 = vmatprep.subr.bf16.mxu0 0
    %7077 = vmatpush1.bf16.msra.mxu0 %v242
    %7078 = vmatprep.subr.bf16.mxu0 0
    %7079 = vmatpush2.bf16.msra.mxu0 0
    %7080 = vmatprep.subr.bf16.mxu0 0
    %7081 = vmatpush2.bf16.msra.mxu0 0
    %7082 = vmatprep.subr.bf16.mxu0 0
    %7083 = vmatpush2.bf16.msra.mxu0 0
    %7084 = vmatprep.subr.bf16.mxu0 0
    %7085 = vmatpush2.bf16.msra.mxu0 0
    %7086 = vmatprep.subr.bf16.mxu0 0
    %7087 = vmatpush2.bf16.msra.mxu0 0
    %7088 = vmatprep.subr.bf16.mxu0 0
    %7089 = vmatpush2.bf16.msra.mxu0 0
    %7090 = vmatprep.subr.bf16.mxu0 0
    %7091 = vmatpush2.bf16.msra.mxu0 0
    %7092 = vmatprep.subr.bf16.mxu0 0
    %7093 = vmatpush2.bf16.msra.mxu0 0
    %7094 = vmatprep.mubr.bf16.mxu0 0
    %7095 = vmatmul.mubr.bf16.gmra.mxu0 %v7061
    %v7096 = vpop.f32.mrf.mxu0
    %v7097 = vadd.f32 0.0, %v7096
    %v7098 = vpop.f32.mrf.mxu0
    %v7099 = vpop.f32.mrf.mxu0
    %v7100 = vpop.f32.mrf.mxu0
    %7101 = vdwg.mxu0
    %v7102 = vpack.c.bf16 %v7097, %v7097
    %7103 = vmatprep.subr.bf16.mxu0 0
    %7104 = vmatpush1.bf16.msra.mxu0 %v158
    %7105 = vmatprep.subr.bf16.mxu0 0
    %7106 = vmatpush1.bf16.msra.mxu0 %v157
    %7107 = vmatprep.subr.bf16.mxu0 0
    %7108 = vmatpush1.bf16.msra.mxu0 %v156
    %7109 = vmatprep.subr.bf16.mxu0 0
    %7110 = vmatpush1.bf16.msra.mxu0 %v155
    %7111 = vmatprep.subr.bf16.mxu0 0
    %7112 = vmatpush1.bf16.msra.mxu0 %v154
    %7113 = vmatprep.subr.bf16.mxu0 0
    %7114 = vmatpush1.bf16.msra.mxu0 %v153
    %7115 = vmatprep.subr.bf16.mxu0 0
    %7116 = vmatpush1.bf16.msra.mxu0 %v152
    %7117 = vmatprep.subr.bf16.mxu0 0
    %7118 = vmatpush1.bf16.msra.mxu0 %v151
    %7119 = vmatprep.subr.bf16.mxu0 0
    %7120 = vmatpush2.bf16.msra.mxu0 0
    %7121 = vmatprep.subr.bf16.mxu0 0
    %7122 = vmatpush2.bf16.msra.mxu0 0
    %7123 = vmatprep.subr.bf16.mxu0 0
    %7124 = vmatpush2.bf16.msra.mxu0 0
    %7125 = vmatprep.subr.bf16.mxu0 0
    %7126 = vmatpush2.bf16.msra.mxu0 0
    %7127 = vmatprep.subr.bf16.mxu0 0
    %7128 = vmatpush2.bf16.msra.mxu0 0
    %7129 = vmatprep.subr.bf16.mxu0 0
    %7130 = vmatpush2.bf16.msra.mxu0 0
    %7131 = vmatprep.subr.bf16.mxu0 0
    %7132 = vmatpush2.bf16.msra.mxu0 0
    %7133 = vmatprep.subr.bf16.mxu0 0
    %7134 = vmatpush2.bf16.msra.mxu0 0
    %7135 = vmatprep.mubr.bf16.mxu0 0
    %7136 = vmatmul.mubr.bf16.gmra.mxu0 %v7102
    %v7137 = vpop.f32.mrf.mxu0
    %v7138 = vadd.f32 0.0, %v7137
    %v7139 = vpop.f32.mrf.mxu0
    %v7140 = vpop.f32.mrf.mxu0
    %v7141 = vpop.f32.mrf.mxu0
    %7142 = vdwg.mxu0
    %v7143 = vtanh.pop %v7138
    %v7144 = vadd.f32 %v7097, %v7143
    %v7145 = vpack.c.bf16 %v7144, %v7144
    %7146 = vmatprep.subr.bf16.mxu0 0
    %7147 = vmatpush1.bf16.msra.mxu0 %v249
    %7148 = vmatprep.subr.bf16.mxu0 0
    %7149 = vmatpush1.bf16.msra.mxu0 %v248
    %7150 = vmatprep.subr.bf16.mxu0 0
    %7151 = vmatpush1.bf16.msra.mxu0 %v247
    %7152 = vmatprep.subr.bf16.mxu0 0
    %7153 = vmatpush1.bf16.msra.mxu0 %v246
    %7154 = vmatprep.subr.bf16.mxu0 0
    %7155 = vmatpush1.bf16.msra.mxu0 %v245
    %7156 = vmatprep.subr.bf16.mxu0 0
    %7157 = vmatpush1.bf16.msra.mxu0 %v244
    %7158 = vmatprep.subr.bf16.mxu0 0
    %7159 = vmatpush1.bf16.msra.mxu0 %v243
    %7160 = vmatprep.subr.bf16.mxu0 0
    %7161 = vmatpush1.bf16.msra.mxu0 %v242
    %7162 = vmatprep.subr.bf16.mxu0 0
    %7163 = vmatpush2.bf16.msra.mxu0 0
    %7164 = vmatprep.subr.bf16.mxu0 0
    %7165 = vmatpush2.bf16.msra.mxu0 0
    %7166 = vmatprep.subr.bf16.mxu0 0
    %7167 = vmatpush2.bf16.msra.mxu0 0
    %7168 = vmatprep.subr.bf16.mxu0 0
    %7169 = vmatpush2.bf16.msra.mxu0 0
    %7170 = vmatprep.subr.bf16.mxu0 0
    %7171 = vmatpush2.bf16.msra.mxu0 0
    %7172 = vmatprep.subr.bf16.mxu0 0
    %7173 = vmatpush2.bf16.msra.mxu0 0
    %7174 = vmatprep.subr.bf16.mxu0 0
    %7175 = vmatpush2.bf16.msra.mxu0 0
    %7176 = vmatprep.subr.bf16.mxu0 0
    %7177 = vmatpush2.bf16.msra.mxu0 0
    %7178 = vmatprep.mubr.bf16.mxu0 0
    %7179 = vmatmul.mubr.bf16.gmra.mxu0 %v7145
    %v7180 = vpop.f32.mrf.mxu0
    %v7181 = vadd.f32 0.0, %v7180
    %v7182 = vpop.f32.mrf.mxu0
    %v7183 = vpop.f32.mrf.mxu0
    %v7184 = vpop.f32.mrf.mxu0
    %7185 = vdwg.mxu0
    %v7186 = vpack.c.bf16 %v7181, %v7181
    %7187 = vmatprep.subr.bf16.mxu0 0
    %7188 = vmatpush1.bf16.msra.mxu0 %v158
    %7189 = vmatprep.subr.bf16.mxu0 0
    %7190 = vmatpush1.bf16.msra.mxu0 %v157
    %7191 = vmatprep.subr.bf16.mxu0 0
    %7192 = vmatpush1.bf16.msra.mxu0 %v156
    %7193 = vmatprep.subr.bf16.mxu0 0
    %7194 = vmatpush1.bf16.msra.mxu0 %v155
    %7195 = vmatprep.subr.bf16.mxu0 0
    %7196 = vmatpush1.bf16.msra.mxu0 %v154
    %7197 = vmatprep.subr.bf16.mxu0 0
    %7198 = vmatpush1.bf16.msra.mxu0 %v153
    %7199 = vmatprep.subr.bf16.mxu0 0
    %7200 = vmatpush1.bf16.msra.mxu0 %v152
    %7201 = vmatprep.subr.bf16.mxu0 0
    %7202 = vmatpush1.bf16.msra.mxu0 %v151
    %7203 = vmatprep.subr.bf16.mxu0 0
    %7204 = vmatpush2.bf16.msra.mxu0 0
    %7205 = vmatprep.subr.bf16.mxu0 0
    %7206 = vmatpush2.bf16.msra.mxu0 0
    %7207 = vmatprep.subr.bf16.mxu0 0
    %7208 = vmatpush2.bf16.msra.mxu0 0
    %7209 = vmatprep.subr.bf16.mxu0 0
    %7210 = vmatpush2.bf16.msra.mxu0 0
    %7211 = vmatprep.subr.bf16.mxu0 0
    %7212 = vmatpush2.bf16.msra.mxu0 0
    %7213 = vmatprep.subr.bf16.mxu0 0
    %7214 = vmatpush2.bf16.msra.mxu0 0
    %7215 = vmatprep.subr.bf16.mxu0 0
    %7216 = vmatpush2.bf16.msra.mxu0 0
    %7217 = vmatprep.subr.bf16.mxu0 0
    %7218 = vmatpush2.bf16.msra.mxu0 0
    %7219 = vmatprep.mubr.bf16.mxu0 0
    %7220 = vmatmul.mubr.bf16.gmra.mxu0 %v7186
    %v7221 = vpop.f32.mrf.mxu0
    %v7222 = vadd.f32 0.0, %v7221
    %v7223 = vpop.f32.mrf.mxu0
    %v7224 = vpop.f32.mrf.mxu0
    %v7225 = vpop.f32.mrf.mxu0
    %7226 = vdwg.mxu0
    %v7227 = vtanh.pop %v7222
    %v7228 = vadd.f32 %v7181, %v7227
    %v7229 = vpack.c.bf16 %v7228, %v7228
    %7230 = vmatprep.subr.bf16.mxu0 0
    %7231 = vmatpush1.bf16.msra.mxu0 %v249
    %7232 = vmatprep.subr.bf16.mxu0 0
    %7233 = vmatpush1.bf16.msra.mxu0 %v248
    %7234 = vmatprep.subr.bf16.mxu0 0
    %7235 = vmatpush1.bf16.msra.mxu0 %v247
    %7236 = vmatprep.subr.bf16.mxu0 0
    %7237 = vmatpush1.bf16.msra.mxu0 %v246
    %7238 = vmatprep.subr.bf16.mxu0 0
    %7239 = vmatpush1.bf16.msra.mxu0 %v245
    %7240 = vmatprep.subr.bf16.mxu0 0
    %7241 = vmatpush1.bf16.msra.mxu0 %v244
    %7242 = vmatprep.subr.bf16.mxu0 0
    %7243 = vmatpush1.bf16.msra.mxu0 %v243
    %7244 = vmatprep.subr.bf16.mxu0 0
    %7245 = vmatpush1.bf16.msra.mxu0 %v242
    %7246 = vmatprep.subr.bf16.mxu0 0
    %7247 = vmatpush2.bf16.msra.mxu0 0
    %7248 = vmatprep.subr.bf16.mxu0 0
    %7249 = vmatpush2.bf16.msra.mxu0 0
    %7250 = vmatprep.subr.bf16.mxu0 0
    %7251 = vmatpush2.bf16.msra.mxu0 0
    %7252 = vmatprep.subr.bf16.mxu0 0
    %7253 = vmatpush2.bf16.msra.mxu0 0
    %7254 = vmatprep.subr.bf16.mxu0 0
    %7255 = vmatpush2.bf16.msra.mxu0 0
    %7256 = vmatprep.subr.bf16.mxu0 0
    %7257 = vmatpush2.bf16.msra.mxu0 0
    %7258 = vmatprep.subr.bf16.mxu0 0
    %7259 = vmatpush2.bf16.msra.mxu0 0
    %7260 = vmatprep.subr.bf16.mxu0 0
    %7261 = vmatpush2.bf16.msra.mxu0 0
    %7262 = vmatprep.mubr.bf16.mxu0 0
    %7263 = vmatmul.mubr.bf16.gmra.mxu0 %v7229
    %v7264 = vpop.f32.mrf.mxu0
    %v7265 = vadd.f32 0.0, %v7264
    %v7266 = vpop.f32.mrf.mxu0
    %v7267 = vpop.f32.mrf.mxu0
    %v7268 = vpop.f32.mrf.mxu0
    %7269 = vdwg.mxu0
    %v7270 = vpack.c.bf16 %v7265, %v7265
    %7271 = vmatprep.subr.bf16.mxu0 0
    %7272 = vmatpush1.bf16.msra.mxu0 %v158
    %7273 = vmatprep.subr.bf16.mxu0 0
    %7274 = vmatpush1.bf16.msra.mxu0 %v157
    %7275 = vmatprep.subr.bf16.mxu0 0
    %7276 = vmatpush1.bf16.msra.mxu0 %v156
    %7277 = vmatprep.subr.bf16.mxu0 0
    %7278 = vmatpush1.bf16.msra.mxu0 %v155
    %7279 = vmatprep.subr.bf16.mxu0 0
    %7280 = vmatpush1.bf16.msra.mxu0 %v154
    %7281 = vmatprep.subr.bf16.mxu0 0
    %7282 = vmatpush1.bf16.msra.mxu0 %v153
    %7283 = vmatprep.subr.bf16.mxu0 0
    %7284 = vmatpush1.bf16.msra.mxu0 %v152
    %7285 = vmatprep.subr.bf16.mxu0 0
    %7286 = vmatpush1.bf16.msra.mxu0 %v151
    %7287 = vmatprep.subr.bf16.mxu0 0
    %7288 = vmatpush2.bf16.msra.mxu0 0
    %7289 = vmatprep.subr.bf16.mxu0 0
    %7290 = vmatpush2.bf16.msra.mxu0 0
    %7291 = vmatprep.subr.bf16.mxu0 0
    %7292 = vmatpush2.bf16.msra.mxu0 0
    %7293 = vmatprep.subr.bf16.mxu0 0
    %7294 = vmatpush2.bf16.msra.mxu0 0
    %7295 = vmatprep.subr.bf16.mxu0 0
    %7296 = vmatpush2.bf16.msra.mxu0 0
    %7297 = vmatprep.subr.bf16.mxu0 0
    %7298 = vmatpush2.bf16.msra.mxu0 0
    %7299 = vmatprep.subr.bf16.mxu0 0
    %7300 = vmatpush2.bf16.msra.mxu0 0
    %7301 = vmatprep.subr.bf16.mxu0 0
    %7302 = vmatpush2.bf16.msra.mxu0 0
    %7303 = vmatprep.mubr.bf16.mxu0 0
    %7304 = vmatmul.mubr.bf16.gmra.mxu0 %v7270
    %v7305 = vpop.f32.mrf.mxu0
    %v7306 = vadd.f32 0.0, %v7305
    %v7307 = vpop.f32.mrf.mxu0
    %v7308 = vpop.f32.mrf.mxu0
    %v7309 = vpop.f32.mrf.mxu0
    %7310 = vdwg.mxu0
    %v7311 = vtanh.pop %v7306
    %v7312 = vadd.f32 %v7265, %v7311
    %v7313 = vpack.c.bf16 %v7312, %v7312
    %7314 = vmatprep.subr.bf16.mxu0 0
    %7315 = vmatpush1.bf16.msra.mxu0 %v249
    %7316 = vmatprep.subr.bf16.mxu0 0
    %7317 = vmatpush1.bf16.msra.mxu0 %v248
    %7318 = vmatprep.subr.bf16.mxu0 0
    %7319 = vmatpush1.bf16.msra.mxu0 %v247
    %7320 = vmatprep.subr.bf16.mxu0 0
    %7321 = vmatpush1.bf16.msra.mxu0 %v246
    %7322 = vmatprep.subr.bf16.mxu0 0
    %7323 = vmatpush1.bf16.msra.mxu0 %v245
    %7324 = vmatprep.subr.bf16.mxu0 0
    %7325 = vmatpush1.bf16.msra.mxu0 %v244
    %7326 = vmatprep.subr.bf16.mxu0 0
    %7327 = vmatpush1.bf16.msra.mxu0 %v243
    %7328 = vmatprep.subr.bf16.mxu0 0
    %7329 = vmatpush1.bf16.msra.mxu0 %v242
    %7330 = vmatprep.subr.bf16.mxu0 0
    %7331 = vmatpush2.bf16.msra.mxu0 0
    %7332 = vmatprep.subr.bf16.mxu0 0
    %7333 = vmatpush2.bf16.msra.mxu0 0
    %7334 = vmatprep.subr.bf16.mxu0 0
    %7335 = vmatpush2.bf16.msra.mxu0 0
    %7336 = vmatprep.subr.bf16.mxu0 0
    %7337 = vmatpush2.bf16.msra.mxu0 0
    %7338 = vmatprep.subr.bf16.mxu0 0
    %7339 = vmatpush2.bf16.msra.mxu0 0
    %7340 = vmatprep.subr.bf16.mxu0 0
    %7341 = vmatpush2.bf16.msra.mxu0 0
    %7342 = vmatprep.subr.bf16.mxu0 0
    %7343 = vmatpush2.bf16.msra.mxu0 0
    %7344 = vmatprep.subr.bf16.mxu0 0
    %7345 = vmatpush2.bf16.msra.mxu0 0
    %7346 = vmatprep.mubr.bf16.mxu0 0
    %7347 = vmatmul.mubr.bf16.gmra.mxu0 %v7313
    %v7348 = vpop.f32.mrf.mxu0
    %v7349 = vadd.f32 0.0, %v7348
    %v7350 = vpop.f32.mrf.mxu0
    %v7351 = vpop.f32.mrf.mxu0
    %v7352 = vpop.f32.mrf.mxu0
    %7353 = vdwg.mxu0
    %v7354 = vpack.c.bf16 %v7349, %v7349
    %7355 = vmatprep.subr.bf16.mxu0 0
    %7356 = vmatpush1.bf16.msra.mxu0 %v158
    %7357 = vmatprep.subr.bf16.mxu0 0
    %7358 = vmatpush1.bf16.msra.mxu0 %v157
    %7359 = vmatprep.subr.bf16.mxu0 0
    %7360 = vmatpush1.bf16.msra.mxu0 %v156
    %7361 = vmatprep.subr.bf16.mxu0 0
    %7362 = vmatpush1.bf16.msra.mxu0 %v155
    %7363 = vmatprep.subr.bf16.mxu0 0
    %7364 = vmatpush1.bf16.msra.mxu0 %v154
    %7365 = vmatprep.subr.bf16.mxu0 0
    %7366 = vmatpush1.bf16.msra.mxu0 %v153
    %7367 = vmatprep.subr.bf16.mxu0 0
    %7368 = vmatpush1.bf16.msra.mxu0 %v152
    %7369 = vmatprep.subr.bf16.mxu0 0
    %7370 = vmatpush1.bf16.msra.mxu0 %v151
    %7371 = vmatprep.subr.bf16.mxu0 0
    %7372 = vmatpush2.bf16.msra.mxu0 0
    %7373 = vmatprep.subr.bf16.mxu0 0
    %7374 = vmatpush2.bf16.msra.mxu0 0
    %7375 = vmatprep.subr.bf16.mxu0 0
    %7376 = vmatpush2.bf16.msra.mxu0 0
    %7377 = vmatprep.subr.bf16.mxu0 0
    %7378 = vmatpush2.bf16.msra.mxu0 0
    %7379 = vmatprep.subr.bf16.mxu0 0
    %7380 = vmatpush2.bf16.msra.mxu0 0
    %7381 = vmatprep.subr.bf16.mxu0 0
    %7382 = vmatpush2.bf16.msra.mxu0 0
    %7383 = vmatprep.subr.bf16.mxu0 0
    %7384 = vmatpush2.bf16.msra.mxu0 0
    %7385 = vmatprep.subr.bf16.mxu0 0
    %7386 = vmatpush2.bf16.msra.mxu0 0
    %7387 = vmatprep.mubr.bf16.mxu0 0
    %7388 = vmatmul.mubr.bf16.gmra.mxu0 %v7354
    %v7389 = vpop.f32.mrf.mxu0
    %v7390 = vadd.f32 0.0, %v7389
    %v7391 = vpop.f32.mrf.mxu0
    %v7392 = vpop.f32.mrf.mxu0
    %v7393 = vpop.f32.mrf.mxu0
    %7394 = vdwg.mxu0
    %v7395 = vtanh.pop %v7390
    %v7396 = vadd.f32 %v7349, %v7395
    %v7397 = vpack.c.bf16 %v7396, %v7396
    %7398 = vmatprep.subr.bf16.mxu0 0
    %7399 = vmatpush1.bf16.msra.mxu0 %v249
    %7400 = vmatprep.subr.bf16.mxu0 0
    %7401 = vmatpush1.bf16.msra.mxu0 %v248
    %7402 = vmatprep.subr.bf16.mxu0 0
    %7403 = vmatpush1.bf16.msra.mxu0 %v247
    %7404 = vmatprep.subr.bf16.mxu0 0
    %7405 = vmatpush1.bf16.msra.mxu0 %v246
    %7406 = vmatprep.subr.bf16.mxu0 0
    %7407 = vmatpush1.bf16.msra.mxu0 %v245
    %7408 = vmatprep.subr.bf16.mxu0 0
    %7409 = vmatpush1.bf16.msra.mxu0 %v244
    %7410 = vmatprep.subr.bf16.mxu0 0
    %7411 = vmatpush1.bf16.msra.mxu0 %v243
    %7412 = vmatprep.subr.bf16.mxu0 0
    %7413 = vmatpush1.bf16.msra.mxu0 %v242
    %7414 = vmatprep.subr.bf16.mxu0 0
    %7415 = vmatpush2.bf16.msra.mxu0 0
    %7416 = vmatprep.subr.bf16.mxu0 0
    %7417 = vmatpush2.bf16.msra.mxu0 0
    %7418 = vmatprep.subr.bf16.mxu0 0
    %7419 = vmatpush2.bf16.msra.mxu0 0
    %7420 = vmatprep.subr.bf16.mxu0 0
    %7421 = vmatpush2.bf16.msra.mxu0 0
    %7422 = vmatprep.subr.bf16.mxu0 0
    %7423 = vmatpush2.bf16.msra.mxu0 0
    %7424 = vmatprep.subr.bf16.mxu0 0
    %7425 = vmatpush2.bf16.msra.mxu0 0
    %7426 = vmatprep.subr.bf16.mxu0 0
    %7427 = vmatpush2.bf16.msra.mxu0 0
    %7428 = vmatprep.subr.bf16.mxu0 0
    %7429 = vmatpush2.bf16.msra.mxu0 0
    %7430 = vmatprep.mubr.bf16.mxu0 0
    %7431 = vmatmul.mubr.bf16.gmra.mxu0 %v7397
    %v7432 = vpop.f32.mrf.mxu0
    %v7433 = vadd.f32 0.0, %v7432
    %v7434 = vpop.f32.mrf.mxu0
    %v7435 = vpop.f32.mrf.mxu0
    %v7436 = vpop.f32.mrf.mxu0
    %7437 = vdwg.mxu0
    %v7438 = vpack.c.bf16 %v7433, %v7433
    %7439 = vmatprep.subr.bf16.mxu0 0
    %7440 = vmatpush1.bf16.msra.mxu0 %v158
    %7441 = vmatprep.subr.bf16.mxu0 0
    %7442 = vmatpush1.bf16.msra.mxu0 %v157
    %7443 = vmatprep.subr.bf16.mxu0 0
    %7444 = vmatpush1.bf16.msra.mxu0 %v156
    %7445 = vmatprep.subr.bf16.mxu0 0
    %7446 = vmatpush1.bf16.msra.mxu0 %v155
    %7447 = vmatprep.subr.bf16.mxu0 0
    %7448 = vmatpush1.bf16.msra.mxu0 %v154
    %7449 = vmatprep.subr.bf16.mxu0 0
    %7450 = vmatpush1.bf16.msra.mxu0 %v153
    %7451 = vmatprep.subr.bf16.mxu0 0
    %7452 = vmatpush1.bf16.msra.mxu0 %v152
    %7453 = vmatprep.subr.bf16.mxu0 0
    %7454 = vmatpush1.bf16.msra.mxu0 %v151
    %7455 = vmatprep.subr.bf16.mxu0 0
    %7456 = vmatpush2.bf16.msra.mxu0 0
    %7457 = vmatprep.subr.bf16.mxu0 0
    %7458 = vmatpush2.bf16.msra.mxu0 0
    %7459 = vmatprep.subr.bf16.mxu0 0
    %7460 = vmatpush2.bf16.msra.mxu0 0
    %7461 = vmatprep.subr.bf16.mxu0 0
    %7462 = vmatpush2.bf16.msra.mxu0 0
    %7463 = vmatprep.subr.bf16.mxu0 0
    %7464 = vmatpush2.bf16.msra.mxu0 0
    %7465 = vmatprep.subr.bf16.mxu0 0
    %7466 = vmatpush2.bf16.msra.mxu0 0
    %7467 = vmatprep.subr.bf16.mxu0 0
    %7468 = vmatpush2.bf16.msra.mxu0 0
    %7469 = vmatprep.subr.bf16.mxu0 0
    %7470 = vmatpush2.bf16.msra.mxu0 0
    %7471 = vmatprep.mubr.bf16.mxu0 0
    %7472 = vmatmul.mubr.bf16.gmra.mxu0 %v7438
    %v7473 = vpop.f32.mrf.mxu0
    %v7474 = vadd.f32 0.0, %v7473
    %v7475 = vpop.f32.mrf.mxu0
    %v7476 = vpop.f32.mrf.mxu0
    %v7477 = vpop.f32.mrf.mxu0
    %7478 = vdwg.mxu0
    %v7479 = vtanh.pop %v7474
    %v7480 = vadd.f32 %v7433, %v7479
    %v7481 = vpack.c.bf16 %v7480, %v7480
    %7482 = vmatprep.subr.bf16.mxu0 0
    %7483 = vmatpush1.bf16.msra.mxu0 %v249
    %7484 = vmatprep.subr.bf16.mxu0 0
    %7485 = vmatpush1.bf16.msra.mxu0 %v248
    %7486 = vmatprep.subr.bf16.mxu0 0
    %7487 = vmatpush1.bf16.msra.mxu0 %v247
    %7488 = vmatprep.subr.bf16.mxu0 0
    %7489 = vmatpush1.bf16.msra.mxu0 %v246
    %7490 = vmatprep.subr.bf16.mxu0 0
    %7491 = vmatpush1.bf16.msra.mxu0 %v245
    %7492 = vmatprep.subr.bf16.mxu0 0
    %7493 = vmatpush1.bf16.msra.mxu0 %v244
    %7494 = vmatprep.subr.bf16.mxu0 0
    %7495 = vmatpush1.bf16.msra.mxu0 %v243
    %7496 = vmatprep.subr.bf16.mxu0 0
    %7497 = vmatpush1.bf16.msra.mxu0 %v242
    %7498 = vmatprep.subr.bf16.mxu0 0
    %7499 = vmatpush2.bf16.msra.mxu0 0
    %7500 = vmatprep.subr.bf16.mxu0 0
    %7501 = vmatpush2.bf16.msra.mxu0 0
    %7502 = vmatprep.subr.bf16.mxu0 0
    %7503 = vmatpush2.bf16.msra.mxu0 0
    %7504 = vmatprep.subr.bf16.mxu0 0
    %7505 = vmatpush2.bf16.msra.mxu0 0
    %7506 = vmatprep.subr.bf16.mxu0 0
    %7507 = vmatpush2.bf16.msra.mxu0 0
    %7508 = vmatprep.subr.bf16.mxu0 0
    %7509 = vmatpush2.bf16.msra.mxu0 0
    %7510 = vmatprep.subr.bf16.mxu0 0
    %7511 = vmatpush2.bf16.msra.mxu0 0
    %7512 = vmatprep.subr.bf16.mxu0 0
    %7513 = vmatpush2.bf16.msra.mxu0 0
    %7514 = vmatprep.mubr.bf16.mxu0 0
    %7515 = vmatmul.mubr.bf16.gmra.mxu0 %v7481
    %v7516 = vpop.f32.mrf.mxu0
    %v7517 = vadd.f32 0.0, %v7516
    %v7518 = vpop.f32.mrf.mxu0
    %v7519 = vpop.f32.mrf.mxu0
    %v7520 = vpop.f32.mrf.mxu0
    %7521 = vdwg.mxu0
    %v7522 = vpack.c.bf16 %v7517, %v7517
    %7523 = vmatprep.subr.bf16.mxu0 0
    %7524 = vmatpush1.bf16.msra.mxu0 %v158
    %7525 = vmatprep.subr.bf16.mxu0 0
    %7526 = vmatpush1.bf16.msra.mxu0 %v157
    %7527 = vmatprep.subr.bf16.mxu0 0
    %7528 = vmatpush1.bf16.msra.mxu0 %v156
    %7529 = vmatprep.subr.bf16.mxu0 0
    %7530 = vmatpush1.bf16.msra.mxu0 %v155
    %7531 = vmatprep.subr.bf16.mxu0 0
    %7532 = vmatpush1.bf16.msra.mxu0 %v154
    %7533 = vmatprep.subr.bf16.mxu0 0
    %7534 = vmatpush1.bf16.msra.mxu0 %v153
    %7535 = vmatprep.subr.bf16.mxu0 0
    %7536 = vmatpush1.bf16.msra.mxu0 %v152
    %7537 = vmatprep.subr.bf16.mxu0 0
    %7538 = vmatpush1.bf16.msra.mxu0 %v151
    %7539 = vmatprep.subr.bf16.mxu0 0
    %7540 = vmatpush2.bf16.msra.mxu0 0
    %7541 = vmatprep.subr.bf16.mxu0 0
    %7542 = vmatpush2.bf16.msra.mxu0 0
    %7543 = vmatprep.subr.bf16.mxu0 0
    %7544 = vmatpush2.bf16.msra.mxu0 0
    %7545 = vmatprep.subr.bf16.mxu0 0
    %7546 = vmatpush2.bf16.msra.mxu0 0
    %7547 = vmatprep.subr.bf16.mxu0 0
    %7548 = vmatpush2.bf16.msra.mxu0 0
    %7549 = vmatprep.subr.bf16.mxu0 0
    %7550 = vmatpush2.bf16.msra.mxu0 0
    %7551 = vmatprep.subr.bf16.mxu0 0
    %7552 = vmatpush2.bf16.msra.mxu0 0
    %7553 = vmatprep.subr.bf16.mxu0 0
    %7554 = vmatpush2.bf16.msra.mxu0 0
    %7555 = vmatprep.mubr.bf16.mxu0 0
    %7556 = vmatmul.mubr.bf16.gmra.mxu0 %v7522
    %v7557 = vpop.f32.mrf.mxu0
    %v7558 = vadd.f32 0.0, %v7557
    %v7559 = vpop.f32.mrf.mxu0
    %v7560 = vpop.f32.mrf.mxu0
    %v7561 = vpop.f32.mrf.mxu0
    %7562 = vdwg.mxu0
    %v7563 = vtanh.pop %v7558
    %v7564 = vadd.f32 %v7517, %v7563
    %v7565 = vpack.c.bf16 %v7564, %v7564
    %7566 = vmatprep.subr.bf16.mxu0 0
    %7567 = vmatpush1.bf16.msra.mxu0 %v249
    %7568 = vmatprep.subr.bf16.mxu0 0
    %7569 = vmatpush1.bf16.msra.mxu0 %v248
    %7570 = vmatprep.subr.bf16.mxu0 0
    %7571 = vmatpush1.bf16.msra.mxu0 %v247
    %7572 = vmatprep.subr.bf16.mxu0 0
    %7573 = vmatpush1.bf16.msra.mxu0 %v246
    %7574 = vmatprep.subr.bf16.mxu0 0
    %7575 = vmatpush1.bf16.msra.mxu0 %v245
    %7576 = vmatprep.subr.bf16.mxu0 0
    %7577 = vmatpush1.bf16.msra.mxu0 %v244
    %7578 = vmatprep.subr.bf16.mxu0 0
    %7579 = vmatpush1.bf16.msra.mxu0 %v243
    %7580 = vmatprep.subr.bf16.mxu0 0
    %7581 = vmatpush1.bf16.msra.mxu0 %v242
    %7582 = vmatprep.subr.bf16.mxu0 0
    %7583 = vmatpush2.bf16.msra.mxu0 0
    %7584 = vmatprep.subr.bf16.mxu0 0
    %7585 = vmatpush2.bf16.msra.mxu0 0
    %7586 = vmatprep.subr.bf16.mxu0 0
    %7587 = vmatpush2.bf16.msra.mxu0 0
    %7588 = vmatprep.subr.bf16.mxu0 0
    %7589 = vmatpush2.bf16.msra.mxu0 0
    %7590 = vmatprep.subr.bf16.mxu0 0
    %7591 = vmatpush2.bf16.msra.mxu0 0
    %7592 = vmatprep.subr.bf16.mxu0 0
    %7593 = vmatpush2.bf16.msra.mxu0 0
    %7594 = vmatprep.subr.bf16.mxu0 0
    %7595 = vmatpush2.bf16.msra.mxu0 0
    %7596 = vmatprep.subr.bf16.mxu0 0
    %7597 = vmatpush2.bf16.msra.mxu0 0
    %7598 = vmatprep.mubr.bf16.mxu0 0
    %7599 = vmatmul.mubr.bf16.gmra.mxu0 %v7565
    %v7600 = vpop.f32.mrf.mxu0
    %v7601 = vadd.f32 0.0, %v7600
    %v7602 = vpop.f32.mrf.mxu0
    %v7603 = vpop.f32.mrf.mxu0
    %v7604 = vpop.f32.mrf.mxu0
    %7605 = vdwg.mxu0
    %v7606 = vpack.c.bf16 %v7601, %v7601
    %7607 = vmatprep.subr.bf16.mxu0 0
    %7608 = vmatpush1.bf16.msra.mxu0 %v158
    %7609 = vmatprep.subr.bf16.mxu0 0
    %7610 = vmatpush1.bf16.msra.mxu0 %v157
    %7611 = vmatprep.subr.bf16.mxu0 0
    %7612 = vmatpush1.bf16.msra.mxu0 %v156
    %7613 = vmatprep.subr.bf16.mxu0 0
    %7614 = vmatpush1.bf16.msra.mxu0 %v155
    %7615 = vmatprep.subr.bf16.mxu0 0
    %7616 = vmatpush1.bf16.msra.mxu0 %v154
    %7617 = vmatprep.subr.bf16.mxu0 0
    %7618 = vmatpush1.bf16.msra.mxu0 %v153
    %7619 = vmatprep.subr.bf16.mxu0 0
    %7620 = vmatpush1.bf16.msra.mxu0 %v152
    %7621 = vmatprep.subr.bf16.mxu0 0
    %7622 = vmatpush1.bf16.msra.mxu0 %v151
    %7623 = vmatprep.subr.bf16.mxu0 0
    %7624 = vmatpush2.bf16.msra.mxu0 0
    %7625 = vmatprep.subr.bf16.mxu0 0
    %7626 = vmatpush2.bf16.msra.mxu0 0
    %7627 = vmatprep.subr.bf16.mxu0 0
    %7628 = vmatpush2.bf16.msra.mxu0 0
    %7629 = vmatprep.subr.bf16.mxu0 0
    %7630 = vmatpush2.bf16.msra.mxu0 0
    %7631 = vmatprep.subr.bf16.mxu0 0
    %7632 = vmatpush2.bf16.msra.mxu0 0
    %7633 = vmatprep.subr.bf16.mxu0 0
    %7634 = vmatpush2.bf16.msra.mxu0 0
    %7635 = vmatprep.subr.bf16.mxu0 0
    %7636 = vmatpush2.bf16.msra.mxu0 0
    %7637 = vmatprep.subr.bf16.mxu0 0
    %7638 = vmatpush2.bf16.msra.mxu0 0
    %7639 = vmatprep.mubr.bf16.mxu0 0
    %7640 = vmatmul.mubr.bf16.gmra.mxu0 %v7606
    %v7641 = vpop.f32.mrf.mxu0
    %v7642 = vadd.f32 0.0, %v7641
    %v7643 = vpop.f32.mrf.mxu0
    %v7644 = vpop.f32.mrf.mxu0
    %v7645 = vpop.f32.mrf.mxu0
    %7646 = vdwg.mxu0
    %v7647 = vtanh.pop %v7642
    %v7648 = vadd.f32 %v7601, %v7647
    %v7649 = vpack.c.bf16 %v7648, %v7648
    %7650 = vmatprep.subr.bf16.mxu0 0
    %7651 = vmatpush1.bf16.msra.mxu0 %v249
    %7652 = vmatprep.subr.bf16.mxu0 0
    %7653 = vmatpush1.bf16.msra.mxu0 %v248
    %7654 = vmatprep.subr.bf16.mxu0 0
    %7655 = vmatpush1.bf16.msra.mxu0 %v247
    %7656 = vmatprep.subr.bf16.mxu0 0
    %7657 = vmatpush1.bf16.msra.mxu0 %v246
    %7658 = vmatprep.subr.bf16.mxu0 0
    %7659 = vmatpush1.bf16.msra.mxu0 %v245
    %7660 = vmatprep.subr.bf16.mxu0 0
    %7661 = vmatpush1.bf16.msra.mxu0 %v244
    %7662 = vmatprep.subr.bf16.mxu0 0
    %7663 = vmatpush1.bf16.msra.mxu0 %v243
    %7664 = vmatprep.subr.bf16.mxu0 0
    %7665 = vmatpush1.bf16.msra.mxu0 %v242
    %7666 = vmatprep.subr.bf16.mxu0 0
    %7667 = vmatpush2.bf16.msra.mxu0 0
    %7668 = vmatprep.subr.bf16.mxu0 0
    %7669 = vmatpush2.bf16.msra.mxu0 0
    %7670 = vmatprep.subr.bf16.mxu0 0
    %7671 = vmatpush2.bf16.msra.mxu0 0
    %7672 = vmatprep.subr.bf16.mxu0 0
    %7673 = vmatpush2.bf16.msra.mxu0 0
    %7674 = vmatprep.subr.bf16.mxu0 0
    %7675 = vmatpush2.bf16.msra.mxu0 0
    %7676 = vmatprep.subr.bf16.mxu0 0
    %7677 = vmatpush2.bf16.msra.mxu0 0
    %7678 = vmatprep.subr.bf16.mxu0 0
    %7679 = vmatpush2.bf16.msra.mxu0 0
    %7680 = vmatprep.subr.bf16.mxu0 0
    %7681 = vmatpush2.bf16.msra.mxu0 0
    %7682 = vmatprep.mubr.bf16.mxu0 0
    %7683 = vmatmul.mubr.bf16.gmra.mxu0 %v7649
    %v7684 = vpop.f32.mrf.mxu0
    %v7685 = vadd.f32 0.0, %v7684
    %v7686 = vpop.f32.mrf.mxu0
    %v7687 = vpop.f32.mrf.mxu0
    %v7688 = vpop.f32.mrf.mxu0
    %7689 = vdwg.mxu0
    %v7690 = vpack.c.bf16 %v7685, %v7685
    %7691 = vmatprep.subr.bf16.mxu0 0
    %7692 = vmatpush1.bf16.msra.mxu0 %v158
    %7693 = vmatprep.subr.bf16.mxu0 0
    %7694 = vmatpush1.bf16.msra.mxu0 %v157
    %7695 = vmatprep.subr.bf16.mxu0 0
    %7696 = vmatpush1.bf16.msra.mxu0 %v156
    %7697 = vmatprep.subr.bf16.mxu0 0
    %7698 = vmatpush1.bf16.msra.mxu0 %v155
    %7699 = vmatprep.subr.bf16.mxu0 0
    %7700 = vmatpush1.bf16.msra.mxu0 %v154
    %7701 = vmatprep.subr.bf16.mxu0 0
    %7702 = vmatpush1.bf16.msra.mxu0 %v153
    %7703 = vmatprep.subr.bf16.mxu0 0
    %7704 = vmatpush1.bf16.msra.mxu0 %v152
    %7705 = vmatprep.subr.bf16.mxu0 0
    %7706 = vmatpush1.bf16.msra.mxu0 %v151
    %7707 = vmatprep.subr.bf16.mxu0 0
    %7708 = vmatpush2.bf16.msra.mxu0 0
    %7709 = vmatprep.subr.bf16.mxu0 0
    %7710 = vmatpush2.bf16.msra.mxu0 0
    %7711 = vmatprep.subr.bf16.mxu0 0
    %7712 = vmatpush2.bf16.msra.mxu0 0
    %7713 = vmatprep.subr.bf16.mxu0 0
    %7714 = vmatpush2.bf16.msra.mxu0 0
    %7715 = vmatprep.subr.bf16.mxu0 0
    %7716 = vmatpush2.bf16.msra.mxu0 0
    %7717 = vmatprep.subr.bf16.mxu0 0
    %7718 = vmatpush2.bf16.msra.mxu0 0
    %7719 = vmatprep.subr.bf16.mxu0 0
    %7720 = vmatpush2.bf16.msra.mxu0 0
    %7721 = vmatprep.subr.bf16.mxu0 0
    %7722 = vmatpush2.bf16.msra.mxu0 0
    %7723 = vmatprep.mubr.bf16.mxu0 0
    %7724 = vmatmul.mubr.bf16.gmra.mxu0 %v7690
    %v7725 = vpop.f32.mrf.mxu0
    %v7726 = vadd.f32 0.0, %v7725
    %v7727 = vpop.f32.mrf.mxu0
    %v7728 = vpop.f32.mrf.mxu0
    %v7729 = vpop.f32.mrf.mxu0
    %7730 = vdwg.mxu0
    %v7731 = vtanh.pop %v7726
    %v7732 = vadd.f32 %v7685, %v7731
    %v7733 = vpack.c.bf16 %v7732, %v7732
    %7734 = vmatprep.subr.bf16.mxu0 0
    %7735 = vmatpush1.bf16.msra.mxu0 %v249
    %7736 = vmatprep.subr.bf16.mxu0 0
    %7737 = vmatpush1.bf16.msra.mxu0 %v248
    %7738 = vmatprep.subr.bf16.mxu0 0
    %7739 = vmatpush1.bf16.msra.mxu0 %v247
    %7740 = vmatprep.subr.bf16.mxu0 0
    %7741 = vmatpush1.bf16.msra.mxu0 %v246
    %7742 = vmatprep.subr.bf16.mxu0 0
    %7743 = vmatpush1.bf16.msra.mxu0 %v245
    %7744 = vmatprep.subr.bf16.mxu0 0
    %7745 = vmatpush1.bf16.msra.mxu0 %v244
    %7746 = vmatprep.subr.bf16.mxu0 0
    %7747 = vmatpush1.bf16.msra.mxu0 %v243
    %7748 = vmatprep.subr.bf16.mxu0 0
    %7749 = vmatpush1.bf16.msra.mxu0 %v242
    %7750 = vmatprep.subr.bf16.mxu0 0
    %7751 = vmatpush2.bf16.msra.mxu0 0
    %7752 = vmatprep.subr.bf16.mxu0 0
    %7753 = vmatpush2.bf16.msra.mxu0 0
    %7754 = vmatprep.subr.bf16.mxu0 0
    %7755 = vmatpush2.bf16.msra.mxu0 0
    %7756 = vmatprep.subr.bf16.mxu0 0
    %7757 = vmatpush2.bf16.msra.mxu0 0
    %7758 = vmatprep.subr.bf16.mxu0 0
    %7759 = vmatpush2.bf16.msra.mxu0 0
    %7760 = vmatprep.subr.bf16.mxu0 0
    %7761 = vmatpush2.bf16.msra.mxu0 0
    %7762 = vmatprep.subr.bf16.mxu0 0
    %7763 = vmatpush2.bf16.msra.mxu0 0
    %7764 = vmatprep.subr.bf16.mxu0 0
    %7765 = vmatpush2.bf16.msra.mxu0 0
    %7766 = vmatprep.mubr.bf16.mxu0 0
    %7767 = vmatmul.mubr.bf16.gmra.mxu0 %v7733
    %v7768 = vpop.f32.mrf.mxu0
    %v7769 = vadd.f32 0.0, %v7768
    %v7770 = vpop.f32.mrf.mxu0
    %v7771 = vpop.f32.mrf.mxu0
    %v7772 = vpop.f32.mrf.mxu0
    %7773 = vdwg.mxu0
    %v7774 = vpack.c.bf16 %v7769, %v7769
    %7775 = vmatprep.subr.bf16.mxu0 0
    %7776 = vmatpush1.bf16.msra.mxu0 %v158
    %7777 = vmatprep.subr.bf16.mxu0 0
    %7778 = vmatpush1.bf16.msra.mxu0 %v157
    %7779 = vmatprep.subr.bf16.mxu0 0
    %7780 = vmatpush1.bf16.msra.mxu0 %v156
    %7781 = vmatprep.subr.bf16.mxu0 0
    %7782 = vmatpush1.bf16.msra.mxu0 %v155
    %7783 = vmatprep.subr.bf16.mxu0 0
    %7784 = vmatpush1.bf16.msra.mxu0 %v154
    %7785 = vmatprep.subr.bf16.mxu0 0
    %7786 = vmatpush1.bf16.msra.mxu0 %v153
    %7787 = vmatprep.subr.bf16.mxu0 0
    %7788 = vmatpush1.bf16.msra.mxu0 %v152
    %7789 = vmatprep.subr.bf16.mxu0 0
    %7790 = vmatpush1.bf16.msra.mxu0 %v151
    %7791 = vmatprep.subr.bf16.mxu0 0
    %7792 = vmatpush2.bf16.msra.mxu0 0
    %7793 = vmatprep.subr.bf16.mxu0 0
    %7794 = vmatpush2.bf16.msra.mxu0 0
    %7795 = vmatprep.subr.bf16.mxu0 0
    %7796 = vmatpush2.bf16.msra.mxu0 0
    %7797 = vmatprep.subr.bf16.mxu0 0
    %7798 = vmatpush2.bf16.msra.mxu0 0
    %7799 = vmatprep.subr.bf16.mxu0 0
    %7800 = vmatpush2.bf16.msra.mxu0 0
    %7801 = vmatprep.subr.bf16.mxu0 0
    %7802 = vmatpush2.bf16.msra.mxu0 0
    %7803 = vmatprep.subr.bf16.mxu0 0
    %7804 = vmatpush2.bf16.msra.mxu0 0
    %7805 = vmatprep.subr.bf16.mxu0 0
    %7806 = vmatpush2.bf16.msra.mxu0 0
    %7807 = vmatprep.mubr.bf16.mxu0 0
    %7808 = vmatmul.mubr.bf16.gmra.mxu0 %v7774
    %v7809 = vpop.f32.mrf.mxu0
    %v7810 = vadd.f32 0.0, %v7809
    %v7811 = vpop.f32.mrf.mxu0
    %v7812 = vpop.f32.mrf.mxu0
    %v7813 = vpop.f32.mrf.mxu0
    %7814 = vdwg.mxu0
    %v7815 = vtanh.pop %v7810
    %v7816 = vadd.f32 %v7769, %v7815
    %v7817 = vpack.c.bf16 %v7816, %v7816
    %7818 = vmatprep.subr.bf16.mxu0 0
    %7819 = vmatpush1.bf16.msra.mxu0 %v249
    %7820 = vmatprep.subr.bf16.mxu0 0
    %7821 = vmatpush1.bf16.msra.mxu0 %v248
    %7822 = vmatprep.subr.bf16.mxu0 0
    %7823 = vmatpush1.bf16.msra.mxu0 %v247
    %7824 = vmatprep.subr.bf16.mxu0 0
    %7825 = vmatpush1.bf16.msra.mxu0 %v246
    %7826 = vmatprep.subr.bf16.mxu0 0
    %7827 = vmatpush1.bf16.msra.mxu0 %v245
    %7828 = vmatprep.subr.bf16.mxu0 0
    %7829 = vmatpush1.bf16.msra.mxu0 %v244
    %7830 = vmatprep.subr.bf16.mxu0 0
    %7831 = vmatpush1.bf16.msra.mxu0 %v243
    %7832 = vmatprep.subr.bf16.mxu0 0
    %7833 = vmatpush1.bf16.msra.mxu0 %v242
    %7834 = vmatprep.subr.bf16.mxu0 0
    %7835 = vmatpush2.bf16.msra.mxu0 0
    %7836 = vmatprep.subr.bf16.mxu0 0
    %7837 = vmatpush2.bf16.msra.mxu0 0
    %7838 = vmatprep.subr.bf16.mxu0 0
    %7839 = vmatpush2.bf16.msra.mxu0 0
    %7840 = vmatprep.subr.bf16.mxu0 0
    %7841 = vmatpush2.bf16.msra.mxu0 0
    %7842 = vmatprep.subr.bf16.mxu0 0
    %7843 = vmatpush2.bf16.msra.mxu0 0
    %7844 = vmatprep.subr.bf16.mxu0 0
    %7845 = vmatpush2.bf16.msra.mxu0 0
    %7846 = vmatprep.subr.bf16.mxu0 0
    %7847 = vmatpush2.bf16.msra.mxu0 0
    %7848 = vmatprep.subr.bf16.mxu0 0
    %7849 = vmatpush2.bf16.msra.mxu0 0
    %7850 = vmatprep.mubr.bf16.mxu0 0
    %7851 = vmatmul.mubr.bf16.gmra.mxu0 %v7817
    %v7852 = vpop.f32.mrf.mxu0
    %v7853 = vadd.f32 0.0, %v7852
    %v7854 = vpop.f32.mrf.mxu0
    %v7855 = vpop.f32.mrf.mxu0
    %v7856 = vpop.f32.mrf.mxu0
    %7857 = vdwg.mxu0
    %v7858 = vpack.c.bf16 %v7853, %v7853
    %7859 = vmatprep.subr.bf16.mxu0 0
    %7860 = vmatpush1.bf16.msra.mxu0 %v158
    %7861 = vmatprep.subr.bf16.mxu0 0
    %7862 = vmatpush1.bf16.msra.mxu0 %v157
    %7863 = vmatprep.subr.bf16.mxu0 0
    %7864 = vmatpush1.bf16.msra.mxu0 %v156
    %7865 = vmatprep.subr.bf16.mxu0 0
    %7866 = vmatpush1.bf16.msra.mxu0 %v155
    %7867 = vmatprep.subr.bf16.mxu0 0
    %7868 = vmatpush1.bf16.msra.mxu0 %v154
    %7869 = vmatprep.subr.bf16.mxu0 0
    %7870 = vmatpush1.bf16.msra.mxu0 %v153
    %7871 = vmatprep.subr.bf16.mxu0 0
    %7872 = vmatpush1.bf16.msra.mxu0 %v152
    %7873 = vmatprep.subr.bf16.mxu0 0
    %7874 = vmatpush1.bf16.msra.mxu0 %v151
    %7875 = vmatprep.subr.bf16.mxu0 0
    %7876 = vmatpush2.bf16.msra.mxu0 0
    %7877 = vmatprep.subr.bf16.mxu0 0
    %7878 = vmatpush2.bf16.msra.mxu0 0
    %7879 = vmatprep.subr.bf16.mxu0 0
    %7880 = vmatpush2.bf16.msra.mxu0 0
    %7881 = vmatprep.subr.bf16.mxu0 0
    %7882 = vmatpush2.bf16.msra.mxu0 0
    %7883 = vmatprep.subr.bf16.mxu0 0
    %7884 = vmatpush2.bf16.msra.mxu0 0
    %7885 = vmatprep.subr.bf16.mxu0 0
    %7886 = vmatpush2.bf16.msra.mxu0 0
    %7887 = vmatprep.subr.bf16.mxu0 0
    %7888 = vmatpush2.bf16.msra.mxu0 0
    %7889 = vmatprep.subr.bf16.mxu0 0
    %7890 = vmatpush2.bf16.msra.mxu0 0
    %7891 = vmatprep.mubr.bf16.mxu0 0
    %7892 = vmatmul.mubr.bf16.gmra.mxu0 %v7858
    %v7893 = vpop.f32.mrf.mxu0
    %v7894 = vadd.f32 0.0, %v7893
    %v7895 = vpop.f32.mrf.mxu0
    %v7896 = vpop.f32.mrf.mxu0
    %v7897 = vpop.f32.mrf.mxu0
    %7898 = vdwg.mxu0
    %v7899 = vtanh.pop %v7894
    %v7900 = vadd.f32 %v7853, %v7899
    %v7901 = vpack.c.bf16 %v7900, %v7900
    %7902 = vmatprep.subr.bf16.mxu0 0
    %7903 = vmatpush1.bf16.msra.mxu0 %v249
    %7904 = vmatprep.subr.bf16.mxu0 0
    %7905 = vmatpush1.bf16.msra.mxu0 %v248
    %7906 = vmatprep.subr.bf16.mxu0 0
    %7907 = vmatpush1.bf16.msra.mxu0 %v247
    %7908 = vmatprep.subr.bf16.mxu0 0
    %7909 = vmatpush1.bf16.msra.mxu0 %v246
    %7910 = vmatprep.subr.bf16.mxu0 0
    %7911 = vmatpush1.bf16.msra.mxu0 %v245
    %7912 = vmatprep.subr.bf16.mxu0 0
    %7913 = vmatpush1.bf16.msra.mxu0 %v244
    %7914 = vmatprep.subr.bf16.mxu0 0
    %7915 = vmatpush1.bf16.msra.mxu0 %v243
    %7916 = vmatprep.subr.bf16.mxu0 0
    %7917 = vmatpush1.bf16.msra.mxu0 %v242
    %7918 = vmatprep.subr.bf16.mxu0 0
    %7919 = vmatpush2.bf16.msra.mxu0 0
    %7920 = vmatprep.subr.bf16.mxu0 0
    %7921 = vmatpush2.bf16.msra.mxu0 0
    %7922 = vmatprep.subr.bf16.mxu0 0
    %7923 = vmatpush2.bf16.msra.mxu0 0
    %7924 = vmatprep.subr.bf16.mxu0 0
    %7925 = vmatpush2.bf16.msra.mxu0 0
    %7926 = vmatprep.subr.bf16.mxu0 0
    %7927 = vmatpush2.bf16.msra.mxu0 0
    %7928 = vmatprep.subr.bf16.mxu0 0
    %7929 = vmatpush2.bf16.msra.mxu0 0
    %7930 = vmatprep.subr.bf16.mxu0 0
    %7931 = vmatpush2.bf16.msra.mxu0 0
    %7932 = vmatprep.subr.bf16.mxu0 0
    %7933 = vmatpush2.bf16.msra.mxu0 0
    %7934 = vmatprep.mubr.bf16.mxu0 0
    %7935 = vmatmul.mubr.bf16.gmra.mxu0 %v7901
    %v7936 = vpop.f32.mrf.mxu0
    %v7937 = vadd.f32 0.0, %v7936
    %v7938 = vpop.f32.mrf.mxu0
    %v7939 = vpop.f32.mrf.mxu0
    %v7940 = vpop.f32.mrf.mxu0
    %7941 = vdwg.mxu0
    %v7942 = vpack.c.bf16 %v7937, %v7937
    %7943 = vmatprep.subr.bf16.mxu0 0
    %7944 = vmatpush1.bf16.msra.mxu0 %v158
    %7945 = vmatprep.subr.bf16.mxu0 0
    %7946 = vmatpush1.bf16.msra.mxu0 %v157
    %7947 = vmatprep.subr.bf16.mxu0 0
    %7948 = vmatpush1.bf16.msra.mxu0 %v156
    %7949 = vmatprep.subr.bf16.mxu0 0
    %7950 = vmatpush1.bf16.msra.mxu0 %v155
    %7951 = vmatprep.subr.bf16.mxu0 0
    %7952 = vmatpush1.bf16.msra.mxu0 %v154
    %7953 = vmatprep.subr.bf16.mxu0 0
    %7954 = vmatpush1.bf16.msra.mxu0 %v153
    %7955 = vmatprep.subr.bf16.mxu0 0
    %7956 = vmatpush1.bf16.msra.mxu0 %v152
    %7957 = vmatprep.subr.bf16.mxu0 0
    %7958 = vmatpush1.bf16.msra.mxu0 %v151
    %7959 = vmatprep.subr.bf16.mxu0 0
    %7960 = vmatpush2.bf16.msra.mxu0 0
    %7961 = vmatprep.subr.bf16.mxu0 0
    %7962 = vmatpush2.bf16.msra.mxu0 0
    %7963 = vmatprep.subr.bf16.mxu0 0
    %7964 = vmatpush2.bf16.msra.mxu0 0
    %7965 = vmatprep.subr.bf16.mxu0 0
    %7966 = vmatpush2.bf16.msra.mxu0 0
    %7967 = vmatprep.subr.bf16.mxu0 0
    %7968 = vmatpush2.bf16.msra.mxu0 0
    %7969 = vmatprep.subr.bf16.mxu0 0
    %7970 = vmatpush2.bf16.msra.mxu0 0
    %7971 = vmatprep.subr.bf16.mxu0 0
    %7972 = vmatpush2.bf16.msra.mxu0 0
    %7973 = vmatprep.subr.bf16.mxu0 0
    %7974 = vmatpush2.bf16.msra.mxu0 0
    %7975 = vmatprep.mubr.bf16.mxu0 0
    %7976 = vmatmul.mubr.bf16.gmra.mxu0 %v7942
    %v7977 = vpop.f32.mrf.mxu0
    %v7978 = vadd.f32 0.0, %v7977
    %v7979 = vpop.f32.mrf.mxu0
    %v7980 = vpop.f32.mrf.mxu0
    %v7981 = vpop.f32.mrf.mxu0
    %7982 = vdwg.mxu0
    %v7983 = vtanh.pop %v7978
    %v7984 = vadd.f32 %v7937, %v7983
    %v7985 = vpack.c.bf16 %v7984, %v7984
    %7986 = vmatprep.subr.bf16.mxu0 0
    %7987 = vmatpush1.bf16.msra.mxu0 %v249
    %7988 = vmatprep.subr.bf16.mxu0 0
    %7989 = vmatpush1.bf16.msra.mxu0 %v248
    %7990 = vmatprep.subr.bf16.mxu0 0
    %7991 = vmatpush1.bf16.msra.mxu0 %v247
    %7992 = vmatprep.subr.bf16.mxu0 0
    %7993 = vmatpush1.bf16.msra.mxu0 %v246
    %7994 = vmatprep.subr.bf16.mxu0 0
    %7995 = vmatpush1.bf16.msra.mxu0 %v245
    %7996 = vmatprep.subr.bf16.mxu0 0
    %7997 = vmatpush1.bf16.msra.mxu0 %v244
    %7998 = vmatprep.subr.bf16.mxu0 0
    %7999 = vmatpush1.bf16.msra.mxu0 %v243
    %8000 = vmatprep.subr.bf16.mxu0 0
    %8001 = vmatpush1.bf16.msra.mxu0 %v242
    %8002 = vmatprep.subr.bf16.mxu0 0
    %8003 = vmatpush2.bf16.msra.mxu0 0
    %8004 = vmatprep.subr.bf16.mxu0 0
    %8005 = vmatpush2.bf16.msra.mxu0 0
    %8006 = vmatprep.subr.bf16.mxu0 0
    %8007 = vmatpush2.bf16.msra.mxu0 0
    %8008 = vmatprep.subr.bf16.mxu0 0
    %8009 = vmatpush2.bf16.msra.mxu0 0
    %8010 = vmatprep.subr.bf16.mxu0 0
    %8011 = vmatpush2.bf16.msra.mxu0 0
    %8012 = vmatprep.subr.bf16.mxu0 0
    %8013 = vmatpush2.bf16.msra.mxu0 0
    %8014 = vmatprep.subr.bf16.mxu0 0
    %8015 = vmatpush2.bf16.msra.mxu0 0
    %8016 = vmatprep.subr.bf16.mxu0 0
    %8017 = vmatpush2.bf16.msra.mxu0 0
    %8018 = vmatprep.mubr.bf16.mxu0 0
    %8019 = vmatmul.mubr.bf16.gmra.mxu0 %v7985
    %v8020 = vpop.f32.mrf.mxu0
    %v8021 = vadd.f32 0.0, %v8020
    %v8022 = vpop.f32.mrf.mxu0
    %v8023 = vpop.f32.mrf.mxu0
    %v8024 = vpop.f32.mrf.mxu0
    %8025 = vdwg.mxu0
    %v8026 = vpack.c.bf16 %v8021, %v8021
    %8027 = vmatprep.subr.bf16.mxu0 0
    %8028 = vmatpush1.bf16.msra.mxu0 %v158
    %8029 = vmatprep.subr.bf16.mxu0 0
    %8030 = vmatpush1.bf16.msra.mxu0 %v157
    %8031 = vmatprep.subr.bf16.mxu0 0
    %8032 = vmatpush1.bf16.msra.mxu0 %v156
    %8033 = vmatprep.subr.bf16.mxu0 0
    %8034 = vmatpush1.bf16.msra.mxu0 %v155
    %8035 = vmatprep.subr.bf16.mxu0 0
    %8036 = vmatpush1.bf16.msra.mxu0 %v154
    %8037 = vmatprep.subr.bf16.mxu0 0
    %8038 = vmatpush1.bf16.msra.mxu0 %v153
    %8039 = vmatprep.subr.bf16.mxu0 0
    %8040 = vmatpush1.bf16.msra.mxu0 %v152
    %8041 = vmatprep.subr.bf16.mxu0 0
    %8042 = vmatpush1.bf16.msra.mxu0 %v151
    %8043 = vmatprep.subr.bf16.mxu0 0
    %8044 = vmatpush2.bf16.msra.mxu0 0
    %8045 = vmatprep.subr.bf16.mxu0 0
    %8046 = vmatpush2.bf16.msra.mxu0 0
    %8047 = vmatprep.subr.bf16.mxu0 0
    %8048 = vmatpush2.bf16.msra.mxu0 0
    %8049 = vmatprep.subr.bf16.mxu0 0
    %8050 = vmatpush2.bf16.msra.mxu0 0
    %8051 = vmatprep.subr.bf16.mxu0 0
    %8052 = vmatpush2.bf16.msra.mxu0 0
    %8053 = vmatprep.subr.bf16.mxu0 0
    %8054 = vmatpush2.bf16.msra.mxu0 0
    %8055 = vmatprep.subr.bf16.mxu0 0
    %8056 = vmatpush2.bf16.msra.mxu0 0
    %8057 = vmatprep.subr.bf16.mxu0 0
    %8058 = vmatpush2.bf16.msra.mxu0 0
    %8059 = vmatprep.mubr.bf16.mxu0 0
    %8060 = vmatmul.mubr.bf16.gmra.mxu0 %v8026
    %v8061 = vpop.f32.mrf.mxu0
    %v8062 = vadd.f32 0.0, %v8061
    %v8063 = vpop.f32.mrf.mxu0
    %v8064 = vpop.f32.mrf.mxu0
    %v8065 = vpop.f32.mrf.mxu0
    %8066 = vdwg.mxu0
    %v8067 = vtanh.pop %v8062
    %v8068 = vadd.f32 %v8021, %v8067
    %v8069 = vpack.c.bf16 %v8068, %v8068
    %8070 = vmatprep.subr.bf16.mxu0 0
    %8071 = vmatpush1.bf16.msra.mxu0 %v249
    %8072 = vmatprep.subr.bf16.mxu0 0
    %8073 = vmatpush1.bf16.msra.mxu0 %v248
    %8074 = vmatprep.subr.bf16.mxu0 0
    %8075 = vmatpush1.bf16.msra.mxu0 %v247
    %8076 = vmatprep.subr.bf16.mxu0 0
    %8077 = vmatpush1.bf16.msra.mxu0 %v246
    %8078 = vmatprep.subr.bf16.mxu0 0
    %8079 = vmatpush1.bf16.msra.mxu0 %v245
    %8080 = vmatprep.subr.bf16.mxu0 0
    %8081 = vmatpush1.bf16.msra.mxu0 %v244
    %8082 = vmatprep.subr.bf16.mxu0 0
    %8083 = vmatpush1.bf16.msra.mxu0 %v243
    %8084 = vmatprep.subr.bf16.mxu0 0
    %8085 = vmatpush1.bf16.msra.mxu0 %v242
    %8086 = vmatprep.subr.bf16.mxu0 0
    %8087 = vmatpush2.bf16.msra.mxu0 0
    %8088 = vmatprep.subr.bf16.mxu0 0
    %8089 = vmatpush2.bf16.msra.mxu0 0
    %8090 = vmatprep.subr.bf16.mxu0 0
    %8091 = vmatpush2.bf16.msra.mxu0 0
    %8092 = vmatprep.subr.bf16.mxu0 0
    %8093 = vmatpush2.bf16.msra.mxu0 0
    %8094 = vmatprep.subr.bf16.mxu0 0
    %8095 = vmatpush2.bf16.msra.mxu0 0
    %8096 = vmatprep.subr.bf16.mxu0 0
    %8097 = vmatpush2.bf16.msra.mxu0 0
    %8098 = vmatprep.subr.bf16.mxu0 0
    %8099 = vmatpush2.bf16.msra.mxu0 0
    %8100 = vmatprep.subr.bf16.mxu0 0
    %8101 = vmatpush2.bf16.msra.mxu0 0
    %8102 = vmatprep.mubr.bf16.mxu0 0
    %8103 = vmatmul.mubr.bf16.gmra.mxu0 %v8069
    %v8104 = vpop.f32.mrf.mxu0
    %v8105 = vadd.f32 0.0, %v8104
    %v8106 = vpop.f32.mrf.mxu0
    %v8107 = vpop.f32.mrf.mxu0
    %v8108 = vpop.f32.mrf.mxu0
    %8109 = vdwg.mxu0
    %v8110 = vpack.c.bf16 %v8105, %v8105
    %8111 = vmatprep.subr.bf16.mxu0 0
    %8112 = vmatpush1.bf16.msra.mxu0 %v158
    %8113 = vmatprep.subr.bf16.mxu0 0
    %8114 = vmatpush1.bf16.msra.mxu0 %v157
    %8115 = vmatprep.subr.bf16.mxu0 0
    %8116 = vmatpush1.bf16.msra.mxu0 %v156
    %8117 = vmatprep.subr.bf16.mxu0 0
    %8118 = vmatpush1.bf16.msra.mxu0 %v155
    %8119 = vmatprep.subr.bf16.mxu0 0
    %8120 = vmatpush1.bf16.msra.mxu0 %v154
    %8121 = vmatprep.subr.bf16.mxu0 0
    %8122 = vmatpush1.bf16.msra.mxu0 %v153
    %8123 = vmatprep.subr.bf16.mxu0 0
    %8124 = vmatpush1.bf16.msra.mxu0 %v152
    %8125 = vmatprep.subr.bf16.mxu0 0
    %8126 = vmatpush1.bf16.msra.mxu0 %v151
    %8127 = vmatprep.subr.bf16.mxu0 0
    %8128 = vmatpush2.bf16.msra.mxu0 0
    %8129 = vmatprep.subr.bf16.mxu0 0
    %8130 = vmatpush2.bf16.msra.mxu0 0
    %8131 = vmatprep.subr.bf16.mxu0 0
    %8132 = vmatpush2.bf16.msra.mxu0 0
    %8133 = vmatprep.subr.bf16.mxu0 0
    %8134 = vmatpush2.bf16.msra.mxu0 0
    %8135 = vmatprep.subr.bf16.mxu0 0
    %8136 = vmatpush2.bf16.msra.mxu0 0
    %8137 = vmatprep.subr.bf16.mxu0 0
    %8138 = vmatpush2.bf16.msra.mxu0 0
    %8139 = vmatprep.subr.bf16.mxu0 0
    %8140 = vmatpush2.bf16.msra.mxu0 0
    %8141 = vmatprep.subr.bf16.mxu0 0
    %8142 = vmatpush2.bf16.msra.mxu0 0
    %8143 = vmatprep.mubr.bf16.mxu0 0
    %8144 = vmatmul.mubr.bf16.gmra.mxu0 %v8110
    %v8145 = vpop.f32.mrf.mxu0
    %v8146 = vadd.f32 0.0, %v8145
    %v8147 = vpop.f32.mrf.mxu0
    %v8148 = vpop.f32.mrf.mxu0
    %v8149 = vpop.f32.mrf.mxu0
    %8150 = vdwg.mxu0
    %v8151 = vtanh.pop %v8146
    %v8152 = vadd.f32 %v8105, %v8151
    %v8153 = vpack.c.bf16 %v8152, %v8152
    %8154 = vmatprep.subr.bf16.mxu0 0
    %8155 = vmatpush1.bf16.msra.mxu0 %v249
    %8156 = vmatprep.subr.bf16.mxu0 0
    %8157 = vmatpush1.bf16.msra.mxu0 %v248
    %8158 = vmatprep.subr.bf16.mxu0 0
    %8159 = vmatpush1.bf16.msra.mxu0 %v247
    %8160 = vmatprep.subr.bf16.mxu0 0
    %8161 = vmatpush1.bf16.msra.mxu0 %v246
    %8162 = vmatprep.subr.bf16.mxu0 0
    %8163 = vmatpush1.bf16.msra.mxu0 %v245
    %8164 = vmatprep.subr.bf16.mxu0 0
    %8165 = vmatpush1.bf16.msra.mxu0 %v244
    %8166 = vmatprep.subr.bf16.mxu0 0
    %8167 = vmatpush1.bf16.msra.mxu0 %v243
    %8168 = vmatprep.subr.bf16.mxu0 0
    %8169 = vmatpush1.bf16.msra.mxu0 %v242
    %8170 = vmatprep.subr.bf16.mxu0 0
    %8171 = vmatpush2.bf16.msra.mxu0 0
    %8172 = vmatprep.subr.bf16.mxu0 0
    %8173 = vmatpush2.bf16.msra.mxu0 0
    %8174 = vmatprep.subr.bf16.mxu0 0
    %8175 = vmatpush2.bf16.msra.mxu0 0
    %8176 = vmatprep.subr.bf16.mxu0 0
    %8177 = vmatpush2.bf16.msra.mxu0 0
    %8178 = vmatprep.subr.bf16.mxu0 0
    %8179 = vmatpush2.bf16.msra.mxu0 0
    %8180 = vmatprep.subr.bf16.mxu0 0
    %8181 = vmatpush2.bf16.msra.mxu0 0
    %8182 = vmatprep.subr.bf16.mxu0 0
    %8183 = vmatpush2.bf16.msra.mxu0 0
    %8184 = vmatprep.subr.bf16.mxu0 0
    %8185 = vmatpush2.bf16.msra.mxu0 0
    %8186 = vmatprep.mubr.bf16.mxu0 0
    %8187 = vmatmul.mubr.bf16.gmra.mxu0 %v8153
    %v8188 = vpop.f32.mrf.mxu0
    %v8189 = vadd.f32 0.0, %v8188
    %v8190 = vpop.f32.mrf.mxu0
    %v8191 = vpop.f32.mrf.mxu0
    %v8192 = vpop.f32.mrf.mxu0
    %8193 = vdwg.mxu0
    %v8194 = vpack.c.bf16 %v8189, %v8189
    %8195 = vmatprep.subr.bf16.mxu0 0
    %8196 = vmatpush1.bf16.msra.mxu0 %v158
    %8197 = vmatprep.subr.bf16.mxu0 0
    %8198 = vmatpush1.bf16.msra.mxu0 %v157
    %8199 = vmatprep.subr.bf16.mxu0 0
    %8200 = vmatpush1.bf16.msra.mxu0 %v156
    %8201 = vmatprep.subr.bf16.mxu0 0
    %8202 = vmatpush1.bf16.msra.mxu0 %v155
    %8203 = vmatprep.subr.bf16.mxu0 0
    %8204 = vmatpush1.bf16.msra.mxu0 %v154
    %8205 = vmatprep.subr.bf16.mxu0 0
    %8206 = vmatpush1.bf16.msra.mxu0 %v153
    %8207 = vmatprep.subr.bf16.mxu0 0
    %8208 = vmatpush1.bf16.msra.mxu0 %v152
    %8209 = vmatprep.subr.bf16.mxu0 0
    %8210 = vmatpush1.bf16.msra.mxu0 %v151
    %8211 = vmatprep.subr.bf16.mxu0 0
    %8212 = vmatpush2.bf16.msra.mxu0 0
    %8213 = vmatprep.subr.bf16.mxu0 0
    %8214 = vmatpush2.bf16.msra.mxu0 0
    %8215 = vmatprep.subr.bf16.mxu0 0
    %8216 = vmatpush2.bf16.msra.mxu0 0
    %8217 = vmatprep.subr.bf16.mxu0 0
    %8218 = vmatpush2.bf16.msra.mxu0 0
    %8219 = vmatprep.subr.bf16.mxu0 0
    %8220 = vmatpush2.bf16.msra.mxu0 0
    %8221 = vmatprep.subr.bf16.mxu0 0
    %8222 = vmatpush2.bf16.msra.mxu0 0
    %8223 = vmatprep.subr.bf16.mxu0 0
    %8224 = vmatpush2.bf16.msra.mxu0 0
    %8225 = vmatprep.subr.bf16.mxu0 0
    %8226 = vmatpush2.bf16.msra.mxu0 0
    %8227 = vmatprep.mubr.bf16.mxu0 0
    %8228 = vmatmul.mubr.bf16.gmra.mxu0 %v8194
    %v8229 = vpop.f32.mrf.mxu0
    %v8230 = vadd.f32 0.0, %v8229
    %v8231 = vpop.f32.mrf.mxu0
    %v8232 = vpop.f32.mrf.mxu0
    %v8233 = vpop.f32.mrf.mxu0
    %8234 = vdwg.mxu0
    %v8235 = vtanh.pop %v8230
    %v8236 = vadd.f32 %v8189, %v8235
    %v8237 = vpack.c.bf16 %v8236, %v8236
    %8238 = vmatprep.subr.bf16.mxu0 0
    %8239 = vmatpush1.bf16.msra.mxu0 %v249
    %8240 = vmatprep.subr.bf16.mxu0 0
    %8241 = vmatpush1.bf16.msra.mxu0 %v248
    %8242 = vmatprep.subr.bf16.mxu0 0
    %8243 = vmatpush1.bf16.msra.mxu0 %v247
    %8244 = vmatprep.subr.bf16.mxu0 0
    %8245 = vmatpush1.bf16.msra.mxu0 %v246
    %8246 = vmatprep.subr.bf16.mxu0 0
    %8247 = vmatpush1.bf16.msra.mxu0 %v245
    %8248 = vmatprep.subr.bf16.mxu0 0
    %8249 = vmatpush1.bf16.msra.mxu0 %v244
    %8250 = vmatprep.subr.bf16.mxu0 0
    %8251 = vmatpush1.bf16.msra.mxu0 %v243
    %8252 = vmatprep.subr.bf16.mxu0 0
    %8253 = vmatpush1.bf16.msra.mxu0 %v242
    %8254 = vmatprep.subr.bf16.mxu0 0
    %8255 = vmatpush2.bf16.msra.mxu0 0
    %8256 = vmatprep.subr.bf16.mxu0 0
    %8257 = vmatpush2.bf16.msra.mxu0 0
    %8258 = vmatprep.subr.bf16.mxu0 0
    %8259 = vmatpush2.bf16.msra.mxu0 0
    %8260 = vmatprep.subr.bf16.mxu0 0
    %8261 = vmatpush2.bf16.msra.mxu0 0
    %8262 = vmatprep.subr.bf16.mxu0 0
    %8263 = vmatpush2.bf16.msra.mxu0 0
    %8264 = vmatprep.subr.bf16.mxu0 0
    %8265 = vmatpush2.bf16.msra.mxu0 0
    %8266 = vmatprep.subr.bf16.mxu0 0
    %8267 = vmatpush2.bf16.msra.mxu0 0
    %8268 = vmatprep.subr.bf16.mxu0 0
    %8269 = vmatpush2.bf16.msra.mxu0 0
    %8270 = vmatprep.mubr.bf16.mxu0 0
    %8271 = vmatmul.mubr.bf16.gmra.mxu0 %v8237
    %v8272 = vpop.f32.mrf.mxu0
    %v8273 = vadd.f32 0.0, %v8272
    %v8274 = vpop.f32.mrf.mxu0
    %v8275 = vpop.f32.mrf.mxu0
    %v8276 = vpop.f32.mrf.mxu0
    %8277 = vdwg.mxu0
    %v8278 = vpack.c.bf16 %v8273, %v8273
    %8279 = vmatprep.subr.bf16.mxu0 0
    %8280 = vmatpush1.bf16.msra.mxu0 %v158
    %8281 = vmatprep.subr.bf16.mxu0 0
    %8282 = vmatpush1.bf16.msra.mxu0 %v157
    %8283 = vmatprep.subr.bf16.mxu0 0
    %8284 = vmatpush1.bf16.msra.mxu0 %v156
    %8285 = vmatprep.subr.bf16.mxu0 0
    %8286 = vmatpush1.bf16.msra.mxu0 %v155
    %8287 = vmatprep.subr.bf16.mxu0 0
    %8288 = vmatpush1.bf16.msra.mxu0 %v154
    %8289 = vmatprep.subr.bf16.mxu0 0
    %8290 = vmatpush1.bf16.msra.mxu0 %v153
    %8291 = vmatprep.subr.bf16.mxu0 0
    %8292 = vmatpush1.bf16.msra.mxu0 %v152
    %8293 = vmatprep.subr.bf16.mxu0 0
    %8294 = vmatpush1.bf16.msra.mxu0 %v151
    %8295 = vmatprep.subr.bf16.mxu0 0
    %8296 = vmatpush2.bf16.msra.mxu0 0
    %8297 = vmatprep.subr.bf16.mxu0 0
    %8298 = vmatpush2.bf16.msra.mxu0 0
    %8299 = vmatprep.subr.bf16.mxu0 0
    %8300 = vmatpush2.bf16.msra.mxu0 0
    %8301 = vmatprep.subr.bf16.mxu0 0
    %8302 = vmatpush2.bf16.msra.mxu0 0
    %8303 = vmatprep.subr.bf16.mxu0 0
    %8304 = vmatpush2.bf16.msra.mxu0 0
    %8305 = vmatprep.subr.bf16.mxu0 0
    %8306 = vmatpush2.bf16.msra.mxu0 0
    %8307 = vmatprep.subr.bf16.mxu0 0
    %8308 = vmatpush2.bf16.msra.mxu0 0
    %8309 = vmatprep.subr.bf16.mxu0 0
    %8310 = vmatpush2.bf16.msra.mxu0 0
    %8311 = vmatprep.mubr.bf16.mxu0 0
    %8312 = vmatmul.mubr.bf16.gmra.mxu0 %v8278
    %v8313 = vpop.f32.mrf.mxu0
    %v8314 = vadd.f32 0.0, %v8313
    %v8315 = vpop.f32.mrf.mxu0
    %v8316 = vpop.f32.mrf.mxu0
    %v8317 = vpop.f32.mrf.mxu0
    %8318 = vdwg.mxu0
    %v8319 = vtanh.pop %v8314
    %v8320 = vadd.f32 %v8273, %v8319
    %v8321 = vpack.c.bf16 %v8320, %v8320
    %8322 = vmatprep.subr.bf16.mxu0 0
    %8323 = vmatpush1.bf16.msra.mxu0 %v249
    %8324 = vmatprep.subr.bf16.mxu0 0
    %8325 = vmatpush1.bf16.msra.mxu0 %v248
    %8326 = vmatprep.subr.bf16.mxu0 0
    %8327 = vmatpush1.bf16.msra.mxu0 %v247
    %8328 = vmatprep.subr.bf16.mxu0 0
    %8329 = vmatpush1.bf16.msra.mxu0 %v246
    %8330 = vmatprep.subr.bf16.mxu0 0
    %8331 = vmatpush1.bf16.msra.mxu0 %v245
    %8332 = vmatprep.subr.bf16.mxu0 0
    %8333 = vmatpush1.bf16.msra.mxu0 %v244
    %8334 = vmatprep.subr.bf16.mxu0 0
    %8335 = vmatpush1.bf16.msra.mxu0 %v243
    %8336 = vmatprep.subr.bf16.mxu0 0
    %8337 = vmatpush1.bf16.msra.mxu0 %v242
    %8338 = vmatprep.subr.bf16.mxu0 0
    %8339 = vmatpush2.bf16.msra.mxu0 0
    %8340 = vmatprep.subr.bf16.mxu0 0
    %8341 = vmatpush2.bf16.msra.mxu0 0
    %8342 = vmatprep.subr.bf16.mxu0 0
    %8343 = vmatpush2.bf16.msra.mxu0 0
    %8344 = vmatprep.subr.bf16.mxu0 0
    %8345 = vmatpush2.bf16.msra.mxu0 0
    %8346 = vmatprep.subr.bf16.mxu0 0
    %8347 = vmatpush2.bf16.msra.mxu0 0
    %8348 = vmatprep.subr.bf16.mxu0 0
    %8349 = vmatpush2.bf16.msra.mxu0 0
    %8350 = vmatprep.subr.bf16.mxu0 0
    %8351 = vmatpush2.bf16.msra.mxu0 0
    %8352 = vmatprep.subr.bf16.mxu0 0
    %8353 = vmatpush2.bf16.msra.mxu0 0
    %8354 = vmatprep.mubr.bf16.mxu0 0
    %8355 = vmatmul.mubr.bf16.gmra.mxu0 %v8321
    %v8356 = vpop.f32.mrf.mxu0
    %v8357 = vadd.f32 0.0, %v8356
    %v8358 = vpop.f32.mrf.mxu0
    %v8359 = vpop.f32.mrf.mxu0
    %v8360 = vpop.f32.mrf.mxu0
    %8361 = vdwg.mxu0
    %v8362 = vpack.c.bf16 %v8357, %v8357
    %8363 = vmatprep.subr.bf16.mxu0 0
    %8364 = vmatpush1.bf16.msra.mxu0 %v158
    %8365 = vmatprep.subr.bf16.mxu0 0
    %8366 = vmatpush1.bf16.msra.mxu0 %v157
    %8367 = vmatprep.subr.bf16.mxu0 0
    %8368 = vmatpush1.bf16.msra.mxu0 %v156
    %8369 = vmatprep.subr.bf16.mxu0 0
    %8370 = vmatpush1.bf16.msra.mxu0 %v155
    %8371 = vmatprep.subr.bf16.mxu0 0
    %8372 = vmatpush1.bf16.msra.mxu0 %v154
    %8373 = vmatprep.subr.bf16.mxu0 0
    %8374 = vmatpush1.bf16.msra.mxu0 %v153
    %8375 = vmatprep.subr.bf16.mxu0 0
    %8376 = vmatpush1.bf16.msra.mxu0 %v152
    %8377 = vmatprep.subr.bf16.mxu0 0
    %8378 = vmatpush1.bf16.msra.mxu0 %v151
    %8379 = vmatprep.subr.bf16.mxu0 0
    %8380 = vmatpush2.bf16.msra.mxu0 0
    %8381 = vmatprep.subr.bf16.mxu0 0
    %8382 = vmatpush2.bf16.msra.mxu0 0
    %8383 = vmatprep.subr.bf16.mxu0 0
    %8384 = vmatpush2.bf16.msra.mxu0 0
    %8385 = vmatprep.subr.bf16.mxu0 0
    %8386 = vmatpush2.bf16.msra.mxu0 0
    %8387 = vmatprep.subr.bf16.mxu0 0
    %8388 = vmatpush2.bf16.msra.mxu0 0
    %8389 = vmatprep.subr.bf16.mxu0 0
    %8390 = vmatpush2.bf16.msra.mxu0 0
    %8391 = vmatprep.subr.bf16.mxu0 0
    %8392 = vmatpush2.bf16.msra.mxu0 0
    %8393 = vmatprep.subr.bf16.mxu0 0
    %8394 = vmatpush2.bf16.msra.mxu0 0
    %8395 = vmatprep.mubr.bf16.mxu0 0
    %8396 = vmatmul.mubr.bf16.gmra.mxu0 %v8362
    %v8397 = vpop.f32.mrf.mxu0
    %v8398 = vadd.f32 0.0, %v8397
    %v8399 = vpop.f32.mrf.mxu0
    %v8400 = vpop.f32.mrf.mxu0
    %v8401 = vpop.f32.mrf.mxu0
    %8402 = vdwg.mxu0
    %v8403 = vtanh.pop %v8398
    %v8404 = vadd.f32 %v8357, %v8403
    %v8405 = vpack.c.bf16 %v8404, %v8404
    %8406 = vmatprep.subr.bf16.mxu0 0
    %8407 = vmatpush1.bf16.msra.mxu0 %v249
    %8408 = vmatprep.subr.bf16.mxu0 0
    %8409 = vmatpush1.bf16.msra.mxu0 %v248
    %8410 = vmatprep.subr.bf16.mxu0 0
    %8411 = vmatpush1.bf16.msra.mxu0 %v247
    %8412 = vmatprep.subr.bf16.mxu0 0
    %8413 = vmatpush1.bf16.msra.mxu0 %v246
    %8414 = vmatprep.subr.bf16.mxu0 0
    %8415 = vmatpush1.bf16.msra.mxu0 %v245
    %8416 = vmatprep.subr.bf16.mxu0 0
    %8417 = vmatpush1.bf16.msra.mxu0 %v244
    %8418 = vmatprep.subr.bf16.mxu0 0
    %8419 = vmatpush1.bf16.msra.mxu0 %v243
    %8420 = vmatprep.subr.bf16.mxu0 0
    %8421 = vmatpush1.bf16.msra.mxu0 %v242
    %8422 = vmatprep.subr.bf16.mxu0 0
    %8423 = vmatpush2.bf16.msra.mxu0 0
    %8424 = vmatprep.subr.bf16.mxu0 0
    %8425 = vmatpush2.bf16.msra.mxu0 0
    %8426 = vmatprep.subr.bf16.mxu0 0
    %8427 = vmatpush2.bf16.msra.mxu0 0
    %8428 = vmatprep.subr.bf16.mxu0 0
    %8429 = vmatpush2.bf16.msra.mxu0 0
    %8430 = vmatprep.subr.bf16.mxu0 0
    %8431 = vmatpush2.bf16.msra.mxu0 0
    %8432 = vmatprep.subr.bf16.mxu0 0
    %8433 = vmatpush2.bf16.msra.mxu0 0
    %8434 = vmatprep.subr.bf16.mxu0 0
    %8435 = vmatpush2.bf16.msra.mxu0 0
    %8436 = vmatprep.subr.bf16.mxu0 0
    %8437 = vmatpush2.bf16.msra.mxu0 0
    %8438 = vmatprep.mubr.bf16.mxu0 0
    %8439 = vmatmul.mubr.bf16.gmra.mxu0 %v8405
    %v8440 = vpop.f32.mrf.mxu0
    %v8441 = vadd.f32 0.0, %v8440
    %v8442 = vpop.f32.mrf.mxu0
    %v8443 = vpop.f32.mrf.mxu0
    %v8444 = vpop.f32.mrf.mxu0
    %8445 = vdwg.mxu0
    %v8446 = vpack.c.bf16 %v8441, %v8441
    %8447 = vmatprep.subr.bf16.mxu0 0
    %8448 = vmatpush1.bf16.msra.mxu0 %v158
    %8449 = vmatprep.subr.bf16.mxu0 0
    %8450 = vmatpush1.bf16.msra.mxu0 %v157
    %8451 = vmatprep.subr.bf16.mxu0 0
    %8452 = vmatpush1.bf16.msra.mxu0 %v156
    %8453 = vmatprep.subr.bf16.mxu0 0
    %8454 = vmatpush1.bf16.msra.mxu0 %v155
    %8455 = vmatprep.subr.bf16.mxu0 0
    %8456 = vmatpush1.bf16.msra.mxu0 %v154
    %8457 = vmatprep.subr.bf16.mxu0 0
    %8458 = vmatpush1.bf16.msra.mxu0 %v153
    %8459 = vmatprep.subr.bf16.mxu0 0
    %8460 = vmatpush1.bf16.msra.mxu0 %v152
    %8461 = vmatprep.subr.bf16.mxu0 0
    %8462 = vmatpush1.bf16.msra.mxu0 %v151
    %8463 = vmatprep.subr.bf16.mxu0 0
    %8464 = vmatpush2.bf16.msra.mxu0 0
    %8465 = vmatprep.subr.bf16.mxu0 0
    %8466 = vmatpush2.bf16.msra.mxu0 0
    %8467 = vmatprep.subr.bf16.mxu0 0
    %8468 = vmatpush2.bf16.msra.mxu0 0
    %8469 = vmatprep.subr.bf16.mxu0 0
    %8470 = vmatpush2.bf16.msra.mxu0 0
    %8471 = vmatprep.subr.bf16.mxu0 0
    %8472 = vmatpush2.bf16.msra.mxu0 0
    %8473 = vmatprep.subr.bf16.mxu0 0
    %8474 = vmatpush2.bf16.msra.mxu0 0
    %8475 = vmatprep.subr.bf16.mxu0 0
    %8476 = vmatpush2.bf16.msra.mxu0 0
    %8477 = vmatprep.subr.bf16.mxu0 0
    %8478 = vmatpush2.bf16.msra.mxu0 0
    %8479 = vmatprep.mubr.bf16.mxu0 0
    %8480 = vmatmul.mubr.bf16.gmra.mxu0 %v8446
    %v8481 = vpop.f32.mrf.mxu0
    %v8482 = vadd.f32 0.0, %v8481
    %v8483 = vpop.f32.mrf.mxu0
    %v8484 = vpop.f32.mrf.mxu0
    %v8485 = vpop.f32.mrf.mxu0
    %8486 = vdwg.mxu0
    %v8487 = vtanh.pop %v8482
    %v8488 = vadd.f32 %v8441, %v8487
    %v8489 = vpack.c.bf16 %v8488, %v8488
    %8490 = vmatprep.subr.bf16.mxu0 0
    %8491 = vmatpush1.bf16.msra.mxu0 %v249
    %8492 = vmatprep.subr.bf16.mxu0 0
    %8493 = vmatpush1.bf16.msra.mxu0 %v248
    %8494 = vmatprep.subr.bf16.mxu0 0
    %8495 = vmatpush1.bf16.msra.mxu0 %v247
    %8496 = vmatprep.subr.bf16.mxu0 0
    %8497 = vmatpush1.bf16.msra.mxu0 %v246
    %8498 = vmatprep.subr.bf16.mxu0 0
    %8499 = vmatpush1.bf16.msra.mxu0 %v245
    %8500 = vmatprep.subr.bf16.mxu0 0
    %8501 = vmatpush1.bf16.msra.mxu0 %v244
    %8502 = vmatprep.subr.bf16.mxu0 0
    %8503 = vmatpush1.bf16.msra.mxu0 %v243
    %8504 = vmatprep.subr.bf16.mxu0 0
    %8505 = vmatpush1.bf16.msra.mxu0 %v242
    %8506 = vmatprep.subr.bf16.mxu0 0
    %8507 = vmatpush2.bf16.msra.mxu0 0
    %8508 = vmatprep.subr.bf16.mxu0 0
    %8509 = vmatpush2.bf16.msra.mxu0 0
    %8510 = vmatprep.subr.bf16.mxu0 0
    %8511 = vmatpush2.bf16.msra.mxu0 0
    %8512 = vmatprep.subr.bf16.mxu0 0
    %8513 = vmatpush2.bf16.msra.mxu0 0
    %8514 = vmatprep.subr.bf16.mxu0 0
    %8515 = vmatpush2.bf16.msra.mxu0 0
    %8516 = vmatprep.subr.bf16.mxu0 0
    %8517 = vmatpush2.bf16.msra.mxu0 0
    %8518 = vmatprep.subr.bf16.mxu0 0
    %8519 = vmatpush2.bf16.msra.mxu0 0
    %8520 = vmatprep.subr.bf16.mxu0 0
    %8521 = vmatpush2.bf16.msra.mxu0 0
    %8522 = vmatprep.mubr.bf16.mxu0 0
    %8523 = vmatmul.mubr.bf16.gmra.mxu0 %v8489
    %v8524 = vpop.f32.mrf.mxu0
    %v8525 = vadd.f32 0.0, %v8524
    %v8526 = vpop.f32.mrf.mxu0
    %v8527 = vpop.f32.mrf.mxu0
    %v8528 = vpop.f32.mrf.mxu0
    %8529 = vdwg.mxu0
    %v8530 = vpack.c.bf16 %v8525, %v8525
    %8531 = vmatprep.subr.bf16.mxu0 0
    %8532 = vmatpush1.bf16.msra.mxu0 %v158
    %8533 = vmatprep.subr.bf16.mxu0 0
    %8534 = vmatpush1.bf16.msra.mxu0 %v157
    %8535 = vmatprep.subr.bf16.mxu0 0
    %8536 = vmatpush1.bf16.msra.mxu0 %v156
    %8537 = vmatprep.subr.bf16.mxu0 0
    %8538 = vmatpush1.bf16.msra.mxu0 %v155
    %8539 = vmatprep.subr.bf16.mxu0 0
    %8540 = vmatpush1.bf16.msra.mxu0 %v154
    %8541 = vmatprep.subr.bf16.mxu0 0
    %8542 = vmatpush1.bf16.msra.mxu0 %v153
    %8543 = vmatprep.subr.bf16.mxu0 0
    %8544 = vmatpush1.bf16.msra.mxu0 %v152
    %8545 = vmatprep.subr.bf16.mxu0 0
    %8546 = vmatpush1.bf16.msra.mxu0 %v151
    %8547 = vmatprep.subr.bf16.mxu0 0
    %8548 = vmatpush2.bf16.msra.mxu0 0
    %8549 = vmatprep.subr.bf16.mxu0 0
    %8550 = vmatpush2.bf16.msra.mxu0 0
    %8551 = vmatprep.subr.bf16.mxu0 0
    %8552 = vmatpush2.bf16.msra.mxu0 0
    %8553 = vmatprep.subr.bf16.mxu0 0
    %8554 = vmatpush2.bf16.msra.mxu0 0
    %8555 = vmatprep.subr.bf16.mxu0 0
    %8556 = vmatpush2.bf16.msra.mxu0 0
    %8557 = vmatprep.subr.bf16.mxu0 0
    %8558 = vmatpush2.bf16.msra.mxu0 0
    %8559 = vmatprep.subr.bf16.mxu0 0
    %8560 = vmatpush2.bf16.msra.mxu0 0
    %8561 = vmatprep.subr.bf16.mxu0 0
    %8562 = vmatpush2.bf16.msra.mxu0 0
    %8563 = vmatprep.mubr.bf16.mxu0 0
    %8564 = vmatmul.mubr.bf16.gmra.mxu0 %v8530
    %v8565 = vpop.f32.mrf.mxu0
    %v8566 = vadd.f32 0.0, %v8565
    %v8567 = vpop.f32.mrf.mxu0
    %v8568 = vpop.f32.mrf.mxu0
    %v8569 = vpop.f32.mrf.mxu0
    %8570 = vdwg.mxu0
    %v8571 = vtanh.pop %v8566
    %v8572 = vadd.f32 %v8525, %v8571
    %v8573 = vpack.c.bf16 %v8572, %v8572
    %8574 = vmatprep.subr.bf16.mxu0 0
    %8575 = vmatpush1.bf16.msra.mxu0 %v249
    %8576 = vmatprep.subr.bf16.mxu0 0
    %8577 = vmatpush1.bf16.msra.mxu0 %v248
    %8578 = vmatprep.subr.bf16.mxu0 0
    %8579 = vmatpush1.bf16.msra.mxu0 %v247
    %8580 = vmatprep.subr.bf16.mxu0 0
    %8581 = vmatpush1.bf16.msra.mxu0 %v246
    %8582 = vmatprep.subr.bf16.mxu0 0
    %8583 = vmatpush1.bf16.msra.mxu0 %v245
    %8584 = vmatprep.subr.bf16.mxu0 0
    %8585 = vmatpush1.bf16.msra.mxu0 %v244
    %8586 = vmatprep.subr.bf16.mxu0 0
    %8587 = vmatpush1.bf16.msra.mxu0 %v243
    %8588 = vmatprep.subr.bf16.mxu0 0
    %8589 = vmatpush1.bf16.msra.mxu0 %v242
    %8590 = vmatprep.subr.bf16.mxu0 0
    %8591 = vmatpush2.bf16.msra.mxu0 0
    %8592 = vmatprep.subr.bf16.mxu0 0
    %8593 = vmatpush2.bf16.msra.mxu0 0
    %8594 = vmatprep.subr.bf16.mxu0 0
    %8595 = vmatpush2.bf16.msra.mxu0 0
    %8596 = vmatprep.subr.bf16.mxu0 0
    %8597 = vmatpush2.bf16.msra.mxu0 0
    %8598 = vmatprep.subr.bf16.mxu0 0
    %8599 = vmatpush2.bf16.msra.mxu0 0
    %8600 = vmatprep.subr.bf16.mxu0 0
    %8601 = vmatpush2.bf16.msra.mxu0 0
    %8602 = vmatprep.subr.bf16.mxu0 0
    %8603 = vmatpush2.bf16.msra.mxu0 0
    %8604 = vmatprep.subr.bf16.mxu0 0
    %8605 = vmatpush2.bf16.msra.mxu0 0
    %8606 = vmatprep.mubr.bf16.mxu0 0
    %8607 = vmatmul.mubr.bf16.gmra.mxu0 %v8573
    %v8608 = vpop.f32.mrf.mxu0
    %v8609 = vadd.f32 0.0, %v8608
    %v8610 = vpop.f32.mrf.mxu0
    %v8611 = vpop.f32.mrf.mxu0
    %v8612 = vpop.f32.mrf.mxu0
    %8613 = vdwg.mxu0
    %8614 = vst [vmem:[#allocation10] sm:$0xff] %v8609
    %vm8615 = vcmp.lt.s32.totalorder %v91, 4
    %vm8616 = vmand %vm94, %vm8615
    %v8617 = vsel %vm8616, %v8609, 0.0
    %v8618 = vmul.f32 %v8617, %v8617
    %8619 = vadd.xlane.f32.xlu0 %v8618
    %v8620 = vpop.xlane.xlu0 %8619
    %v8621 = vrot.slane %v8620, 4
    %v8622 = vadd.f32 %v8620, %v8621
    %v8623 = vrot.slane %v8622, 2
    %v8624 = vadd.f32 %v8622, %v8623
    %v8625 = vrot.slane %v8624, 1
    %v8626 = vadd.f32 %v8624, %v8625
    %s8627 = vtos %v8626
    %s8628 = scalar_lea.smem [#allocation11], 0
    %8629 = sst [smem:[%s8628]] %s8627
    // Predicated region
    $region26: #{simulate_pallas.1} parent=1 // pred_check
      _
    $region27: #{simulate_pallas.1} parent=1 // pred_check_branch
      %8631 = sbr.rel (0) target = $region29
    $region28: #{simulate_pallas.1} parent=1 // pred_region
      %s8633 = ssub.s32 128, 128
      %8634 = vsyncadd [#allocation4], %s8633
      %s8636 = sshll.u32 [#allocation10], 4
      %s8637 = int_to_ptr.vmem [resolvable:$true] %s8636
      %8639 = dma.vmem_to_hbm [thread:$0]  %s8637, 128, %s3, [#allocation4]
    $region29: #{simulate_pallas.1} parent=1 // pred_fallthru
      _
    // Predicated region
    $region30: #{simulate_pallas.1} parent=1 // pred_check
      _
    $region31: #{simulate_pallas.1} parent=1 // pred_check_branch
      %8641 = sbr.rel (0) target = $region33
    $region32: #{simulate_pallas.1} parent=1 // pred_region
      %s8643 = ssub.s32 16, 16
      %8644 = vsyncadd [#allocation6], %s8643
      %8647 = dma.smem_to_hbm [#allocation11], 16, %s4, [#allocation6]
    $region33: #{simulate_pallas.1} parent=1 // pred_fallthru
      _
    // Predicated region
    $region34: #{simulate_pallas.1} parent=1 // pred_check
      _
    $region35: #{simulate_pallas.1} parent=1 // pred_check_branch
      %8649 = sbr.rel (0) target = $region37
    $region36: #{simulate_pallas.1} parent=1 // pred_region
      %8650 = dma.done [#allocation4], 128
    $region37: #{simulate_pallas.1} parent=1 // pred_fallthru
      _
    // Predicated region
    $region38: #{simulate_pallas.1} parent=1 // pred_check
      _
    $region39: #{simulate_pallas.1} parent=1 // pred_check_branch
      %8652 = sbr.rel (0) target = $region41
    $region40: #{simulate_pallas.1} parent=1 // pred_region
      %8653 = dma.done [#allocation6], 16
    $region41: #{simulate_pallas.1} parent=1 // pred_fallthru
      _
    %8654 = sfence
    %8655 = vsyncpa [#allocation3], 1
    %8656 = vsyncpa [#allocation9], 1
    %8657 = vsyncpa [#allocation4], 1
    %8658 = vsyncpa [#allocation5], 1
    %8659 = vsyncpa [#allocation6], 1

</llo_original>
